<compile_context>
chip_gen: v7x
topology: tpu7x:2x2x1
jax: 0.10.0
libtpu: 0.0.40
codegen_flags: <defaults>
</compile_context>

<pallas_src>
import numpy as np

import jax
import jax.numpy as jnp
from jax.experimental import pallas as pl
from jax.experimental.pallas import tpu as pltpu  # noqa: F401  (kept for TPU-specific tuning hooks)

# ----------------------------- config (small, synthetic) -----------------------------
B = 2            # batch
S = 8            # sequence length
D = 32           # d_model
N_HEADS = 4
HD = D // N_HEADS
HIDDEN = 64      # feed-forward hidden size
N_LAYERS = 2
NUM_CLASSES = 5
C_PAD = 128      # lane-dense padded class count for the logits store
LN_EPS = 1e-5
BH = B * N_HEADS


def _layernorm(x, gamma, beta):
    mu = jnp.mean(x, axis=-1, keepdims=True)
    var = jnp.mean((x - mu) * (x - mu), axis=-1, keepdims=True)
    inv = jax.lax.rsqrt(var + LN_EPS)
    return (x - mu) * inv * gamma + beta


# --------------------------- single fused forward-pass kernel ------------------------
def fused_encoder_kernel(x_ref, mask_ref,
                         wq_ref, bq_ref, wk_ref, bk_ref, wv_ref, bv_ref,
                         wo_ref, bo_ref, w1_ref, b1_ref, w2_ref, b2_ref,
                         g1_ref, be1_ref, g2_ref, be2_ref,
                         gf_ref, bf_ref, wc_ref, bc_ref,
                         out_ref, logits_ref):
    x = x_ref[...]                       # (B*S, D) residual stream, rows fill sublanes
    mask_bias = mask_ref[...]            # (B*H, 1, S) additive key-padding bias

    for l in range(N_LAYERS):            # static unroll; all weights already in VMEM
        # ---- multi-head self-attention: batch & heads folded into one batch dim ----
        xb = jnp.broadcast_to(x.reshape(B, 1, S, D), (B, N_HEADS, S, D)).reshape(BH, S, D)
        q = jnp.einsum('bsd,bde->bse', xb, wq_ref[l],
                       preferred_element_type=jnp.float32) + bq_ref[l]     # scale folded in
        k = jnp.einsum('bsd,bde->bse', xb, wk_ref[l],
                       preferred_element_type=jnp.float32) + bk_ref[l]
        v = jnp.einsum('bsd,bde->bse', xb, wv_ref[l],
                       preferred_element_type=jnp.float32) + bv_ref[l]

        sc = jnp.einsum('bqe,bke->bqk', q, k,
                        preferred_element_type=jnp.float32) + mask_bias    # (BH, S, S)
        sc = sc - jnp.max(sc, axis=-1, keepdims=True)
        p = jnp.exp(sc)
        p = p * pl.reciprocal(jnp.sum(p, axis=-1, keepdims=True), approx=True)

        o = jnp.einsum('bqk,bke->bqe', p, v,
                       preferred_element_type=jnp.float32)                 # (BH, S, hd)
        # per-head output projection + sum over heads == concat(heads) @ Wo
        proj = jnp.einsum('bqe,bed->bqd', o, wo_ref[l],
                          preferred_element_type=jnp.float32)              # (BH, S, D)
        attn = jnp.sum(proj.reshape(B, N_HEADS, S, D), axis=1).reshape(B * S, D) + bo_ref[l]

        # ---- post-norm residual + ReLU feed-forward (nn.TransformerEncoderLayer) ----
        x1 = _layernorm(x + attn, g1_ref[l], be1_ref[l])
        h = jnp.maximum(
            jnp.dot(x1, w1_ref[l], preferred_element_type=jnp.float32) + b1_ref[l], 0.0)
        ff = jnp.dot(h, w2_ref[l], preferred_element_type=jnp.float32) + b2_ref[l]
        x = _layernorm(x1 + ff, g2_ref[l], be2_ref[l])

    # final encoder LayerNorm
    y = _layernorm(x, gf_ref[...], bf_ref[...])
    out_ref[...] = y

    # classifier on CLS token (row 0 of each sequence); classes padded to lane width
    cls = y.reshape(B, S, D)[:, 0, :]                                       # (B, D)
    logits_ref[...] = (jnp.dot(cls, wc_ref[...], preferred_element_type=jnp.float32)
                       + bc_ref[...])


@jax.jit
def modality_encoder_forward(emb, key_padding_mask, stacked, gf, bf, wc_pad, bc_pad):
    # key_padding_mask: bool (B, S), True = padded (PyTorch src_key_padding_mask).
    x2 = emb.reshape(B * S, D)
    mbias = jnp.where(key_padding_mask, jnp.float32(-1e9), jnp.float32(0.0))     # (B, S)
    mask_bh = jnp.broadcast_to(mbias[:, None, None, :],
                               (B, N_HEADS, 1, S)).reshape(BH, 1, S)

    full2, logits_pad = pl.pallas_call(
        fused_encoder_kernel,
        out_shape=(jax.ShapeDtypeStruct((B * S, D), jnp.float32),
                   jax.ShapeDtypeStruct((B, C_PAD), jnp.float32)),
    )(x2, mask_bh,
      stacked["wq"], stacked["bq"], stacked["wk"], stacked["bk"],
      stacked["wv"], stacked["bv"], stacked["wo"], stacked["bo"],
      stacked["w1"], stacked["b1"], stacked["w2"], stacked["b2"],
      stacked["g1"], stacked["be1"], stacked["g2"], stacked["be2"],
      gf.reshape(1, D), bf.reshape(1, D), wc_pad, bc_pad)

    return full2.reshape(B, S, D), logits_pad[:, :NUM_CLASSES]


# ----------------------------- parameter init & preparation --------------------------
def xavier(key, fan_in, fan_out):
    bound = float(np.sqrt(6.0 / (fan_in + fan_out)))
    return jax.random.uniform(key, (fan_in, fan_out), jnp.float32, -bound, bound)


def init_layer_params(key):
    ks = jax.random.split(key, 6)
    z = lambda n: jnp.zeros((n,), jnp.float32)
    return {
        "wq": xavier(ks[0], D, D), "bq": z(D),
        "wk": xavier(ks[1], D, D), "bk": z(D),
        "wv": xavier(ks[2], D, D), "bv": z(D),
        "wo": xavier(ks[3], D, D), "bo": z(D),
        "w1": xavier(ks[4], D, HIDDEN), "b1": z(HIDDEN),
        "w2": xavier(ks[5], HIDDEN, D), "b2": z(D),
        "g1": jnp.ones((D,), jnp.float32), "be1": z(D),
        "g2": jnp.ones((D,), jnp.float32), "be2": z(D),
    }


def prepare_params(layers, wcls, bcls):
    """Stack per-layer weights on a leading layer axis; pre-arrange attention
    weights per (batch*head) so the kernel uses batched dots with no slicing."""
    scale = 1.0 / float(np.sqrt(HD))

    def tile_over_batch(a):                       # (H, ...) -> (B*H, ...)
        return jnp.broadcast_to(a[None], (B,) + a.shape).reshape((BH,) + a.shape[1:])

    keys = ["wq", "bq", "wk", "bk", "wv", "bv", "wo", "bo",
            "w1", "b1", "w2", "b2", "g1", "be1", "g2", "be2"]
    acc = {k: [] for k in keys}
    for p in layers:
        def in_proj(w, b, s):
            wh = (w * s).reshape(D, N_HEADS, HD).transpose(1, 0, 2)   # (H, D, hd)
            bh = (b * s).reshape(N_HEADS, 1, HD)                      # (H, 1, hd)
            return tile_over_batch(wh), tile_over_batch(bh)

        wq, bq = in_proj(p["wq"], p["bq"], scale)    # fold 1/sqrt(hd) into Q proj
        wk, bk = in_proj(p["wk"], p["bk"], 1.0)
        wv, bv = in_proj(p["wv"], p["bv"], 1.0)
        wo = tile_over_batch(p["wo"].reshape(N_HEADS, HD, D))          # (BH, hd, D)

        acc["wq"].append(wq); acc["bq"].append(bq)
        acc["wk"].append(wk); acc["bk"].append(bk)
        acc["wv"].append(wv); acc["bv"].append(bv)
        acc["wo"].append(wo); acc["bo"].append(p["bo"].reshape(1, D))
        acc["w1"].append(p["w1"]); acc["b1"].append(p["b1"].reshape(1, HIDDEN))
        acc["w2"].append(p["w2"]); acc["b2"].append(p["b2"].reshape(1, D))
        acc["g1"].append(p["g1"].reshape(1, D)); acc["be1"].append(p["be1"].reshape(1, D))
        acc["g2"].append(p["g2"].reshape(1, D)); acc["be2"].append(p["be2"].reshape(1, D))
    stacked = {k: jnp.stack(v) for k, v in acc.items()}

    wc_pad = jnp.zeros((D, C_PAD), jnp.float32).at[:, :NUM_CLASSES].set(wcls)
    bc_pad = jnp.zeros((1, C_PAD), jnp.float32).at[:, :NUM_CLASSES].set(bcls)
    return stacked, wc_pad, bc_pad


# --------------------------------- pure-JAX reference --------------------------------
def reference_forward(emb, key_padding_mask, layers, gf, bf, wcls, bcls):
    scale = 1.0 / float(np.sqrt(HD))
    mask_bias = jnp.where(key_padding_mask, jnp.float32(-1e9), jnp.float32(0.0))[:, None, None, :]
    x = emb
    for p in layers:
        q = x @ p["wq"] + p["bq"]
        k = x @ p["wk"] + p["bk"]
        v = x @ p["wv"] + p["bv"]
        split = lambda t: t.reshape(B, S, N_HEADS, HD).transpose(0, 2, 1, 3)
        qh, kh, vh = split(q), split(k), split(v)
        sc = jnp.einsum('bhqe,bhke->bhqk', qh, kh) * scale + mask_bias
        pa = jax.nn.softmax(sc, axis=-1)
        oh = jnp.einsum('bhqk,bhke->bhqe', pa, vh)
        attn = oh.transpose(0, 2, 1, 3).reshape(B, S, D) @ p["wo"] + p["bo"]
        x1 = _layernorm(x + attn, p["g1"], p["be1"])
        ff = jnp.maximum(x1 @ p["w1"] + p["b1"], 0.0) @ p["w2"] + p["b2"]
        x = _layernorm(x1 + ff, p["g2"], p["be2"])
    y = _layernorm(x, gf, bf)
    logits = y[:, 0, :] @ wcls + bcls
    return y, logits


# --------------------------------------- driver --------------------------------------
if __name__ == "__main__":
    key = jax.random.PRNGKey(0)
    k_emb, k_cls, *k_layers = jax.random.split(key, 2 + N_LAYERS)

    # embeddings as produced by the (omitted) modality preprocessor
    emb = jax.random.normal(k_emb, (B, S, D), jnp.float32)
    # pad the last 2 positions of every sequence (CLS token at position 0 is real)
    key_padding_mask = jnp.zeros((B, S), dtype=bool).at[:, S - 2:].set(True)

    layers = [init_layer_params(k) for k in k_layers]
    final_gamma = jnp.ones((D,), jnp.float32)
    final_beta = jnp.zeros((D,), jnp.float32)
    wcls = xavier(k_cls, D, NUM_CLASSES)
    bcls = jnp.zeros((NUM_CLASSES,), jnp.float32)

    stacked, wc_pad, bc_pad = prepare_params(layers, wcls, bcls)

    full_out, logits = modality_encoder_forward(
        emb, key_padding_mask, stacked, final_gamma, final_beta, wc_pad, bc_pad)
    jax.block_until_ready((full_out, logits))

    ref_full, ref_logits = reference_forward(
        emb, key_padding_mask, layers, final_gamma, final_beta, wcls, bcls)

    assert full_out.shape == (B, S, D)
    assert logits.shape == (B, NUM_CLASSES)
    assert jnp.allclose(full_out, ref_full, atol=3e-2, rtol=3e-2)
    assert jnp.allclose(logits, ref_logits, atol=3e-2, rtol=3e-2)
    print("KERNEL_OK")
</pallas_src>

<mosaic_0001>
module attributes {stable_mosaic.version = 11 : i64} {
  func.func @fused_encoder_kernel(%arg0: memref<16x32xf32, #tpu.memory_space<vmem>>, %arg1: memref<8x1x8xf32, #tpu.memory_space<vmem>>, %arg2: memref<2x8x32x8xf32, #tpu.memory_space<vmem>>, %arg3: memref<2x8x1x8xf32, #tpu.memory_space<vmem>>, %arg4: memref<2x8x32x8xf32, #tpu.memory_space<vmem>>, %arg5: memref<2x8x1x8xf32, #tpu.memory_space<vmem>>, %arg6: memref<2x8x32x8xf32, #tpu.memory_space<vmem>>, %arg7: memref<2x8x1x8xf32, #tpu.memory_space<vmem>>, %arg8: memref<2x8x8x32xf32, #tpu.memory_space<vmem>>, %arg9: memref<2x1x32xf32, #tpu.memory_space<vmem>>, %arg10: memref<2x32x64xf32, #tpu.memory_space<vmem>>, %arg11: memref<2x1x64xf32, #tpu.memory_space<vmem>>, %arg12: memref<2x64x32xf32, #tpu.memory_space<vmem>>, %arg13: memref<2x1x32xf32, #tpu.memory_space<vmem>>, %arg14: memref<2x1x32xf32, #tpu.memory_space<vmem>>, %arg15: memref<2x1x32xf32, #tpu.memory_space<vmem>>, %arg16: memref<2x1x32xf32, #tpu.memory_space<vmem>>, %arg17: memref<2x1x32xf32, #tpu.memory_space<vmem>>, %arg18: memref<1x32xf32, #tpu.memory_space<vmem>>, %arg19: memref<1x32xf32, #tpu.memory_space<vmem>>, %arg20: memref<32x128xf32, #tpu.memory_space<vmem>>, %arg21: memref<1x128xf32, #tpu.memory_space<vmem>>, %arg22: memref<16x32xf32, #tpu.memory_space<vmem>>, %arg23: memref<2x128xf32, #tpu.memory_space<vmem>>) attributes {dimension_semantics = [], scalar_prefetch = 0 : i64, scratch_operands = 0 : i64, tpu.core_type = #tpu.core_type<tc>} {
    %c0 = arith.constant 0 : index
    %c0_0 = arith.constant 0 : index
    %0 = vector.load %arg0[%c0, %c0_0] : memref<16x32xf32, #tpu.memory_space<vmem>>, vector<16x32xf32>
    %c0_1 = arith.constant 0 : index
    %c0_2 = arith.constant 0 : index
    %c0_3 = arith.constant 0 : index
    %1 = vector.load %arg1[%c0_1, %c0_2, %c0_3] : memref<8x1x8xf32, #tpu.memory_space<vmem>>, vector<8x1x8xf32>
    %2 = vector.shape_cast %0 : vector<16x32xf32> to vector<2x1x8x32xf32>
    %3 = vector.shape_cast %2 : vector<2x1x8x32xf32> to vector<2x1x8x32xf32>
    %4 = vector.broadcast %3 : vector<2x1x8x32xf32> to vector<2x4x8x32xf32>
    %5 = vector.shape_cast %4 : vector<2x4x8x32xf32> to vector<8x8x32xf32>
    %c0_4 = arith.constant 0 : index
    %c0_5 = arith.constant 0 : index
    %c0_6 = arith.constant 0 : index
    %c0_7 = arith.constant 0 : index
    %6 = vector.load %arg2[%c0_4, %c0_5, %c0_6, %c0_7] : memref<2x8x32x8xf32, #tpu.memory_space<vmem>>, vector<1x8x32x8xf32>
    %7 = vector.shape_cast %6 : vector<1x8x32x8xf32> to vector<8x32x8xf32>
    "tpu.trace_start"() <{level = 10 : i32, message = "bsd,bde->bse"}> : () -> ()
    %cst = arith.constant dense<0.000000e+00> : vector<8x8x8xf32>
    %8 = tpu.matmul %5, %7, %cst {dimension_numbers = #tpu.dot_dimension_numbers<[2], [1], [1], [2], [0, 0, 0, 1, 1, 2], [0], [0]>} : vector<8x8x32xf32>, vector<8x32x8xf32>, vector<8x8x8xf32> -> vector<8x8x8xf32>
    "tpu.trace_stop"() : () -> ()
    %c0_8 = arith.constant 0 : index
    %c0_9 = arith.constant 0 : index
    %c0_10 = arith.constant 0 : index
    %c0_11 = arith.constant 0 : index
    %9 = vector.load %arg3[%c0_8, %c0_9, %c0_10, %c0_11] : memref<2x8x1x8xf32, #tpu.memory_space<vmem>>, vector<1x8x1x8xf32>
    %10 = vector.shape_cast %9 : vector<1x8x1x8xf32> to vector<8x1x8xf32>
    %11 = vector.broadcast %10 : vector<8x1x8xf32> to vector<8x8x8xf32>
    %12 = arith.addf %8, %11 : vector<8x8x8xf32>
    %c0_12 = arith.constant 0 : index
    %c0_13 = arith.constant 0 : index
    %c0_14 = arith.constant 0 : index
    %c0_15 = arith.constant 0 : index
    %13 = vector.load %arg4[%c0_12, %c0_13, %c0_14, %c0_15] : memref<2x8x32x8xf32, #tpu.memory_space<vmem>>, vector<1x8x32x8xf32>
    %14 = vector.shape_cast %13 : vector<1x8x32x8xf32> to vector<8x32x8xf32>
    "tpu.trace_start"() <{level = 10 : i32, message = "bsd,bde->bse"}> : () -> ()
    %cst_16 = arith.constant dense<0.000000e+00> : vector<8x8x8xf32>
    %15 = tpu.matmul %5, %14, %cst_16 {dimension_numbers = #tpu.dot_dimension_numbers<[2], [1], [1], [2], [0, 0, 0, 1, 1, 2], [0], [0]>} : vector<8x8x32xf32>, vector<8x32x8xf32>, vector<8x8x8xf32> -> vector<8x8x8xf32>
    "tpu.trace_stop"() : () -> ()
    %c0_17 = arith.constant 0 : index
    %c0_18 = arith.constant 0 : index
    %c0_19 = arith.constant 0 : index
    %c0_20 = arith.constant 0 : index
    %16 = vector.load %arg5[%c0_17, %c0_18, %c0_19, %c0_20] : memref<2x8x1x8xf32, #tpu.memory_space<vmem>>, vector<1x8x1x8xf32>
    %17 = vector.shape_cast %16 : vector<1x8x1x8xf32> to vector<8x1x8xf32>
    %18 = vector.broadcast %17 : vector<8x1x8xf32> to vector<8x8x8xf32>
    %19 = arith.addf %15, %18 : vector<8x8x8xf32>
    %c0_21 = arith.constant 0 : index
    %c0_22 = arith.constant 0 : index
    %c0_23 = arith.constant 0 : index
    %c0_24 = arith.constant 0 : index
    %20 = vector.load %arg6[%c0_21, %c0_22, %c0_23, %c0_24] : memref<2x8x32x8xf32, #tpu.memory_space<vmem>>, vector<1x8x32x8xf32>
    %21 = vector.shape_cast %20 : vector<1x8x32x8xf32> to vector<8x32x8xf32>
    "tpu.trace_start"() <{level = 10 : i32, message = "bsd,bde->bse"}> : () -> ()
    %cst_25 = arith.constant dense<0.000000e+00> : vector<8x8x8xf32>
    %22 = tpu.matmul %5, %21, %cst_25 {dimension_numbers = #tpu.dot_dimension_numbers<[2], [1], [1], [2], [0, 0, 0, 1, 1, 2], [0], [0]>} : vector<8x8x32xf32>, vector<8x32x8xf32>, vector<8x8x8xf32> -> vector<8x8x8xf32>
    "tpu.trace_stop"() : () -> ()
    %c0_26 = arith.constant 0 : index
    %c0_27 = arith.constant 0 : index
    %c0_28 = arith.constant 0 : index
    %c0_29 = arith.constant 0 : index
    %23 = vector.load %arg7[%c0_26, %c0_27, %c0_28, %c0_29] : memref<2x8x1x8xf32, #tpu.memory_space<vmem>>, vector<1x8x1x8xf32>
    %24 = vector.shape_cast %23 : vector<1x8x1x8xf32> to vector<8x1x8xf32>
    %25 = vector.broadcast %24 : vector<8x1x8xf32> to vector<8x8x8xf32>
    %26 = arith.addf %22, %25 : vector<8x8x8xf32>
    "tpu.trace_start"() <{level = 10 : i32, message = "bqe,bke->bqk"}> : () -> ()
    %cst_30 = arith.constant dense<0.000000e+00> : vector<8x8x8xf32>
    %27 = tpu.matmul %12, %19, %cst_30 {dimension_numbers = #tpu.dot_dimension_numbers<[2], [2], [1], [1], [0, 0, 0, 1, 1, 1], [0], [0]>} : vector<8x8x8xf32>, vector<8x8x8xf32>, vector<8x8x8xf32> -> vector<8x8x8xf32>
    "tpu.trace_stop"() : () -> ()
    %28 = vector.broadcast %1 : vector<8x1x8xf32> to vector<8x8x8xf32>
    %29 = arith.addf %27, %28 : vector<8x8x8xf32>
    %cst_31 = arith.constant dense<0xFF800000> : vector<8x8xf32>
    %30 = vector.multi_reduction <maximumf>, %29, %cst_31 [2] : vector<8x8x8xf32> to vector<8x8xf32>
    %31 = vector.shape_cast %30 : vector<8x8xf32> to vector<8x8x1xf32>
    %32 = vector.broadcast %31 : vector<8x8x1xf32> to vector<8x8x8xf32>
    %33 = arith.subf %29, %32 : vector<8x8x8xf32>
    %34 = math.exp %33 : vector<8x8x8xf32>
    %cst_32 = arith.constant dense<0.000000e+00> : vector<8x8xf32>
    %35 = vector.multi_reduction <add>, %34, %cst_32 [2] : vector<8x8x8xf32> to vector<8x8xf32>
    %36 = vector.shape_cast %35 : vector<8x8xf32> to vector<8x8x1xf32>
    %37 = tpu.reciprocal %36 {approx = true} : vector<8x8x1xf32> -> vector<8x8x1xf32>
    %38 = vector.broadcast %37 : vector<8x8x1xf32> to vector<8x8x8xf32>
    %39 = arith.mulf %34, %38 : vector<8x8x8xf32>
    "tpu.trace_start"() <{level = 10 : i32, message = "bqk,bke->bqe"}> : () -> ()
    %cst_33 = arith.constant dense<0.000000e+00> : vector<8x8x8xf32>
    %40 = tpu.matmul %39, %26, %cst_33 {dimension_numbers = #tpu.dot_dimension_numbers<[2], [1], [1], [2], [0, 0, 0, 1, 1, 2], [0], [0]>} : vector<8x8x8xf32>, vector<8x8x8xf32>, vector<8x8x8xf32> -> vector<8x8x8xf32>
    "tpu.trace_stop"() : () -> ()
    %c0_34 = arith.constant 0 : index
    %c0_35 = arith.constant 0 : index
    %c0_36 = arith.constant 0 : index
    %c0_37 = arith.constant 0 : index
    %41 = vector.load %arg8[%c0_34, %c0_35, %c0_36, %c0_37] : memref<2x8x8x32xf32, #tpu.memory_space<vmem>>, vector<1x8x8x32xf32>
    %42 = vector.shape_cast %41 : vector<1x8x8x32xf32> to vector<8x8x32xf32>
    "tpu.trace_start"() <{level = 10 : i32, message = "bqe,bed->bqd"}> : () -> ()
    %cst_38 = arith.constant dense<0.000000e+00> : vector<8x8x32xf32>
    %43 = tpu.matmul %40, %42, %cst_38 {dimension_numbers = #tpu.dot_dimension_numbers<[2], [1], [1], [2], [0, 0, 0, 1, 1, 2], [0], [0]>} : vector<8x8x8xf32>, vector<8x8x32xf32>, vector<8x8x32xf32> -> vector<8x8x32xf32>
    "tpu.trace_stop"() : () -> ()
    %44 = vector.shape_cast %43 : vector<8x8x32xf32> to vector<2x4x8x32xf32>
    %cst_39 = arith.constant dense<0.000000e+00> : vector<2x8x32xf32>
    %45 = vector.multi_reduction <add>, %44, %cst_39 [1] : vector<2x4x8x32xf32> to vector<2x8x32xf32>
    %46 = vector.shape_cast %45 : vector<2x8x32xf32> to vector<16x32xf32>
    %c0_40 = arith.constant 0 : index
    %c0_41 = arith.constant 0 : index
    %c0_42 = arith.constant 0 : index
    %47 = vector.load %arg9[%c0_40, %c0_41, %c0_42] : memref<2x1x32xf32, #tpu.memory_space<vmem>>, vector<1x1x32xf32>
    %48 = vector.shape_cast %47 : vector<1x1x32xf32> to vector<1x32xf32>
    %49 = vector.broadcast %48 : vector<1x32xf32> to vector<16x32xf32>
    %50 = arith.addf %46, %49 : vector<16x32xf32>
    %51 = arith.addf %0, %50 : vector<16x32xf32>
    %c0_43 = arith.constant 0 : index
    %c0_44 = arith.constant 0 : index
    %c0_45 = arith.constant 0 : index
    %52 = vector.load %arg14[%c0_43, %c0_44, %c0_45] : memref<2x1x32xf32, #tpu.memory_space<vmem>>, vector<1x1x32xf32>
    %53 = vector.shape_cast %52 : vector<1x1x32xf32> to vector<1x32xf32>
    %c0_46 = arith.constant 0 : index
    %c0_47 = arith.constant 0 : index
    %c0_48 = arith.constant 0 : index
    %54 = vector.load %arg15[%c0_46, %c0_47, %c0_48] : memref<2x1x32xf32, #tpu.memory_space<vmem>>, vector<1x1x32xf32>
    %55 = vector.shape_cast %54 : vector<1x1x32xf32> to vector<1x32xf32>
    %cst_49 = arith.constant dense<0.000000e+00> : vector<16xf32>
    %56 = vector.multi_reduction <add>, %51, %cst_49 [1] : vector<16x32xf32> to vector<16xf32>
    %57 = vector.shape_cast %56 : vector<16xf32> to vector<16x1xf32>
    %cst_50 = arith.constant 3.200000e+01 : f32
    %58 = vector.broadcast %cst_50 : f32 to vector<16x1xf32>
    %59 = arith.divf %57, %58 : vector<16x1xf32>
    %60 = vector.broadcast %59 : vector<16x1xf32> to vector<16x32xf32>
    %61 = arith.subf %51, %60 : vector<16x32xf32>
    %62 = vector.broadcast %59 : vector<16x1xf32> to vector<16x32xf32>
    %63 = arith.subf %51, %62 : vector<16x32xf32>
    %64 = arith.mulf %61, %63 : vector<16x32xf32>
    %cst_51 = arith.constant dense<0.000000e+00> : vector<16xf32>
    %65 = vector.multi_reduction <add>, %64, %cst_51 [1] : vector<16x32xf32> to vector<16xf32>
    %66 = vector.shape_cast %65 : vector<16xf32> to vector<16x1xf32>
    %cst_52 = arith.constant 3.200000e+01 : f32
    %67 = vector.broadcast %cst_52 : f32 to vector<16x1xf32>
    %68 = arith.divf %66, %67 : vector<16x1xf32>
    %cst_53 = arith.constant 9.99999974E-6 : f32
    %69 = vector.broadcast %cst_53 : f32 to vector<16x1xf32>
    %70 = arith.addf %68, %69 : vector<16x1xf32>
    %71 = math.rsqrt %70 : vector<16x1xf32>
    %72 = vector.broadcast %59 : vector<16x1xf32> to vector<16x32xf32>
    %73 = arith.subf %51, %72 : vector<16x32xf32>
    %74 = vector.broadcast %71 : vector<16x1xf32> to vector<16x32xf32>
    %75 = arith.mulf %73, %74 : vector<16x32xf32>
    %76 = vector.broadcast %53 : vector<1x32xf32> to vector<16x32xf32>
    %77 = arith.mulf %75, %76 : vector<16x32xf32>
    %78 = vector.broadcast %55 : vector<1x32xf32> to vector<16x32xf32>
    %79 = arith.addf %77, %78 : vector<16x32xf32>
    %c0_54 = arith.constant 0 : index
    %c0_55 = arith.constant 0 : index
    %c0_56 = arith.constant 0 : index
    %80 = vector.load %arg10[%c0_54, %c0_55, %c0_56] : memref<2x32x64xf32, #tpu.memory_space<vmem>>, vector<1x32x64xf32>
    %81 = vector.shape_cast %80 : vector<1x32x64xf32> to vector<32x64xf32>
    %cst_57 = arith.constant dense<0.000000e+00> : vector<16x64xf32>
    %82 = tpu.matmul %79, %81, %cst_57 {dimension_numbers = #tpu.dot_dimension_numbers<[1], [0], [0], [1], [0, 0, 1, 1], [], []>} : vector<16x32xf32>, vector<32x64xf32>, vector<16x64xf32> -> vector<16x64xf32>
    %c0_58 = arith.constant 0 : index
    %c0_59 = arith.constant 0 : index
    %c0_60 = arith.constant 0 : index
    %83 = vector.load %arg11[%c0_58, %c0_59, %c0_60] : memref<2x1x64xf32, #tpu.memory_space<vmem>>, vector<1x1x64xf32>
    %84 = vector.shape_cast %83 : vector<1x1x64xf32> to vector<1x64xf32>
    %85 = vector.broadcast %84 : vector<1x64xf32> to vector<16x64xf32>
    %86 = arith.addf %82, %85 : vector<16x64xf32>
    %cst_61 = arith.constant 0.000000e+00 : f32
    %87 = vector.broadcast %cst_61 : f32 to vector<16x64xf32>
    %88 = arith.maximumf %86, %87 : vector<16x64xf32>
    %c0_62 = arith.constant 0 : index
    %c0_63 = arith.constant 0 : index
    %c0_64 = arith.constant 0 : index
    %89 = vector.load %arg12[%c0_62, %c0_63, %c0_64] : memref<2x64x32xf32, #tpu.memory_space<vmem>>, vector<1x64x32xf32>
    %90 = vector.shape_cast %89 : vector<1x64x32xf32> to vector<64x32xf32>
    %cst_65 = arith.constant dense<0.000000e+00> : vector<16x32xf32>
    %91 = tpu.matmul %88, %90, %cst_65 {dimension_numbers = #tpu.dot_dimension_numbers<[1], [0], [0], [1], [0, 0, 1, 1], [], []>} : vector<16x64xf32>, vector<64x32xf32>, vector<16x32xf32> -> vector<16x32xf32>
    %c0_66 = arith.constant 0 : index
    %c0_67 = arith.constant 0 : index
    %c0_68 = arith.constant 0 : index
    %92 = vector.load %arg13[%c0_66, %c0_67, %c0_68] : memref<2x1x32xf32, #tpu.memory_space<vmem>>, vector<1x1x32xf32>
    %93 = vector.shape_cast %92 : vector<1x1x32xf32> to vector<1x32xf32>
    %94 = vector.broadcast %93 : vector<1x32xf32> to vector<16x32xf32>
    %95 = arith.addf %91, %94 : vector<16x32xf32>
    %96 = arith.addf %79, %95 : vector<16x32xf32>
    %c0_69 = arith.constant 0 : index
    %c0_70 = arith.constant 0 : index
    %c0_71 = arith.constant 0 : index
    %97 = vector.load %arg16[%c0_69, %c0_70, %c0_71] : memref<2x1x32xf32, #tpu.memory_space<vmem>>, vector<1x1x32xf32>
    %98 = vector.shape_cast %97 : vector<1x1x32xf32> to vector<1x32xf32>
    %c0_72 = arith.constant 0 : index
    %c0_73 = arith.constant 0 : index
    %c0_74 = arith.constant 0 : index
    %99 = vector.load %arg17[%c0_72, %c0_73, %c0_74] : memref<2x1x32xf32, #tpu.memory_space<vmem>>, vector<1x1x32xf32>
    %100 = vector.shape_cast %99 : vector<1x1x32xf32> to vector<1x32xf32>
    %cst_75 = arith.constant dense<0.000000e+00> : vector<16xf32>
    %101 = vector.multi_reduction <add>, %96, %cst_75 [1] : vector<16x32xf32> to vector<16xf32>
    %102 = vector.shape_cast %101 : vector<16xf32> to vector<16x1xf32>
    %cst_76 = arith.constant 3.200000e+01 : f32
    %103 = vector.broadcast %cst_76 : f32 to vector<16x1xf32>
    %104 = arith.divf %102, %103 : vector<16x1xf32>
    %105 = vector.broadcast %104 : vector<16x1xf32> to vector<16x32xf32>
    %106 = arith.subf %96, %105 : vector<16x32xf32>
    %107 = vector.broadcast %104 : vector<16x1xf32> to vector<16x32xf32>
    %108 = arith.subf %96, %107 : vector<16x32xf32>
    %109 = arith.mulf %106, %108 : vector<16x32xf32>
    %cst_77 = arith.constant dense<0.000000e+00> : vector<16xf32>
    %110 = vector.multi_reduction <add>, %109, %cst_77 [1] : vector<16x32xf32> to vector<16xf32>
    %111 = vector.shape_cast %110 : vector<16xf32> to vector<16x1xf32>
    %cst_78 = arith.constant 3.200000e+01 : f32
    %112 = vector.broadcast %cst_78 : f32 to vector<16x1xf32>
    %113 = arith.divf %111, %112 : vector<16x1xf32>
    %cst_79 = arith.constant 9.99999974E-6 : f32
    %114 = vector.broadcast %cst_79 : f32 to vector<16x1xf32>
    %115 = arith.addf %113, %114 : vector<16x1xf32>
    %116 = math.rsqrt %115 : vector<16x1xf32>
    %117 = vector.broadcast %104 : vector<16x1xf32> to vector<16x32xf32>
    %118 = arith.subf %96, %117 : vector<16x32xf32>
    %119 = vector.broadcast %116 : vector<16x1xf32> to vector<16x32xf32>
    %120 = arith.mulf %118, %119 : vector<16x32xf32>
    %121 = vector.broadcast %98 : vector<1x32xf32> to vector<16x32xf32>
    %122 = arith.mulf %120, %121 : vector<16x32xf32>
    %123 = vector.broadcast %100 : vector<1x32xf32> to vector<16x32xf32>
    %124 = arith.addf %122, %123 : vector<16x32xf32>
    %125 = vector.shape_cast %124 : vector<16x32xf32> to vector<2x1x8x32xf32>
    %126 = vector.shape_cast %125 : vector<2x1x8x32xf32> to vector<2x1x8x32xf32>
    %127 = vector.broadcast %126 : vector<2x1x8x32xf32> to vector<2x4x8x32xf32>
    %128 = vector.shape_cast %127 : vector<2x4x8x32xf32> to vector<8x8x32xf32>
    %c1 = arith.constant 1 : index
    %c0_80 = arith.constant 0 : index
    %c0_81 = arith.constant 0 : index
    %c0_82 = arith.constant 0 : index
    %129 = vector.load %arg2[%c1, %c0_80, %c0_81, %c0_82] : memref<2x8x32x8xf32, #tpu.memory_space<vmem>>, vector<1x8x32x8xf32>
    %130 = vector.shape_cast %129 : vector<1x8x32x8xf32> to vector<8x32x8xf32>
    "tpu.trace_start"() <{level = 10 : i32, message = "bsd,bde->bse"}> : () -> ()
    %cst_83 = arith.constant dense<0.000000e+00> : vector<8x8x8xf32>
    %131 = tpu.matmul %128, %130, %cst_83 {dimension_numbers = #tpu.dot_dimension_numbers<[2], [1], [1], [2], [0, 0, 0, 1, 1, 2], [0], [0]>} : vector<8x8x32xf32>, vector<8x32x8xf32>, vector<8x8x8xf32> -> vector<8x8x8xf32>
    "tpu.trace_stop"() : () -> ()
    %c1_84 = arith.constant 1 : index
    %c0_85 = arith.constant 0 : index
    %c0_86 = arith.constant 0 : index
    %c0_87 = arith.constant 0 : index
    %132 = vector.load %arg3[%c1_84, %c0_85, %c0_86, %c0_87] : memref<2x8x1x8xf32, #tpu.memory_space<vmem>>, vector<1x8x1x8xf32>
    %133 = vector.shape_cast %132 : vector<1x8x1x8xf32> to vector<8x1x8xf32>
    %134 = vector.broadcast %133 : vector<8x1x8xf32> to vector<8x8x8xf32>
    %135 = arith.addf %131, %134 : vector<8x8x8xf32>
    %c1_88 = arith.constant 1 : index
    %c0_89 = arith.constant 0 : index
    %c0_90 = arith.constant 0 : index
    %c0_91 = arith.constant 0 : index
    %136 = vector.load %arg4[%c1_88, %c0_89, %c0_90, %c0_91] : memref<2x8x32x8xf32, #tpu.memory_space<vmem>>, vector<1x8x32x8xf32>
    %137 = vector.shape_cast %136 : vector<1x8x32x8xf32> to vector<8x32x8xf32>
    "tpu.trace_start"() <{level = 10 : i32, message = "bsd,bde->bse"}> : () -> ()
    %cst_92 = arith.constant dense<0.000000e+00> : vector<8x8x8xf32>
    %138 = tpu.matmul %128, %137, %cst_92 {dimension_numbers = #tpu.dot_dimension_numbers<[2], [1], [1], [2], [0, 0, 0, 1, 1, 2], [0], [0]>} : vector<8x8x32xf32>, vector<8x32x8xf32>, vector<8x8x8xf32> -> vector<8x8x8xf32>
    "tpu.trace_stop"() : () -> ()
    %c1_93 = arith.constant 1 : index
    %c0_94 = arith.constant 0 : index
    %c0_95 = arith.constant 0 : index
    %c0_96 = arith.constant 0 : index
    %139 = vector.load %arg5[%c1_93, %c0_94, %c0_95, %c0_96] : memref<2x8x1x8xf32, #tpu.memory_space<vmem>>, vector<1x8x1x8xf32>
    %140 = vector.shape_cast %139 : vector<1x8x1x8xf32> to vector<8x1x8xf32>
    %141 = vector.broadcast %140 : vector<8x1x8xf32> to vector<8x8x8xf32>
    %142 = arith.addf %138, %141 : vector<8x8x8xf32>
    %c1_97 = arith.constant 1 : index
    %c0_98 = arith.constant 0 : index
    %c0_99 = arith.constant 0 : index
    %c0_100 = arith.constant 0 : index
    %143 = vector.load %arg6[%c1_97, %c0_98, %c0_99, %c0_100] : memref<2x8x32x8xf32, #tpu.memory_space<vmem>>, vector<1x8x32x8xf32>
    %144 = vector.shape_cast %143 : vector<1x8x32x8xf32> to vector<8x32x8xf32>
    "tpu.trace_start"() <{level = 10 : i32, message = "bsd,bde->bse"}> : () -> ()
    %cst_101 = arith.constant dense<0.000000e+00> : vector<8x8x8xf32>
    %145 = tpu.matmul %128, %144, %cst_101 {dimension_numbers = #tpu.dot_dimension_numbers<[2], [1], [1], [2], [0, 0, 0, 1, 1, 2], [0], [0]>} : vector<8x8x32xf32>, vector<8x32x8xf32>, vector<8x8x8xf32> -> vector<8x8x8xf32>
    "tpu.trace_stop"() : () -> ()
    %c1_102 = arith.constant 1 : index
    %c0_103 = arith.constant 0 : index
    %c0_104 = arith.constant 0 : index
    %c0_105 = arith.constant 0 : index
    %146 = vector.load %arg7[%c1_102, %c0_103, %c0_104, %c0_105] : memref<2x8x1x8xf32, #tpu.memory_space<vmem>>, vector<1x8x1x8xf32>
    %147 = vector.shape_cast %146 : vector<1x8x1x8xf32> to vector<8x1x8xf32>
    %148 = vector.broadcast %147 : vector<8x1x8xf32> to vector<8x8x8xf32>
    %149 = arith.addf %145, %148 : vector<8x8x8xf32>
    "tpu.trace_start"() <{level = 10 : i32, message = "bqe,bke->bqk"}> : () -> ()
    %cst_106 = arith.constant dense<0.000000e+00> : vector<8x8x8xf32>
    %150 = tpu.matmul %135, %142, %cst_106 {dimension_numbers = #tpu.dot_dimension_numbers<[2], [2], [1], [1], [0, 0, 0, 1, 1, 1], [0], [0]>} : vector<8x8x8xf32>, vector<8x8x8xf32>, vector<8x8x8xf32> -> vector<8x8x8xf32>
    "tpu.trace_stop"() : () -> ()
    %151 = vector.broadcast %1 : vector<8x1x8xf32> to vector<8x8x8xf32>
    %152 = arith.addf %150, %151 : vector<8x8x8xf32>
    %cst_107 = arith.constant dense<0xFF800000> : vector<8x8xf32>
    %153 = vector.multi_reduction <maximumf>, %152, %cst_107 [2] : vector<8x8x8xf32> to vector<8x8xf32>
    %154 = vector.shape_cast %153 : vector<8x8xf32> to vector<8x8x1xf32>
    %155 = vector.broadcast %154 : vector<8x8x1xf32> to vector<8x8x8xf32>
    %156 = arith.subf %152, %155 : vector<8x8x8xf32>
    %157 = math.exp %156 : vector<8x8x8xf32>
    %cst_108 = arith.constant dense<0.000000e+00> : vector<8x8xf32>
    %158 = vector.multi_reduction <add>, %157, %cst_108 [2] : vector<8x8x8xf32> to vector<8x8xf32>
    %159 = vector.shape_cast %158 : vector<8x8xf32> to vector<8x8x1xf32>
    %160 = tpu.reciprocal %159 {approx = true} : vector<8x8x1xf32> -> vector<8x8x1xf32>
    %161 = vector.broadcast %160 : vector<8x8x1xf32> to vector<8x8x8xf32>
    %162 = arith.mulf %157, %161 : vector<8x8x8xf32>
    "tpu.trace_start"() <{level = 10 : i32, message = "bqk,bke->bqe"}> : () -> ()
    %cst_109 = arith.constant dense<0.000000e+00> : vector<8x8x8xf32>
    %163 = tpu.matmul %162, %149, %cst_109 {dimension_numbers = #tpu.dot_dimension_numbers<[2], [1], [1], [2], [0, 0, 0, 1, 1, 2], [0], [0]>} : vector<8x8x8xf32>, vector<8x8x8xf32>, vector<8x8x8xf32> -> vector<8x8x8xf32>
    "tpu.trace_stop"() : () -> ()
    %c1_110 = arith.constant 1 : index
    %c0_111 = arith.constant 0 : index
    %c0_112 = arith.constant 0 : index
    %c0_113 = arith.constant 0 : index
    %164 = vector.load %arg8[%c1_110, %c0_111, %c0_112, %c0_113] : memref<2x8x8x32xf32, #tpu.memory_space<vmem>>, vector<1x8x8x32xf32>
    %165 = vector.shape_cast %164 : vector<1x8x8x32xf32> to vector<8x8x32xf32>
    "tpu.trace_start"() <{level = 10 : i32, message = "bqe,bed->bqd"}> : () -> ()
    %cst_114 = arith.constant dense<0.000000e+00> : vector<8x8x32xf32>
    %166 = tpu.matmul %163, %165, %cst_114 {dimension_numbers = #tpu.dot_dimension_numbers<[2], [1], [1], [2], [0, 0, 0, 1, 1, 2], [0], [0]>} : vector<8x8x8xf32>, vector<8x8x32xf32>, vector<8x8x32xf32> -> vector<8x8x32xf32>
    "tpu.trace_stop"() : () -> ()
    %167 = vector.shape_cast %166 : vector<8x8x32xf32> to vector<2x4x8x32xf32>
    %cst_115 = arith.constant dense<0.000000e+00> : vector<2x8x32xf32>
    %168 = vector.multi_reduction <add>, %167, %cst_115 [1] : vector<2x4x8x32xf32> to vector<2x8x32xf32>
    %169 = vector.shape_cast %168 : vector<2x8x32xf32> to vector<16x32xf32>
    %c1_116 = arith.constant 1 : index
    %c0_117 = arith.constant 0 : index
    %c0_118 = arith.constant 0 : index
    %170 = vector.load %arg9[%c1_116, %c0_117, %c0_118] : memref<2x1x32xf32, #tpu.memory_space<vmem>>, vector<1x1x32xf32>
    %171 = vector.shape_cast %170 : vector<1x1x32xf32> to vector<1x32xf32>
    %172 = vector.broadcast %171 : vector<1x32xf32> to vector<16x32xf32>
    %173 = arith.addf %169, %172 : vector<16x32xf32>
    %174 = arith.addf %124, %173 : vector<16x32xf32>
    %c1_119 = arith.constant 1 : index
    %c0_120 = arith.constant 0 : index
    %c0_121 = arith.constant 0 : index
    %175 = vector.load %arg14[%c1_119, %c0_120, %c0_121] : memref<2x1x32xf32, #tpu.memory_space<vmem>>, vector<1x1x32xf32>
    %176 = vector.shape_cast %175 : vector<1x1x32xf32> to vector<1x32xf32>
    %c1_122 = arith.constant 1 : index
    %c0_123 = arith.constant 0 : index
    %c0_124 = arith.constant 0 : index
    %177 = vector.load %arg15[%c1_122, %c0_123, %c0_124] : memref<2x1x32xf32, #tpu.memory_space<vmem>>, vector<1x1x32xf32>
    %178 = vector.shape_cast %177 : vector<1x1x32xf32> to vector<1x32xf32>
    %cst_125 = arith.constant dense<0.000000e+00> : vector<16xf32>
    %179 = vector.multi_reduction <add>, %174, %cst_125 [1] : vector<16x32xf32> to vector<16xf32>
    %180 = vector.shape_cast %179 : vector<16xf32> to vector<16x1xf32>
    %cst_126 = arith.constant 3.200000e+01 : f32
    %181 = vector.broadcast %cst_126 : f32 to vector<16x1xf32>
    %182 = arith.divf %180, %181 : vector<16x1xf32>
    %183 = vector.broadcast %182 : vector<16x1xf32> to vector<16x32xf32>
    %184 = arith.subf %174, %183 : vector<16x32xf32>
    %185 = vector.broadcast %182 : vector<16x1xf32> to vector<16x32xf32>
    %186 = arith.subf %174, %185 : vector<16x32xf32>
    %187 = arith.mulf %184, %186 : vector<16x32xf32>
    %cst_127 = arith.constant dense<0.000000e+00> : vector<16xf32>
    %188 = vector.multi_reduction <add>, %187, %cst_127 [1] : vector<16x32xf32> to vector<16xf32>
    %189 = vector.shape_cast %188 : vector<16xf32> to vector<16x1xf32>
    %cst_128 = arith.constant 3.200000e+01 : f32
    %190 = vector.broadcast %cst_128 : f32 to vector<16x1xf32>
    %191 = arith.divf %189, %190 : vector<16x1xf32>
    %cst_129 = arith.constant 9.99999974E-6 : f32
    %192 = vector.broadcast %cst_129 : f32 to vector<16x1xf32>
    %193 = arith.addf %191, %192 : vector<16x1xf32>
    %194 = math.rsqrt %193 : vector<16x1xf32>
    %195 = vector.broadcast %182 : vector<16x1xf32> to vector<16x32xf32>
    %196 = arith.subf %174, %195 : vector<16x32xf32>
    %197 = vector.broadcast %194 : vector<16x1xf32> to vector<16x32xf32>
    %198 = arith.mulf %196, %197 : vector<16x32xf32>
    %199 = vector.broadcast %176 : vector<1x32xf32> to vector<16x32xf32>
    %200 = arith.mulf %198, %199 : vector<16x32xf32>
    %201 = vector.broadcast %178 : vector<1x32xf32> to vector<16x32xf32>
    %202 = arith.addf %200, %201 : vector<16x32xf32>
    %c1_130 = arith.constant 1 : index
    %c0_131 = arith.constant 0 : index
    %c0_132 = arith.constant 0 : index
    %203 = vector.load %arg10[%c1_130, %c0_131, %c0_132] : memref<2x32x64xf32, #tpu.memory_space<vmem>>, vector<1x32x64xf32>
    %204 = vector.shape_cast %203 : vector<1x32x64xf32> to vector<32x64xf32>
    %cst_133 = arith.constant dense<0.000000e+00> : vector<16x64xf32>
    %205 = tpu.matmul %202, %204, %cst_133 {dimension_numbers = #tpu.dot_dimension_numbers<[1], [0], [0], [1], [0, 0, 1, 1], [], []>} : vector<16x32xf32>, vector<32x64xf32>, vector<16x64xf32> -> vector<16x64xf32>
    %c1_134 = arith.constant 1 : index
    %c0_135 = arith.constant 0 : index
    %c0_136 = arith.constant 0 : index
    %206 = vector.load %arg11[%c1_134, %c0_135, %c0_136] : memref<2x1x64xf32, #tpu.memory_space<vmem>>, vector<1x1x64xf32>
    %207 = vector.shape_cast %206 : vector<1x1x64xf32> to vector<1x64xf32>
    %208 = vector.broadcast %207 : vector<1x64xf32> to vector<16x64xf32>
    %209 = arith.addf %205, %208 : vector<16x64xf32>
    %cst_137 = arith.constant 0.000000e+00 : f32
    %210 = vector.broadcast %cst_137 : f32 to vector<16x64xf32>
    %211 = arith.maximumf %209, %210 : vector<16x64xf32>
    %c1_138 = arith.constant 1 : index
    %c0_139 = arith.constant 0 : index
    %c0_140 = arith.constant 0 : index
    %212 = vector.load %arg12[%c1_138, %c0_139, %c0_140] : memref<2x64x32xf32, #tpu.memory_space<vmem>>, vector<1x64x32xf32>
    %213 = vector.shape_cast %212 : vector<1x64x32xf32> to vector<64x32xf32>
    %cst_141 = arith.constant dense<0.000000e+00> : vector<16x32xf32>
    %214 = tpu.matmul %211, %213, %cst_141 {dimension_numbers = #tpu.dot_dimension_numbers<[1], [0], [0], [1], [0, 0, 1, 1], [], []>} : vector<16x64xf32>, vector<64x32xf32>, vector<16x32xf32> -> vector<16x32xf32>
    %c1_142 = arith.constant 1 : index
    %c0_143 = arith.constant 0 : index
    %c0_144 = arith.constant 0 : index
    %215 = vector.load %arg13[%c1_142, %c0_143, %c0_144] : memref<2x1x32xf32, #tpu.memory_space<vmem>>, vector<1x1x32xf32>
    %216 = vector.shape_cast %215 : vector<1x1x32xf32> to vector<1x32xf32>
    %217 = vector.broadcast %216 : vector<1x32xf32> to vector<16x32xf32>
    %218 = arith.addf %214, %217 : vector<16x32xf32>
    %219 = arith.addf %202, %218 : vector<16x32xf32>
    %c1_145 = arith.constant 1 : index
    %c0_146 = arith.constant 0 : index
    %c0_147 = arith.constant 0 : index
    %220 = vector.load %arg16[%c1_145, %c0_146, %c0_147] : memref<2x1x32xf32, #tpu.memory_space<vmem>>, vector<1x1x32xf32>
    %221 = vector.shape_cast %220 : vector<1x1x32xf32> to vector<1x32xf32>
    %c1_148 = arith.constant 1 : index
    %c0_149 = arith.constant 0 : index
    %c0_150 = arith.constant 0 : index
    %222 = vector.load %arg17[%c1_148, %c0_149, %c0_150] : memref<2x1x32xf32, #tpu.memory_space<vmem>>, vector<1x1x32xf32>
    %223 = vector.shape_cast %222 : vector<1x1x32xf32> to vector<1x32xf32>
    %cst_151 = arith.constant dense<0.000000e+00> : vector<16xf32>
    %224 = vector.multi_reduction <add>, %219, %cst_151 [1] : vector<16x32xf32> to vector<16xf32>
    %225 = vector.shape_cast %224 : vector<16xf32> to vector<16x1xf32>
    %cst_152 = arith.constant 3.200000e+01 : f32
    %226 = vector.broadcast %cst_152 : f32 to vector<16x1xf32>
    %227 = arith.divf %225, %226 : vector<16x1xf32>
    %228 = vector.broadcast %227 : vector<16x1xf32> to vector<16x32xf32>
    %229 = arith.subf %219, %228 : vector<16x32xf32>
    %230 = vector.broadcast %227 : vector<16x1xf32> to vector<16x32xf32>
    %231 = arith.subf %219, %230 : vector<16x32xf32>
    %232 = arith.mulf %229, %231 : vector<16x32xf32>
    %cst_153 = arith.constant dense<0.000000e+00> : vector<16xf32>
    %233 = vector.multi_reduction <add>, %232, %cst_153 [1] : vector<16x32xf32> to vector<16xf32>
    %234 = vector.shape_cast %233 : vector<16xf32> to vector<16x1xf32>
    %cst_154 = arith.constant 3.200000e+01 : f32
    %235 = vector.broadcast %cst_154 : f32 to vector<16x1xf32>
    %236 = arith.divf %234, %235 : vector<16x1xf32>
    %cst_155 = arith.constant 9.99999974E-6 : f32
    %237 = vector.broadcast %cst_155 : f32 to vector<16x1xf32>
    %238 = arith.addf %236, %237 : vector<16x1xf32>
    %239 = math.rsqrt %238 : vector<16x1xf32>
    %240 = vector.broadcast %227 : vector<16x1xf32> to vector<16x32xf32>
    %241 = arith.subf %219, %240 : vector<16x32xf32>
    %242 = vector.broadcast %239 : vector<16x1xf32> to vector<16x32xf32>
    %243 = arith.mulf %241, %242 : vector<16x32xf32>
    %244 = vector.broadcast %221 : vector<1x32xf32> to vector<16x32xf32>
    %245 = arith.mulf %243, %244 : vector<16x32xf32>
    %246 = vector.broadcast %223 : vector<1x32xf32> to vector<16x32xf32>
    %247 = arith.addf %245, %246 : vector<16x32xf32>
    %c0_156 = arith.constant 0 : index
    %c0_157 = arith.constant 0 : index
    %248 = vector.load %arg18[%c0_156, %c0_157] : memref<1x32xf32, #tpu.memory_space<vmem>>, vector<1x32xf32>
    %c0_158 = arith.constant 0 : index
    %c0_159 = arith.constant 0 : index
    %249 = vector.load %arg19[%c0_158, %c0_159] : memref<1x32xf32, #tpu.memory_space<vmem>>, vector<1x32xf32>
    %cst_160 = arith.constant dense<0.000000e+00> : vector<16xf32>
    %250 = vector.multi_reduction <add>, %247, %cst_160 [1] : vector<16x32xf32> to vector<16xf32>
    %251 = vector.shape_cast %250 : vector<16xf32> to vector<16x1xf32>
    %cst_161 = arith.constant 3.200000e+01 : f32
    %252 = vector.broadcast %cst_161 : f32 to vector<16x1xf32>
    %253 = arith.divf %251, %252 : vector<16x1xf32>
    %254 = vector.broadcast %253 : vector<16x1xf32> to vector<16x32xf32>
    %255 = arith.subf %247, %254 : vector<16x32xf32>
    %256 = vector.broadcast %253 : vector<16x1xf32> to vector<16x32xf32>
    %257 = arith.subf %247, %256 : vector<16x32xf32>
    %258 = arith.mulf %255, %257 : vector<16x32xf32>
    %cst_162 = arith.constant dense<0.000000e+00> : vector<16xf32>
    %259 = vector.multi_reduction <add>, %258, %cst_162 [1] : vector<16x32xf32> to vector<16xf32>
    %260 = vector.shape_cast %259 : vector<16xf32> to vector<16x1xf32>
    %cst_163 = arith.constant 3.200000e+01 : f32
    %261 = vector.broadcast %cst_163 : f32 to vector<16x1xf32>
    %262 = arith.divf %260, %261 : vector<16x1xf32>
    %cst_164 = arith.constant 9.99999974E-6 : f32
    %263 = vector.broadcast %cst_164 : f32 to vector<16x1xf32>
    %264 = arith.addf %262, %263 : vector<16x1xf32>
    %265 = math.rsqrt %264 : vector<16x1xf32>
    %266 = vector.broadcast %253 : vector<16x1xf32> to vector<16x32xf32>
    %267 = arith.subf %247, %266 : vector<16x32xf32>
    %268 = vector.broadcast %265 : vector<16x1xf32> to vector<16x32xf32>
    %269 = arith.mulf %267, %268 : vector<16x32xf32>
    %270 = vector.broadcast %248 : vector<1x32xf32> to vector<16x32xf32>
    %271 = arith.mulf %269, %270 : vector<16x32xf32>
    %272 = vector.broadcast %249 : vector<1x32xf32> to vector<16x32xf32>
    %273 = arith.addf %271, %272 : vector<16x32xf32>
    %c0_165 = arith.constant 0 : index
    %c0_166 = arith.constant 0 : index
    %274 = vector.load %arg22[%c0_165, %c0_166] : memref<16x32xf32, #tpu.memory_space<vmem>>, vector<16x32xf32>
    tpu.vector_store %arg22[%c0_165, %c0_166], %273 {strides = array<i32>} : memref<16x32xf32, #tpu.memory_space<vmem>>, vector<16x32xf32>,
    %275 = vector.shape_cast %273 : vector<16x32xf32> to vector<2x8x32xf32>
    %276 = vector.extract_strided_slice %275 {offsets = [0, 0, 0], sizes = [2, 1, 32], strides = [1, 1, 1]} : vector<2x8x32xf32> to vector<2x1x32xf32>
    %277 = vector.shape_cast %276 : vector<2x1x32xf32> to vector<2x32xf32>
    %c0_167 = arith.constant 0 : index
    %c0_168 = arith.constant 0 : index
    %278 = vector.load %arg20[%c0_167, %c0_168] : memref<32x128xf32, #tpu.memory_space<vmem>>, vector<32x128xf32>
    %cst_169 = arith.constant dense<0.000000e+00> : vector<2x128xf32>
    %279 = tpu.matmul %277, %278, %cst_169 {dimension_numbers = #tpu.dot_dimension_numbers<[1], [0], [0], [1], [0, 0, 1, 1], [], []>} : vector<2x32xf32>, vector<32x128xf32>, vector<2x128xf32> -> vector<2x128xf32>
    %c0_170 = arith.constant 0 : index
    %c0_171 = arith.constant 0 : index
    %280 = vector.load %arg21[%c0_170, %c0_171] : memref<1x128xf32, #tpu.memory_space<vmem>>, vector<1x128xf32>
    %281 = vector.broadcast %280 : vector<1x128xf32> to vector<2x128xf32>
    %282 = arith.addf %279, %281 : vector<2x128xf32>
    %c0_172 = arith.constant 0 : index
    %c0_173 = arith.constant 0 : index
    %283 = vector.load %arg23[%c0_172, %c0_173] : memref<2x128xf32, #tpu.memory_space<vmem>>, vector<2x128xf32>
    tpu.vector_store %arg23[%c0_172, %c0_173], %282 {strides = array<i32>} : memref<2x128xf32, #tpu.memory_space<vmem>>, vector<2x128xf32>,
    return
  }
}

</mosaic_0001>

<llo_original>
// kernel: modality_encoder_forward.1
$region0: #{modality_encoder_forward.1}
  #allocation0 [shape = 'u32[]', space=smem, size = 0x4, offset = 0x4, fixed_abs, tag = 'smem constant byte address 0x4 - core index']
  #allocation1 [shape = 'u32[144,128]{1,0:T(1,128)}', space=vmem, size = 0x12000, scoped, tag = 'internal scratch']
  %s0 = inlined_call_operand.vmem [shape: f32[16,32], index: 0, kind: input, shape index: {}]
  %s1 = inlined_call_operand.vmem [shape: f32[8,1,8], index: 1, kind: input, shape index: {}]
  %s2 = inlined_call_operand.vmem [shape: f32[2,8,32,8], index: 2, kind: input, shape index: {}]
  %s3 = inlined_call_operand.vmem [shape: f32[2,8,1,8], index: 3, kind: input, shape index: {}]
  %s4 = inlined_call_operand.vmem [shape: f32[2,8,32,8], index: 4, kind: input, shape index: {}]
  %s5 = inlined_call_operand.vmem [shape: f32[2,8,1,8], index: 5, kind: input, shape index: {}]
  %s6 = inlined_call_operand.vmem [shape: f32[2,8,32,8], index: 6, kind: input, shape index: {}]
  %s7 = inlined_call_operand.vmem [shape: f32[2,8,1,8], index: 7, kind: input, shape index: {}]
  %s8 = inlined_call_operand.vmem [shape: f32[2,8,8,32], index: 8, kind: input, shape index: {}]
  %s9 = inlined_call_operand.vmem [shape: f32[2,1,32], index: 9, kind: input, shape index: {}]
  %s10 = inlined_call_operand.vmem [shape: f32[2,32,64], index: 10, kind: input, shape index: {}]
  %s11 = inlined_call_operand.vmem [shape: f32[2,1,64], index: 11, kind: input, shape index: {}]
  %s12 = inlined_call_operand.vmem [shape: f32[2,64,32], index: 12, kind: input, shape index: {}]
  %s13 = inlined_call_operand.vmem [shape: f32[2,1,32], index: 13, kind: input, shape index: {}]
  %s14 = inlined_call_operand.vmem [shape: f32[2,1,32], index: 14, kind: input, shape index: {}]
  %s15 = inlined_call_operand.vmem [shape: f32[2,1,32], index: 15, kind: input, shape index: {}]
  %s16 = inlined_call_operand.vmem [shape: f32[2,1,32], index: 16, kind: input, shape index: {}]
  %s17 = inlined_call_operand.vmem [shape: f32[2,1,32], index: 17, kind: input, shape index: {}]
  %s18 = inlined_call_operand.vmem [shape: f32[1,32], index: 18, kind: input, shape index: {}]
  %s19 = inlined_call_operand.vmem [shape: f32[1,32], index: 19, kind: input, shape index: {}]
  %s20 = inlined_call_operand.vmem [shape: f32[32,128], index: 20, kind: input, shape index: {}]
  %s21 = inlined_call_operand.vmem [shape: f32[1,128], index: 21, kind: input, shape index: {}]
  %s22 = inlined_call_operand.hbm [shape: f32[16,32], index: 22, kind: output, shape index: {0}]
  %s23 = inlined_call_operand.hbm [shape: f32[2,128], index: 23, kind: output, shape index: {1}]
  %24 = xla_tuple %s22, %s23
  %s25 = sld [smem:[#allocation0]]
  $region106: #{modality_encoder_forward.1} parent=0
    _
  %s27 = ssub.s32 1, %s25
  %s28 = scalar_select 0, %s27, %s25
  $region1: #{modality_encoder_forward.1} parent=0
    #allocation2 [shape = 'u8[8192]{0}', space=vmem, size = 0x2000, scoped, tag = 'output window, operand 0, single buffered']
    #allocation3 [shape = 's32[1]{0}', space=sflag, size = 0x4, scoped, tag = 'scoped memory for modality_encoder_forward.1']
    #allocation4 [shape = 'u8[1024]{0}', space=vmem, size = 0x400, scoped, tag = 'output window, operand 1, single buffered']
    #allocation5 [shape = 's32[1]{0}', space=sflag, size = 0x4, scoped, tag = 'scoped memory for modality_encoder_forward.1']
    %29 = vsyncpa [#allocation3], 0
    %30 = vsyncpa [#allocation5], 0
    // Predicated region
    $region2: #{modality_encoder_forward.1} parent=1 // pred_check
      _
    $region3: #{modality_encoder_forward.1} parent=1 // pred_check_branch
      %32 = sbr.rel (0) target = $region5
    $region4: #{modality_encoder_forward.1} parent=1 // pred_region
      _
    $region5: #{modality_encoder_forward.1} parent=1 // pred_fallthru
      _
    // Predicated region
    $region6: #{modality_encoder_forward.1} parent=1 // pred_check
      _
    $region7: #{modality_encoder_forward.1} parent=1 // pred_check_branch
      %34 = sbr.rel (0) target = $region9
    $region8: #{modality_encoder_forward.1} parent=1 // pred_region
      _
    $region9: #{modality_encoder_forward.1} parent=1 // pred_fallthru
      _
    // Predicated region
    $region10: #{modality_encoder_forward.1} parent=1 // pred_check
      _
    $region11: #{modality_encoder_forward.1} parent=1 // pred_check_branch
      %36 = sbr.rel (0) target = $region13
    $region12: #{modality_encoder_forward.1} parent=1 // pred_region
      _
    $region13: #{modality_encoder_forward.1} parent=1 // pred_fallthru
      _
    // Predicated region
    $region14: #{modality_encoder_forward.1} parent=1 // pred_check
      _
    $region15: #{modality_encoder_forward.1} parent=1 // pred_check_branch
      %38 = sbr.rel (0) target = $region17
    $region16: #{modality_encoder_forward.1} parent=1 // pred_region
      _
    $region17: #{modality_encoder_forward.1} parent=1 // pred_fallthru
      _
    // Predicated region
    $region18: #{modality_encoder_forward.1} parent=1 // pred_check
      _
    $region19: #{modality_encoder_forward.1} parent=1 // pred_check_branch
      %40 = sbr.rel (0) target = $region21
    $region20: #{modality_encoder_forward.1} parent=1 // pred_region
      _
    $region21: #{modality_encoder_forward.1} parent=1 // pred_fallthru
      _
    // Predicated region
    $region22: #{modality_encoder_forward.1} parent=1 // pred_check
      _
    $region23: #{modality_encoder_forward.1} parent=1 // pred_check_branch
      %42 = sbr.rel (0) target = $region25
    $region24: #{modality_encoder_forward.1} parent=1 // pred_region
      _
    $region25: #{modality_encoder_forward.1} parent=1 // pred_fallthru
      _
    // Predicated region
    $region26: #{modality_encoder_forward.1} parent=1 // pred_check
      _
    $region27: #{modality_encoder_forward.1} parent=1 // pred_check_branch
      %44 = sbr.rel (0) target = $region29
    $region28: #{modality_encoder_forward.1} parent=1 // pred_region
      _
    $region29: #{modality_encoder_forward.1} parent=1 // pred_fallthru
      _
    // Predicated region
    $region30: #{modality_encoder_forward.1} parent=1 // pred_check
      _
    $region31: #{modality_encoder_forward.1} parent=1 // pred_check_branch
      %46 = sbr.rel (0) target = $region33
    $region32: #{modality_encoder_forward.1} parent=1 // pred_region
      _
    $region33: #{modality_encoder_forward.1} parent=1 // pred_fallthru
      _
    // Predicated region
    $region34: #{modality_encoder_forward.1} parent=1 // pred_check
      _
    $region35: #{modality_encoder_forward.1} parent=1 // pred_check_branch
      %48 = sbr.rel (0) target = $region37
    $region36: #{modality_encoder_forward.1} parent=1 // pred_region
      _
    $region37: #{modality_encoder_forward.1} parent=1 // pred_fallthru
      _
    // Predicated region
    $region38: #{modality_encoder_forward.1} parent=1 // pred_check
      _
    $region39: #{modality_encoder_forward.1} parent=1 // pred_check_branch
      %50 = sbr.rel (0) target = $region41
    $region40: #{modality_encoder_forward.1} parent=1 // pred_region
      _
    $region41: #{modality_encoder_forward.1} parent=1 // pred_fallthru
      _
    // Predicated region
    $region42: #{modality_encoder_forward.1} parent=1 // pred_check
      _
    $region43: #{modality_encoder_forward.1} parent=1 // pred_check_branch
      %52 = sbr.rel (0) target = $region45
    $region44: #{modality_encoder_forward.1} parent=1 // pred_region
      _
    $region45: #{modality_encoder_forward.1} parent=1 // pred_fallthru
      _
    // Predicated region
    $region46: #{modality_encoder_forward.1} parent=1 // pred_check
      _
    $region47: #{modality_encoder_forward.1} parent=1 // pred_check_branch
      %54 = sbr.rel (0) target = $region49
    $region48: #{modality_encoder_forward.1} parent=1 // pred_region
      _
    $region49: #{modality_encoder_forward.1} parent=1 // pred_fallthru
      _
    // Predicated region
    $region50: #{modality_encoder_forward.1} parent=1 // pred_check
      _
    $region51: #{modality_encoder_forward.1} parent=1 // pred_check_branch
      %56 = sbr.rel (0) target = $region53
    $region52: #{modality_encoder_forward.1} parent=1 // pred_region
      _
    $region53: #{modality_encoder_forward.1} parent=1 // pred_fallthru
      _
    // Predicated region
    $region54: #{modality_encoder_forward.1} parent=1 // pred_check
      _
    $region55: #{modality_encoder_forward.1} parent=1 // pred_check_branch
      %58 = sbr.rel (0) target = $region57
    $region56: #{modality_encoder_forward.1} parent=1 // pred_region
      _
    $region57: #{modality_encoder_forward.1} parent=1 // pred_fallthru
      _
    // Predicated region
    $region58: #{modality_encoder_forward.1} parent=1 // pred_check
      _
    $region59: #{modality_encoder_forward.1} parent=1 // pred_check_branch
      %60 = sbr.rel (0) target = $region61
    $region60: #{modality_encoder_forward.1} parent=1 // pred_region
      _
    $region61: #{modality_encoder_forward.1} parent=1 // pred_fallthru
      _
    // Predicated region
    $region62: #{modality_encoder_forward.1} parent=1 // pred_check
      _
    $region63: #{modality_encoder_forward.1} parent=1 // pred_check_branch
      %62 = sbr.rel (0) target = $region65
    $region64: #{modality_encoder_forward.1} parent=1 // pred_region
      _
    $region65: #{modality_encoder_forward.1} parent=1 // pred_fallthru
      _
    // Predicated region
    $region66: #{modality_encoder_forward.1} parent=1 // pred_check
      _
    $region67: #{modality_encoder_forward.1} parent=1 // pred_check_branch
      %64 = sbr.rel (0) target = $region69
    $region68: #{modality_encoder_forward.1} parent=1 // pred_region
      _
    $region69: #{modality_encoder_forward.1} parent=1 // pred_fallthru
      _
    // Predicated region
    $region70: #{modality_encoder_forward.1} parent=1 // pred_check
      _
    $region71: #{modality_encoder_forward.1} parent=1 // pred_check_branch
      %66 = sbr.rel (0) target = $region73
    $region72: #{modality_encoder_forward.1} parent=1 // pred_region
      _
    $region73: #{modality_encoder_forward.1} parent=1 // pred_fallthru
      _
    // Predicated region
    $region74: #{modality_encoder_forward.1} parent=1 // pred_check
      _
    $region75: #{modality_encoder_forward.1} parent=1 // pred_check_branch
      %68 = sbr.rel (0) target = $region77
    $region76: #{modality_encoder_forward.1} parent=1 // pred_region
      _
    $region77: #{modality_encoder_forward.1} parent=1 // pred_fallthru
      _
    // Predicated region
    $region78: #{modality_encoder_forward.1} parent=1 // pred_check
      _
    $region79: #{modality_encoder_forward.1} parent=1 // pred_check_branch
      %70 = sbr.rel (0) target = $region81
    $region80: #{modality_encoder_forward.1} parent=1 // pred_region
      _
    $region81: #{modality_encoder_forward.1} parent=1 // pred_fallthru
      _
    // Predicated region
    $region82: #{modality_encoder_forward.1} parent=1 // pred_check
      _
    $region83: #{modality_encoder_forward.1} parent=1 // pred_check_branch
      %72 = sbr.rel (0) target = $region85
    $region84: #{modality_encoder_forward.1} parent=1 // pred_region
      _
    $region85: #{modality_encoder_forward.1} parent=1 // pred_fallthru
      _
    // Predicated region
    $region86: #{modality_encoder_forward.1} parent=1 // pred_check
      _
    $region87: #{modality_encoder_forward.1} parent=1 // pred_check_branch
      %74 = sbr.rel (0) target = $region89
    $region88: #{modality_encoder_forward.1} parent=1 // pred_region
      _
    $region89: #{modality_encoder_forward.1} parent=1 // pred_fallthru
      _
    %v75 = vld [vmem:[%s0] sm:$0xff]
    %v76 = vld [vmem:[%s0 + $0x8] sm:$0xff]
    %v77 = vld [vmem:[%s1] sm:$0x1]
    %v78 = vld [vmem:[%s1 + $0x1] sm:$0x1]
    %v79 = vld [vmem:[%s1 + $0x2] sm:$0x1]
    %v80 = vld [vmem:[%s1 + $0x3] sm:$0x1]
    %v81 = vld [vmem:[%s1 + $0x4] sm:$0x1]
    %v82 = vld [vmem:[%s1 + $0x5] sm:$0x1]
    %v83 = vld [vmem:[%s1 + $0x6] sm:$0x1]
    %v84 = vld [vmem:[%s1 + $0x7] sm:$0x1]
    %v85 = vld [vmem:[%s2] sm:$0xff]
    %v86 = vld [vmem:[%s2 + $0x8] sm:$0xff]
    %v87 = vld [vmem:[%s2 + $0x10] sm:$0xff]
    %v88 = vld [vmem:[%s2 + $0x18] sm:$0xff]
    %v89 = vld [vmem:[%s2 + $0x20] sm:$0xff]
    %v90 = vld [vmem:[%s2 + $0x28] sm:$0xff]
    %v91 = vld [vmem:[%s2 + $0x30] sm:$0xff]
    %v92 = vld [vmem:[%s2 + $0x38] sm:$0xff]
    %v93 = vld [vmem:[%s2 + $0x40] sm:$0xff]
    %v94 = vld [vmem:[%s2 + $0x48] sm:$0xff]
    %v95 = vld [vmem:[%s2 + $0x50] sm:$0xff]
    %v96 = vld [vmem:[%s2 + $0x58] sm:$0xff]
    %v97 = vld [vmem:[%s2 + $0x60] sm:$0xff]
    %v98 = vld [vmem:[%s2 + $0x68] sm:$0xff]
    %v99 = vld [vmem:[%s2 + $0x70] sm:$0xff]
    %v100 = vld [vmem:[%s2 + $0x78] sm:$0xff]
    %v101 = vld [vmem:[%s2 + $0x80] sm:$0xff]
    %v102 = vld [vmem:[%s2 + $0x88] sm:$0xff]
    %v103 = vld [vmem:[%s2 + $0x90] sm:$0xff]
    %v104 = vld [vmem:[%s2 + $0x98] sm:$0xff]
    %v105 = vld [vmem:[%s2 + $0xa0] sm:$0xff]
    %v106 = vld [vmem:[%s2 + $0xa8] sm:$0xff]
    %v107 = vld [vmem:[%s2 + $0xb0] sm:$0xff]
    %v108 = vld [vmem:[%s2 + $0xb8] sm:$0xff]
    %v109 = vld [vmem:[%s2 + $0xc0] sm:$0xff]
    %v110 = vld [vmem:[%s2 + $0xc8] sm:$0xff]
    %v111 = vld [vmem:[%s2 + $0xd0] sm:$0xff]
    %v112 = vld [vmem:[%s2 + $0xd8] sm:$0xff]
    %v113 = vld [vmem:[%s2 + $0xe0] sm:$0xff]
    %v114 = vld [vmem:[%s2 + $0xe8] sm:$0xff]
    %v115 = vld [vmem:[%s2 + $0xf0] sm:$0xff]
    %v116 = vld [vmem:[%s2 + $0xf8] sm:$0xff]
    %v117 = vld [vmem:[%s3] sm:$0x1]
    %v118 = vld [vmem:[%s3 + $0x1] sm:$0x1]
    %v119 = vld [vmem:[%s3 + $0x2] sm:$0x1]
    %v120 = vld [vmem:[%s3 + $0x3] sm:$0x1]
    %v121 = vld [vmem:[%s3 + $0x4] sm:$0x1]
    %v122 = vld [vmem:[%s3 + $0x5] sm:$0x1]
    %v123 = vld [vmem:[%s3 + $0x6] sm:$0x1]
    %v124 = vld [vmem:[%s3 + $0x7] sm:$0x1]
    %v133 = vlaneseq
    %v134 = vshrl.u32 %v133, 7
    %v135 = vsub.s32 0, %v134
    %v136 = vrot.slane %v117, %v135
    %v137 = vlaneseq
    %v138 = vshrl.u32 %v137, 7
    %v139 = vsub.s32 0, %v138
    %v140 = vrot.slane %v118, %v139
    %v141 = vlaneseq
    %v142 = vshrl.u32 %v141, 7
    %v143 = vsub.s32 0, %v142
    %v144 = vrot.slane %v119, %v143
    %v145 = vlaneseq
    %v146 = vshrl.u32 %v145, 7
    %v147 = vsub.s32 0, %v146
    %v148 = vrot.slane %v120, %v147
    %v149 = vlaneseq
    %v150 = vshrl.u32 %v149, 7
    %v151 = vsub.s32 0, %v150
    %v152 = vrot.slane %v121, %v151
    %v153 = vlaneseq
    %v154 = vshrl.u32 %v153, 7
    %v155 = vsub.s32 0, %v154
    %v156 = vrot.slane %v122, %v155
    %v157 = vlaneseq
    %v158 = vshrl.u32 %v157, 7
    %v159 = vsub.s32 0, %v158
    %v160 = vrot.slane %v123, %v159
    %v161 = vlaneseq
    %v162 = vshrl.u32 %v161, 7
    %v163 = vsub.s32 0, %v162
    %v164 = vrot.slane %v124, %v163
    %vm173 = vcmask 261120
    %v175 = vsel %vm173, %v75, 0
    %177 = vmatprep.subr.mxu0 0.0
    %178 = vmatpush1.msra.mxu0 %v85
    %179 = vmatprep.subr.mxu0 0.0
    %180 = vmatpush1.msra.mxu0 %v86
    %181 = vmatprep.subr.mxu0 0.0
    %182 = vmatpush1.msra.mxu0 %v87
    %183 = vmatprep.subr.mxu0 0.0
    %184 = vmatpush1.msra.mxu0 %v88
    %185 = vmatprep.subr.mxu0 0.0
    %186 = vmatpush1.msra.mxu0 0.0
    %187 = vmatprep.subr.mxu0 0.0
    %188 = vmatpush1.msra.mxu0 0.0
    %189 = vmatprep.subr.mxu0 0.0
    %190 = vmatpush1.msra.mxu0 0.0
    %191 = vmatprep.subr.mxu0 0.0
    %192 = vmatpush1.msra.mxu0 0.0
    %193 = vmatprep.subr.mxu0 0.0
    %194 = vmatpush1.msra.mxu0 0.0
    %195 = vmatprep.subr.mxu0 0.0
    %196 = vmatpush1.msra.mxu0 0.0
    %197 = vmatprep.subr.mxu0 0.0
    %198 = vmatpush1.msra.mxu0 0.0
    %199 = vmatprep.subr.mxu0 0.0
    %200 = vmatpush1.msra.mxu0 0.0
    %201 = vmatprep.subr.mxu0 0.0
    %202 = vmatpush1.msra.mxu0 0.0
    %203 = vmatprep.subr.mxu0 0.0
    %204 = vmatpush1.msra.mxu0 0.0
    %205 = vmatprep.subr.mxu0 0.0
    %206 = vmatpush1.msra.mxu0 0.0
    %207 = vmatprep.subr.mxu0 0.0
    %208 = vmatpush1.msra.mxu0 0.0
    %209 = vmatprep.subr.mxu0 0.0
    %210 = vmatpush1.msra.mxu0 0.0
    %211 = vmatprep.subr.mxu0 0.0
    %212 = vmatpush1.msra.mxu0 0.0
    %213 = vmatprep.subr.mxu0 0.0
    %214 = vmatpush1.msra.mxu0 0.0
    %215 = vmatprep.subr.mxu0 0.0
    %216 = vmatpush1.msra.mxu0 0.0
    %217 = vmatprep.subr.mxu0 0.0
    %218 = vmatpush1.msra.mxu0 0.0
    %219 = vmatprep.subr.mxu0 0.0
    %220 = vmatpush1.msra.mxu0 0.0
    %221 = vmatprep.subr.mxu0 0.0
    %222 = vmatpush1.msra.mxu0 0.0
    %223 = vmatprep.subr.mxu0 0.0
    %224 = vmatpush1.msra.mxu0 0.0
    %225 = vmatprep.subr.mxu0 0.0
    %226 = vmatpush1.msra.mxu0 0.0
    %227 = vmatprep.subr.mxu0 0.0
    %228 = vmatpush1.msra.mxu0 0.0
    %229 = vmatprep.subr.mxu0 0.0
    %230 = vmatpush1.msra.mxu0 0.0
    %231 = vmatprep.subr.mxu0 0.0
    %232 = vmatpush1.msra.mxu0 0.0
    %233 = vmatprep.subr.mxu0 0.0
    %234 = vmatpush1.msra.mxu0 0.0
    %235 = vmatprep.subr.mxu0 0.0
    %236 = vmatpush1.msra.mxu0 0.0
    %237 = vmatprep.subr.mxu0 0.0
    %238 = vmatpush1.msra.mxu0 0.0
    %239 = vmatprep.subr.mxu0 0.0
    %240 = vmatpush1.msra.mxu0 0.0
    %241 = vmatprep.mubr.f32.mxu0 0.0
    %242 = vmatmul.mubr.f32.gmra.mrb[0].mxu0 %v175
    %v243 = vpop.f32.mrb[0].mxu0
    %v244 = vadd.f32 %v136, %v243
    %v245 = vpop.f32.mrb[0].mxu0
    %246 = vdwg.mxu0
    %247 = vmatprep.subr.mxu0 0.0
    %248 = vmatpush1.msra.mxu0 %v89
    %249 = vmatprep.subr.mxu0 0.0
    %250 = vmatpush1.msra.mxu0 %v90
    %251 = vmatprep.subr.mxu0 0.0
    %252 = vmatpush1.msra.mxu0 %v91
    %253 = vmatprep.subr.mxu0 0.0
    %254 = vmatpush1.msra.mxu0 %v92
    %255 = vmatprep.subr.mxu0 0.0
    %256 = vmatpush1.msra.mxu0 0.0
    %257 = vmatprep.subr.mxu0 0.0
    %258 = vmatpush1.msra.mxu0 0.0
    %259 = vmatprep.subr.mxu0 0.0
    %260 = vmatpush1.msra.mxu0 0.0
    %261 = vmatprep.subr.mxu0 0.0
    %262 = vmatpush1.msra.mxu0 0.0
    %263 = vmatprep.subr.mxu0 0.0
    %264 = vmatpush1.msra.mxu0 0.0
    %265 = vmatprep.subr.mxu0 0.0
    %266 = vmatpush1.msra.mxu0 0.0
    %267 = vmatprep.subr.mxu0 0.0
    %268 = vmatpush1.msra.mxu0 0.0
    %269 = vmatprep.subr.mxu0 0.0
    %270 = vmatpush1.msra.mxu0 0.0
    %271 = vmatprep.subr.mxu0 0.0
    %272 = vmatpush1.msra.mxu0 0.0
    %273 = vmatprep.subr.mxu0 0.0
    %274 = vmatpush1.msra.mxu0 0.0
    %275 = vmatprep.subr.mxu0 0.0
    %276 = vmatpush1.msra.mxu0 0.0
    %277 = vmatprep.subr.mxu0 0.0
    %278 = vmatpush1.msra.mxu0 0.0
    %279 = vmatprep.subr.mxu0 0.0
    %280 = vmatpush1.msra.mxu0 0.0
    %281 = vmatprep.subr.mxu0 0.0
    %282 = vmatpush1.msra.mxu0 0.0
    %283 = vmatprep.subr.mxu0 0.0
    %284 = vmatpush1.msra.mxu0 0.0
    %285 = vmatprep.subr.mxu0 0.0
    %286 = vmatpush1.msra.mxu0 0.0
    %287 = vmatprep.subr.mxu0 0.0
    %288 = vmatpush1.msra.mxu0 0.0
    %289 = vmatprep.subr.mxu0 0.0
    %290 = vmatpush1.msra.mxu0 0.0
    %291 = vmatprep.subr.mxu0 0.0
    %292 = vmatpush1.msra.mxu0 0.0
    %293 = vmatprep.subr.mxu0 0.0
    %294 = vmatpush1.msra.mxu0 0.0
    %295 = vmatprep.subr.mxu0 0.0
    %296 = vmatpush1.msra.mxu0 0.0
    %297 = vmatprep.subr.mxu0 0.0
    %298 = vmatpush1.msra.mxu0 0.0
    %299 = vmatprep.subr.mxu0 0.0
    %300 = vmatpush1.msra.mxu0 0.0
    %301 = vmatprep.subr.mxu0 0.0
    %302 = vmatpush1.msra.mxu0 0.0
    %303 = vmatprep.subr.mxu0 0.0
    %304 = vmatpush1.msra.mxu0 0.0
    %305 = vmatprep.subr.mxu0 0.0
    %306 = vmatpush1.msra.mxu0 0.0
    %307 = vmatprep.subr.mxu0 0.0
    %308 = vmatpush1.msra.mxu0 0.0
    %309 = vmatprep.subr.mxu0 0.0
    %310 = vmatpush1.msra.mxu0 0.0
    %311 = vmatprep.mubr.f32.mxu0 0.0
    %312 = vmatmul.mubr.f32.gmra.mrb[0].mxu0 %v175
    %v313 = vpop.f32.mrb[0].mxu0
    %v314 = vadd.f32 %v140, %v313
    %v315 = vpop.f32.mrb[0].mxu0
    %316 = vdwg.mxu0
    %317 = vmatprep.subr.mxu0 0.0
    %318 = vmatpush1.msra.mxu0 %v93
    %319 = vmatprep.subr.mxu0 0.0
    %320 = vmatpush1.msra.mxu0 %v94
    %321 = vmatprep.subr.mxu0 0.0
    %322 = vmatpush1.msra.mxu0 %v95
    %323 = vmatprep.subr.mxu0 0.0
    %324 = vmatpush1.msra.mxu0 %v96
    %325 = vmatprep.subr.mxu0 0.0
    %326 = vmatpush1.msra.mxu0 0.0
    %327 = vmatprep.subr.mxu0 0.0
    %328 = vmatpush1.msra.mxu0 0.0
    %329 = vmatprep.subr.mxu0 0.0
    %330 = vmatpush1.msra.mxu0 0.0
    %331 = vmatprep.subr.mxu0 0.0
    %332 = vmatpush1.msra.mxu0 0.0
    %333 = vmatprep.subr.mxu0 0.0
    %334 = vmatpush1.msra.mxu0 0.0
    %335 = vmatprep.subr.mxu0 0.0
    %336 = vmatpush1.msra.mxu0 0.0
    %337 = vmatprep.subr.mxu0 0.0
    %338 = vmatpush1.msra.mxu0 0.0
    %339 = vmatprep.subr.mxu0 0.0
    %340 = vmatpush1.msra.mxu0 0.0
    %341 = vmatprep.subr.mxu0 0.0
    %342 = vmatpush1.msra.mxu0 0.0
    %343 = vmatprep.subr.mxu0 0.0
    %344 = vmatpush1.msra.mxu0 0.0
    %345 = vmatprep.subr.mxu0 0.0
    %346 = vmatpush1.msra.mxu0 0.0
    %347 = vmatprep.subr.mxu0 0.0
    %348 = vmatpush1.msra.mxu0 0.0
    %349 = vmatprep.subr.mxu0 0.0
    %350 = vmatpush1.msra.mxu0 0.0
    %351 = vmatprep.subr.mxu0 0.0
    %352 = vmatpush1.msra.mxu0 0.0
    %353 = vmatprep.subr.mxu0 0.0
    %354 = vmatpush1.msra.mxu0 0.0
    %355 = vmatprep.subr.mxu0 0.0
    %356 = vmatpush1.msra.mxu0 0.0
    %357 = vmatprep.subr.mxu0 0.0
    %358 = vmatpush1.msra.mxu0 0.0
    %359 = vmatprep.subr.mxu0 0.0
    %360 = vmatpush1.msra.mxu0 0.0
    %361 = vmatprep.subr.mxu0 0.0
    %362 = vmatpush1.msra.mxu0 0.0
    %363 = vmatprep.subr.mxu0 0.0
    %364 = vmatpush1.msra.mxu0 0.0
    %365 = vmatprep.subr.mxu0 0.0
    %366 = vmatpush1.msra.mxu0 0.0
    %367 = vmatprep.subr.mxu0 0.0
    %368 = vmatpush1.msra.mxu0 0.0
    %369 = vmatprep.subr.mxu0 0.0
    %370 = vmatpush1.msra.mxu0 0.0
    %371 = vmatprep.subr.mxu0 0.0
    %372 = vmatpush1.msra.mxu0 0.0
    %373 = vmatprep.subr.mxu0 0.0
    %374 = vmatpush1.msra.mxu0 0.0
    %375 = vmatprep.subr.mxu0 0.0
    %376 = vmatpush1.msra.mxu0 0.0
    %377 = vmatprep.subr.mxu0 0.0
    %378 = vmatpush1.msra.mxu0 0.0
    %379 = vmatprep.subr.mxu0 0.0
    %380 = vmatpush1.msra.mxu0 0.0
    %381 = vmatprep.mubr.f32.mxu0 0.0
    %382 = vmatmul.mubr.f32.gmra.mrb[0].mxu0 %v175
    %v383 = vpop.f32.mrb[0].mxu0
    %v384 = vadd.f32 %v144, %v383
    %v385 = vpop.f32.mrb[0].mxu0
    %386 = vdwg.mxu0
    %387 = vmatprep.subr.mxu0 0.0
    %388 = vmatpush1.msra.mxu0 %v97
    %389 = vmatprep.subr.mxu0 0.0
    %390 = vmatpush1.msra.mxu0 %v98
    %391 = vmatprep.subr.mxu0 0.0
    %392 = vmatpush1.msra.mxu0 %v99
    %393 = vmatprep.subr.mxu0 0.0
    %394 = vmatpush1.msra.mxu0 %v100
    %395 = vmatprep.subr.mxu0 0.0
    %396 = vmatpush1.msra.mxu0 0.0
    %397 = vmatprep.subr.mxu0 0.0
    %398 = vmatpush1.msra.mxu0 0.0
    %399 = vmatprep.subr.mxu0 0.0
    %400 = vmatpush1.msra.mxu0 0.0
    %401 = vmatprep.subr.mxu0 0.0
    %402 = vmatpush1.msra.mxu0 0.0
    %403 = vmatprep.subr.mxu0 0.0
    %404 = vmatpush1.msra.mxu0 0.0
    %405 = vmatprep.subr.mxu0 0.0
    %406 = vmatpush1.msra.mxu0 0.0
    %407 = vmatprep.subr.mxu0 0.0
    %408 = vmatpush1.msra.mxu0 0.0
    %409 = vmatprep.subr.mxu0 0.0
    %410 = vmatpush1.msra.mxu0 0.0
    %411 = vmatprep.subr.mxu0 0.0
    %412 = vmatpush1.msra.mxu0 0.0
    %413 = vmatprep.subr.mxu0 0.0
    %414 = vmatpush1.msra.mxu0 0.0
    %415 = vmatprep.subr.mxu0 0.0
    %416 = vmatpush1.msra.mxu0 0.0
    %417 = vmatprep.subr.mxu0 0.0
    %418 = vmatpush1.msra.mxu0 0.0
    %419 = vmatprep.subr.mxu0 0.0
    %420 = vmatpush1.msra.mxu0 0.0
    %421 = vmatprep.subr.mxu0 0.0
    %422 = vmatpush1.msra.mxu0 0.0
    %423 = vmatprep.subr.mxu0 0.0
    %424 = vmatpush1.msra.mxu0 0.0
    %425 = vmatprep.subr.mxu0 0.0
    %426 = vmatpush1.msra.mxu0 0.0
    %427 = vmatprep.subr.mxu0 0.0
    %428 = vmatpush1.msra.mxu0 0.0
    %429 = vmatprep.subr.mxu0 0.0
    %430 = vmatpush1.msra.mxu0 0.0
    %431 = vmatprep.subr.mxu0 0.0
    %432 = vmatpush1.msra.mxu0 0.0
    %433 = vmatprep.subr.mxu0 0.0
    %434 = vmatpush1.msra.mxu0 0.0
    %435 = vmatprep.subr.mxu0 0.0
    %436 = vmatpush1.msra.mxu0 0.0
    %437 = vmatprep.subr.mxu0 0.0
    %438 = vmatpush1.msra.mxu0 0.0
    %439 = vmatprep.subr.mxu0 0.0
    %440 = vmatpush1.msra.mxu0 0.0
    %441 = vmatprep.subr.mxu0 0.0
    %442 = vmatpush1.msra.mxu0 0.0
    %443 = vmatprep.subr.mxu0 0.0
    %444 = vmatpush1.msra.mxu0 0.0
    %445 = vmatprep.subr.mxu0 0.0
    %446 = vmatpush1.msra.mxu0 0.0
    %447 = vmatprep.subr.mxu0 0.0
    %448 = vmatpush1.msra.mxu0 0.0
    %449 = vmatprep.subr.mxu0 0.0
    %450 = vmatpush1.msra.mxu0 0.0
    %451 = vmatprep.mubr.f32.mxu0 0.0
    %452 = vmatmul.mubr.f32.gmra.mrb[0].mxu0 %v175
    %v453 = vpop.f32.mrb[0].mxu0
    %v454 = vadd.f32 %v148, %v453
    %v455 = vpop.f32.mrb[0].mxu0
    %456 = vdwg.mxu0
    %v458 = vsel %vm173, %v76, 0
    %460 = vmatprep.subr.mxu0 0.0
    %461 = vmatpush1.msra.mxu0 %v101
    %462 = vmatprep.subr.mxu0 0.0
    %463 = vmatpush1.msra.mxu0 %v102
    %464 = vmatprep.subr.mxu0 0.0
    %465 = vmatpush1.msra.mxu0 %v103
    %466 = vmatprep.subr.mxu0 0.0
    %467 = vmatpush1.msra.mxu0 %v104
    %468 = vmatprep.subr.mxu0 0.0
    %469 = vmatpush1.msra.mxu0 0.0
    %470 = vmatprep.subr.mxu0 0.0
    %471 = vmatpush1.msra.mxu0 0.0
    %472 = vmatprep.subr.mxu0 0.0
    %473 = vmatpush1.msra.mxu0 0.0
    %474 = vmatprep.subr.mxu0 0.0
    %475 = vmatpush1.msra.mxu0 0.0
    %476 = vmatprep.subr.mxu0 0.0
    %477 = vmatpush1.msra.mxu0 0.0
    %478 = vmatprep.subr.mxu0 0.0
    %479 = vmatpush1.msra.mxu0 0.0
    %480 = vmatprep.subr.mxu0 0.0
    %481 = vmatpush1.msra.mxu0 0.0
    %482 = vmatprep.subr.mxu0 0.0
    %483 = vmatpush1.msra.mxu0 0.0
    %484 = vmatprep.subr.mxu0 0.0
    %485 = vmatpush1.msra.mxu0 0.0
    %486 = vmatprep.subr.mxu0 0.0
    %487 = vmatpush1.msra.mxu0 0.0
    %488 = vmatprep.subr.mxu0 0.0
    %489 = vmatpush1.msra.mxu0 0.0
    %490 = vmatprep.subr.mxu0 0.0
    %491 = vmatpush1.msra.mxu0 0.0
    %492 = vmatprep.subr.mxu0 0.0
    %493 = vmatpush1.msra.mxu0 0.0
    %494 = vmatprep.subr.mxu0 0.0
    %495 = vmatpush1.msra.mxu0 0.0
    %496 = vmatprep.subr.mxu0 0.0
    %497 = vmatpush1.msra.mxu0 0.0
    %498 = vmatprep.subr.mxu0 0.0
    %499 = vmatpush1.msra.mxu0 0.0
    %500 = vmatprep.subr.mxu0 0.0
    %501 = vmatpush1.msra.mxu0 0.0
    %502 = vmatprep.subr.mxu0 0.0
    %503 = vmatpush1.msra.mxu0 0.0
    %504 = vmatprep.subr.mxu0 0.0
    %505 = vmatpush1.msra.mxu0 0.0
    %506 = vmatprep.subr.mxu0 0.0
    %507 = vmatpush1.msra.mxu0 0.0
    %508 = vmatprep.subr.mxu0 0.0
    %509 = vmatpush1.msra.mxu0 0.0
    %510 = vmatprep.subr.mxu0 0.0
    %511 = vmatpush1.msra.mxu0 0.0
    %512 = vmatprep.subr.mxu0 0.0
    %513 = vmatpush1.msra.mxu0 0.0
    %514 = vmatprep.subr.mxu0 0.0
    %515 = vmatpush1.msra.mxu0 0.0
    %516 = vmatprep.subr.mxu0 0.0
    %517 = vmatpush1.msra.mxu0 0.0
    %518 = vmatprep.subr.mxu0 0.0
    %519 = vmatpush1.msra.mxu0 0.0
    %520 = vmatprep.subr.mxu0 0.0
    %521 = vmatpush1.msra.mxu0 0.0
    %522 = vmatprep.subr.mxu0 0.0
    %523 = vmatpush1.msra.mxu0 0.0
    %524 = vmatprep.mubr.f32.mxu0 0.0
    %525 = vmatmul.mubr.f32.gmra.mrb[0].mxu0 %v458
    %v526 = vpop.f32.mrb[0].mxu0
    %v527 = vadd.f32 %v152, %v526
    %v528 = vpop.f32.mrb[0].mxu0
    %529 = vdwg.mxu0
    %530 = vmatprep.subr.mxu0 0.0
    %531 = vmatpush1.msra.mxu0 %v105
    %532 = vmatprep.subr.mxu0 0.0
    %533 = vmatpush1.msra.mxu0 %v106
    %534 = vmatprep.subr.mxu0 0.0
    %535 = vmatpush1.msra.mxu0 %v107
    %536 = vmatprep.subr.mxu0 0.0
    %537 = vmatpush1.msra.mxu0 %v108
    %538 = vmatprep.subr.mxu0 0.0
    %539 = vmatpush1.msra.mxu0 0.0
    %540 = vmatprep.subr.mxu0 0.0
    %541 = vmatpush1.msra.mxu0 0.0
    %542 = vmatprep.subr.mxu0 0.0
    %543 = vmatpush1.msra.mxu0 0.0
    %544 = vmatprep.subr.mxu0 0.0
    %545 = vmatpush1.msra.mxu0 0.0
    %546 = vmatprep.subr.mxu0 0.0
    %547 = vmatpush1.msra.mxu0 0.0
    %548 = vmatprep.subr.mxu0 0.0
    %549 = vmatpush1.msra.mxu0 0.0
    %550 = vmatprep.subr.mxu0 0.0
    %551 = vmatpush1.msra.mxu0 0.0
    %552 = vmatprep.subr.mxu0 0.0
    %553 = vmatpush1.msra.mxu0 0.0
    %554 = vmatprep.subr.mxu0 0.0
    %555 = vmatpush1.msra.mxu0 0.0
    %556 = vmatprep.subr.mxu0 0.0
    %557 = vmatpush1.msra.mxu0 0.0
    %558 = vmatprep.subr.mxu0 0.0
    %559 = vmatpush1.msra.mxu0 0.0
    %560 = vmatprep.subr.mxu0 0.0
    %561 = vmatpush1.msra.mxu0 0.0
    %562 = vmatprep.subr.mxu0 0.0
    %563 = vmatpush1.msra.mxu0 0.0
    %564 = vmatprep.subr.mxu0 0.0
    %565 = vmatpush1.msra.mxu0 0.0
    %566 = vmatprep.subr.mxu0 0.0
    %567 = vmatpush1.msra.mxu0 0.0
    %568 = vmatprep.subr.mxu0 0.0
    %569 = vmatpush1.msra.mxu0 0.0
    %570 = vmatprep.subr.mxu0 0.0
    %571 = vmatpush1.msra.mxu0 0.0
    %572 = vmatprep.subr.mxu0 0.0
    %573 = vmatpush1.msra.mxu0 0.0
    %574 = vmatprep.subr.mxu0 0.0
    %575 = vmatpush1.msra.mxu0 0.0
    %576 = vmatprep.subr.mxu0 0.0
    %577 = vmatpush1.msra.mxu0 0.0
    %578 = vmatprep.subr.mxu0 0.0
    %579 = vmatpush1.msra.mxu0 0.0
    %580 = vmatprep.subr.mxu0 0.0
    %581 = vmatpush1.msra.mxu0 0.0
    %582 = vmatprep.subr.mxu0 0.0
    %583 = vmatpush1.msra.mxu0 0.0
    %584 = vmatprep.subr.mxu0 0.0
    %585 = vmatpush1.msra.mxu0 0.0
    %586 = vmatprep.subr.mxu0 0.0
    %587 = vmatpush1.msra.mxu0 0.0
    %588 = vmatprep.subr.mxu0 0.0
    %589 = vmatpush1.msra.mxu0 0.0
    %590 = vmatprep.subr.mxu0 0.0
    %591 = vmatpush1.msra.mxu0 0.0
    %592 = vmatprep.subr.mxu0 0.0
    %593 = vmatpush1.msra.mxu0 0.0
    %594 = vmatprep.mubr.f32.mxu0 0.0
    %595 = vmatmul.mubr.f32.gmra.mrb[0].mxu0 %v458
    %v596 = vpop.f32.mrb[0].mxu0
    %v597 = vadd.f32 %v156, %v596
    %v598 = vpop.f32.mrb[0].mxu0
    %599 = vdwg.mxu0
    %600 = vmatprep.subr.mxu0 0.0
    %601 = vmatpush1.msra.mxu0 %v109
    %602 = vmatprep.subr.mxu0 0.0
    %603 = vmatpush1.msra.mxu0 %v110
    %604 = vmatprep.subr.mxu0 0.0
    %605 = vmatpush1.msra.mxu0 %v111
    %606 = vmatprep.subr.mxu0 0.0
    %607 = vmatpush1.msra.mxu0 %v112
    %608 = vmatprep.subr.mxu0 0.0
    %609 = vmatpush1.msra.mxu0 0.0
    %610 = vmatprep.subr.mxu0 0.0
    %611 = vmatpush1.msra.mxu0 0.0
    %612 = vmatprep.subr.mxu0 0.0
    %613 = vmatpush1.msra.mxu0 0.0
    %614 = vmatprep.subr.mxu0 0.0
    %615 = vmatpush1.msra.mxu0 0.0
    %616 = vmatprep.subr.mxu0 0.0
    %617 = vmatpush1.msra.mxu0 0.0
    %618 = vmatprep.subr.mxu0 0.0
    %619 = vmatpush1.msra.mxu0 0.0
    %620 = vmatprep.subr.mxu0 0.0
    %621 = vmatpush1.msra.mxu0 0.0
    %622 = vmatprep.subr.mxu0 0.0
    %623 = vmatpush1.msra.mxu0 0.0
    %624 = vmatprep.subr.mxu0 0.0
    %625 = vmatpush1.msra.mxu0 0.0
    %626 = vmatprep.subr.mxu0 0.0
    %627 = vmatpush1.msra.mxu0 0.0
    %628 = vmatprep.subr.mxu0 0.0
    %629 = vmatpush1.msra.mxu0 0.0
    %630 = vmatprep.subr.mxu0 0.0
    %631 = vmatpush1.msra.mxu0 0.0
    %632 = vmatprep.subr.mxu0 0.0
    %633 = vmatpush1.msra.mxu0 0.0
    %634 = vmatprep.subr.mxu0 0.0
    %635 = vmatpush1.msra.mxu0 0.0
    %636 = vmatprep.subr.mxu0 0.0
    %637 = vmatpush1.msra.mxu0 0.0
    %638 = vmatprep.subr.mxu0 0.0
    %639 = vmatpush1.msra.mxu0 0.0
    %640 = vmatprep.subr.mxu0 0.0
    %641 = vmatpush1.msra.mxu0 0.0
    %642 = vmatprep.subr.mxu0 0.0
    %643 = vmatpush1.msra.mxu0 0.0
    %644 = vmatprep.subr.mxu0 0.0
    %645 = vmatpush1.msra.mxu0 0.0
    %646 = vmatprep.subr.mxu0 0.0
    %647 = vmatpush1.msra.mxu0 0.0
    %648 = vmatprep.subr.mxu0 0.0
    %649 = vmatpush1.msra.mxu0 0.0
    %650 = vmatprep.subr.mxu0 0.0
    %651 = vmatpush1.msra.mxu0 0.0
    %652 = vmatprep.subr.mxu0 0.0
    %653 = vmatpush1.msra.mxu0 0.0
    %654 = vmatprep.subr.mxu0 0.0
    %655 = vmatpush1.msra.mxu0 0.0
    %656 = vmatprep.subr.mxu0 0.0
    %657 = vmatpush1.msra.mxu0 0.0
    %658 = vmatprep.subr.mxu0 0.0
    %659 = vmatpush1.msra.mxu0 0.0
    %660 = vmatprep.subr.mxu0 0.0
    %661 = vmatpush1.msra.mxu0 0.0
    %662 = vmatprep.subr.mxu0 0.0
    %663 = vmatpush1.msra.mxu0 0.0
    %664 = vmatprep.mubr.f32.mxu0 0.0
    %665 = vmatmul.mubr.f32.gmra.mrb[0].mxu0 %v458
    %v666 = vpop.f32.mrb[0].mxu0
    %v667 = vadd.f32 %v160, %v666
    %v668 = vpop.f32.mrb[0].mxu0
    %669 = vdwg.mxu0
    %670 = vmatprep.subr.mxu0 0.0
    %671 = vmatpush1.msra.mxu0 %v113
    %672 = vmatprep.subr.mxu0 0.0
    %673 = vmatpush1.msra.mxu0 %v114
    %674 = vmatprep.subr.mxu0 0.0
    %675 = vmatpush1.msra.mxu0 %v115
    %676 = vmatprep.subr.mxu0 0.0
    %677 = vmatpush1.msra.mxu0 %v116
    %678 = vmatprep.subr.mxu0 0.0
    %679 = vmatpush1.msra.mxu0 0.0
    %680 = vmatprep.subr.mxu0 0.0
    %681 = vmatpush1.msra.mxu0 0.0
    %682 = vmatprep.subr.mxu0 0.0
    %683 = vmatpush1.msra.mxu0 0.0
    %684 = vmatprep.subr.mxu0 0.0
    %685 = vmatpush1.msra.mxu0 0.0
    %686 = vmatprep.subr.mxu0 0.0
    %687 = vmatpush1.msra.mxu0 0.0
    %688 = vmatprep.subr.mxu0 0.0
    %689 = vmatpush1.msra.mxu0 0.0
    %690 = vmatprep.subr.mxu0 0.0
    %691 = vmatpush1.msra.mxu0 0.0
    %692 = vmatprep.subr.mxu0 0.0
    %693 = vmatpush1.msra.mxu0 0.0
    %694 = vmatprep.subr.mxu0 0.0
    %695 = vmatpush1.msra.mxu0 0.0
    %696 = vmatprep.subr.mxu0 0.0
    %697 = vmatpush1.msra.mxu0 0.0
    %698 = vmatprep.subr.mxu0 0.0
    %699 = vmatpush1.msra.mxu0 0.0
    %700 = vmatprep.subr.mxu0 0.0
    %701 = vmatpush1.msra.mxu0 0.0
    %702 = vmatprep.subr.mxu0 0.0
    %703 = vmatpush1.msra.mxu0 0.0
    %704 = vmatprep.subr.mxu0 0.0
    %705 = vmatpush1.msra.mxu0 0.0
    %706 = vmatprep.subr.mxu0 0.0
    %707 = vmatpush1.msra.mxu0 0.0
    %708 = vmatprep.subr.mxu0 0.0
    %709 = vmatpush1.msra.mxu0 0.0
    %710 = vmatprep.subr.mxu0 0.0
    %711 = vmatpush1.msra.mxu0 0.0
    %712 = vmatprep.subr.mxu0 0.0
    %713 = vmatpush1.msra.mxu0 0.0
    %714 = vmatprep.subr.mxu0 0.0
    %715 = vmatpush1.msra.mxu0 0.0
    %716 = vmatprep.subr.mxu0 0.0
    %717 = vmatpush1.msra.mxu0 0.0
    %718 = vmatprep.subr.mxu0 0.0
    %719 = vmatpush1.msra.mxu0 0.0
    %720 = vmatprep.subr.mxu0 0.0
    %721 = vmatpush1.msra.mxu0 0.0
    %722 = vmatprep.subr.mxu0 0.0
    %723 = vmatpush1.msra.mxu0 0.0
    %724 = vmatprep.subr.mxu0 0.0
    %725 = vmatpush1.msra.mxu0 0.0
    %726 = vmatprep.subr.mxu0 0.0
    %727 = vmatpush1.msra.mxu0 0.0
    %728 = vmatprep.subr.mxu0 0.0
    %729 = vmatpush1.msra.mxu0 0.0
    %730 = vmatprep.subr.mxu0 0.0
    %731 = vmatpush1.msra.mxu0 0.0
    %732 = vmatprep.subr.mxu0 0.0
    %733 = vmatpush1.msra.mxu0 0.0
    %734 = vmatprep.mubr.f32.mxu0 0.0
    %735 = vmatmul.mubr.f32.gmra.mrb[0].mxu0 %v458
    %v736 = vpop.f32.mrb[0].mxu0
    %v737 = vadd.f32 %v164, %v736
    %v738 = vpop.f32.mrb[0].mxu0
    %739 = vdwg.mxu0
    %v740 = vld [vmem:[%s4] sm:$0xff]
    %v741 = vld [vmem:[%s4 + $0x8] sm:$0xff]
    %v742 = vld [vmem:[%s4 + $0x10] sm:$0xff]
    %v743 = vld [vmem:[%s4 + $0x18] sm:$0xff]
    %v744 = vld [vmem:[%s4 + $0x20] sm:$0xff]
    %v745 = vld [vmem:[%s4 + $0x28] sm:$0xff]
    %v746 = vld [vmem:[%s4 + $0x30] sm:$0xff]
    %v747 = vld [vmem:[%s4 + $0x38] sm:$0xff]
    %v748 = vld [vmem:[%s4 + $0x40] sm:$0xff]
    %v749 = vld [vmem:[%s4 + $0x48] sm:$0xff]
    %v750 = vld [vmem:[%s4 + $0x50] sm:$0xff]
    %v751 = vld [vmem:[%s4 + $0x58] sm:$0xff]
    %v752 = vld [vmem:[%s4 + $0x60] sm:$0xff]
    %v753 = vld [vmem:[%s4 + $0x68] sm:$0xff]
    %v754 = vld [vmem:[%s4 + $0x70] sm:$0xff]
    %v755 = vld [vmem:[%s4 + $0x78] sm:$0xff]
    %v756 = vld [vmem:[%s4 + $0x80] sm:$0xff]
    %v757 = vld [vmem:[%s4 + $0x88] sm:$0xff]
    %v758 = vld [vmem:[%s4 + $0x90] sm:$0xff]
    %v759 = vld [vmem:[%s4 + $0x98] sm:$0xff]
    %v760 = vld [vmem:[%s4 + $0xa0] sm:$0xff]
    %v761 = vld [vmem:[%s4 + $0xa8] sm:$0xff]
    %v762 = vld [vmem:[%s4 + $0xb0] sm:$0xff]
    %v763 = vld [vmem:[%s4 + $0xb8] sm:$0xff]
    %v764 = vld [vmem:[%s4 + $0xc0] sm:$0xff]
    %v765 = vld [vmem:[%s4 + $0xc8] sm:$0xff]
    %v766 = vld [vmem:[%s4 + $0xd0] sm:$0xff]
    %v767 = vld [vmem:[%s4 + $0xd8] sm:$0xff]
    %v768 = vld [vmem:[%s4 + $0xe0] sm:$0xff]
    %v769 = vld [vmem:[%s4 + $0xe8] sm:$0xff]
    %v770 = vld [vmem:[%s4 + $0xf0] sm:$0xff]
    %v771 = vld [vmem:[%s4 + $0xf8] sm:$0xff]
    %v772 = vld [vmem:[%s5] sm:$0x1]
    %v773 = vld [vmem:[%s5 + $0x1] sm:$0x1]
    %v774 = vld [vmem:[%s5 + $0x2] sm:$0x1]
    %v775 = vld [vmem:[%s5 + $0x3] sm:$0x1]
    %v776 = vld [vmem:[%s5 + $0x4] sm:$0x1]
    %v777 = vld [vmem:[%s5 + $0x5] sm:$0x1]
    %v778 = vld [vmem:[%s5 + $0x6] sm:$0x1]
    %v779 = vld [vmem:[%s5 + $0x7] sm:$0x1]
    %v788 = vlaneseq
    %v789 = vshrl.u32 %v788, 7
    %v790 = vsub.s32 0, %v789
    %v791 = vrot.slane %v772, %v790
    %v792 = vlaneseq
    %v793 = vshrl.u32 %v792, 7
    %v794 = vsub.s32 0, %v793
    %v795 = vrot.slane %v773, %v794
    %v796 = vlaneseq
    %v797 = vshrl.u32 %v796, 7
    %v798 = vsub.s32 0, %v797
    %v799 = vrot.slane %v774, %v798
    %v800 = vlaneseq
    %v801 = vshrl.u32 %v800, 7
    %v802 = vsub.s32 0, %v801
    %v803 = vrot.slane %v775, %v802
    %v804 = vlaneseq
    %v805 = vshrl.u32 %v804, 7
    %v806 = vsub.s32 0, %v805
    %v807 = vrot.slane %v776, %v806
    %v808 = vlaneseq
    %v809 = vshrl.u32 %v808, 7
    %v810 = vsub.s32 0, %v809
    %v811 = vrot.slane %v777, %v810
    %v812 = vlaneseq
    %v813 = vshrl.u32 %v812, 7
    %v814 = vsub.s32 0, %v813
    %v815 = vrot.slane %v778, %v814
    %v816 = vlaneseq
    %v817 = vshrl.u32 %v816, 7
    %v818 = vsub.s32 0, %v817
    %v819 = vrot.slane %v779, %v818
    %828 = vmatprep.subr.mxu0 0.0
    %829 = vmatpush1.msra.mxu0 %v740
    %830 = vmatprep.subr.mxu0 0.0
    %831 = vmatpush1.msra.mxu0 %v741
    %832 = vmatprep.subr.mxu0 0.0
    %833 = vmatpush1.msra.mxu0 %v742
    %834 = vmatprep.subr.mxu0 0.0
    %835 = vmatpush1.msra.mxu0 %v743
    %836 = vmatprep.subr.mxu0 0.0
    %837 = vmatpush1.msra.mxu0 0.0
    %838 = vmatprep.subr.mxu0 0.0
    %839 = vmatpush1.msra.mxu0 0.0
    %840 = vmatprep.subr.mxu0 0.0
    %841 = vmatpush1.msra.mxu0 0.0
    %842 = vmatprep.subr.mxu0 0.0
    %843 = vmatpush1.msra.mxu0 0.0
    %844 = vmatprep.subr.mxu0 0.0
    %845 = vmatpush1.msra.mxu0 0.0
    %846 = vmatprep.subr.mxu0 0.0
    %847 = vmatpush1.msra.mxu0 0.0
    %848 = vmatprep.subr.mxu0 0.0
    %849 = vmatpush1.msra.mxu0 0.0
    %850 = vmatprep.subr.mxu0 0.0
    %851 = vmatpush1.msra.mxu0 0.0
    %852 = vmatprep.subr.mxu0 0.0
    %853 = vmatpush1.msra.mxu0 0.0
    %854 = vmatprep.subr.mxu0 0.0
    %855 = vmatpush1.msra.mxu0 0.0
    %856 = vmatprep.subr.mxu0 0.0
    %857 = vmatpush1.msra.mxu0 0.0
    %858 = vmatprep.subr.mxu0 0.0
    %859 = vmatpush1.msra.mxu0 0.0
    %860 = vmatprep.subr.mxu0 0.0
    %861 = vmatpush1.msra.mxu0 0.0
    %862 = vmatprep.subr.mxu0 0.0
    %863 = vmatpush1.msra.mxu0 0.0
    %864 = vmatprep.subr.mxu0 0.0
    %865 = vmatpush1.msra.mxu0 0.0
    %866 = vmatprep.subr.mxu0 0.0
    %867 = vmatpush1.msra.mxu0 0.0
    %868 = vmatprep.subr.mxu0 0.0
    %869 = vmatpush1.msra.mxu0 0.0
    %870 = vmatprep.subr.mxu0 0.0
    %871 = vmatpush1.msra.mxu0 0.0
    %872 = vmatprep.subr.mxu0 0.0
    %873 = vmatpush1.msra.mxu0 0.0
    %874 = vmatprep.subr.mxu0 0.0
    %875 = vmatpush1.msra.mxu0 0.0
    %876 = vmatprep.subr.mxu0 0.0
    %877 = vmatpush1.msra.mxu0 0.0
    %878 = vmatprep.subr.mxu0 0.0
    %879 = vmatpush1.msra.mxu0 0.0
    %880 = vmatprep.subr.mxu0 0.0
    %881 = vmatpush1.msra.mxu0 0.0
    %882 = vmatprep.subr.mxu0 0.0
    %883 = vmatpush1.msra.mxu0 0.0
    %884 = vmatprep.subr.mxu0 0.0
    %885 = vmatpush1.msra.mxu0 0.0
    %886 = vmatprep.subr.mxu0 0.0
    %887 = vmatpush1.msra.mxu0 0.0
    %888 = vmatprep.subr.mxu0 0.0
    %889 = vmatpush1.msra.mxu0 0.0
    %890 = vmatprep.subr.mxu0 0.0
    %891 = vmatpush1.msra.mxu0 0.0
    %892 = vmatprep.mubr.f32.mxu0 0.0
    %893 = vmatmul.mubr.f32.gmra.mrb[0].mxu0 %v175
    %v894 = vpop.f32.mrb[0].mxu0
    %v895 = vadd.f32 %v791, %v894
    %v896 = vpop.f32.mrb[0].mxu0
    %897 = vdwg.mxu0
    %898 = vmatprep.subr.mxu0 0.0
    %899 = vmatpush1.msra.mxu0 %v744
    %900 = vmatprep.subr.mxu0 0.0
    %901 = vmatpush1.msra.mxu0 %v745
    %902 = vmatprep.subr.mxu0 0.0
    %903 = vmatpush1.msra.mxu0 %v746
    %904 = vmatprep.subr.mxu0 0.0
    %905 = vmatpush1.msra.mxu0 %v747
    %906 = vmatprep.subr.mxu0 0.0
    %907 = vmatpush1.msra.mxu0 0.0
    %908 = vmatprep.subr.mxu0 0.0
    %909 = vmatpush1.msra.mxu0 0.0
    %910 = vmatprep.subr.mxu0 0.0
    %911 = vmatpush1.msra.mxu0 0.0
    %912 = vmatprep.subr.mxu0 0.0
    %913 = vmatpush1.msra.mxu0 0.0
    %914 = vmatprep.subr.mxu0 0.0
    %915 = vmatpush1.msra.mxu0 0.0
    %916 = vmatprep.subr.mxu0 0.0
    %917 = vmatpush1.msra.mxu0 0.0
    %918 = vmatprep.subr.mxu0 0.0
    %919 = vmatpush1.msra.mxu0 0.0
    %920 = vmatprep.subr.mxu0 0.0
    %921 = vmatpush1.msra.mxu0 0.0
    %922 = vmatprep.subr.mxu0 0.0
    %923 = vmatpush1.msra.mxu0 0.0
    %924 = vmatprep.subr.mxu0 0.0
    %925 = vmatpush1.msra.mxu0 0.0
    %926 = vmatprep.subr.mxu0 0.0
    %927 = vmatpush1.msra.mxu0 0.0
    %928 = vmatprep.subr.mxu0 0.0
    %929 = vmatpush1.msra.mxu0 0.0
    %930 = vmatprep.subr.mxu0 0.0
    %931 = vmatpush1.msra.mxu0 0.0
    %932 = vmatprep.subr.mxu0 0.0
    %933 = vmatpush1.msra.mxu0 0.0
    %934 = vmatprep.subr.mxu0 0.0
    %935 = vmatpush1.msra.mxu0 0.0
    %936 = vmatprep.subr.mxu0 0.0
    %937 = vmatpush1.msra.mxu0 0.0
    %938 = vmatprep.subr.mxu0 0.0
    %939 = vmatpush1.msra.mxu0 0.0
    %940 = vmatprep.subr.mxu0 0.0
    %941 = vmatpush1.msra.mxu0 0.0
    %942 = vmatprep.subr.mxu0 0.0
    %943 = vmatpush1.msra.mxu0 0.0
    %944 = vmatprep.subr.mxu0 0.0
    %945 = vmatpush1.msra.mxu0 0.0
    %946 = vmatprep.subr.mxu0 0.0
    %947 = vmatpush1.msra.mxu0 0.0
    %948 = vmatprep.subr.mxu0 0.0
    %949 = vmatpush1.msra.mxu0 0.0
    %950 = vmatprep.subr.mxu0 0.0
    %951 = vmatpush1.msra.mxu0 0.0
    %952 = vmatprep.subr.mxu0 0.0
    %953 = vmatpush1.msra.mxu0 0.0
    %954 = vmatprep.subr.mxu0 0.0
    %955 = vmatpush1.msra.mxu0 0.0
    %956 = vmatprep.subr.mxu0 0.0
    %957 = vmatpush1.msra.mxu0 0.0
    %958 = vmatprep.subr.mxu0 0.0
    %959 = vmatpush1.msra.mxu0 0.0
    %960 = vmatprep.subr.mxu0 0.0
    %961 = vmatpush1.msra.mxu0 0.0
    %962 = vmatprep.mubr.f32.mxu0 0.0
    %963 = vmatmul.mubr.f32.gmra.mrb[0].mxu0 %v175
    %v964 = vpop.f32.mrb[0].mxu0
    %v965 = vadd.f32 %v795, %v964
    %v966 = vpop.f32.mrb[0].mxu0
    %967 = vdwg.mxu0
    %968 = vmatprep.subr.mxu0 0.0
    %969 = vmatpush1.msra.mxu0 %v748
    %970 = vmatprep.subr.mxu0 0.0
    %971 = vmatpush1.msra.mxu0 %v749
    %972 = vmatprep.subr.mxu0 0.0
    %973 = vmatpush1.msra.mxu0 %v750
    %974 = vmatprep.subr.mxu0 0.0
    %975 = vmatpush1.msra.mxu0 %v751
    %976 = vmatprep.subr.mxu0 0.0
    %977 = vmatpush1.msra.mxu0 0.0
    %978 = vmatprep.subr.mxu0 0.0
    %979 = vmatpush1.msra.mxu0 0.0
    %980 = vmatprep.subr.mxu0 0.0
    %981 = vmatpush1.msra.mxu0 0.0
    %982 = vmatprep.subr.mxu0 0.0
    %983 = vmatpush1.msra.mxu0 0.0
    %984 = vmatprep.subr.mxu0 0.0
    %985 = vmatpush1.msra.mxu0 0.0
    %986 = vmatprep.subr.mxu0 0.0
    %987 = vmatpush1.msra.mxu0 0.0
    %988 = vmatprep.subr.mxu0 0.0
    %989 = vmatpush1.msra.mxu0 0.0
    %990 = vmatprep.subr.mxu0 0.0
    %991 = vmatpush1.msra.mxu0 0.0
    %992 = vmatprep.subr.mxu0 0.0
    %993 = vmatpush1.msra.mxu0 0.0
    %994 = vmatprep.subr.mxu0 0.0
    %995 = vmatpush1.msra.mxu0 0.0
    %996 = vmatprep.subr.mxu0 0.0
    %997 = vmatpush1.msra.mxu0 0.0
    %998 = vmatprep.subr.mxu0 0.0
    %999 = vmatpush1.msra.mxu0 0.0
    %1000 = vmatprep.subr.mxu0 0.0
    %1001 = vmatpush1.msra.mxu0 0.0
    %1002 = vmatprep.subr.mxu0 0.0
    %1003 = vmatpush1.msra.mxu0 0.0
    %1004 = vmatprep.subr.mxu0 0.0
    %1005 = vmatpush1.msra.mxu0 0.0
    %1006 = vmatprep.subr.mxu0 0.0
    %1007 = vmatpush1.msra.mxu0 0.0
    %1008 = vmatprep.subr.mxu0 0.0
    %1009 = vmatpush1.msra.mxu0 0.0
    %1010 = vmatprep.subr.mxu0 0.0
    %1011 = vmatpush1.msra.mxu0 0.0
    %1012 = vmatprep.subr.mxu0 0.0
    %1013 = vmatpush1.msra.mxu0 0.0
    %1014 = vmatprep.subr.mxu0 0.0
    %1015 = vmatpush1.msra.mxu0 0.0
    %1016 = vmatprep.subr.mxu0 0.0
    %1017 = vmatpush1.msra.mxu0 0.0
    %1018 = vmatprep.subr.mxu0 0.0
    %1019 = vmatpush1.msra.mxu0 0.0
    %1020 = vmatprep.subr.mxu0 0.0
    %1021 = vmatpush1.msra.mxu0 0.0
    %1022 = vmatprep.subr.mxu0 0.0
    %1023 = vmatpush1.msra.mxu0 0.0
    %1024 = vmatprep.subr.mxu0 0.0
    %1025 = vmatpush1.msra.mxu0 0.0
    %1026 = vmatprep.subr.mxu0 0.0
    %1027 = vmatpush1.msra.mxu0 0.0
    %1028 = vmatprep.subr.mxu0 0.0
    %1029 = vmatpush1.msra.mxu0 0.0
    %1030 = vmatprep.subr.mxu0 0.0
    %1031 = vmatpush1.msra.mxu0 0.0
    %1032 = vmatprep.mubr.f32.mxu0 0.0
    %1033 = vmatmul.mubr.f32.gmra.mrb[0].mxu0 %v175
    %v1034 = vpop.f32.mrb[0].mxu0
    %v1035 = vadd.f32 %v799, %v1034
    %v1036 = vpop.f32.mrb[0].mxu0
    %1037 = vdwg.mxu0
    %1038 = vmatprep.subr.mxu0 0.0
    %1039 = vmatpush1.msra.mxu0 %v752
    %1040 = vmatprep.subr.mxu0 0.0
    %1041 = vmatpush1.msra.mxu0 %v753
    %1042 = vmatprep.subr.mxu0 0.0
    %1043 = vmatpush1.msra.mxu0 %v754
    %1044 = vmatprep.subr.mxu0 0.0
    %1045 = vmatpush1.msra.mxu0 %v755
    %1046 = vmatprep.subr.mxu0 0.0
    %1047 = vmatpush1.msra.mxu0 0.0
    %1048 = vmatprep.subr.mxu0 0.0
    %1049 = vmatpush1.msra.mxu0 0.0
    %1050 = vmatprep.subr.mxu0 0.0
    %1051 = vmatpush1.msra.mxu0 0.0
    %1052 = vmatprep.subr.mxu0 0.0
    %1053 = vmatpush1.msra.mxu0 0.0
    %1054 = vmatprep.subr.mxu0 0.0
    %1055 = vmatpush1.msra.mxu0 0.0
    %1056 = vmatprep.subr.mxu0 0.0
    %1057 = vmatpush1.msra.mxu0 0.0
    %1058 = vmatprep.subr.mxu0 0.0
    %1059 = vmatpush1.msra.mxu0 0.0
    %1060 = vmatprep.subr.mxu0 0.0
    %1061 = vmatpush1.msra.mxu0 0.0
    %1062 = vmatprep.subr.mxu0 0.0
    %1063 = vmatpush1.msra.mxu0 0.0
    %1064 = vmatprep.subr.mxu0 0.0
    %1065 = vmatpush1.msra.mxu0 0.0
    %1066 = vmatprep.subr.mxu0 0.0
    %1067 = vmatpush1.msra.mxu0 0.0
    %1068 = vmatprep.subr.mxu0 0.0
    %1069 = vmatpush1.msra.mxu0 0.0
    %1070 = vmatprep.subr.mxu0 0.0
    %1071 = vmatpush1.msra.mxu0 0.0
    %1072 = vmatprep.subr.mxu0 0.0
    %1073 = vmatpush1.msra.mxu0 0.0
    %1074 = vmatprep.subr.mxu0 0.0
    %1075 = vmatpush1.msra.mxu0 0.0
    %1076 = vmatprep.subr.mxu0 0.0
    %1077 = vmatpush1.msra.mxu0 0.0
    %1078 = vmatprep.subr.mxu0 0.0
    %1079 = vmatpush1.msra.mxu0 0.0
    %1080 = vmatprep.subr.mxu0 0.0
    %1081 = vmatpush1.msra.mxu0 0.0
    %1082 = vmatprep.subr.mxu0 0.0
    %1083 = vmatpush1.msra.mxu0 0.0
    %1084 = vmatprep.subr.mxu0 0.0
    %1085 = vmatpush1.msra.mxu0 0.0
    %1086 = vmatprep.subr.mxu0 0.0
    %1087 = vmatpush1.msra.mxu0 0.0
    %1088 = vmatprep.subr.mxu0 0.0
    %1089 = vmatpush1.msra.mxu0 0.0
    %1090 = vmatprep.subr.mxu0 0.0
    %1091 = vmatpush1.msra.mxu0 0.0
    %1092 = vmatprep.subr.mxu0 0.0
    %1093 = vmatpush1.msra.mxu0 0.0
    %1094 = vmatprep.subr.mxu0 0.0
    %1095 = vmatpush1.msra.mxu0 0.0
    %1096 = vmatprep.subr.mxu0 0.0
    %1097 = vmatpush1.msra.mxu0 0.0
    %1098 = vmatprep.subr.mxu0 0.0
    %1099 = vmatpush1.msra.mxu0 0.0
    %1100 = vmatprep.subr.mxu0 0.0
    %1101 = vmatpush1.msra.mxu0 0.0
    %1102 = vmatprep.mubr.f32.mxu0 0.0
    %1103 = vmatmul.mubr.f32.gmra.mrb[0].mxu0 %v175
    %v1104 = vpop.f32.mrb[0].mxu0
    %v1105 = vadd.f32 %v803, %v1104
    %v1106 = vpop.f32.mrb[0].mxu0
    %1107 = vdwg.mxu0
    %1108 = vmatprep.subr.mxu0 0.0
    %1109 = vmatpush1.msra.mxu0 %v756
    %1110 = vmatprep.subr.mxu0 0.0
    %1111 = vmatpush1.msra.mxu0 %v757
    %1112 = vmatprep.subr.mxu0 0.0
    %1113 = vmatpush1.msra.mxu0 %v758
    %1114 = vmatprep.subr.mxu0 0.0
    %1115 = vmatpush1.msra.mxu0 %v759
    %1116 = vmatprep.subr.mxu0 0.0
    %1117 = vmatpush1.msra.mxu0 0.0
    %1118 = vmatprep.subr.mxu0 0.0
    %1119 = vmatpush1.msra.mxu0 0.0
    %1120 = vmatprep.subr.mxu0 0.0
    %1121 = vmatpush1.msra.mxu0 0.0
    %1122 = vmatprep.subr.mxu0 0.0
    %1123 = vmatpush1.msra.mxu0 0.0
    %1124 = vmatprep.subr.mxu0 0.0
    %1125 = vmatpush1.msra.mxu0 0.0
    %1126 = vmatprep.subr.mxu0 0.0
    %1127 = vmatpush1.msra.mxu0 0.0
    %1128 = vmatprep.subr.mxu0 0.0
    %1129 = vmatpush1.msra.mxu0 0.0
    %1130 = vmatprep.subr.mxu0 0.0
    %1131 = vmatpush1.msra.mxu0 0.0
    %1132 = vmatprep.subr.mxu0 0.0
    %1133 = vmatpush1.msra.mxu0 0.0
    %1134 = vmatprep.subr.mxu0 0.0
    %1135 = vmatpush1.msra.mxu0 0.0
    %1136 = vmatprep.subr.mxu0 0.0
    %1137 = vmatpush1.msra.mxu0 0.0
    %1138 = vmatprep.subr.mxu0 0.0
    %1139 = vmatpush1.msra.mxu0 0.0
    %1140 = vmatprep.subr.mxu0 0.0
    %1141 = vmatpush1.msra.mxu0 0.0
    %1142 = vmatprep.subr.mxu0 0.0
    %1143 = vmatpush1.msra.mxu0 0.0
    %1144 = vmatprep.subr.mxu0 0.0
    %1145 = vmatpush1.msra.mxu0 0.0
    %1146 = vmatprep.subr.mxu0 0.0
    %1147 = vmatpush1.msra.mxu0 0.0
    %1148 = vmatprep.subr.mxu0 0.0
    %1149 = vmatpush1.msra.mxu0 0.0
    %1150 = vmatprep.subr.mxu0 0.0
    %1151 = vmatpush1.msra.mxu0 0.0
    %1152 = vmatprep.subr.mxu0 0.0
    %1153 = vmatpush1.msra.mxu0 0.0
    %1154 = vmatprep.subr.mxu0 0.0
    %1155 = vmatpush1.msra.mxu0 0.0
    %1156 = vmatprep.subr.mxu0 0.0
    %1157 = vmatpush1.msra.mxu0 0.0
    %1158 = vmatprep.subr.mxu0 0.0
    %1159 = vmatpush1.msra.mxu0 0.0
    %1160 = vmatprep.subr.mxu0 0.0
    %1161 = vmatpush1.msra.mxu0 0.0
    %1162 = vmatprep.subr.mxu0 0.0
    %1163 = vmatpush1.msra.mxu0 0.0
    %1164 = vmatprep.subr.mxu0 0.0
    %1165 = vmatpush1.msra.mxu0 0.0
    %1166 = vmatprep.subr.mxu0 0.0
    %1167 = vmatpush1.msra.mxu0 0.0
    %1168 = vmatprep.subr.mxu0 0.0
    %1169 = vmatpush1.msra.mxu0 0.0
    %1170 = vmatprep.subr.mxu0 0.0
    %1171 = vmatpush1.msra.mxu0 0.0
    %1172 = vmatprep.mubr.f32.mxu0 0.0
    %1173 = vmatmul.mubr.f32.gmra.mrb[0].mxu0 %v458
    %v1174 = vpop.f32.mrb[0].mxu0
    %v1175 = vadd.f32 %v807, %v1174
    %v1176 = vpop.f32.mrb[0].mxu0
    %1177 = vdwg.mxu0
    %1178 = vmatprep.subr.mxu0 0.0
    %1179 = vmatpush1.msra.mxu0 %v760
    %1180 = vmatprep.subr.mxu0 0.0
    %1181 = vmatpush1.msra.mxu0 %v761
    %1182 = vmatprep.subr.mxu0 0.0
    %1183 = vmatpush1.msra.mxu0 %v762
    %1184 = vmatprep.subr.mxu0 0.0
    %1185 = vmatpush1.msra.mxu0 %v763
    %1186 = vmatprep.subr.mxu0 0.0
    %1187 = vmatpush1.msra.mxu0 0.0
    %1188 = vmatprep.subr.mxu0 0.0
    %1189 = vmatpush1.msra.mxu0 0.0
    %1190 = vmatprep.subr.mxu0 0.0
    %1191 = vmatpush1.msra.mxu0 0.0
    %1192 = vmatprep.subr.mxu0 0.0
    %1193 = vmatpush1.msra.mxu0 0.0
    %1194 = vmatprep.subr.mxu0 0.0
    %1195 = vmatpush1.msra.mxu0 0.0
    %1196 = vmatprep.subr.mxu0 0.0
    %1197 = vmatpush1.msra.mxu0 0.0
    %1198 = vmatprep.subr.mxu0 0.0
    %1199 = vmatpush1.msra.mxu0 0.0
    %1200 = vmatprep.subr.mxu0 0.0
    %1201 = vmatpush1.msra.mxu0 0.0
    %1202 = vmatprep.subr.mxu0 0.0
    %1203 = vmatpush1.msra.mxu0 0.0
    %1204 = vmatprep.subr.mxu0 0.0
    %1205 = vmatpush1.msra.mxu0 0.0
    %1206 = vmatprep.subr.mxu0 0.0
    %1207 = vmatpush1.msra.mxu0 0.0
    %1208 = vmatprep.subr.mxu0 0.0
    %1209 = vmatpush1.msra.mxu0 0.0
    %1210 = vmatprep.subr.mxu0 0.0
    %1211 = vmatpush1.msra.mxu0 0.0
    %1212 = vmatprep.subr.mxu0 0.0
    %1213 = vmatpush1.msra.mxu0 0.0
    %1214 = vmatprep.subr.mxu0 0.0
    %1215 = vmatpush1.msra.mxu0 0.0
    %1216 = vmatprep.subr.mxu0 0.0
    %1217 = vmatpush1.msra.mxu0 0.0
    %1218 = vmatprep.subr.mxu0 0.0
    %1219 = vmatpush1.msra.mxu0 0.0
    %1220 = vmatprep.subr.mxu0 0.0
    %1221 = vmatpush1.msra.mxu0 0.0
    %1222 = vmatprep.subr.mxu0 0.0
    %1223 = vmatpush1.msra.mxu0 0.0
    %1224 = vmatprep.subr.mxu0 0.0
    %1225 = vmatpush1.msra.mxu0 0.0
    %1226 = vmatprep.subr.mxu0 0.0
    %1227 = vmatpush1.msra.mxu0 0.0
    %1228 = vmatprep.subr.mxu0 0.0
    %1229 = vmatpush1.msra.mxu0 0.0
    %1230 = vmatprep.subr.mxu0 0.0
    %1231 = vmatpush1.msra.mxu0 0.0
    %1232 = vmatprep.subr.mxu0 0.0
    %1233 = vmatpush1.msra.mxu0 0.0
    %1234 = vmatprep.subr.mxu0 0.0
    %1235 = vmatpush1.msra.mxu0 0.0
    %1236 = vmatprep.subr.mxu0 0.0
    %1237 = vmatpush1.msra.mxu0 0.0
    %1238 = vmatprep.subr.mxu0 0.0
    %1239 = vmatpush1.msra.mxu0 0.0
    %1240 = vmatprep.subr.mxu0 0.0
    %1241 = vmatpush1.msra.mxu0 0.0
    %1242 = vmatprep.mubr.f32.mxu0 0.0
    %1243 = vmatmul.mubr.f32.gmra.mrb[0].mxu0 %v458
    %v1244 = vpop.f32.mrb[0].mxu0
    %v1245 = vadd.f32 %v811, %v1244
    %v1246 = vpop.f32.mrb[0].mxu0
    %1247 = vdwg.mxu0
    %1248 = vmatprep.subr.mxu0 0.0
    %1249 = vmatpush1.msra.mxu0 %v764
    %1250 = vmatprep.subr.mxu0 0.0
    %1251 = vmatpush1.msra.mxu0 %v765
    %1252 = vmatprep.subr.mxu0 0.0
    %1253 = vmatpush1.msra.mxu0 %v766
    %1254 = vmatprep.subr.mxu0 0.0
    %1255 = vmatpush1.msra.mxu0 %v767
    %1256 = vmatprep.subr.mxu0 0.0
    %1257 = vmatpush1.msra.mxu0 0.0
    %1258 = vmatprep.subr.mxu0 0.0
    %1259 = vmatpush1.msra.mxu0 0.0
    %1260 = vmatprep.subr.mxu0 0.0
    %1261 = vmatpush1.msra.mxu0 0.0
    %1262 = vmatprep.subr.mxu0 0.0
    %1263 = vmatpush1.msra.mxu0 0.0
    %1264 = vmatprep.subr.mxu0 0.0
    %1265 = vmatpush1.msra.mxu0 0.0
    %1266 = vmatprep.subr.mxu0 0.0
    %1267 = vmatpush1.msra.mxu0 0.0
    %1268 = vmatprep.subr.mxu0 0.0
    %1269 = vmatpush1.msra.mxu0 0.0
    %1270 = vmatprep.subr.mxu0 0.0
    %1271 = vmatpush1.msra.mxu0 0.0
    %1272 = vmatprep.subr.mxu0 0.0
    %1273 = vmatpush1.msra.mxu0 0.0
    %1274 = vmatprep.subr.mxu0 0.0
    %1275 = vmatpush1.msra.mxu0 0.0
    %1276 = vmatprep.subr.mxu0 0.0
    %1277 = vmatpush1.msra.mxu0 0.0
    %1278 = vmatprep.subr.mxu0 0.0
    %1279 = vmatpush1.msra.mxu0 0.0
    %1280 = vmatprep.subr.mxu0 0.0
    %1281 = vmatpush1.msra.mxu0 0.0
    %1282 = vmatprep.subr.mxu0 0.0
    %1283 = vmatpush1.msra.mxu0 0.0
    %1284 = vmatprep.subr.mxu0 0.0
    %1285 = vmatpush1.msra.mxu0 0.0
    %1286 = vmatprep.subr.mxu0 0.0
    %1287 = vmatpush1.msra.mxu0 0.0
    %1288 = vmatprep.subr.mxu0 0.0
    %1289 = vmatpush1.msra.mxu0 0.0
    %1290 = vmatprep.subr.mxu0 0.0
    %1291 = vmatpush1.msra.mxu0 0.0
    %1292 = vmatprep.subr.mxu0 0.0
    %1293 = vmatpush1.msra.mxu0 0.0
    %1294 = vmatprep.subr.mxu0 0.0
    %1295 = vmatpush1.msra.mxu0 0.0
    %1296 = vmatprep.subr.mxu0 0.0
    %1297 = vmatpush1.msra.mxu0 0.0
    %1298 = vmatprep.subr.mxu0 0.0
    %1299 = vmatpush1.msra.mxu0 0.0
    %1300 = vmatprep.subr.mxu0 0.0
    %1301 = vmatpush1.msra.mxu0 0.0
    %1302 = vmatprep.subr.mxu0 0.0
    %1303 = vmatpush1.msra.mxu0 0.0
    %1304 = vmatprep.subr.mxu0 0.0
    %1305 = vmatpush1.msra.mxu0 0.0
    %1306 = vmatprep.subr.mxu0 0.0
    %1307 = vmatpush1.msra.mxu0 0.0
    %1308 = vmatprep.subr.mxu0 0.0
    %1309 = vmatpush1.msra.mxu0 0.0
    %1310 = vmatprep.subr.mxu0 0.0
    %1311 = vmatpush1.msra.mxu0 0.0
    %1312 = vmatprep.mubr.f32.mxu0 0.0
    %1313 = vmatmul.mubr.f32.gmra.mrb[0].mxu0 %v458
    %v1314 = vpop.f32.mrb[0].mxu0
    %v1315 = vadd.f32 %v815, %v1314
    %v1316 = vpop.f32.mrb[0].mxu0
    %1317 = vdwg.mxu0
    %1318 = vmatprep.subr.mxu0 0.0
    %1319 = vmatpush1.msra.mxu0 %v768
    %1320 = vmatprep.subr.mxu0 0.0
    %1321 = vmatpush1.msra.mxu0 %v769
    %1322 = vmatprep.subr.mxu0 0.0
    %1323 = vmatpush1.msra.mxu0 %v770
    %1324 = vmatprep.subr.mxu0 0.0
    %1325 = vmatpush1.msra.mxu0 %v771
    %1326 = vmatprep.subr.mxu0 0.0
    %1327 = vmatpush1.msra.mxu0 0.0
    %1328 = vmatprep.subr.mxu0 0.0
    %1329 = vmatpush1.msra.mxu0 0.0
    %1330 = vmatprep.subr.mxu0 0.0
    %1331 = vmatpush1.msra.mxu0 0.0
    %1332 = vmatprep.subr.mxu0 0.0
    %1333 = vmatpush1.msra.mxu0 0.0
    %1334 = vmatprep.subr.mxu0 0.0
    %1335 = vmatpush1.msra.mxu0 0.0
    %1336 = vmatprep.subr.mxu0 0.0
    %1337 = vmatpush1.msra.mxu0 0.0
    %1338 = vmatprep.subr.mxu0 0.0
    %1339 = vmatpush1.msra.mxu0 0.0
    %1340 = vmatprep.subr.mxu0 0.0
    %1341 = vmatpush1.msra.mxu0 0.0
    %1342 = vmatprep.subr.mxu0 0.0
    %1343 = vmatpush1.msra.mxu0 0.0
    %1344 = vmatprep.subr.mxu0 0.0
    %1345 = vmatpush1.msra.mxu0 0.0
    %1346 = vmatprep.subr.mxu0 0.0
    %1347 = vmatpush1.msra.mxu0 0.0
    %1348 = vmatprep.subr.mxu0 0.0
    %1349 = vmatpush1.msra.mxu0 0.0
    %1350 = vmatprep.subr.mxu0 0.0
    %1351 = vmatpush1.msra.mxu0 0.0
    %1352 = vmatprep.subr.mxu0 0.0
    %1353 = vmatpush1.msra.mxu0 0.0
    %1354 = vmatprep.subr.mxu0 0.0
    %1355 = vmatpush1.msra.mxu0 0.0
    %1356 = vmatprep.subr.mxu0 0.0
    %1357 = vmatpush1.msra.mxu0 0.0
    %1358 = vmatprep.subr.mxu0 0.0
    %1359 = vmatpush1.msra.mxu0 0.0
    %1360 = vmatprep.subr.mxu0 0.0
    %1361 = vmatpush1.msra.mxu0 0.0
    %1362 = vmatprep.subr.mxu0 0.0
    %1363 = vmatpush1.msra.mxu0 0.0
    %1364 = vmatprep.subr.mxu0 0.0
    %1365 = vmatpush1.msra.mxu0 0.0
    %1366 = vmatprep.subr.mxu0 0.0
    %1367 = vmatpush1.msra.mxu0 0.0
    %1368 = vmatprep.subr.mxu0 0.0
    %1369 = vmatpush1.msra.mxu0 0.0
    %1370 = vmatprep.subr.mxu0 0.0
    %1371 = vmatpush1.msra.mxu0 0.0
    %1372 = vmatprep.subr.mxu0 0.0
    %1373 = vmatpush1.msra.mxu0 0.0
    %1374 = vmatprep.subr.mxu0 0.0
    %1375 = vmatpush1.msra.mxu0 0.0
    %1376 = vmatprep.subr.mxu0 0.0
    %1377 = vmatpush1.msra.mxu0 0.0
    %1378 = vmatprep.subr.mxu0 0.0
    %1379 = vmatpush1.msra.mxu0 0.0
    %1380 = vmatprep.subr.mxu0 0.0
    %1381 = vmatpush1.msra.mxu0 0.0
    %1382 = vmatprep.mubr.f32.mxu0 0.0
    %1383 = vmatmul.mubr.f32.gmra.mrb[0].mxu0 %v458
    %v1384 = vpop.f32.mrb[0].mxu0
    %v1385 = vadd.f32 %v819, %v1384
    %v1386 = vpop.f32.mrb[0].mxu0
    %1387 = vdwg.mxu0
    %v1388 = vld [vmem:[%s6] sm:$0xff]
    %v1389 = vld [vmem:[%s6 + $0x8] sm:$0xff]
    %v1390 = vld [vmem:[%s6 + $0x10] sm:$0xff]
    %v1391 = vld [vmem:[%s6 + $0x18] sm:$0xff]
    %v1392 = vld [vmem:[%s6 + $0x20] sm:$0xff]
    %v1393 = vld [vmem:[%s6 + $0x28] sm:$0xff]
    %v1394 = vld [vmem:[%s6 + $0x30] sm:$0xff]
    %v1395 = vld [vmem:[%s6 + $0x38] sm:$0xff]
    %v1396 = vld [vmem:[%s6 + $0x40] sm:$0xff]
    %v1397 = vld [vmem:[%s6 + $0x48] sm:$0xff]
    %v1398 = vld [vmem:[%s6 + $0x50] sm:$0xff]
    %v1399 = vld [vmem:[%s6 + $0x58] sm:$0xff]
    %v1400 = vld [vmem:[%s6 + $0x60] sm:$0xff]
    %v1401 = vld [vmem:[%s6 + $0x68] sm:$0xff]
    %v1402 = vld [vmem:[%s6 + $0x70] sm:$0xff]
    %v1403 = vld [vmem:[%s6 + $0x78] sm:$0xff]
    %v1404 = vld [vmem:[%s6 + $0x80] sm:$0xff]
    %v1405 = vld [vmem:[%s6 + $0x88] sm:$0xff]
    %v1406 = vld [vmem:[%s6 + $0x90] sm:$0xff]
    %v1407 = vld [vmem:[%s6 + $0x98] sm:$0xff]
    %v1408 = vld [vmem:[%s6 + $0xa0] sm:$0xff]
    %v1409 = vld [vmem:[%s6 + $0xa8] sm:$0xff]
    %v1410 = vld [vmem:[%s6 + $0xb0] sm:$0xff]
    %v1411 = vld [vmem:[%s6 + $0xb8] sm:$0xff]
    %v1412 = vld [vmem:[%s6 + $0xc0] sm:$0xff]
    %v1413 = vld [vmem:[%s6 + $0xc8] sm:$0xff]
    %v1414 = vld [vmem:[%s6 + $0xd0] sm:$0xff]
    %v1415 = vld [vmem:[%s6 + $0xd8] sm:$0xff]
    %v1416 = vld [vmem:[%s6 + $0xe0] sm:$0xff]
    %v1417 = vld [vmem:[%s6 + $0xe8] sm:$0xff]
    %v1418 = vld [vmem:[%s6 + $0xf0] sm:$0xff]
    %v1419 = vld [vmem:[%s6 + $0xf8] sm:$0xff]
    %v1420 = vld [vmem:[%s7] sm:$0x1]
    %v1421 = vld [vmem:[%s7 + $0x1] sm:$0x1]
    %v1422 = vld [vmem:[%s7 + $0x2] sm:$0x1]
    %v1423 = vld [vmem:[%s7 + $0x3] sm:$0x1]
    %v1424 = vld [vmem:[%s7 + $0x4] sm:$0x1]
    %v1425 = vld [vmem:[%s7 + $0x5] sm:$0x1]
    %v1426 = vld [vmem:[%s7 + $0x6] sm:$0x1]
    %v1427 = vld [vmem:[%s7 + $0x7] sm:$0x1]
    %v1436 = vlaneseq
    %v1437 = vshrl.u32 %v1436, 7
    %v1438 = vsub.s32 0, %v1437
    %v1439 = vrot.slane %v1420, %v1438
    %v1440 = vlaneseq
    %v1441 = vshrl.u32 %v1440, 7
    %v1442 = vsub.s32 0, %v1441
    %v1443 = vrot.slane %v1421, %v1442
    %v1444 = vlaneseq
    %v1445 = vshrl.u32 %v1444, 7
    %v1446 = vsub.s32 0, %v1445
    %v1447 = vrot.slane %v1422, %v1446
    %v1448 = vlaneseq
    %v1449 = vshrl.u32 %v1448, 7
    %v1450 = vsub.s32 0, %v1449
    %v1451 = vrot.slane %v1423, %v1450
    %v1452 = vlaneseq
    %v1453 = vshrl.u32 %v1452, 7
    %v1454 = vsub.s32 0, %v1453
    %v1455 = vrot.slane %v1424, %v1454
    %v1456 = vlaneseq
    %v1457 = vshrl.u32 %v1456, 7
    %v1458 = vsub.s32 0, %v1457
    %v1459 = vrot.slane %v1425, %v1458
    %v1460 = vlaneseq
    %v1461 = vshrl.u32 %v1460, 7
    %v1462 = vsub.s32 0, %v1461
    %v1463 = vrot.slane %v1426, %v1462
    %v1464 = vlaneseq
    %v1465 = vshrl.u32 %v1464, 7
    %v1466 = vsub.s32 0, %v1465
    %v1467 = vrot.slane %v1427, %v1466
    %1476 = vmatprep.subr.mxu0 0.0
    %1477 = vmatpush1.msra.mxu0 %v1388
    %1478 = vmatprep.subr.mxu0 0.0
    %1479 = vmatpush1.msra.mxu0 %v1389
    %1480 = vmatprep.subr.mxu0 0.0
    %1481 = vmatpush1.msra.mxu0 %v1390
    %1482 = vmatprep.subr.mxu0 0.0
    %1483 = vmatpush1.msra.mxu0 %v1391
    %1484 = vmatprep.subr.mxu0 0.0
    %1485 = vmatpush1.msra.mxu0 0.0
    %1486 = vmatprep.subr.mxu0 0.0
    %1487 = vmatpush1.msra.mxu0 0.0
    %1488 = vmatprep.subr.mxu0 0.0
    %1489 = vmatpush1.msra.mxu0 0.0
    %1490 = vmatprep.subr.mxu0 0.0
    %1491 = vmatpush1.msra.mxu0 0.0
    %1492 = vmatprep.subr.mxu0 0.0
    %1493 = vmatpush1.msra.mxu0 0.0
    %1494 = vmatprep.subr.mxu0 0.0
    %1495 = vmatpush1.msra.mxu0 0.0
    %1496 = vmatprep.subr.mxu0 0.0
    %1497 = vmatpush1.msra.mxu0 0.0
    %1498 = vmatprep.subr.mxu0 0.0
    %1499 = vmatpush1.msra.mxu0 0.0
    %1500 = vmatprep.subr.mxu0 0.0
    %1501 = vmatpush1.msra.mxu0 0.0
    %1502 = vmatprep.subr.mxu0 0.0
    %1503 = vmatpush1.msra.mxu0 0.0
    %1504 = vmatprep.subr.mxu0 0.0
    %1505 = vmatpush1.msra.mxu0 0.0
    %1506 = vmatprep.subr.mxu0 0.0
    %1507 = vmatpush1.msra.mxu0 0.0
    %1508 = vmatprep.subr.mxu0 0.0
    %1509 = vmatpush1.msra.mxu0 0.0
    %1510 = vmatprep.subr.mxu0 0.0
    %1511 = vmatpush1.msra.mxu0 0.0
    %1512 = vmatprep.subr.mxu0 0.0
    %1513 = vmatpush1.msra.mxu0 0.0
    %1514 = vmatprep.subr.mxu0 0.0
    %1515 = vmatpush1.msra.mxu0 0.0
    %1516 = vmatprep.subr.mxu0 0.0
    %1517 = vmatpush1.msra.mxu0 0.0
    %1518 = vmatprep.subr.mxu0 0.0
    %1519 = vmatpush1.msra.mxu0 0.0
    %1520 = vmatprep.subr.mxu0 0.0
    %1521 = vmatpush1.msra.mxu0 0.0
    %1522 = vmatprep.subr.mxu0 0.0
    %1523 = vmatpush1.msra.mxu0 0.0
    %1524 = vmatprep.subr.mxu0 0.0
    %1525 = vmatpush1.msra.mxu0 0.0
    %1526 = vmatprep.subr.mxu0 0.0
    %1527 = vmatpush1.msra.mxu0 0.0
    %1528 = vmatprep.subr.mxu0 0.0
    %1529 = vmatpush1.msra.mxu0 0.0
    %1530 = vmatprep.subr.mxu0 0.0
    %1531 = vmatpush1.msra.mxu0 0.0
    %1532 = vmatprep.subr.mxu0 0.0
    %1533 = vmatpush1.msra.mxu0 0.0
    %1534 = vmatprep.subr.mxu0 0.0
    %1535 = vmatpush1.msra.mxu0 0.0
    %1536 = vmatprep.subr.mxu0 0.0
    %1537 = vmatpush1.msra.mxu0 0.0
    %1538 = vmatprep.subr.mxu0 0.0
    %1539 = vmatpush1.msra.mxu0 0.0
    %1540 = vmatprep.mubr.f32.mxu0 0.0
    %1541 = vmatmul.mubr.f32.gmra.mrb[0].mxu0 %v175
    %v1542 = vpop.f32.mrb[0].mxu0
    %v1543 = vadd.f32 %v1439, %v1542
    %v1544 = vpop.f32.mrb[0].mxu0
    %1545 = vdwg.mxu0
    %1546 = vmatprep.subr.mxu0 0.0
    %1547 = vmatpush1.msra.mxu0 %v1392
    %1548 = vmatprep.subr.mxu0 0.0
    %1549 = vmatpush1.msra.mxu0 %v1393
    %1550 = vmatprep.subr.mxu0 0.0
    %1551 = vmatpush1.msra.mxu0 %v1394
    %1552 = vmatprep.subr.mxu0 0.0
    %1553 = vmatpush1.msra.mxu0 %v1395
    %1554 = vmatprep.subr.mxu0 0.0
    %1555 = vmatpush1.msra.mxu0 0.0
    %1556 = vmatprep.subr.mxu0 0.0
    %1557 = vmatpush1.msra.mxu0 0.0
    %1558 = vmatprep.subr.mxu0 0.0
    %1559 = vmatpush1.msra.mxu0 0.0
    %1560 = vmatprep.subr.mxu0 0.0
    %1561 = vmatpush1.msra.mxu0 0.0
    %1562 = vmatprep.subr.mxu0 0.0
    %1563 = vmatpush1.msra.mxu0 0.0
    %1564 = vmatprep.subr.mxu0 0.0
    %1565 = vmatpush1.msra.mxu0 0.0
    %1566 = vmatprep.subr.mxu0 0.0
    %1567 = vmatpush1.msra.mxu0 0.0
    %1568 = vmatprep.subr.mxu0 0.0
    %1569 = vmatpush1.msra.mxu0 0.0
    %1570 = vmatprep.subr.mxu0 0.0
    %1571 = vmatpush1.msra.mxu0 0.0
    %1572 = vmatprep.subr.mxu0 0.0
    %1573 = vmatpush1.msra.mxu0 0.0
    %1574 = vmatprep.subr.mxu0 0.0
    %1575 = vmatpush1.msra.mxu0 0.0
    %1576 = vmatprep.subr.mxu0 0.0
    %1577 = vmatpush1.msra.mxu0 0.0
    %1578 = vmatprep.subr.mxu0 0.0
    %1579 = vmatpush1.msra.mxu0 0.0
    %1580 = vmatprep.subr.mxu0 0.0
    %1581 = vmatpush1.msra.mxu0 0.0
    %1582 = vmatprep.subr.mxu0 0.0
    %1583 = vmatpush1.msra.mxu0 0.0
    %1584 = vmatprep.subr.mxu0 0.0
    %1585 = vmatpush1.msra.mxu0 0.0
    %1586 = vmatprep.subr.mxu0 0.0
    %1587 = vmatpush1.msra.mxu0 0.0
    %1588 = vmatprep.subr.mxu0 0.0
    %1589 = vmatpush1.msra.mxu0 0.0
    %1590 = vmatprep.subr.mxu0 0.0
    %1591 = vmatpush1.msra.mxu0 0.0
    %1592 = vmatprep.subr.mxu0 0.0
    %1593 = vmatpush1.msra.mxu0 0.0
    %1594 = vmatprep.subr.mxu0 0.0
    %1595 = vmatpush1.msra.mxu0 0.0
    %1596 = vmatprep.subr.mxu0 0.0
    %1597 = vmatpush1.msra.mxu0 0.0
    %1598 = vmatprep.subr.mxu0 0.0
    %1599 = vmatpush1.msra.mxu0 0.0
    %1600 = vmatprep.subr.mxu0 0.0
    %1601 = vmatpush1.msra.mxu0 0.0
    %1602 = vmatprep.subr.mxu0 0.0
    %1603 = vmatpush1.msra.mxu0 0.0
    %1604 = vmatprep.subr.mxu0 0.0
    %1605 = vmatpush1.msra.mxu0 0.0
    %1606 = vmatprep.subr.mxu0 0.0
    %1607 = vmatpush1.msra.mxu0 0.0
    %1608 = vmatprep.subr.mxu0 0.0
    %1609 = vmatpush1.msra.mxu0 0.0
    %1610 = vmatprep.mubr.f32.mxu0 0.0
    %1611 = vmatmul.mubr.f32.gmra.mrb[0].mxu0 %v175
    %v1612 = vpop.f32.mrb[0].mxu0
    %v1613 = vadd.f32 %v1443, %v1612
    %v1614 = vpop.f32.mrb[0].mxu0
    %1615 = vdwg.mxu0
    %1616 = vmatprep.subr.mxu0 0.0
    %1617 = vmatpush1.msra.mxu0 %v1396
    %1618 = vmatprep.subr.mxu0 0.0
    %1619 = vmatpush1.msra.mxu0 %v1397
    %1620 = vmatprep.subr.mxu0 0.0
    %1621 = vmatpush1.msra.mxu0 %v1398
    %1622 = vmatprep.subr.mxu0 0.0
    %1623 = vmatpush1.msra.mxu0 %v1399
    %1624 = vmatprep.subr.mxu0 0.0
    %1625 = vmatpush1.msra.mxu0 0.0
    %1626 = vmatprep.subr.mxu0 0.0
    %1627 = vmatpush1.msra.mxu0 0.0
    %1628 = vmatprep.subr.mxu0 0.0
    %1629 = vmatpush1.msra.mxu0 0.0
    %1630 = vmatprep.subr.mxu0 0.0
    %1631 = vmatpush1.msra.mxu0 0.0
    %1632 = vmatprep.subr.mxu0 0.0
    %1633 = vmatpush1.msra.mxu0 0.0
    %1634 = vmatprep.subr.mxu0 0.0
    %1635 = vmatpush1.msra.mxu0 0.0
    %1636 = vmatprep.subr.mxu0 0.0
    %1637 = vmatpush1.msra.mxu0 0.0
    %1638 = vmatprep.subr.mxu0 0.0
    %1639 = vmatpush1.msra.mxu0 0.0
    %1640 = vmatprep.subr.mxu0 0.0
    %1641 = vmatpush1.msra.mxu0 0.0
    %1642 = vmatprep.subr.mxu0 0.0
    %1643 = vmatpush1.msra.mxu0 0.0
    %1644 = vmatprep.subr.mxu0 0.0
    %1645 = vmatpush1.msra.mxu0 0.0
    %1646 = vmatprep.subr.mxu0 0.0
    %1647 = vmatpush1.msra.mxu0 0.0
    %1648 = vmatprep.subr.mxu0 0.0
    %1649 = vmatpush1.msra.mxu0 0.0
    %1650 = vmatprep.subr.mxu0 0.0
    %1651 = vmatpush1.msra.mxu0 0.0
    %1652 = vmatprep.subr.mxu0 0.0
    %1653 = vmatpush1.msra.mxu0 0.0
    %1654 = vmatprep.subr.mxu0 0.0
    %1655 = vmatpush1.msra.mxu0 0.0
    %1656 = vmatprep.subr.mxu0 0.0
    %1657 = vmatpush1.msra.mxu0 0.0
    %1658 = vmatprep.subr.mxu0 0.0
    %1659 = vmatpush1.msra.mxu0 0.0
    %1660 = vmatprep.subr.mxu0 0.0
    %1661 = vmatpush1.msra.mxu0 0.0
    %1662 = vmatprep.subr.mxu0 0.0
    %1663 = vmatpush1.msra.mxu0 0.0
    %1664 = vmatprep.subr.mxu0 0.0
    %1665 = vmatpush1.msra.mxu0 0.0
    %1666 = vmatprep.subr.mxu0 0.0
    %1667 = vmatpush1.msra.mxu0 0.0
    %1668 = vmatprep.subr.mxu0 0.0
    %1669 = vmatpush1.msra.mxu0 0.0
    %1670 = vmatprep.subr.mxu0 0.0
    %1671 = vmatpush1.msra.mxu0 0.0
    %1672 = vmatprep.subr.mxu0 0.0
    %1673 = vmatpush1.msra.mxu0 0.0
    %1674 = vmatprep.subr.mxu0 0.0
    %1675 = vmatpush1.msra.mxu0 0.0
    %1676 = vmatprep.subr.mxu0 0.0
    %1677 = vmatpush1.msra.mxu0 0.0
    %1678 = vmatprep.subr.mxu0 0.0
    %1679 = vmatpush1.msra.mxu0 0.0
    %1680 = vmatprep.mubr.f32.mxu0 0.0
    %1681 = vmatmul.mubr.f32.gmra.mrb[0].mxu0 %v175
    %v1682 = vpop.f32.mrb[0].mxu0
    %v1683 = vadd.f32 %v1447, %v1682
    %v1684 = vpop.f32.mrb[0].mxu0
    %1685 = vdwg.mxu0
    %1686 = vmatprep.subr.mxu0 0.0
    %1687 = vmatpush1.msra.mxu0 %v1400
    %1688 = vmatprep.subr.mxu0 0.0
    %1689 = vmatpush1.msra.mxu0 %v1401
    %1690 = vmatprep.subr.mxu0 0.0
    %1691 = vmatpush1.msra.mxu0 %v1402
    %1692 = vmatprep.subr.mxu0 0.0
    %1693 = vmatpush1.msra.mxu0 %v1403
    %1694 = vmatprep.subr.mxu0 0.0
    %1695 = vmatpush1.msra.mxu0 0.0
    %1696 = vmatprep.subr.mxu0 0.0
    %1697 = vmatpush1.msra.mxu0 0.0
    %1698 = vmatprep.subr.mxu0 0.0
    %1699 = vmatpush1.msra.mxu0 0.0
    %1700 = vmatprep.subr.mxu0 0.0
    %1701 = vmatpush1.msra.mxu0 0.0
    %1702 = vmatprep.subr.mxu0 0.0
    %1703 = vmatpush1.msra.mxu0 0.0
    %1704 = vmatprep.subr.mxu0 0.0
    %1705 = vmatpush1.msra.mxu0 0.0
    %1706 = vmatprep.subr.mxu0 0.0
    %1707 = vmatpush1.msra.mxu0 0.0
    %1708 = vmatprep.subr.mxu0 0.0
    %1709 = vmatpush1.msra.mxu0 0.0
    %1710 = vmatprep.subr.mxu0 0.0
    %1711 = vmatpush1.msra.mxu0 0.0
    %1712 = vmatprep.subr.mxu0 0.0
    %1713 = vmatpush1.msra.mxu0 0.0
    %1714 = vmatprep.subr.mxu0 0.0
    %1715 = vmatpush1.msra.mxu0 0.0
    %1716 = vmatprep.subr.mxu0 0.0
    %1717 = vmatpush1.msra.mxu0 0.0
    %1718 = vmatprep.subr.mxu0 0.0
    %1719 = vmatpush1.msra.mxu0 0.0
    %1720 = vmatprep.subr.mxu0 0.0
    %1721 = vmatpush1.msra.mxu0 0.0
    %1722 = vmatprep.subr.mxu0 0.0
    %1723 = vmatpush1.msra.mxu0 0.0
    %1724 = vmatprep.subr.mxu0 0.0
    %1725 = vmatpush1.msra.mxu0 0.0
    %1726 = vmatprep.subr.mxu0 0.0
    %1727 = vmatpush1.msra.mxu0 0.0
    %1728 = vmatprep.subr.mxu0 0.0
    %1729 = vmatpush1.msra.mxu0 0.0
    %1730 = vmatprep.subr.mxu0 0.0
    %1731 = vmatpush1.msra.mxu0 0.0
    %1732 = vmatprep.subr.mxu0 0.0
    %1733 = vmatpush1.msra.mxu0 0.0
    %1734 = vmatprep.subr.mxu0 0.0
    %1735 = vmatpush1.msra.mxu0 0.0
    %1736 = vmatprep.subr.mxu0 0.0
    %1737 = vmatpush1.msra.mxu0 0.0
    %1738 = vmatprep.subr.mxu0 0.0
    %1739 = vmatpush1.msra.mxu0 0.0
    %1740 = vmatprep.subr.mxu0 0.0
    %1741 = vmatpush1.msra.mxu0 0.0
    %1742 = vmatprep.subr.mxu0 0.0
    %1743 = vmatpush1.msra.mxu0 0.0
    %1744 = vmatprep.subr.mxu0 0.0
    %1745 = vmatpush1.msra.mxu0 0.0
    %1746 = vmatprep.subr.mxu0 0.0
    %1747 = vmatpush1.msra.mxu0 0.0
    %1748 = vmatprep.subr.mxu0 0.0
    %1749 = vmatpush1.msra.mxu0 0.0
    %1750 = vmatprep.mubr.f32.mxu0 0.0
    %1751 = vmatmul.mubr.f32.gmra.mrb[0].mxu0 %v175
    %v1752 = vpop.f32.mrb[0].mxu0
    %v1753 = vadd.f32 %v1451, %v1752
    %v1754 = vpop.f32.mrb[0].mxu0
    %1755 = vdwg.mxu0
    %1756 = vmatprep.subr.mxu0 0.0
    %1757 = vmatpush1.msra.mxu0 %v1404
    %1758 = vmatprep.subr.mxu0 0.0
    %1759 = vmatpush1.msra.mxu0 %v1405
    %1760 = vmatprep.subr.mxu0 0.0
    %1761 = vmatpush1.msra.mxu0 %v1406
    %1762 = vmatprep.subr.mxu0 0.0
    %1763 = vmatpush1.msra.mxu0 %v1407
    %1764 = vmatprep.subr.mxu0 0.0
    %1765 = vmatpush1.msra.mxu0 0.0
    %1766 = vmatprep.subr.mxu0 0.0
    %1767 = vmatpush1.msra.mxu0 0.0
    %1768 = vmatprep.subr.mxu0 0.0
    %1769 = vmatpush1.msra.mxu0 0.0
    %1770 = vmatprep.subr.mxu0 0.0
    %1771 = vmatpush1.msra.mxu0 0.0
    %1772 = vmatprep.subr.mxu0 0.0
    %1773 = vmatpush1.msra.mxu0 0.0
    %1774 = vmatprep.subr.mxu0 0.0
    %1775 = vmatpush1.msra.mxu0 0.0
    %1776 = vmatprep.subr.mxu0 0.0
    %1777 = vmatpush1.msra.mxu0 0.0
    %1778 = vmatprep.subr.mxu0 0.0
    %1779 = vmatpush1.msra.mxu0 0.0
    %1780 = vmatprep.subr.mxu0 0.0
    %1781 = vmatpush1.msra.mxu0 0.0
    %1782 = vmatprep.subr.mxu0 0.0
    %1783 = vmatpush1.msra.mxu0 0.0
    %1784 = vmatprep.subr.mxu0 0.0
    %1785 = vmatpush1.msra.mxu0 0.0
    %1786 = vmatprep.subr.mxu0 0.0
    %1787 = vmatpush1.msra.mxu0 0.0
    %1788 = vmatprep.subr.mxu0 0.0
    %1789 = vmatpush1.msra.mxu0 0.0
    %1790 = vmatprep.subr.mxu0 0.0
    %1791 = vmatpush1.msra.mxu0 0.0
    %1792 = vmatprep.subr.mxu0 0.0
    %1793 = vmatpush1.msra.mxu0 0.0
    %1794 = vmatprep.subr.mxu0 0.0
    %1795 = vmatpush1.msra.mxu0 0.0
    %1796 = vmatprep.subr.mxu0 0.0
    %1797 = vmatpush1.msra.mxu0 0.0
    %1798 = vmatprep.subr.mxu0 0.0
    %1799 = vmatpush1.msra.mxu0 0.0
    %1800 = vmatprep.subr.mxu0 0.0
    %1801 = vmatpush1.msra.mxu0 0.0
    %1802 = vmatprep.subr.mxu0 0.0
    %1803 = vmatpush1.msra.mxu0 0.0
    %1804 = vmatprep.subr.mxu0 0.0
    %1805 = vmatpush1.msra.mxu0 0.0
    %1806 = vmatprep.subr.mxu0 0.0
    %1807 = vmatpush1.msra.mxu0 0.0
    %1808 = vmatprep.subr.mxu0 0.0
    %1809 = vmatpush1.msra.mxu0 0.0
    %1810 = vmatprep.subr.mxu0 0.0
    %1811 = vmatpush1.msra.mxu0 0.0
    %1812 = vmatprep.subr.mxu0 0.0
    %1813 = vmatpush1.msra.mxu0 0.0
    %1814 = vmatprep.subr.mxu0 0.0
    %1815 = vmatpush1.msra.mxu0 0.0
    %1816 = vmatprep.subr.mxu0 0.0
    %1817 = vmatpush1.msra.mxu0 0.0
    %1818 = vmatprep.subr.mxu0 0.0
    %1819 = vmatpush1.msra.mxu0 0.0
    %1820 = vmatprep.mubr.f32.mxu0 0.0
    %1821 = vmatmul.mubr.f32.gmra.mrb[0].mxu0 %v458
    %v1822 = vpop.f32.mrb[0].mxu0
    %v1823 = vadd.f32 %v1455, %v1822
    %v1824 = vpop.f32.mrb[0].mxu0
    %1825 = vdwg.mxu0
    %1826 = vmatprep.subr.mxu0 0.0
    %1827 = vmatpush1.msra.mxu0 %v1408
    %1828 = vmatprep.subr.mxu0 0.0
    %1829 = vmatpush1.msra.mxu0 %v1409
    %1830 = vmatprep.subr.mxu0 0.0
    %1831 = vmatpush1.msra.mxu0 %v1410
    %1832 = vmatprep.subr.mxu0 0.0
    %1833 = vmatpush1.msra.mxu0 %v1411
    %1834 = vmatprep.subr.mxu0 0.0
    %1835 = vmatpush1.msra.mxu0 0.0
    %1836 = vmatprep.subr.mxu0 0.0
    %1837 = vmatpush1.msra.mxu0 0.0
    %1838 = vmatprep.subr.mxu0 0.0
    %1839 = vmatpush1.msra.mxu0 0.0
    %1840 = vmatprep.subr.mxu0 0.0
    %1841 = vmatpush1.msra.mxu0 0.0
    %1842 = vmatprep.subr.mxu0 0.0
    %1843 = vmatpush1.msra.mxu0 0.0
    %1844 = vmatprep.subr.mxu0 0.0
    %1845 = vmatpush1.msra.mxu0 0.0
    %1846 = vmatprep.subr.mxu0 0.0
    %1847 = vmatpush1.msra.mxu0 0.0
    %1848 = vmatprep.subr.mxu0 0.0
    %1849 = vmatpush1.msra.mxu0 0.0
    %1850 = vmatprep.subr.mxu0 0.0
    %1851 = vmatpush1.msra.mxu0 0.0
    %1852 = vmatprep.subr.mxu0 0.0
    %1853 = vmatpush1.msra.mxu0 0.0
    %1854 = vmatprep.subr.mxu0 0.0
    %1855 = vmatpush1.msra.mxu0 0.0
    %1856 = vmatprep.subr.mxu0 0.0
    %1857 = vmatpush1.msra.mxu0 0.0
    %1858 = vmatprep.subr.mxu0 0.0
    %1859 = vmatpush1.msra.mxu0 0.0
    %1860 = vmatprep.subr.mxu0 0.0
    %1861 = vmatpush1.msra.mxu0 0.0
    %1862 = vmatprep.subr.mxu0 0.0
    %1863 = vmatpush1.msra.mxu0 0.0
    %1864 = vmatprep.subr.mxu0 0.0
    %1865 = vmatpush1.msra.mxu0 0.0
    %1866 = vmatprep.subr.mxu0 0.0
    %1867 = vmatpush1.msra.mxu0 0.0
    %1868 = vmatprep.subr.mxu0 0.0
    %1869 = vmatpush1.msra.mxu0 0.0
    %1870 = vmatprep.subr.mxu0 0.0
    %1871 = vmatpush1.msra.mxu0 0.0
    %1872 = vmatprep.subr.mxu0 0.0
    %1873 = vmatpush1.msra.mxu0 0.0
    %1874 = vmatprep.subr.mxu0 0.0
    %1875 = vmatpush1.msra.mxu0 0.0
    %1876 = vmatprep.subr.mxu0 0.0
    %1877 = vmatpush1.msra.mxu0 0.0
    %1878 = vmatprep.subr.mxu0 0.0
    %1879 = vmatpush1.msra.mxu0 0.0
    %1880 = vmatprep.subr.mxu0 0.0
    %1881 = vmatpush1.msra.mxu0 0.0
    %1882 = vmatprep.subr.mxu0 0.0
    %1883 = vmatpush1.msra.mxu0 0.0
    %1884 = vmatprep.subr.mxu0 0.0
    %1885 = vmatpush1.msra.mxu0 0.0
    %1886 = vmatprep.subr.mxu0 0.0
    %1887 = vmatpush1.msra.mxu0 0.0
    %1888 = vmatprep.subr.mxu0 0.0
    %1889 = vmatpush1.msra.mxu0 0.0
    %1890 = vmatprep.mubr.f32.mxu0 0.0
    %1891 = vmatmul.mubr.f32.gmra.mrb[0].mxu0 %v458
    %v1892 = vpop.f32.mrb[0].mxu0
    %v1893 = vadd.f32 %v1459, %v1892
    %v1894 = vpop.f32.mrb[0].mxu0
    %1895 = vdwg.mxu0
    %1896 = vmatprep.subr.mxu0 0.0
    %1897 = vmatpush1.msra.mxu0 %v1412
    %1898 = vmatprep.subr.mxu0 0.0
    %1899 = vmatpush1.msra.mxu0 %v1413
    %1900 = vmatprep.subr.mxu0 0.0
    %1901 = vmatpush1.msra.mxu0 %v1414
    %1902 = vmatprep.subr.mxu0 0.0
    %1903 = vmatpush1.msra.mxu0 %v1415
    %1904 = vmatprep.subr.mxu0 0.0
    %1905 = vmatpush1.msra.mxu0 0.0
    %1906 = vmatprep.subr.mxu0 0.0
    %1907 = vmatpush1.msra.mxu0 0.0
    %1908 = vmatprep.subr.mxu0 0.0
    %1909 = vmatpush1.msra.mxu0 0.0
    %1910 = vmatprep.subr.mxu0 0.0
    %1911 = vmatpush1.msra.mxu0 0.0
    %1912 = vmatprep.subr.mxu0 0.0
    %1913 = vmatpush1.msra.mxu0 0.0
    %1914 = vmatprep.subr.mxu0 0.0
    %1915 = vmatpush1.msra.mxu0 0.0
    %1916 = vmatprep.subr.mxu0 0.0
    %1917 = vmatpush1.msra.mxu0 0.0
    %1918 = vmatprep.subr.mxu0 0.0
    %1919 = vmatpush1.msra.mxu0 0.0
    %1920 = vmatprep.subr.mxu0 0.0
    %1921 = vmatpush1.msra.mxu0 0.0
    %1922 = vmatprep.subr.mxu0 0.0
    %1923 = vmatpush1.msra.mxu0 0.0
    %1924 = vmatprep.subr.mxu0 0.0
    %1925 = vmatpush1.msra.mxu0 0.0
    %1926 = vmatprep.subr.mxu0 0.0
    %1927 = vmatpush1.msra.mxu0 0.0
    %1928 = vmatprep.subr.mxu0 0.0
    %1929 = vmatpush1.msra.mxu0 0.0
    %1930 = vmatprep.subr.mxu0 0.0
    %1931 = vmatpush1.msra.mxu0 0.0
    %1932 = vmatprep.subr.mxu0 0.0
    %1933 = vmatpush1.msra.mxu0 0.0
    %1934 = vmatprep.subr.mxu0 0.0
    %1935 = vmatpush1.msra.mxu0 0.0
    %1936 = vmatprep.subr.mxu0 0.0
    %1937 = vmatpush1.msra.mxu0 0.0
    %1938 = vmatprep.subr.mxu0 0.0
    %1939 = vmatpush1.msra.mxu0 0.0
    %1940 = vmatprep.subr.mxu0 0.0
    %1941 = vmatpush1.msra.mxu0 0.0
    %1942 = vmatprep.subr.mxu0 0.0
    %1943 = vmatpush1.msra.mxu0 0.0
    %1944 = vmatprep.subr.mxu0 0.0
    %1945 = vmatpush1.msra.mxu0 0.0
    %1946 = vmatprep.subr.mxu0 0.0
    %1947 = vmatpush1.msra.mxu0 0.0
    %1948 = vmatprep.subr.mxu0 0.0
    %1949 = vmatpush1.msra.mxu0 0.0
    %1950 = vmatprep.subr.mxu0 0.0
    %1951 = vmatpush1.msra.mxu0 0.0
    %1952 = vmatprep.subr.mxu0 0.0
    %1953 = vmatpush1.msra.mxu0 0.0
    %1954 = vmatprep.subr.mxu0 0.0
    %1955 = vmatpush1.msra.mxu0 0.0
    %1956 = vmatprep.subr.mxu0 0.0
    %1957 = vmatpush1.msra.mxu0 0.0
    %1958 = vmatprep.subr.mxu0 0.0
    %1959 = vmatpush1.msra.mxu0 0.0
    %1960 = vmatprep.mubr.f32.mxu0 0.0
    %1961 = vmatmul.mubr.f32.gmra.mrb[0].mxu0 %v458
    %v1962 = vpop.f32.mrb[0].mxu0
    %v1963 = vadd.f32 %v1463, %v1962
    %v1964 = vpop.f32.mrb[0].mxu0
    %1965 = vdwg.mxu0
    %1966 = vmatprep.subr.mxu0 0.0
    %1967 = vmatpush1.msra.mxu0 %v1416
    %1968 = vmatprep.subr.mxu0 0.0
    %1969 = vmatpush1.msra.mxu0 %v1417
    %1970 = vmatprep.subr.mxu0 0.0
    %1971 = vmatpush1.msra.mxu0 %v1418
    %1972 = vmatprep.subr.mxu0 0.0
    %1973 = vmatpush1.msra.mxu0 %v1419
    %1974 = vmatprep.subr.mxu0 0.0
    %1975 = vmatpush1.msra.mxu0 0.0
    %1976 = vmatprep.subr.mxu0 0.0
    %1977 = vmatpush1.msra.mxu0 0.0
    %1978 = vmatprep.subr.mxu0 0.0
    %1979 = vmatpush1.msra.mxu0 0.0
    %1980 = vmatprep.subr.mxu0 0.0
    %1981 = vmatpush1.msra.mxu0 0.0
    %1982 = vmatprep.subr.mxu0 0.0
    %1983 = vmatpush1.msra.mxu0 0.0
    %1984 = vmatprep.subr.mxu0 0.0
    %1985 = vmatpush1.msra.mxu0 0.0
    %1986 = vmatprep.subr.mxu0 0.0
    %1987 = vmatpush1.msra.mxu0 0.0
    %1988 = vmatprep.subr.mxu0 0.0
    %1989 = vmatpush1.msra.mxu0 0.0
    %1990 = vmatprep.subr.mxu0 0.0
    %1991 = vmatpush1.msra.mxu0 0.0
    %1992 = vmatprep.subr.mxu0 0.0
    %1993 = vmatpush1.msra.mxu0 0.0
    %1994 = vmatprep.subr.mxu0 0.0
    %1995 = vmatpush1.msra.mxu0 0.0
    %1996 = vmatprep.subr.mxu0 0.0
    %1997 = vmatpush1.msra.mxu0 0.0
    %1998 = vmatprep.subr.mxu0 0.0
    %1999 = vmatpush1.msra.mxu0 0.0
    %2000 = vmatprep.subr.mxu0 0.0
    %2001 = vmatpush1.msra.mxu0 0.0
    %2002 = vmatprep.subr.mxu0 0.0
    %2003 = vmatpush1.msra.mxu0 0.0
    %2004 = vmatprep.subr.mxu0 0.0
    %2005 = vmatpush1.msra.mxu0 0.0
    %2006 = vmatprep.subr.mxu0 0.0
    %2007 = vmatpush1.msra.mxu0 0.0
    %2008 = vmatprep.subr.mxu0 0.0
    %2009 = vmatpush1.msra.mxu0 0.0
    %2010 = vmatprep.subr.mxu0 0.0
    %2011 = vmatpush1.msra.mxu0 0.0
    %2012 = vmatprep.subr.mxu0 0.0
    %2013 = vmatpush1.msra.mxu0 0.0
    %2014 = vmatprep.subr.mxu0 0.0
    %2015 = vmatpush1.msra.mxu0 0.0
    %2016 = vmatprep.subr.mxu0 0.0
    %2017 = vmatpush1.msra.mxu0 0.0
    %2018 = vmatprep.subr.mxu0 0.0
    %2019 = vmatpush1.msra.mxu0 0.0
    %2020 = vmatprep.subr.mxu0 0.0
    %2021 = vmatpush1.msra.mxu0 0.0
    %2022 = vmatprep.subr.mxu0 0.0
    %2023 = vmatpush1.msra.mxu0 0.0
    %2024 = vmatprep.subr.mxu0 0.0
    %2025 = vmatpush1.msra.mxu0 0.0
    %2026 = vmatprep.subr.mxu0 0.0
    %2027 = vmatpush1.msra.mxu0 0.0
    %2028 = vmatprep.subr.mxu0 0.0
    %2029 = vmatpush1.msra.mxu0 0.0
    %2030 = vmatprep.mubr.f32.mxu0 0.0
    %2031 = vmatmul.mubr.f32.gmra.mrb[0].mxu0 %v458
    %v2032 = vpop.f32.mrb[0].mxu0
    %v2033 = vadd.f32 %v1467, %v2032
    %v2034 = vpop.f32.mrb[0].mxu0
    %2035 = vdwg.mxu0
    %v2044 = vlaneseq
    %v2045 = vshrl.u32 %v2044, 7
    %v2046 = vsub.s32 0, %v2045
    %v2047 = vrot.slane %v77, %v2046
    %v2048 = vlaneseq
    %v2049 = vshrl.u32 %v2048, 7
    %v2050 = vsub.s32 0, %v2049
    %v2051 = vrot.slane %v78, %v2050
    %v2052 = vlaneseq
    %v2053 = vshrl.u32 %v2052, 7
    %v2054 = vsub.s32 0, %v2053
    %v2055 = vrot.slane %v79, %v2054
    %v2056 = vlaneseq
    %v2057 = vshrl.u32 %v2056, 7
    %v2058 = vsub.s32 0, %v2057
    %v2059 = vrot.slane %v80, %v2058
    %v2060 = vlaneseq
    %v2061 = vshrl.u32 %v2060, 7
    %v2062 = vsub.s32 0, %v2061
    %v2063 = vrot.slane %v81, %v2062
    %v2064 = vlaneseq
    %v2065 = vshrl.u32 %v2064, 7
    %v2066 = vsub.s32 0, %v2065
    %v2067 = vrot.slane %v82, %v2066
    %v2068 = vlaneseq
    %v2069 = vshrl.u32 %v2068, 7
    %v2070 = vsub.s32 0, %v2069
    %v2071 = vrot.slane %v83, %v2070
    %v2072 = vlaneseq
    %v2073 = vshrl.u32 %v2072, 7
    %v2074 = vsub.s32 0, %v2073
    %v2075 = vrot.slane %v84, %v2074
    %vm2084 = vcmask 64512
    %v2086 = vsel %vm2084, %v244, 0
    %v2089 = vsel %vm2084, %v895, 0
    %2091 = vmatprep.subr.mxu0 0.0
    %2092 = vmatpush1.xpose.msra.mxu0 %v2089
    %2093 = vmatprep.subr.mxu0 0.0
    %2094 = vmatpush1.xpose.msra.mxu0 0.0
    %2095 = vmatprep.subr.mxu0 0.0
    %2096 = vmatpush1.xpose.msra.mxu0 0.0
    %2097 = vmatprep.subr.mxu0 0.0
    %2098 = vmatpush1.xpose.msra.mxu0 0.0
    %2099 = vmatprep.subr.mxu0 0.0
    %2100 = vmatpush1.xpose.msra.mxu0 0.0
    %2101 = vmatprep.subr.mxu0 0.0
    %2102 = vmatpush1.xpose.msra.mxu0 0.0
    %2103 = vmatprep.subr.mxu0 0.0
    %2104 = vmatpush1.xpose.msra.mxu0 0.0
    %2105 = vmatprep.subr.mxu0 0.0
    %2106 = vmatpush1.xpose.msra.mxu0 0.0
    %2107 = vmatprep.subr.mxu0 0.0
    %2108 = vmatpush1.xpose.msra.mxu0 0.0
    %2109 = vmatprep.subr.mxu0 0.0
    %2110 = vmatpush1.xpose.msra.mxu0 0.0
    %2111 = vmatprep.subr.mxu0 0.0
    %2112 = vmatpush1.xpose.msra.mxu0 0.0
    %2113 = vmatprep.subr.mxu0 0.0
    %2114 = vmatpush1.xpose.msra.mxu0 0.0
    %2115 = vmatprep.subr.mxu0 0.0
    %2116 = vmatpush1.xpose.msra.mxu0 0.0
    %2117 = vmatprep.subr.mxu0 0.0
    %2118 = vmatpush1.xpose.msra.mxu0 0.0
    %2119 = vmatprep.subr.mxu0 0.0
    %2120 = vmatpush1.xpose.msra.mxu0 0.0
    %2121 = vmatprep.subr.mxu0 0.0
    %2122 = vmatpush1.xpose.msra.mxu0 0.0
    %2123 = vmatprep.subr.mxu0 0.0
    %2124 = vmatpush1.xpose.msra.mxu0 0.0
    %2125 = vmatprep.subr.mxu0 0.0
    %2126 = vmatpush1.xpose.msra.mxu0 0.0
    %2127 = vmatprep.subr.mxu0 0.0
    %2128 = vmatpush1.xpose.msra.mxu0 0.0
    %2129 = vmatprep.subr.mxu0 0.0
    %2130 = vmatpush1.xpose.msra.mxu0 0.0
    %2131 = vmatprep.subr.mxu0 0.0
    %2132 = vmatpush1.xpose.msra.mxu0 0.0
    %2133 = vmatprep.subr.mxu0 0.0
    %2134 = vmatpush1.xpose.msra.mxu0 0.0
    %2135 = vmatprep.subr.mxu0 0.0
    %2136 = vmatpush1.xpose.msra.mxu0 0.0
    %2137 = vmatprep.subr.mxu0 0.0
    %2138 = vmatpush1.xpose.msra.mxu0 0.0
    %2139 = vmatprep.subr.mxu0 0.0
    %2140 = vmatpush1.xpose.msra.mxu0 0.0
    %2141 = vmatprep.subr.mxu0 0.0
    %2142 = vmatpush1.xpose.msra.mxu0 0.0
    %2143 = vmatprep.subr.mxu0 0.0
    %2144 = vmatpush1.xpose.msra.mxu0 0.0
    %2145 = vmatprep.subr.mxu0 0.0
    %2146 = vmatpush1.xpose.msra.mxu0 0.0
    %2147 = vmatprep.subr.mxu0 0.0
    %2148 = vmatpush1.xpose.msra.mxu0 0.0
    %2149 = vmatprep.subr.mxu0 0.0
    %2150 = vmatpush1.xpose.msra.mxu0 0.0
    %2151 = vmatprep.subr.mxu0 0.0
    %2152 = vmatpush1.xpose.msra.mxu0 0.0
    %2153 = vmatprep.subr.mxu0 0.0
    %2154 = vmatpush1.xpose.msra.mxu0 0.0
    %2155 = vmatprep.mubr.f32.mxu0 0.0
    %2156 = vmatmul.mubr.f32.gmra.mrb[0].mxu0 %v2086
    %v2157 = vpop.f32.mrb[0].mxu0
    %v2158 = vadd.f32 %v2047, %v2157
    %v2159 = vpop.f32.mrb[0].mxu0
    %2160 = vdwg.mxu0
    %v2162 = vsel %vm2084, %v314, 0
    %v2165 = vsel %vm2084, %v965, 0
    %2167 = vmatprep.subr.mxu0 0.0
    %2168 = vmatpush1.xpose.msra.mxu0 %v2165
    %2169 = vmatprep.subr.mxu0 0.0
    %2170 = vmatpush1.xpose.msra.mxu0 0.0
    %2171 = vmatprep.subr.mxu0 0.0
    %2172 = vmatpush1.xpose.msra.mxu0 0.0
    %2173 = vmatprep.subr.mxu0 0.0
    %2174 = vmatpush1.xpose.msra.mxu0 0.0
    %2175 = vmatprep.subr.mxu0 0.0
    %2176 = vmatpush1.xpose.msra.mxu0 0.0
    %2177 = vmatprep.subr.mxu0 0.0
    %2178 = vmatpush1.xpose.msra.mxu0 0.0
    %2179 = vmatprep.subr.mxu0 0.0
    %2180 = vmatpush1.xpose.msra.mxu0 0.0
    %2181 = vmatprep.subr.mxu0 0.0
    %2182 = vmatpush1.xpose.msra.mxu0 0.0
    %2183 = vmatprep.subr.mxu0 0.0
    %2184 = vmatpush1.xpose.msra.mxu0 0.0
    %2185 = vmatprep.subr.mxu0 0.0
    %2186 = vmatpush1.xpose.msra.mxu0 0.0
    %2187 = vmatprep.subr.mxu0 0.0
    %2188 = vmatpush1.xpose.msra.mxu0 0.0
    %2189 = vmatprep.subr.mxu0 0.0
    %2190 = vmatpush1.xpose.msra.mxu0 0.0
    %2191 = vmatprep.subr.mxu0 0.0
    %2192 = vmatpush1.xpose.msra.mxu0 0.0
    %2193 = vmatprep.subr.mxu0 0.0
    %2194 = vmatpush1.xpose.msra.mxu0 0.0
    %2195 = vmatprep.subr.mxu0 0.0
    %2196 = vmatpush1.xpose.msra.mxu0 0.0
    %2197 = vmatprep.subr.mxu0 0.0
    %2198 = vmatpush1.xpose.msra.mxu0 0.0
    %2199 = vmatprep.subr.mxu0 0.0
    %2200 = vmatpush1.xpose.msra.mxu0 0.0
    %2201 = vmatprep.subr.mxu0 0.0
    %2202 = vmatpush1.xpose.msra.mxu0 0.0
    %2203 = vmatprep.subr.mxu0 0.0
    %2204 = vmatpush1.xpose.msra.mxu0 0.0
    %2205 = vmatprep.subr.mxu0 0.0
    %2206 = vmatpush1.xpose.msra.mxu0 0.0
    %2207 = vmatprep.subr.mxu0 0.0
    %2208 = vmatpush1.xpose.msra.mxu0 0.0
    %2209 = vmatprep.subr.mxu0 0.0
    %2210 = vmatpush1.xpose.msra.mxu0 0.0
    %2211 = vmatprep.subr.mxu0 0.0
    %2212 = vmatpush1.xpose.msra.mxu0 0.0
    %2213 = vmatprep.subr.mxu0 0.0
    %2214 = vmatpush1.xpose.msra.mxu0 0.0
    %2215 = vmatprep.subr.mxu0 0.0
    %2216 = vmatpush1.xpose.msra.mxu0 0.0
    %2217 = vmatprep.subr.mxu0 0.0
    %2218 = vmatpush1.xpose.msra.mxu0 0.0
    %2219 = vmatprep.subr.mxu0 0.0
    %2220 = vmatpush1.xpose.msra.mxu0 0.0
    %2221 = vmatprep.subr.mxu0 0.0
    %2222 = vmatpush1.xpose.msra.mxu0 0.0
    %2223 = vmatprep.subr.mxu0 0.0
    %2224 = vmatpush1.xpose.msra.mxu0 0.0
    %2225 = vmatprep.subr.mxu0 0.0
    %2226 = vmatpush1.xpose.msra.mxu0 0.0
    %2227 = vmatprep.subr.mxu0 0.0
    %2228 = vmatpush1.xpose.msra.mxu0 0.0
    %2229 = vmatprep.subr.mxu0 0.0
    %2230 = vmatpush1.xpose.msra.mxu0 0.0
    %2231 = vmatprep.mubr.f32.mxu0 0.0
    %2232 = vmatmul.mubr.f32.gmra.mrb[0].mxu0 %v2162
    %v2233 = vpop.f32.mrb[0].mxu0
    %v2234 = vadd.f32 %v2051, %v2233
    %v2235 = vpop.f32.mrb[0].mxu0
    %2236 = vdwg.mxu0
    %v2238 = vsel %vm2084, %v384, 0
    %v2241 = vsel %vm2084, %v1035, 0
    %2243 = vmatprep.subr.mxu0 0.0
    %2244 = vmatpush1.xpose.msra.mxu0 %v2241
    %2245 = vmatprep.subr.mxu0 0.0
    %2246 = vmatpush1.xpose.msra.mxu0 0.0
    %2247 = vmatprep.subr.mxu0 0.0
    %2248 = vmatpush1.xpose.msra.mxu0 0.0
    %2249 = vmatprep.subr.mxu0 0.0
    %2250 = vmatpush1.xpose.msra.mxu0 0.0
    %2251 = vmatprep.subr.mxu0 0.0
    %2252 = vmatpush1.xpose.msra.mxu0 0.0
    %2253 = vmatprep.subr.mxu0 0.0
    %2254 = vmatpush1.xpose.msra.mxu0 0.0
    %2255 = vmatprep.subr.mxu0 0.0
    %2256 = vmatpush1.xpose.msra.mxu0 0.0
    %2257 = vmatprep.subr.mxu0 0.0
    %2258 = vmatpush1.xpose.msra.mxu0 0.0
    %2259 = vmatprep.subr.mxu0 0.0
    %2260 = vmatpush1.xpose.msra.mxu0 0.0
    %2261 = vmatprep.subr.mxu0 0.0
    %2262 = vmatpush1.xpose.msra.mxu0 0.0
    %2263 = vmatprep.subr.mxu0 0.0
    %2264 = vmatpush1.xpose.msra.mxu0 0.0
    %2265 = vmatprep.subr.mxu0 0.0
    %2266 = vmatpush1.xpose.msra.mxu0 0.0
    %2267 = vmatprep.subr.mxu0 0.0
    %2268 = vmatpush1.xpose.msra.mxu0 0.0
    %2269 = vmatprep.subr.mxu0 0.0
    %2270 = vmatpush1.xpose.msra.mxu0 0.0
    %2271 = vmatprep.subr.mxu0 0.0
    %2272 = vmatpush1.xpose.msra.mxu0 0.0
    %2273 = vmatprep.subr.mxu0 0.0
    %2274 = vmatpush1.xpose.msra.mxu0 0.0
    %2275 = vmatprep.subr.mxu0 0.0
    %2276 = vmatpush1.xpose.msra.mxu0 0.0
    %2277 = vmatprep.subr.mxu0 0.0
    %2278 = vmatpush1.xpose.msra.mxu0 0.0
    %2279 = vmatprep.subr.mxu0 0.0
    %2280 = vmatpush1.xpose.msra.mxu0 0.0
    %2281 = vmatprep.subr.mxu0 0.0
    %2282 = vmatpush1.xpose.msra.mxu0 0.0
    %2283 = vmatprep.subr.mxu0 0.0
    %2284 = vmatpush1.xpose.msra.mxu0 0.0
    %2285 = vmatprep.subr.mxu0 0.0
    %2286 = vmatpush1.xpose.msra.mxu0 0.0
    %2287 = vmatprep.subr.mxu0 0.0
    %2288 = vmatpush1.xpose.msra.mxu0 0.0
    %2289 = vmatprep.subr.mxu0 0.0
    %2290 = vmatpush1.xpose.msra.mxu0 0.0
    %2291 = vmatprep.subr.mxu0 0.0
    %2292 = vmatpush1.xpose.msra.mxu0 0.0
    %2293 = vmatprep.subr.mxu0 0.0
    %2294 = vmatpush1.xpose.msra.mxu0 0.0
    %2295 = vmatprep.subr.mxu0 0.0
    %2296 = vmatpush1.xpose.msra.mxu0 0.0
    %2297 = vmatprep.subr.mxu0 0.0
    %2298 = vmatpush1.xpose.msra.mxu0 0.0
    %2299 = vmatprep.subr.mxu0 0.0
    %2300 = vmatpush1.xpose.msra.mxu0 0.0
    %2301 = vmatprep.subr.mxu0 0.0
    %2302 = vmatpush1.xpose.msra.mxu0 0.0
    %2303 = vmatprep.subr.mxu0 0.0
    %2304 = vmatpush1.xpose.msra.mxu0 0.0
    %2305 = vmatprep.subr.mxu0 0.0
    %2306 = vmatpush1.xpose.msra.mxu0 0.0
    %2307 = vmatprep.mubr.f32.mxu0 0.0
    %2308 = vmatmul.mubr.f32.gmra.mrb[0].mxu0 %v2238
    %v2309 = vpop.f32.mrb[0].mxu0
    %v2310 = vadd.f32 %v2055, %v2309
    %v2311 = vpop.f32.mrb[0].mxu0
    %2312 = vdwg.mxu0
    %v2314 = vsel %vm2084, %v454, 0
    %v2317 = vsel %vm2084, %v1105, 0
    %2319 = vmatprep.subr.mxu0 0.0
    %2320 = vmatpush1.xpose.msra.mxu0 %v2317
    %2321 = vmatprep.subr.mxu0 0.0
    %2322 = vmatpush1.xpose.msra.mxu0 0.0
    %2323 = vmatprep.subr.mxu0 0.0
    %2324 = vmatpush1.xpose.msra.mxu0 0.0
    %2325 = vmatprep.subr.mxu0 0.0
    %2326 = vmatpush1.xpose.msra.mxu0 0.0
    %2327 = vmatprep.subr.mxu0 0.0
    %2328 = vmatpush1.xpose.msra.mxu0 0.0
    %2329 = vmatprep.subr.mxu0 0.0
    %2330 = vmatpush1.xpose.msra.mxu0 0.0
    %2331 = vmatprep.subr.mxu0 0.0
    %2332 = vmatpush1.xpose.msra.mxu0 0.0
    %2333 = vmatprep.subr.mxu0 0.0
    %2334 = vmatpush1.xpose.msra.mxu0 0.0
    %2335 = vmatprep.subr.mxu0 0.0
    %2336 = vmatpush1.xpose.msra.mxu0 0.0
    %2337 = vmatprep.subr.mxu0 0.0
    %2338 = vmatpush1.xpose.msra.mxu0 0.0
    %2339 = vmatprep.subr.mxu0 0.0
    %2340 = vmatpush1.xpose.msra.mxu0 0.0
    %2341 = vmatprep.subr.mxu0 0.0
    %2342 = vmatpush1.xpose.msra.mxu0 0.0
    %2343 = vmatprep.subr.mxu0 0.0
    %2344 = vmatpush1.xpose.msra.mxu0 0.0
    %2345 = vmatprep.subr.mxu0 0.0
    %2346 = vmatpush1.xpose.msra.mxu0 0.0
    %2347 = vmatprep.subr.mxu0 0.0
    %2348 = vmatpush1.xpose.msra.mxu0 0.0
    %2349 = vmatprep.subr.mxu0 0.0
    %2350 = vmatpush1.xpose.msra.mxu0 0.0
    %2351 = vmatprep.subr.mxu0 0.0
    %2352 = vmatpush1.xpose.msra.mxu0 0.0
    %2353 = vmatprep.subr.mxu0 0.0
    %2354 = vmatpush1.xpose.msra.mxu0 0.0
    %2355 = vmatprep.subr.mxu0 0.0
    %2356 = vmatpush1.xpose.msra.mxu0 0.0
    %2357 = vmatprep.subr.mxu0 0.0
    %2358 = vmatpush1.xpose.msra.mxu0 0.0
    %2359 = vmatprep.subr.mxu0 0.0
    %2360 = vmatpush1.xpose.msra.mxu0 0.0
    %2361 = vmatprep.subr.mxu0 0.0
    %2362 = vmatpush1.xpose.msra.mxu0 0.0
    %2363 = vmatprep.subr.mxu0 0.0
    %2364 = vmatpush1.xpose.msra.mxu0 0.0
    %2365 = vmatprep.subr.mxu0 0.0
    %2366 = vmatpush1.xpose.msra.mxu0 0.0
    %2367 = vmatprep.subr.mxu0 0.0
    %2368 = vmatpush1.xpose.msra.mxu0 0.0
    %2369 = vmatprep.subr.mxu0 0.0
    %2370 = vmatpush1.xpose.msra.mxu0 0.0
    %2371 = vmatprep.subr.mxu0 0.0
    %2372 = vmatpush1.xpose.msra.mxu0 0.0
    %2373 = vmatprep.subr.mxu0 0.0
    %2374 = vmatpush1.xpose.msra.mxu0 0.0
    %2375 = vmatprep.subr.mxu0 0.0
    %2376 = vmatpush1.xpose.msra.mxu0 0.0
    %2377 = vmatprep.subr.mxu0 0.0
    %2378 = vmatpush1.xpose.msra.mxu0 0.0
    %2379 = vmatprep.subr.mxu0 0.0
    %2380 = vmatpush1.xpose.msra.mxu0 0.0
    %2381 = vmatprep.subr.mxu0 0.0
    %2382 = vmatpush1.xpose.msra.mxu0 0.0
    %2383 = vmatprep.mubr.f32.mxu0 0.0
    %2384 = vmatmul.mubr.f32.gmra.mrb[0].mxu0 %v2314
    %v2385 = vpop.f32.mrb[0].mxu0
    %v2386 = vadd.f32 %v2059, %v2385
    %v2387 = vpop.f32.mrb[0].mxu0
    %2388 = vdwg.mxu0
    %v2390 = vsel %vm2084, %v527, 0
    %v2393 = vsel %vm2084, %v1175, 0
    %2395 = vmatprep.subr.mxu0 0.0
    %2396 = vmatpush1.xpose.msra.mxu0 %v2393
    %2397 = vmatprep.subr.mxu0 0.0
    %2398 = vmatpush1.xpose.msra.mxu0 0.0
    %2399 = vmatprep.subr.mxu0 0.0
    %2400 = vmatpush1.xpose.msra.mxu0 0.0
    %2401 = vmatprep.subr.mxu0 0.0
    %2402 = vmatpush1.xpose.msra.mxu0 0.0
    %2403 = vmatprep.subr.mxu0 0.0
    %2404 = vmatpush1.xpose.msra.mxu0 0.0
    %2405 = vmatprep.subr.mxu0 0.0
    %2406 = vmatpush1.xpose.msra.mxu0 0.0
    %2407 = vmatprep.subr.mxu0 0.0
    %2408 = vmatpush1.xpose.msra.mxu0 0.0
    %2409 = vmatprep.subr.mxu0 0.0
    %2410 = vmatpush1.xpose.msra.mxu0 0.0
    %2411 = vmatprep.subr.mxu0 0.0
    %2412 = vmatpush1.xpose.msra.mxu0 0.0
    %2413 = vmatprep.subr.mxu0 0.0
    %2414 = vmatpush1.xpose.msra.mxu0 0.0
    %2415 = vmatprep.subr.mxu0 0.0
    %2416 = vmatpush1.xpose.msra.mxu0 0.0
    %2417 = vmatprep.subr.mxu0 0.0
    %2418 = vmatpush1.xpose.msra.mxu0 0.0
    %2419 = vmatprep.subr.mxu0 0.0
    %2420 = vmatpush1.xpose.msra.mxu0 0.0
    %2421 = vmatprep.subr.mxu0 0.0
    %2422 = vmatpush1.xpose.msra.mxu0 0.0
    %2423 = vmatprep.subr.mxu0 0.0
    %2424 = vmatpush1.xpose.msra.mxu0 0.0
    %2425 = vmatprep.subr.mxu0 0.0
    %2426 = vmatpush1.xpose.msra.mxu0 0.0
    %2427 = vmatprep.subr.mxu0 0.0
    %2428 = vmatpush1.xpose.msra.mxu0 0.0
    %2429 = vmatprep.subr.mxu0 0.0
    %2430 = vmatpush1.xpose.msra.mxu0 0.0
    %2431 = vmatprep.subr.mxu0 0.0
    %2432 = vmatpush1.xpose.msra.mxu0 0.0
    %2433 = vmatprep.subr.mxu0 0.0
    %2434 = vmatpush1.xpose.msra.mxu0 0.0
    %2435 = vmatprep.subr.mxu0 0.0
    %2436 = vmatpush1.xpose.msra.mxu0 0.0
    %2437 = vmatprep.subr.mxu0 0.0
    %2438 = vmatpush1.xpose.msra.mxu0 0.0
    %2439 = vmatprep.subr.mxu0 0.0
    %2440 = vmatpush1.xpose.msra.mxu0 0.0
    %2441 = vmatprep.subr.mxu0 0.0
    %2442 = vmatpush1.xpose.msra.mxu0 0.0
    %2443 = vmatprep.subr.mxu0 0.0
    %2444 = vmatpush1.xpose.msra.mxu0 0.0
    %2445 = vmatprep.subr.mxu0 0.0
    %2446 = vmatpush1.xpose.msra.mxu0 0.0
    %2447 = vmatprep.subr.mxu0 0.0
    %2448 = vmatpush1.xpose.msra.mxu0 0.0
    %2449 = vmatprep.subr.mxu0 0.0
    %2450 = vmatpush1.xpose.msra.mxu0 0.0
    %2451 = vmatprep.subr.mxu0 0.0
    %2452 = vmatpush1.xpose.msra.mxu0 0.0
    %2453 = vmatprep.subr.mxu0 0.0
    %2454 = vmatpush1.xpose.msra.mxu0 0.0
    %2455 = vmatprep.subr.mxu0 0.0
    %2456 = vmatpush1.xpose.msra.mxu0 0.0
    %2457 = vmatprep.subr.mxu0 0.0
    %2458 = vmatpush1.xpose.msra.mxu0 0.0
    %2459 = vmatprep.mubr.f32.mxu0 0.0
    %2460 = vmatmul.mubr.f32.gmra.mrb[0].mxu0 %v2390
    %v2461 = vpop.f32.mrb[0].mxu0
    %v2462 = vadd.f32 %v2063, %v2461
    %v2463 = vpop.f32.mrb[0].mxu0
    %2464 = vdwg.mxu0
    %v2466 = vsel %vm2084, %v597, 0
    %v2469 = vsel %vm2084, %v1245, 0
    %2471 = vmatprep.subr.mxu0 0.0
    %2472 = vmatpush1.xpose.msra.mxu0 %v2469
    %2473 = vmatprep.subr.mxu0 0.0
    %2474 = vmatpush1.xpose.msra.mxu0 0.0
    %2475 = vmatprep.subr.mxu0 0.0
    %2476 = vmatpush1.xpose.msra.mxu0 0.0
    %2477 = vmatprep.subr.mxu0 0.0
    %2478 = vmatpush1.xpose.msra.mxu0 0.0
    %2479 = vmatprep.subr.mxu0 0.0
    %2480 = vmatpush1.xpose.msra.mxu0 0.0
    %2481 = vmatprep.subr.mxu0 0.0
    %2482 = vmatpush1.xpose.msra.mxu0 0.0
    %2483 = vmatprep.subr.mxu0 0.0
    %2484 = vmatpush1.xpose.msra.mxu0 0.0
    %2485 = vmatprep.subr.mxu0 0.0
    %2486 = vmatpush1.xpose.msra.mxu0 0.0
    %2487 = vmatprep.subr.mxu0 0.0
    %2488 = vmatpush1.xpose.msra.mxu0 0.0
    %2489 = vmatprep.subr.mxu0 0.0
    %2490 = vmatpush1.xpose.msra.mxu0 0.0
    %2491 = vmatprep.subr.mxu0 0.0
    %2492 = vmatpush1.xpose.msra.mxu0 0.0
    %2493 = vmatprep.subr.mxu0 0.0
    %2494 = vmatpush1.xpose.msra.mxu0 0.0
    %2495 = vmatprep.subr.mxu0 0.0
    %2496 = vmatpush1.xpose.msra.mxu0 0.0
    %2497 = vmatprep.subr.mxu0 0.0
    %2498 = vmatpush1.xpose.msra.mxu0 0.0
    %2499 = vmatprep.subr.mxu0 0.0
    %2500 = vmatpush1.xpose.msra.mxu0 0.0
    %2501 = vmatprep.subr.mxu0 0.0
    %2502 = vmatpush1.xpose.msra.mxu0 0.0
    %2503 = vmatprep.subr.mxu0 0.0
    %2504 = vmatpush1.xpose.msra.mxu0 0.0
    %2505 = vmatprep.subr.mxu0 0.0
    %2506 = vmatpush1.xpose.msra.mxu0 0.0
    %2507 = vmatprep.subr.mxu0 0.0
    %2508 = vmatpush1.xpose.msra.mxu0 0.0
    %2509 = vmatprep.subr.mxu0 0.0
    %2510 = vmatpush1.xpose.msra.mxu0 0.0
    %2511 = vmatprep.subr.mxu0 0.0
    %2512 = vmatpush1.xpose.msra.mxu0 0.0
    %2513 = vmatprep.subr.mxu0 0.0
    %2514 = vmatpush1.xpose.msra.mxu0 0.0
    %2515 = vmatprep.subr.mxu0 0.0
    %2516 = vmatpush1.xpose.msra.mxu0 0.0
    %2517 = vmatprep.subr.mxu0 0.0
    %2518 = vmatpush1.xpose.msra.mxu0 0.0
    %2519 = vmatprep.subr.mxu0 0.0
    %2520 = vmatpush1.xpose.msra.mxu0 0.0
    %2521 = vmatprep.subr.mxu0 0.0
    %2522 = vmatpush1.xpose.msra.mxu0 0.0
    %2523 = vmatprep.subr.mxu0 0.0
    %2524 = vmatpush1.xpose.msra.mxu0 0.0
    %2525 = vmatprep.subr.mxu0 0.0
    %2526 = vmatpush1.xpose.msra.mxu0 0.0
    %2527 = vmatprep.subr.mxu0 0.0
    %2528 = vmatpush1.xpose.msra.mxu0 0.0
    %2529 = vmatprep.subr.mxu0 0.0
    %2530 = vmatpush1.xpose.msra.mxu0 0.0
    %2531 = vmatprep.subr.mxu0 0.0
    %2532 = vmatpush1.xpose.msra.mxu0 0.0
    %2533 = vmatprep.subr.mxu0 0.0
    %2534 = vmatpush1.xpose.msra.mxu0 0.0
    %2535 = vmatprep.mubr.f32.mxu0 0.0
    %2536 = vmatmul.mubr.f32.gmra.mrb[0].mxu0 %v2466
    %v2537 = vpop.f32.mrb[0].mxu0
    %v2538 = vadd.f32 %v2067, %v2537
    %v2539 = vpop.f32.mrb[0].mxu0
    %2540 = vdwg.mxu0
    %v2542 = vsel %vm2084, %v667, 0
    %v2545 = vsel %vm2084, %v1315, 0
    %2547 = vmatprep.subr.mxu0 0.0
    %2548 = vmatpush1.xpose.msra.mxu0 %v2545
    %2549 = vmatprep.subr.mxu0 0.0
    %2550 = vmatpush1.xpose.msra.mxu0 0.0
    %2551 = vmatprep.subr.mxu0 0.0
    %2552 = vmatpush1.xpose.msra.mxu0 0.0
    %2553 = vmatprep.subr.mxu0 0.0
    %2554 = vmatpush1.xpose.msra.mxu0 0.0
    %2555 = vmatprep.subr.mxu0 0.0
    %2556 = vmatpush1.xpose.msra.mxu0 0.0
    %2557 = vmatprep.subr.mxu0 0.0
    %2558 = vmatpush1.xpose.msra.mxu0 0.0
    %2559 = vmatprep.subr.mxu0 0.0
    %2560 = vmatpush1.xpose.msra.mxu0 0.0
    %2561 = vmatprep.subr.mxu0 0.0
    %2562 = vmatpush1.xpose.msra.mxu0 0.0
    %2563 = vmatprep.subr.mxu0 0.0
    %2564 = vmatpush1.xpose.msra.mxu0 0.0
    %2565 = vmatprep.subr.mxu0 0.0
    %2566 = vmatpush1.xpose.msra.mxu0 0.0
    %2567 = vmatprep.subr.mxu0 0.0
    %2568 = vmatpush1.xpose.msra.mxu0 0.0
    %2569 = vmatprep.subr.mxu0 0.0
    %2570 = vmatpush1.xpose.msra.mxu0 0.0
    %2571 = vmatprep.subr.mxu0 0.0
    %2572 = vmatpush1.xpose.msra.mxu0 0.0
    %2573 = vmatprep.subr.mxu0 0.0
    %2574 = vmatpush1.xpose.msra.mxu0 0.0
    %2575 = vmatprep.subr.mxu0 0.0
    %2576 = vmatpush1.xpose.msra.mxu0 0.0
    %2577 = vmatprep.subr.mxu0 0.0
    %2578 = vmatpush1.xpose.msra.mxu0 0.0
    %2579 = vmatprep.subr.mxu0 0.0
    %2580 = vmatpush1.xpose.msra.mxu0 0.0
    %2581 = vmatprep.subr.mxu0 0.0
    %2582 = vmatpush1.xpose.msra.mxu0 0.0
    %2583 = vmatprep.subr.mxu0 0.0
    %2584 = vmatpush1.xpose.msra.mxu0 0.0
    %2585 = vmatprep.subr.mxu0 0.0
    %2586 = vmatpush1.xpose.msra.mxu0 0.0
    %2587 = vmatprep.subr.mxu0 0.0
    %2588 = vmatpush1.xpose.msra.mxu0 0.0
    %2589 = vmatprep.subr.mxu0 0.0
    %2590 = vmatpush1.xpose.msra.mxu0 0.0
    %2591 = vmatprep.subr.mxu0 0.0
    %2592 = vmatpush1.xpose.msra.mxu0 0.0
    %2593 = vmatprep.subr.mxu0 0.0
    %2594 = vmatpush1.xpose.msra.mxu0 0.0
    %2595 = vmatprep.subr.mxu0 0.0
    %2596 = vmatpush1.xpose.msra.mxu0 0.0
    %2597 = vmatprep.subr.mxu0 0.0
    %2598 = vmatpush1.xpose.msra.mxu0 0.0
    %2599 = vmatprep.subr.mxu0 0.0
    %2600 = vmatpush1.xpose.msra.mxu0 0.0
    %2601 = vmatprep.subr.mxu0 0.0
    %2602 = vmatpush1.xpose.msra.mxu0 0.0
    %2603 = vmatprep.subr.mxu0 0.0
    %2604 = vmatpush1.xpose.msra.mxu0 0.0
    %2605 = vmatprep.subr.mxu0 0.0
    %2606 = vmatpush1.xpose.msra.mxu0 0.0
    %2607 = vmatprep.subr.mxu0 0.0
    %2608 = vmatpush1.xpose.msra.mxu0 0.0
    %2609 = vmatprep.subr.mxu0 0.0
    %2610 = vmatpush1.xpose.msra.mxu0 0.0
    %2611 = vmatprep.mubr.f32.mxu0 0.0
    %2612 = vmatmul.mubr.f32.gmra.mrb[0].mxu0 %v2542
    %v2613 = vpop.f32.mrb[0].mxu0
    %v2614 = vadd.f32 %v2071, %v2613
    %v2615 = vpop.f32.mrb[0].mxu0
    %2616 = vdwg.mxu0
    %v2618 = vsel %vm2084, %v737, 0
    %v2621 = vsel %vm2084, %v1385, 0
    %2623 = vmatprep.subr.mxu0 0.0
    %2624 = vmatpush1.xpose.msra.mxu0 %v2621
    %2625 = vmatprep.subr.mxu0 0.0
    %2626 = vmatpush1.xpose.msra.mxu0 0.0
    %2627 = vmatprep.subr.mxu0 0.0
    %2628 = vmatpush1.xpose.msra.mxu0 0.0
    %2629 = vmatprep.subr.mxu0 0.0
    %2630 = vmatpush1.xpose.msra.mxu0 0.0
    %2631 = vmatprep.subr.mxu0 0.0
    %2632 = vmatpush1.xpose.msra.mxu0 0.0
    %2633 = vmatprep.subr.mxu0 0.0
    %2634 = vmatpush1.xpose.msra.mxu0 0.0
    %2635 = vmatprep.subr.mxu0 0.0
    %2636 = vmatpush1.xpose.msra.mxu0 0.0
    %2637 = vmatprep.subr.mxu0 0.0
    %2638 = vmatpush1.xpose.msra.mxu0 0.0
    %2639 = vmatprep.subr.mxu0 0.0
    %2640 = vmatpush1.xpose.msra.mxu0 0.0
    %2641 = vmatprep.subr.mxu0 0.0
    %2642 = vmatpush1.xpose.msra.mxu0 0.0
    %2643 = vmatprep.subr.mxu0 0.0
    %2644 = vmatpush1.xpose.msra.mxu0 0.0
    %2645 = vmatprep.subr.mxu0 0.0
    %2646 = vmatpush1.xpose.msra.mxu0 0.0
    %2647 = vmatprep.subr.mxu0 0.0
    %2648 = vmatpush1.xpose.msra.mxu0 0.0
    %2649 = vmatprep.subr.mxu0 0.0
    %2650 = vmatpush1.xpose.msra.mxu0 0.0
    %2651 = vmatprep.subr.mxu0 0.0
    %2652 = vmatpush1.xpose.msra.mxu0 0.0
    %2653 = vmatprep.subr.mxu0 0.0
    %2654 = vmatpush1.xpose.msra.mxu0 0.0
    %2655 = vmatprep.subr.mxu0 0.0
    %2656 = vmatpush1.xpose.msra.mxu0 0.0
    %2657 = vmatprep.subr.mxu0 0.0
    %2658 = vmatpush1.xpose.msra.mxu0 0.0
    %2659 = vmatprep.subr.mxu0 0.0
    %2660 = vmatpush1.xpose.msra.mxu0 0.0
    %2661 = vmatprep.subr.mxu0 0.0
    %2662 = vmatpush1.xpose.msra.mxu0 0.0
    %2663 = vmatprep.subr.mxu0 0.0
    %2664 = vmatpush1.xpose.msra.mxu0 0.0
    %2665 = vmatprep.subr.mxu0 0.0
    %2666 = vmatpush1.xpose.msra.mxu0 0.0
    %2667 = vmatprep.subr.mxu0 0.0
    %2668 = vmatpush1.xpose.msra.mxu0 0.0
    %2669 = vmatprep.subr.mxu0 0.0
    %2670 = vmatpush1.xpose.msra.mxu0 0.0
    %2671 = vmatprep.subr.mxu0 0.0
    %2672 = vmatpush1.xpose.msra.mxu0 0.0
    %2673 = vmatprep.subr.mxu0 0.0
    %2674 = vmatpush1.xpose.msra.mxu0 0.0
    %2675 = vmatprep.subr.mxu0 0.0
    %2676 = vmatpush1.xpose.msra.mxu0 0.0
    %2677 = vmatprep.subr.mxu0 0.0
    %2678 = vmatpush1.xpose.msra.mxu0 0.0
    %2679 = vmatprep.subr.mxu0 0.0
    %2680 = vmatpush1.xpose.msra.mxu0 0.0
    %2681 = vmatprep.subr.mxu0 0.0
    %2682 = vmatpush1.xpose.msra.mxu0 0.0
    %2683 = vmatprep.subr.mxu0 0.0
    %2684 = vmatpush1.xpose.msra.mxu0 0.0
    %2685 = vmatprep.subr.mxu0 0.0
    %2686 = vmatpush1.xpose.msra.mxu0 0.0
    %2687 = vmatprep.mubr.f32.mxu0 0.0
    %2688 = vmatmul.mubr.f32.gmra.mrb[0].mxu0 %v2618
    %v2689 = vpop.f32.mrb[0].mxu0
    %v2690 = vadd.f32 %v2075, %v2689
    %v2691 = vpop.f32.mrb[0].mxu0
    %2692 = vdwg.mxu0
    %v2693 = vsel %vm2084, %v2158, -inf
    %2694 = vmax.xlane.f32.xlu0 %v2693
    %v2695 = vpop.xlane.xlu0 %2694
    %v2696 = vsel %vm2084, %v2234, -inf
    %2697 = vmax.xlane.f32.xlu0 %v2696
    %v2698 = vpop.xlane.xlu0 %2697
    %v2699 = vsel %vm2084, %v2310, -inf
    %2700 = vmax.xlane.f32.xlu0 %v2699
    %v2701 = vpop.xlane.xlu0 %2700
    %v2702 = vsel %vm2084, %v2386, -inf
    %2703 = vmax.xlane.f32.xlu0 %v2702
    %v2704 = vpop.xlane.xlu0 %2703
    %v2705 = vsel %vm2084, %v2462, -inf
    %2706 = vmax.xlane.f32.xlu0 %v2705
    %v2707 = vpop.xlane.xlu0 %2706
    %v2708 = vsel %vm2084, %v2538, -inf
    %2709 = vmax.xlane.f32.xlu0 %v2708
    %v2710 = vpop.xlane.xlu0 %2709
    %v2711 = vsel %vm2084, %v2614, -inf
    %2712 = vmax.xlane.f32.xlu0 %v2711
    %v2713 = vpop.xlane.xlu0 %2712
    %v2714 = vsel %vm2084, %v2690, -inf
    %2715 = vmax.xlane.f32.xlu0 %v2714
    %v2716 = vpop.xlane.xlu0 %2715
    %v2717 = vsub.f32 %v2158, %v2695
    %v2718 = vsub.f32 %v2234, %v2698
    %v2719 = vsub.f32 %v2310, %v2701
    %v2720 = vsub.f32 %v2386, %v2704
    %v2721 = vsub.f32 %v2462, %v2707
    %v2722 = vsub.f32 %v2538, %v2710
    %v2723 = vsub.f32 %v2614, %v2713
    %v2724 = vsub.f32 %v2690, %v2716
    %v2725 = vmul.f32 %v2717, 1.442695
    %v2726 = vpow.pop %v2725
    %v2727 = vmul.f32 %v2718, 1.442695
    %v2728 = vpow.pop %v2727
    %v2729 = vmul.f32 %v2719, 1.442695
    %v2730 = vpow.pop %v2729
    %v2731 = vmul.f32 %v2720, 1.442695
    %v2732 = vpow.pop %v2731
    %v2733 = vmul.f32 %v2721, 1.442695
    %v2734 = vpow.pop %v2733
    %v2735 = vmul.f32 %v2722, 1.442695
    %v2736 = vpow.pop %v2735
    %v2737 = vmul.f32 %v2723, 1.442695
    %v2738 = vpow.pop %v2737
    %v2739 = vmul.f32 %v2724, 1.442695
    %v2740 = vpow.pop %v2739
    %v2741 = vsel %vm2084, %v2726, 0.0
    %2742 = vadd.xlane.f32.xlu0 %v2741
    %v2743 = vpop.xlane.xlu0 %2742
    %v2744 = vsel %vm2084, %v2728, 0.0
    %2745 = vadd.xlane.f32.xlu0 %v2744
    %v2746 = vpop.xlane.xlu0 %2745
    %v2747 = vsel %vm2084, %v2730, 0.0
    %2748 = vadd.xlane.f32.xlu0 %v2747
    %v2749 = vpop.xlane.xlu0 %2748
    %v2750 = vsel %vm2084, %v2732, 0.0
    %2751 = vadd.xlane.f32.xlu0 %v2750
    %v2752 = vpop.xlane.xlu0 %2751
    %v2753 = vsel %vm2084, %v2734, 0.0
    %2754 = vadd.xlane.f32.xlu0 %v2753
    %v2755 = vpop.xlane.xlu0 %2754
    %v2756 = vsel %vm2084, %v2736, 0.0
    %2757 = vadd.xlane.f32.xlu0 %v2756
    %v2758 = vpop.xlane.xlu0 %2757
    %v2759 = vsel %vm2084, %v2738, 0.0
    %2760 = vadd.xlane.f32.xlu0 %v2759
    %v2761 = vpop.xlane.xlu0 %2760
    %v2762 = vsel %vm2084, %v2740, 0.0
    %2763 = vadd.xlane.f32.xlu0 %v2762
    %v2764 = vpop.xlane.xlu0 %2763
    %v2765 = vrcp.pop %v2743
    %v2766 = vrcp.pop %v2746
    %v2767 = vrcp.pop %v2749
    %v2768 = vrcp.pop %v2752
    %v2769 = vrcp.pop %v2755
    %v2770 = vrcp.pop %v2758
    %v2771 = vrcp.pop %v2761
    %v2772 = vrcp.pop %v2764
    %v2773 = vmul.f32 %v2726, %v2765
    %v2774 = vmul.f32 %v2728, %v2766
    %v2775 = vmul.f32 %v2730, %v2767
    %v2776 = vmul.f32 %v2732, %v2768
    %v2777 = vmul.f32 %v2734, %v2769
    %v2778 = vmul.f32 %v2736, %v2770
    %v2779 = vmul.f32 %v2738, %v2771
    %v2780 = vmul.f32 %v2740, %v2772
    %v2782 = vsel %vm2084, %v2773, 0
    %2784 = vmatprep.subr.mxu0 0.0
    %2785 = vmatpush1.msra.mxu0 %v1543
    %2786 = vmatprep.subr.mxu0 0.0
    %2787 = vmatpush1.msra.mxu0 0.0
    %2788 = vmatprep.subr.mxu0 0.0
    %2789 = vmatpush1.msra.mxu0 0.0
    %2790 = vmatprep.subr.mxu0 0.0
    %2791 = vmatpush1.msra.mxu0 0.0
    %2792 = vmatprep.subr.mxu0 0.0
    %2793 = vmatpush1.msra.mxu0 0.0
    %2794 = vmatprep.subr.mxu0 0.0
    %2795 = vmatpush1.msra.mxu0 0.0
    %2796 = vmatprep.subr.mxu0 0.0
    %2797 = vmatpush1.msra.mxu0 0.0
    %2798 = vmatprep.subr.mxu0 0.0
    %2799 = vmatpush1.msra.mxu0 0.0
    %2800 = vmatprep.subr.mxu0 0.0
    %2801 = vmatpush1.msra.mxu0 0.0
    %2802 = vmatprep.subr.mxu0 0.0
    %2803 = vmatpush1.msra.mxu0 0.0
    %2804 = vmatprep.subr.mxu0 0.0
    %2805 = vmatpush1.msra.mxu0 0.0
    %2806 = vmatprep.subr.mxu0 0.0
    %2807 = vmatpush1.msra.mxu0 0.0
    %2808 = vmatprep.subr.mxu0 0.0
    %2809 = vmatpush1.msra.mxu0 0.0
    %2810 = vmatprep.subr.mxu0 0.0
    %2811 = vmatpush1.msra.mxu0 0.0
    %2812 = vmatprep.subr.mxu0 0.0
    %2813 = vmatpush1.msra.mxu0 0.0
    %2814 = vmatprep.subr.mxu0 0.0
    %2815 = vmatpush1.msra.mxu0 0.0
    %2816 = vmatprep.subr.mxu0 0.0
    %2817 = vmatpush1.msra.mxu0 0.0
    %2818 = vmatprep.subr.mxu0 0.0
    %2819 = vmatpush1.msra.mxu0 0.0
    %2820 = vmatprep.subr.mxu0 0.0
    %2821 = vmatpush1.msra.mxu0 0.0
    %2822 = vmatprep.subr.mxu0 0.0
    %2823 = vmatpush1.msra.mxu0 0.0
    %2824 = vmatprep.subr.mxu0 0.0
    %2825 = vmatpush1.msra.mxu0 0.0
    %2826 = vmatprep.subr.mxu0 0.0
    %2827 = vmatpush1.msra.mxu0 0.0
    %2828 = vmatprep.subr.mxu0 0.0
    %2829 = vmatpush1.msra.mxu0 0.0
    %2830 = vmatprep.subr.mxu0 0.0
    %2831 = vmatpush1.msra.mxu0 0.0
    %2832 = vmatprep.subr.mxu0 0.0
    %2833 = vmatpush1.msra.mxu0 0.0
    %2834 = vmatprep.subr.mxu0 0.0
    %2835 = vmatpush1.msra.mxu0 0.0
    %2836 = vmatprep.subr.mxu0 0.0
    %2837 = vmatpush1.msra.mxu0 0.0
    %2838 = vmatprep.subr.mxu0 0.0
    %2839 = vmatpush1.msra.mxu0 0.0
    %2840 = vmatprep.subr.mxu0 0.0
    %2841 = vmatpush1.msra.mxu0 0.0
    %2842 = vmatprep.subr.mxu0 0.0
    %2843 = vmatpush1.msra.mxu0 0.0
    %2844 = vmatprep.subr.mxu0 0.0
    %2845 = vmatpush1.msra.mxu0 0.0
    %2846 = vmatprep.subr.mxu0 0.0
    %2847 = vmatpush1.msra.mxu0 0.0
    %2848 = vmatprep.mubr.f32.mxu0 0.0
    %2849 = vmatmul.mubr.f32.gmra.mrb[0].mxu0 %v2782
    %v2850 = vpop.f32.mrb[0].mxu0
    %v2851 = vadd.f32 0.0, %v2850
    %v2852 = vpop.f32.mrb[0].mxu0
    %2853 = vdwg.mxu0
    %v2855 = vsel %vm2084, %v2774, 0
    %2857 = vmatprep.subr.mxu0 0.0
    %2858 = vmatpush1.msra.mxu0 %v1613
    %2859 = vmatprep.subr.mxu0 0.0
    %2860 = vmatpush1.msra.mxu0 0.0
    %2861 = vmatprep.subr.mxu0 0.0
    %2862 = vmatpush1.msra.mxu0 0.0
    %2863 = vmatprep.subr.mxu0 0.0
    %2864 = vmatpush1.msra.mxu0 0.0
    %2865 = vmatprep.subr.mxu0 0.0
    %2866 = vmatpush1.msra.mxu0 0.0
    %2867 = vmatprep.subr.mxu0 0.0
    %2868 = vmatpush1.msra.mxu0 0.0
    %2869 = vmatprep.subr.mxu0 0.0
    %2870 = vmatpush1.msra.mxu0 0.0
    %2871 = vmatprep.subr.mxu0 0.0
    %2872 = vmatpush1.msra.mxu0 0.0
    %2873 = vmatprep.subr.mxu0 0.0
    %2874 = vmatpush1.msra.mxu0 0.0
    %2875 = vmatprep.subr.mxu0 0.0
    %2876 = vmatpush1.msra.mxu0 0.0
    %2877 = vmatprep.subr.mxu0 0.0
    %2878 = vmatpush1.msra.mxu0 0.0
    %2879 = vmatprep.subr.mxu0 0.0
    %2880 = vmatpush1.msra.mxu0 0.0
    %2881 = vmatprep.subr.mxu0 0.0
    %2882 = vmatpush1.msra.mxu0 0.0
    %2883 = vmatprep.subr.mxu0 0.0
    %2884 = vmatpush1.msra.mxu0 0.0
    %2885 = vmatprep.subr.mxu0 0.0
    %2886 = vmatpush1.msra.mxu0 0.0
    %2887 = vmatprep.subr.mxu0 0.0
    %2888 = vmatpush1.msra.mxu0 0.0
    %2889 = vmatprep.subr.mxu0 0.0
    %2890 = vmatpush1.msra.mxu0 0.0
    %2891 = vmatprep.subr.mxu0 0.0
    %2892 = vmatpush1.msra.mxu0 0.0
    %2893 = vmatprep.subr.mxu0 0.0
    %2894 = vmatpush1.msra.mxu0 0.0
    %2895 = vmatprep.subr.mxu0 0.0
    %2896 = vmatpush1.msra.mxu0 0.0
    %2897 = vmatprep.subr.mxu0 0.0
    %2898 = vmatpush1.msra.mxu0 0.0
    %2899 = vmatprep.subr.mxu0 0.0
    %2900 = vmatpush1.msra.mxu0 0.0
    %2901 = vmatprep.subr.mxu0 0.0
    %2902 = vmatpush1.msra.mxu0 0.0
    %2903 = vmatprep.subr.mxu0 0.0
    %2904 = vmatpush1.msra.mxu0 0.0
    %2905 = vmatprep.subr.mxu0 0.0
    %2906 = vmatpush1.msra.mxu0 0.0
    %2907 = vmatprep.subr.mxu0 0.0
    %2908 = vmatpush1.msra.mxu0 0.0
    %2909 = vmatprep.subr.mxu0 0.0
    %2910 = vmatpush1.msra.mxu0 0.0
    %2911 = vmatprep.subr.mxu0 0.0
    %2912 = vmatpush1.msra.mxu0 0.0
    %2913 = vmatprep.subr.mxu0 0.0
    %2914 = vmatpush1.msra.mxu0 0.0
    %2915 = vmatprep.subr.mxu0 0.0
    %2916 = vmatpush1.msra.mxu0 0.0
    %2917 = vmatprep.subr.mxu0 0.0
    %2918 = vmatpush1.msra.mxu0 0.0
    %2919 = vmatprep.subr.mxu0 0.0
    %2920 = vmatpush1.msra.mxu0 0.0
    %2921 = vmatprep.mubr.f32.mxu0 0.0
    %2922 = vmatmul.mubr.f32.gmra.mrb[0].mxu0 %v2855
    %v2923 = vpop.f32.mrb[0].mxu0
    %v2924 = vadd.f32 0.0, %v2923
    %v2925 = vpop.f32.mrb[0].mxu0
    %2926 = vdwg.mxu0
    %v2928 = vsel %vm2084, %v2775, 0
    %2930 = vmatprep.subr.mxu0 0.0
    %2931 = vmatpush1.msra.mxu0 %v1683
    %2932 = vmatprep.subr.mxu0 0.0
    %2933 = vmatpush1.msra.mxu0 0.0
    %2934 = vmatprep.subr.mxu0 0.0
    %2935 = vmatpush1.msra.mxu0 0.0
    %2936 = vmatprep.subr.mxu0 0.0
    %2937 = vmatpush1.msra.mxu0 0.0
    %2938 = vmatprep.subr.mxu0 0.0
    %2939 = vmatpush1.msra.mxu0 0.0
    %2940 = vmatprep.subr.mxu0 0.0
    %2941 = vmatpush1.msra.mxu0 0.0
    %2942 = vmatprep.subr.mxu0 0.0
    %2943 = vmatpush1.msra.mxu0 0.0
    %2944 = vmatprep.subr.mxu0 0.0
    %2945 = vmatpush1.msra.mxu0 0.0
    %2946 = vmatprep.subr.mxu0 0.0
    %2947 = vmatpush1.msra.mxu0 0.0
    %2948 = vmatprep.subr.mxu0 0.0
    %2949 = vmatpush1.msra.mxu0 0.0
    %2950 = vmatprep.subr.mxu0 0.0
    %2951 = vmatpush1.msra.mxu0 0.0
    %2952 = vmatprep.subr.mxu0 0.0
    %2953 = vmatpush1.msra.mxu0 0.0
    %2954 = vmatprep.subr.mxu0 0.0
    %2955 = vmatpush1.msra.mxu0 0.0
    %2956 = vmatprep.subr.mxu0 0.0
    %2957 = vmatpush1.msra.mxu0 0.0
    %2958 = vmatprep.subr.mxu0 0.0
    %2959 = vmatpush1.msra.mxu0 0.0
    %2960 = vmatprep.subr.mxu0 0.0
    %2961 = vmatpush1.msra.mxu0 0.0
    %2962 = vmatprep.subr.mxu0 0.0
    %2963 = vmatpush1.msra.mxu0 0.0
    %2964 = vmatprep.subr.mxu0 0.0
    %2965 = vmatpush1.msra.mxu0 0.0
    %2966 = vmatprep.subr.mxu0 0.0
    %2967 = vmatpush1.msra.mxu0 0.0
    %2968 = vmatprep.subr.mxu0 0.0
    %2969 = vmatpush1.msra.mxu0 0.0
    %2970 = vmatprep.subr.mxu0 0.0
    %2971 = vmatpush1.msra.mxu0 0.0
    %2972 = vmatprep.subr.mxu0 0.0
    %2973 = vmatpush1.msra.mxu0 0.0
    %2974 = vmatprep.subr.mxu0 0.0
    %2975 = vmatpush1.msra.mxu0 0.0
    %2976 = vmatprep.subr.mxu0 0.0
    %2977 = vmatpush1.msra.mxu0 0.0
    %2978 = vmatprep.subr.mxu0 0.0
    %2979 = vmatpush1.msra.mxu0 0.0
    %2980 = vmatprep.subr.mxu0 0.0
    %2981 = vmatpush1.msra.mxu0 0.0
    %2982 = vmatprep.subr.mxu0 0.0
    %2983 = vmatpush1.msra.mxu0 0.0
    %2984 = vmatprep.subr.mxu0 0.0
    %2985 = vmatpush1.msra.mxu0 0.0
    %2986 = vmatprep.subr.mxu0 0.0
    %2987 = vmatpush1.msra.mxu0 0.0
    %2988 = vmatprep.subr.mxu0 0.0
    %2989 = vmatpush1.msra.mxu0 0.0
    %2990 = vmatprep.subr.mxu0 0.0
    %2991 = vmatpush1.msra.mxu0 0.0
    %2992 = vmatprep.subr.mxu0 0.0
    %2993 = vmatpush1.msra.mxu0 0.0
    %2994 = vmatprep.mubr.f32.mxu0 0.0
    %2995 = vmatmul.mubr.f32.gmra.mrb[0].mxu0 %v2928
    %v2996 = vpop.f32.mrb[0].mxu0
    %v2997 = vadd.f32 0.0, %v2996
    %v2998 = vpop.f32.mrb[0].mxu0
    %2999 = vdwg.mxu0
    %v3001 = vsel %vm2084, %v2776, 0
    %3003 = vmatprep.subr.mxu0 0.0
    %3004 = vmatpush1.msra.mxu0 %v1753
    %3005 = vmatprep.subr.mxu0 0.0
    %3006 = vmatpush1.msra.mxu0 0.0
    %3007 = vmatprep.subr.mxu0 0.0
    %3008 = vmatpush1.msra.mxu0 0.0
    %3009 = vmatprep.subr.mxu0 0.0
    %3010 = vmatpush1.msra.mxu0 0.0
    %3011 = vmatprep.subr.mxu0 0.0
    %3012 = vmatpush1.msra.mxu0 0.0
    %3013 = vmatprep.subr.mxu0 0.0
    %3014 = vmatpush1.msra.mxu0 0.0
    %3015 = vmatprep.subr.mxu0 0.0
    %3016 = vmatpush1.msra.mxu0 0.0
    %3017 = vmatprep.subr.mxu0 0.0
    %3018 = vmatpush1.msra.mxu0 0.0
    %3019 = vmatprep.subr.mxu0 0.0
    %3020 = vmatpush1.msra.mxu0 0.0
    %3021 = vmatprep.subr.mxu0 0.0
    %3022 = vmatpush1.msra.mxu0 0.0
    %3023 = vmatprep.subr.mxu0 0.0
    %3024 = vmatpush1.msra.mxu0 0.0
    %3025 = vmatprep.subr.mxu0 0.0
    %3026 = vmatpush1.msra.mxu0 0.0
    %3027 = vmatprep.subr.mxu0 0.0
    %3028 = vmatpush1.msra.mxu0 0.0
    %3029 = vmatprep.subr.mxu0 0.0
    %3030 = vmatpush1.msra.mxu0 0.0
    %3031 = vmatprep.subr.mxu0 0.0
    %3032 = vmatpush1.msra.mxu0 0.0
    %3033 = vmatprep.subr.mxu0 0.0
    %3034 = vmatpush1.msra.mxu0 0.0
    %3035 = vmatprep.subr.mxu0 0.0
    %3036 = vmatpush1.msra.mxu0 0.0
    %3037 = vmatprep.subr.mxu0 0.0
    %3038 = vmatpush1.msra.mxu0 0.0
    %3039 = vmatprep.subr.mxu0 0.0
    %3040 = vmatpush1.msra.mxu0 0.0
    %3041 = vmatprep.subr.mxu0 0.0
    %3042 = vmatpush1.msra.mxu0 0.0
    %3043 = vmatprep.subr.mxu0 0.0
    %3044 = vmatpush1.msra.mxu0 0.0
    %3045 = vmatprep.subr.mxu0 0.0
    %3046 = vmatpush1.msra.mxu0 0.0
    %3047 = vmatprep.subr.mxu0 0.0
    %3048 = vmatpush1.msra.mxu0 0.0
    %3049 = vmatprep.subr.mxu0 0.0
    %3050 = vmatpush1.msra.mxu0 0.0
    %3051 = vmatprep.subr.mxu0 0.0
    %3052 = vmatpush1.msra.mxu0 0.0
    %3053 = vmatprep.subr.mxu0 0.0
    %3054 = vmatpush1.msra.mxu0 0.0
    %3055 = vmatprep.subr.mxu0 0.0
    %3056 = vmatpush1.msra.mxu0 0.0
    %3057 = vmatprep.subr.mxu0 0.0
    %3058 = vmatpush1.msra.mxu0 0.0
    %3059 = vmatprep.subr.mxu0 0.0
    %3060 = vmatpush1.msra.mxu0 0.0
    %3061 = vmatprep.subr.mxu0 0.0
    %3062 = vmatpush1.msra.mxu0 0.0
    %3063 = vmatprep.subr.mxu0 0.0
    %3064 = vmatpush1.msra.mxu0 0.0
    %3065 = vmatprep.subr.mxu0 0.0
    %3066 = vmatpush1.msra.mxu0 0.0
    %3067 = vmatprep.mubr.f32.mxu0 0.0
    %3068 = vmatmul.mubr.f32.gmra.mrb[0].mxu0 %v3001
    %v3069 = vpop.f32.mrb[0].mxu0
    %v3070 = vadd.f32 0.0, %v3069
    %v3071 = vpop.f32.mrb[0].mxu0
    %3072 = vdwg.mxu0
    %v3074 = vsel %vm2084, %v2777, 0
    %3076 = vmatprep.subr.mxu0 0.0
    %3077 = vmatpush1.msra.mxu0 %v1823
    %3078 = vmatprep.subr.mxu0 0.0
    %3079 = vmatpush1.msra.mxu0 0.0
    %3080 = vmatprep.subr.mxu0 0.0
    %3081 = vmatpush1.msra.mxu0 0.0
    %3082 = vmatprep.subr.mxu0 0.0
    %3083 = vmatpush1.msra.mxu0 0.0
    %3084 = vmatprep.subr.mxu0 0.0
    %3085 = vmatpush1.msra.mxu0 0.0
    %3086 = vmatprep.subr.mxu0 0.0
    %3087 = vmatpush1.msra.mxu0 0.0
    %3088 = vmatprep.subr.mxu0 0.0
    %3089 = vmatpush1.msra.mxu0 0.0
    %3090 = vmatprep.subr.mxu0 0.0
    %3091 = vmatpush1.msra.mxu0 0.0
    %3092 = vmatprep.subr.mxu0 0.0
    %3093 = vmatpush1.msra.mxu0 0.0
    %3094 = vmatprep.subr.mxu0 0.0
    %3095 = vmatpush1.msra.mxu0 0.0
    %3096 = vmatprep.subr.mxu0 0.0
    %3097 = vmatpush1.msra.mxu0 0.0
    %3098 = vmatprep.subr.mxu0 0.0
    %3099 = vmatpush1.msra.mxu0 0.0
    %3100 = vmatprep.subr.mxu0 0.0
    %3101 = vmatpush1.msra.mxu0 0.0
    %3102 = vmatprep.subr.mxu0 0.0
    %3103 = vmatpush1.msra.mxu0 0.0
    %3104 = vmatprep.subr.mxu0 0.0
    %3105 = vmatpush1.msra.mxu0 0.0
    %3106 = vmatprep.subr.mxu0 0.0
    %3107 = vmatpush1.msra.mxu0 0.0
    %3108 = vmatprep.subr.mxu0 0.0
    %3109 = vmatpush1.msra.mxu0 0.0
    %3110 = vmatprep.subr.mxu0 0.0
    %3111 = vmatpush1.msra.mxu0 0.0
    %3112 = vmatprep.subr.mxu0 0.0
    %3113 = vmatpush1.msra.mxu0 0.0
    %3114 = vmatprep.subr.mxu0 0.0
    %3115 = vmatpush1.msra.mxu0 0.0
    %3116 = vmatprep.subr.mxu0 0.0
    %3117 = vmatpush1.msra.mxu0 0.0
    %3118 = vmatprep.subr.mxu0 0.0
    %3119 = vmatpush1.msra.mxu0 0.0
    %3120 = vmatprep.subr.mxu0 0.0
    %3121 = vmatpush1.msra.mxu0 0.0
    %3122 = vmatprep.subr.mxu0 0.0
    %3123 = vmatpush1.msra.mxu0 0.0
    %3124 = vmatprep.subr.mxu0 0.0
    %3125 = vmatpush1.msra.mxu0 0.0
    %3126 = vmatprep.subr.mxu0 0.0
    %3127 = vmatpush1.msra.mxu0 0.0
    %3128 = vmatprep.subr.mxu0 0.0
    %3129 = vmatpush1.msra.mxu0 0.0
    %3130 = vmatprep.subr.mxu0 0.0
    %3131 = vmatpush1.msra.mxu0 0.0
    %3132 = vmatprep.subr.mxu0 0.0
    %3133 = vmatpush1.msra.mxu0 0.0
    %3134 = vmatprep.subr.mxu0 0.0
    %3135 = vmatpush1.msra.mxu0 0.0
    %3136 = vmatprep.subr.mxu0 0.0
    %3137 = vmatpush1.msra.mxu0 0.0
    %3138 = vmatprep.subr.mxu0 0.0
    %3139 = vmatpush1.msra.mxu0 0.0
    %3140 = vmatprep.mubr.f32.mxu0 0.0
    %3141 = vmatmul.mubr.f32.gmra.mrb[0].mxu0 %v3074
    %v3142 = vpop.f32.mrb[0].mxu0
    %v3143 = vadd.f32 0.0, %v3142
    %v3144 = vpop.f32.mrb[0].mxu0
    %3145 = vdwg.mxu0
    %v3147 = vsel %vm2084, %v2778, 0
    %3149 = vmatprep.subr.mxu0 0.0
    %3150 = vmatpush1.msra.mxu0 %v1893
    %3151 = vmatprep.subr.mxu0 0.0
    %3152 = vmatpush1.msra.mxu0 0.0
    %3153 = vmatprep.subr.mxu0 0.0
    %3154 = vmatpush1.msra.mxu0 0.0
    %3155 = vmatprep.subr.mxu0 0.0
    %3156 = vmatpush1.msra.mxu0 0.0
    %3157 = vmatprep.subr.mxu0 0.0
    %3158 = vmatpush1.msra.mxu0 0.0
    %3159 = vmatprep.subr.mxu0 0.0
    %3160 = vmatpush1.msra.mxu0 0.0
    %3161 = vmatprep.subr.mxu0 0.0
    %3162 = vmatpush1.msra.mxu0 0.0
    %3163 = vmatprep.subr.mxu0 0.0
    %3164 = vmatpush1.msra.mxu0 0.0
    %3165 = vmatprep.subr.mxu0 0.0
    %3166 = vmatpush1.msra.mxu0 0.0
    %3167 = vmatprep.subr.mxu0 0.0
    %3168 = vmatpush1.msra.mxu0 0.0
    %3169 = vmatprep.subr.mxu0 0.0
    %3170 = vmatpush1.msra.mxu0 0.0
    %3171 = vmatprep.subr.mxu0 0.0
    %3172 = vmatpush1.msra.mxu0 0.0
    %3173 = vmatprep.subr.mxu0 0.0
    %3174 = vmatpush1.msra.mxu0 0.0
    %3175 = vmatprep.subr.mxu0 0.0
    %3176 = vmatpush1.msra.mxu0 0.0
    %3177 = vmatprep.subr.mxu0 0.0
    %3178 = vmatpush1.msra.mxu0 0.0
    %3179 = vmatprep.subr.mxu0 0.0
    %3180 = vmatpush1.msra.mxu0 0.0
    %3181 = vmatprep.subr.mxu0 0.0
    %3182 = vmatpush1.msra.mxu0 0.0
    %3183 = vmatprep.subr.mxu0 0.0
    %3184 = vmatpush1.msra.mxu0 0.0
    %3185 = vmatprep.subr.mxu0 0.0
    %3186 = vmatpush1.msra.mxu0 0.0
    %3187 = vmatprep.subr.mxu0 0.0
    %3188 = vmatpush1.msra.mxu0 0.0
    %3189 = vmatprep.subr.mxu0 0.0
    %3190 = vmatpush1.msra.mxu0 0.0
    %3191 = vmatprep.subr.mxu0 0.0
    %3192 = vmatpush1.msra.mxu0 0.0
    %3193 = vmatprep.subr.mxu0 0.0
    %3194 = vmatpush1.msra.mxu0 0.0
    %3195 = vmatprep.subr.mxu0 0.0
    %3196 = vmatpush1.msra.mxu0 0.0
    %3197 = vmatprep.subr.mxu0 0.0
    %3198 = vmatpush1.msra.mxu0 0.0
    %3199 = vmatprep.subr.mxu0 0.0
    %3200 = vmatpush1.msra.mxu0 0.0
    %3201 = vmatprep.subr.mxu0 0.0
    %3202 = vmatpush1.msra.mxu0 0.0
    %3203 = vmatprep.subr.mxu0 0.0
    %3204 = vmatpush1.msra.mxu0 0.0
    %3205 = vmatprep.subr.mxu0 0.0
    %3206 = vmatpush1.msra.mxu0 0.0
    %3207 = vmatprep.subr.mxu0 0.0
    %3208 = vmatpush1.msra.mxu0 0.0
    %3209 = vmatprep.subr.mxu0 0.0
    %3210 = vmatpush1.msra.mxu0 0.0
    %3211 = vmatprep.subr.mxu0 0.0
    %3212 = vmatpush1.msra.mxu0 0.0
    %3213 = vmatprep.mubr.f32.mxu0 0.0
    %3214 = vmatmul.mubr.f32.gmra.mrb[0].mxu0 %v3147
    %v3215 = vpop.f32.mrb[0].mxu0
    %v3216 = vadd.f32 0.0, %v3215
    %v3217 = vpop.f32.mrb[0].mxu0
    %3218 = vdwg.mxu0
    %v3220 = vsel %vm2084, %v2779, 0
    %3222 = vmatprep.subr.mxu0 0.0
    %3223 = vmatpush1.msra.mxu0 %v1963
    %3224 = vmatprep.subr.mxu0 0.0
    %3225 = vmatpush1.msra.mxu0 0.0
    %3226 = vmatprep.subr.mxu0 0.0
    %3227 = vmatpush1.msra.mxu0 0.0
    %3228 = vmatprep.subr.mxu0 0.0
    %3229 = vmatpush1.msra.mxu0 0.0
    %3230 = vmatprep.subr.mxu0 0.0
    %3231 = vmatpush1.msra.mxu0 0.0
    %3232 = vmatprep.subr.mxu0 0.0
    %3233 = vmatpush1.msra.mxu0 0.0
    %3234 = vmatprep.subr.mxu0 0.0
    %3235 = vmatpush1.msra.mxu0 0.0
    %3236 = vmatprep.subr.mxu0 0.0
    %3237 = vmatpush1.msra.mxu0 0.0
    %3238 = vmatprep.subr.mxu0 0.0
    %3239 = vmatpush1.msra.mxu0 0.0
    %3240 = vmatprep.subr.mxu0 0.0
    %3241 = vmatpush1.msra.mxu0 0.0
    %3242 = vmatprep.subr.mxu0 0.0
    %3243 = vmatpush1.msra.mxu0 0.0
    %3244 = vmatprep.subr.mxu0 0.0
    %3245 = vmatpush1.msra.mxu0 0.0
    %3246 = vmatprep.subr.mxu0 0.0
    %3247 = vmatpush1.msra.mxu0 0.0
    %3248 = vmatprep.subr.mxu0 0.0
    %3249 = vmatpush1.msra.mxu0 0.0
    %3250 = vmatprep.subr.mxu0 0.0
    %3251 = vmatpush1.msra.mxu0 0.0
    %3252 = vmatprep.subr.mxu0 0.0
    %3253 = vmatpush1.msra.mxu0 0.0
    %3254 = vmatprep.subr.mxu0 0.0
    %3255 = vmatpush1.msra.mxu0 0.0
    %3256 = vmatprep.subr.mxu0 0.0
    %3257 = vmatpush1.msra.mxu0 0.0
    %3258 = vmatprep.subr.mxu0 0.0
    %3259 = vmatpush1.msra.mxu0 0.0
    %3260 = vmatprep.subr.mxu0 0.0
    %3261 = vmatpush1.msra.mxu0 0.0
    %3262 = vmatprep.subr.mxu0 0.0
    %3263 = vmatpush1.msra.mxu0 0.0
    %3264 = vmatprep.subr.mxu0 0.0
    %3265 = vmatpush1.msra.mxu0 0.0
    %3266 = vmatprep.subr.mxu0 0.0
    %3267 = vmatpush1.msra.mxu0 0.0
    %3268 = vmatprep.subr.mxu0 0.0
    %3269 = vmatpush1.msra.mxu0 0.0
    %3270 = vmatprep.subr.mxu0 0.0
    %3271 = vmatpush1.msra.mxu0 0.0
    %3272 = vmatprep.subr.mxu0 0.0
    %3273 = vmatpush1.msra.mxu0 0.0
    %3274 = vmatprep.subr.mxu0 0.0
    %3275 = vmatpush1.msra.mxu0 0.0
    %3276 = vmatprep.subr.mxu0 0.0
    %3277 = vmatpush1.msra.mxu0 0.0
    %3278 = vmatprep.subr.mxu0 0.0
    %3279 = vmatpush1.msra.mxu0 0.0
    %3280 = vmatprep.subr.mxu0 0.0
    %3281 = vmatpush1.msra.mxu0 0.0
    %3282 = vmatprep.subr.mxu0 0.0
    %3283 = vmatpush1.msra.mxu0 0.0
    %3284 = vmatprep.subr.mxu0 0.0
    %3285 = vmatpush1.msra.mxu0 0.0
    %3286 = vmatprep.mubr.f32.mxu0 0.0
    %3287 = vmatmul.mubr.f32.gmra.mrb[0].mxu0 %v3220
    %v3288 = vpop.f32.mrb[0].mxu0
    %v3289 = vadd.f32 0.0, %v3288
    %v3290 = vpop.f32.mrb[0].mxu0
    %3291 = vdwg.mxu0
    %v3293 = vsel %vm2084, %v2780, 0
    %3295 = vmatprep.subr.mxu0 0.0
    %3296 = vmatpush1.msra.mxu0 %v2033
    %3297 = vmatprep.subr.mxu0 0.0
    %3298 = vmatpush1.msra.mxu0 0.0
    %3299 = vmatprep.subr.mxu0 0.0
    %3300 = vmatpush1.msra.mxu0 0.0
    %3301 = vmatprep.subr.mxu0 0.0
    %3302 = vmatpush1.msra.mxu0 0.0
    %3303 = vmatprep.subr.mxu0 0.0
    %3304 = vmatpush1.msra.mxu0 0.0
    %3305 = vmatprep.subr.mxu0 0.0
    %3306 = vmatpush1.msra.mxu0 0.0
    %3307 = vmatprep.subr.mxu0 0.0
    %3308 = vmatpush1.msra.mxu0 0.0
    %3309 = vmatprep.subr.mxu0 0.0
    %3310 = vmatpush1.msra.mxu0 0.0
    %3311 = vmatprep.subr.mxu0 0.0
    %3312 = vmatpush1.msra.mxu0 0.0
    %3313 = vmatprep.subr.mxu0 0.0
    %3314 = vmatpush1.msra.mxu0 0.0
    %3315 = vmatprep.subr.mxu0 0.0
    %3316 = vmatpush1.msra.mxu0 0.0
    %3317 = vmatprep.subr.mxu0 0.0
    %3318 = vmatpush1.msra.mxu0 0.0
    %3319 = vmatprep.subr.mxu0 0.0
    %3320 = vmatpush1.msra.mxu0 0.0
    %3321 = vmatprep.subr.mxu0 0.0
    %3322 = vmatpush1.msra.mxu0 0.0
    %3323 = vmatprep.subr.mxu0 0.0
    %3324 = vmatpush1.msra.mxu0 0.0
    %3325 = vmatprep.subr.mxu0 0.0
    %3326 = vmatpush1.msra.mxu0 0.0
    %3327 = vmatprep.subr.mxu0 0.0
    %3328 = vmatpush1.msra.mxu0 0.0
    %3329 = vmatprep.subr.mxu0 0.0
    %3330 = vmatpush1.msra.mxu0 0.0
    %3331 = vmatprep.subr.mxu0 0.0
    %3332 = vmatpush1.msra.mxu0 0.0
    %3333 = vmatprep.subr.mxu0 0.0
    %3334 = vmatpush1.msra.mxu0 0.0
    %3335 = vmatprep.subr.mxu0 0.0
    %3336 = vmatpush1.msra.mxu0 0.0
    %3337 = vmatprep.subr.mxu0 0.0
    %3338 = vmatpush1.msra.mxu0 0.0
    %3339 = vmatprep.subr.mxu0 0.0
    %3340 = vmatpush1.msra.mxu0 0.0
    %3341 = vmatprep.subr.mxu0 0.0
    %3342 = vmatpush1.msra.mxu0 0.0
    %3343 = vmatprep.subr.mxu0 0.0
    %3344 = vmatpush1.msra.mxu0 0.0
    %3345 = vmatprep.subr.mxu0 0.0
    %3346 = vmatpush1.msra.mxu0 0.0
    %3347 = vmatprep.subr.mxu0 0.0
    %3348 = vmatpush1.msra.mxu0 0.0
    %3349 = vmatprep.subr.mxu0 0.0
    %3350 = vmatpush1.msra.mxu0 0.0
    %3351 = vmatprep.subr.mxu0 0.0
    %3352 = vmatpush1.msra.mxu0 0.0
    %3353 = vmatprep.subr.mxu0 0.0
    %3354 = vmatpush1.msra.mxu0 0.0
    %3355 = vmatprep.subr.mxu0 0.0
    %3356 = vmatpush1.msra.mxu0 0.0
    %3357 = vmatprep.subr.mxu0 0.0
    %3358 = vmatpush1.msra.mxu0 0.0
    %3359 = vmatprep.mubr.f32.mxu0 0.0
    %3360 = vmatmul.mubr.f32.gmra.mrb[0].mxu0 %v3293
    %v3361 = vpop.f32.mrb[0].mxu0
    %v3362 = vadd.f32 0.0, %v3361
    %v3363 = vpop.f32.mrb[0].mxu0
    %3364 = vdwg.mxu0
    %v3365 = vld [vmem:[%s8] sm:$0xff]
    %v3366 = vld [vmem:[%s8 + $0x8] sm:$0xff]
    %v3367 = vld [vmem:[%s8 + $0x10] sm:$0xff]
    %v3368 = vld [vmem:[%s8 + $0x18] sm:$0xff]
    %v3369 = vld [vmem:[%s8 + $0x20] sm:$0xff]
    %v3370 = vld [vmem:[%s8 + $0x28] sm:$0xff]
    %v3371 = vld [vmem:[%s8 + $0x30] sm:$0xff]
    %v3372 = vld [vmem:[%s8 + $0x38] sm:$0xff]
    %v3374 = vsel %vm2084, %v2851, 0
    %3376 = vmatprep.subr.mxu0 0.0
    %3377 = vmatpush1.msra.mxu0 %v3365
    %3378 = vmatprep.subr.mxu0 0.0
    %3379 = vmatpush1.msra.mxu0 0.0
    %3380 = vmatprep.subr.mxu0 0.0
    %3381 = vmatpush1.msra.mxu0 0.0
    %3382 = vmatprep.subr.mxu0 0.0
    %3383 = vmatpush1.msra.mxu0 0.0
    %3384 = vmatprep.subr.mxu0 0.0
    %3385 = vmatpush1.msra.mxu0 0.0
    %3386 = vmatprep.subr.mxu0 0.0
    %3387 = vmatpush1.msra.mxu0 0.0
    %3388 = vmatprep.subr.mxu0 0.0
    %3389 = vmatpush1.msra.mxu0 0.0
    %3390 = vmatprep.subr.mxu0 0.0
    %3391 = vmatpush1.msra.mxu0 0.0
    %3392 = vmatprep.subr.mxu0 0.0
    %3393 = vmatpush1.msra.mxu0 0.0
    %3394 = vmatprep.subr.mxu0 0.0
    %3395 = vmatpush1.msra.mxu0 0.0
    %3396 = vmatprep.subr.mxu0 0.0
    %3397 = vmatpush1.msra.mxu0 0.0
    %3398 = vmatprep.subr.mxu0 0.0
    %3399 = vmatpush1.msra.mxu0 0.0
    %3400 = vmatprep.subr.mxu0 0.0
    %3401 = vmatpush1.msra.mxu0 0.0
    %3402 = vmatprep.subr.mxu0 0.0
    %3403 = vmatpush1.msra.mxu0 0.0
    %3404 = vmatprep.subr.mxu0 0.0
    %3405 = vmatpush1.msra.mxu0 0.0
    %3406 = vmatprep.subr.mxu0 0.0
    %3407 = vmatpush1.msra.mxu0 0.0
    %3408 = vmatprep.subr.mxu0 0.0
    %3409 = vmatpush1.msra.mxu0 0.0
    %3410 = vmatprep.subr.mxu0 0.0
    %3411 = vmatpush1.msra.mxu0 0.0
    %3412 = vmatprep.subr.mxu0 0.0
    %3413 = vmatpush1.msra.mxu0 0.0
    %3414 = vmatprep.subr.mxu0 0.0
    %3415 = vmatpush1.msra.mxu0 0.0
    %3416 = vmatprep.subr.mxu0 0.0
    %3417 = vmatpush1.msra.mxu0 0.0
    %3418 = vmatprep.subr.mxu0 0.0
    %3419 = vmatpush1.msra.mxu0 0.0
    %3420 = vmatprep.subr.mxu0 0.0
    %3421 = vmatpush1.msra.mxu0 0.0
    %3422 = vmatprep.subr.mxu0 0.0
    %3423 = vmatpush1.msra.mxu0 0.0
    %3424 = vmatprep.subr.mxu0 0.0
    %3425 = vmatpush1.msra.mxu0 0.0
    %3426 = vmatprep.subr.mxu0 0.0
    %3427 = vmatpush1.msra.mxu0 0.0
    %3428 = vmatprep.subr.mxu0 0.0
    %3429 = vmatpush1.msra.mxu0 0.0
    %3430 = vmatprep.subr.mxu0 0.0
    %3431 = vmatpush1.msra.mxu0 0.0
    %3432 = vmatprep.subr.mxu0 0.0
    %3433 = vmatpush1.msra.mxu0 0.0
    %3434 = vmatprep.subr.mxu0 0.0
    %3435 = vmatpush1.msra.mxu0 0.0
    %3436 = vmatprep.subr.mxu0 0.0
    %3437 = vmatpush1.msra.mxu0 0.0
    %3438 = vmatprep.subr.mxu0 0.0
    %3439 = vmatpush1.msra.mxu0 0.0
    %3440 = vmatprep.mubr.f32.mxu0 0.0
    %3441 = vmatmul.mubr.f32.gmra.mrb[0].mxu0 %v3374
    %v3442 = vpop.f32.mrb[0].mxu0
    %v3443 = vadd.f32 0.0, %v3442
    %v3444 = vpop.f32.mrb[0].mxu0
    %3445 = vdwg.mxu0
    %v3447 = vsel %vm2084, %v2924, 0
    %3449 = vmatprep.subr.mxu0 0.0
    %3450 = vmatpush1.msra.mxu0 %v3366
    %3451 = vmatprep.subr.mxu0 0.0
    %3452 = vmatpush1.msra.mxu0 0.0
    %3453 = vmatprep.subr.mxu0 0.0
    %3454 = vmatpush1.msra.mxu0 0.0
    %3455 = vmatprep.subr.mxu0 0.0
    %3456 = vmatpush1.msra.mxu0 0.0
    %3457 = vmatprep.subr.mxu0 0.0
    %3458 = vmatpush1.msra.mxu0 0.0
    %3459 = vmatprep.subr.mxu0 0.0
    %3460 = vmatpush1.msra.mxu0 0.0
    %3461 = vmatprep.subr.mxu0 0.0
    %3462 = vmatpush1.msra.mxu0 0.0
    %3463 = vmatprep.subr.mxu0 0.0
    %3464 = vmatpush1.msra.mxu0 0.0
    %3465 = vmatprep.subr.mxu0 0.0
    %3466 = vmatpush1.msra.mxu0 0.0
    %3467 = vmatprep.subr.mxu0 0.0
    %3468 = vmatpush1.msra.mxu0 0.0
    %3469 = vmatprep.subr.mxu0 0.0
    %3470 = vmatpush1.msra.mxu0 0.0
    %3471 = vmatprep.subr.mxu0 0.0
    %3472 = vmatpush1.msra.mxu0 0.0
    %3473 = vmatprep.subr.mxu0 0.0
    %3474 = vmatpush1.msra.mxu0 0.0
    %3475 = vmatprep.subr.mxu0 0.0
    %3476 = vmatpush1.msra.mxu0 0.0
    %3477 = vmatprep.subr.mxu0 0.0
    %3478 = vmatpush1.msra.mxu0 0.0
    %3479 = vmatprep.subr.mxu0 0.0
    %3480 = vmatpush1.msra.mxu0 0.0
    %3481 = vmatprep.subr.mxu0 0.0
    %3482 = vmatpush1.msra.mxu0 0.0
    %3483 = vmatprep.subr.mxu0 0.0
    %3484 = vmatpush1.msra.mxu0 0.0
    %3485 = vmatprep.subr.mxu0 0.0
    %3486 = vmatpush1.msra.mxu0 0.0
    %3487 = vmatprep.subr.mxu0 0.0
    %3488 = vmatpush1.msra.mxu0 0.0
    %3489 = vmatprep.subr.mxu0 0.0
    %3490 = vmatpush1.msra.mxu0 0.0
    %3491 = vmatprep.subr.mxu0 0.0
    %3492 = vmatpush1.msra.mxu0 0.0
    %3493 = vmatprep.subr.mxu0 0.0
    %3494 = vmatpush1.msra.mxu0 0.0
    %3495 = vmatprep.subr.mxu0 0.0
    %3496 = vmatpush1.msra.mxu0 0.0
    %3497 = vmatprep.subr.mxu0 0.0
    %3498 = vmatpush1.msra.mxu0 0.0
    %3499 = vmatprep.subr.mxu0 0.0
    %3500 = vmatpush1.msra.mxu0 0.0
    %3501 = vmatprep.subr.mxu0 0.0
    %3502 = vmatpush1.msra.mxu0 0.0
    %3503 = vmatprep.subr.mxu0 0.0
    %3504 = vmatpush1.msra.mxu0 0.0
    %3505 = vmatprep.subr.mxu0 0.0
    %3506 = vmatpush1.msra.mxu0 0.0
    %3507 = vmatprep.subr.mxu0 0.0
    %3508 = vmatpush1.msra.mxu0 0.0
    %3509 = vmatprep.subr.mxu0 0.0
    %3510 = vmatpush1.msra.mxu0 0.0
    %3511 = vmatprep.subr.mxu0 0.0
    %3512 = vmatpush1.msra.mxu0 0.0
    %3513 = vmatprep.mubr.f32.mxu0 0.0
    %3514 = vmatmul.mubr.f32.gmra.mrb[0].mxu0 %v3447
    %v3515 = vpop.f32.mrb[0].mxu0
    %v3516 = vadd.f32 0.0, %v3515
    %v3517 = vpop.f32.mrb[0].mxu0
    %3518 = vdwg.mxu0
    %v3520 = vsel %vm2084, %v2997, 0
    %3522 = vmatprep.subr.mxu0 0.0
    %3523 = vmatpush1.msra.mxu0 %v3367
    %3524 = vmatprep.subr.mxu0 0.0
    %3525 = vmatpush1.msra.mxu0 0.0
    %3526 = vmatprep.subr.mxu0 0.0
    %3527 = vmatpush1.msra.mxu0 0.0
    %3528 = vmatprep.subr.mxu0 0.0
    %3529 = vmatpush1.msra.mxu0 0.0
    %3530 = vmatprep.subr.mxu0 0.0
    %3531 = vmatpush1.msra.mxu0 0.0
    %3532 = vmatprep.subr.mxu0 0.0
    %3533 = vmatpush1.msra.mxu0 0.0
    %3534 = vmatprep.subr.mxu0 0.0
    %3535 = vmatpush1.msra.mxu0 0.0
    %3536 = vmatprep.subr.mxu0 0.0
    %3537 = vmatpush1.msra.mxu0 0.0
    %3538 = vmatprep.subr.mxu0 0.0
    %3539 = vmatpush1.msra.mxu0 0.0
    %3540 = vmatprep.subr.mxu0 0.0
    %3541 = vmatpush1.msra.mxu0 0.0
    %3542 = vmatprep.subr.mxu0 0.0
    %3543 = vmatpush1.msra.mxu0 0.0
    %3544 = vmatprep.subr.mxu0 0.0
    %3545 = vmatpush1.msra.mxu0 0.0
    %3546 = vmatprep.subr.mxu0 0.0
    %3547 = vmatpush1.msra.mxu0 0.0
    %3548 = vmatprep.subr.mxu0 0.0
    %3549 = vmatpush1.msra.mxu0 0.0
    %3550 = vmatprep.subr.mxu0 0.0
    %3551 = vmatpush1.msra.mxu0 0.0
    %3552 = vmatprep.subr.mxu0 0.0
    %3553 = vmatpush1.msra.mxu0 0.0
    %3554 = vmatprep.subr.mxu0 0.0
    %3555 = vmatpush1.msra.mxu0 0.0
    %3556 = vmatprep.subr.mxu0 0.0
    %3557 = vmatpush1.msra.mxu0 0.0
    %3558 = vmatprep.subr.mxu0 0.0
    %3559 = vmatpush1.msra.mxu0 0.0
    %3560 = vmatprep.subr.mxu0 0.0
    %3561 = vmatpush1.msra.mxu0 0.0
    %3562 = vmatprep.subr.mxu0 0.0
    %3563 = vmatpush1.msra.mxu0 0.0
    %3564 = vmatprep.subr.mxu0 0.0
    %3565 = vmatpush1.msra.mxu0 0.0
    %3566 = vmatprep.subr.mxu0 0.0
    %3567 = vmatpush1.msra.mxu0 0.0
    %3568 = vmatprep.subr.mxu0 0.0
    %3569 = vmatpush1.msra.mxu0 0.0
    %3570 = vmatprep.subr.mxu0 0.0
    %3571 = vmatpush1.msra.mxu0 0.0
    %3572 = vmatprep.subr.mxu0 0.0
    %3573 = vmatpush1.msra.mxu0 0.0
    %3574 = vmatprep.subr.mxu0 0.0
    %3575 = vmatpush1.msra.mxu0 0.0
    %3576 = vmatprep.subr.mxu0 0.0
    %3577 = vmatpush1.msra.mxu0 0.0
    %3578 = vmatprep.subr.mxu0 0.0
    %3579 = vmatpush1.msra.mxu0 0.0
    %3580 = vmatprep.subr.mxu0 0.0
    %3581 = vmatpush1.msra.mxu0 0.0
    %3582 = vmatprep.subr.mxu0 0.0
    %3583 = vmatpush1.msra.mxu0 0.0
    %3584 = vmatprep.subr.mxu0 0.0
    %3585 = vmatpush1.msra.mxu0 0.0
    %3586 = vmatprep.mubr.f32.mxu0 0.0
    %3587 = vmatmul.mubr.f32.gmra.mrb[0].mxu0 %v3520
    %v3588 = vpop.f32.mrb[0].mxu0
    %v3589 = vadd.f32 0.0, %v3588
    %v3590 = vpop.f32.mrb[0].mxu0
    %3591 = vdwg.mxu0
    %v3593 = vsel %vm2084, %v3070, 0
    %3595 = vmatprep.subr.mxu0 0.0
    %3596 = vmatpush1.msra.mxu0 %v3368
    %3597 = vmatprep.subr.mxu0 0.0
    %3598 = vmatpush1.msra.mxu0 0.0
    %3599 = vmatprep.subr.mxu0 0.0
    %3600 = vmatpush1.msra.mxu0 0.0
    %3601 = vmatprep.subr.mxu0 0.0
    %3602 = vmatpush1.msra.mxu0 0.0
    %3603 = vmatprep.subr.mxu0 0.0
    %3604 = vmatpush1.msra.mxu0 0.0
    %3605 = vmatprep.subr.mxu0 0.0
    %3606 = vmatpush1.msra.mxu0 0.0
    %3607 = vmatprep.subr.mxu0 0.0
    %3608 = vmatpush1.msra.mxu0 0.0
    %3609 = vmatprep.subr.mxu0 0.0
    %3610 = vmatpush1.msra.mxu0 0.0
    %3611 = vmatprep.subr.mxu0 0.0
    %3612 = vmatpush1.msra.mxu0 0.0
    %3613 = vmatprep.subr.mxu0 0.0
    %3614 = vmatpush1.msra.mxu0 0.0
    %3615 = vmatprep.subr.mxu0 0.0
    %3616 = vmatpush1.msra.mxu0 0.0
    %3617 = vmatprep.subr.mxu0 0.0
    %3618 = vmatpush1.msra.mxu0 0.0
    %3619 = vmatprep.subr.mxu0 0.0
    %3620 = vmatpush1.msra.mxu0 0.0
    %3621 = vmatprep.subr.mxu0 0.0
    %3622 = vmatpush1.msra.mxu0 0.0
    %3623 = vmatprep.subr.mxu0 0.0
    %3624 = vmatpush1.msra.mxu0 0.0
    %3625 = vmatprep.subr.mxu0 0.0
    %3626 = vmatpush1.msra.mxu0 0.0
    %3627 = vmatprep.subr.mxu0 0.0
    %3628 = vmatpush1.msra.mxu0 0.0
    %3629 = vmatprep.subr.mxu0 0.0
    %3630 = vmatpush1.msra.mxu0 0.0
    %3631 = vmatprep.subr.mxu0 0.0
    %3632 = vmatpush1.msra.mxu0 0.0
    %3633 = vmatprep.subr.mxu0 0.0
    %3634 = vmatpush1.msra.mxu0 0.0
    %3635 = vmatprep.subr.mxu0 0.0
    %3636 = vmatpush1.msra.mxu0 0.0
    %3637 = vmatprep.subr.mxu0 0.0
    %3638 = vmatpush1.msra.mxu0 0.0
    %3639 = vmatprep.subr.mxu0 0.0
    %3640 = vmatpush1.msra.mxu0 0.0
    %3641 = vmatprep.subr.mxu0 0.0
    %3642 = vmatpush1.msra.mxu0 0.0
    %3643 = vmatprep.subr.mxu0 0.0
    %3644 = vmatpush1.msra.mxu0 0.0
    %3645 = vmatprep.subr.mxu0 0.0
    %3646 = vmatpush1.msra.mxu0 0.0
    %3647 = vmatprep.subr.mxu0 0.0
    %3648 = vmatpush1.msra.mxu0 0.0
    %3649 = vmatprep.subr.mxu0 0.0
    %3650 = vmatpush1.msra.mxu0 0.0
    %3651 = vmatprep.subr.mxu0 0.0
    %3652 = vmatpush1.msra.mxu0 0.0
    %3653 = vmatprep.subr.mxu0 0.0
    %3654 = vmatpush1.msra.mxu0 0.0
    %3655 = vmatprep.subr.mxu0 0.0
    %3656 = vmatpush1.msra.mxu0 0.0
    %3657 = vmatprep.subr.mxu0 0.0
    %3658 = vmatpush1.msra.mxu0 0.0
    %3659 = vmatprep.mubr.f32.mxu0 0.0
    %3660 = vmatmul.mubr.f32.gmra.mrb[0].mxu0 %v3593
    %v3661 = vpop.f32.mrb[0].mxu0
    %v3662 = vadd.f32 0.0, %v3661
    %v3663 = vpop.f32.mrb[0].mxu0
    %3664 = vdwg.mxu0
    %v3666 = vsel %vm2084, %v3143, 0
    %3668 = vmatprep.subr.mxu0 0.0
    %3669 = vmatpush1.msra.mxu0 %v3369
    %3670 = vmatprep.subr.mxu0 0.0
    %3671 = vmatpush1.msra.mxu0 0.0
    %3672 = vmatprep.subr.mxu0 0.0
    %3673 = vmatpush1.msra.mxu0 0.0
    %3674 = vmatprep.subr.mxu0 0.0
    %3675 = vmatpush1.msra.mxu0 0.0
    %3676 = vmatprep.subr.mxu0 0.0
    %3677 = vmatpush1.msra.mxu0 0.0
    %3678 = vmatprep.subr.mxu0 0.0
    %3679 = vmatpush1.msra.mxu0 0.0
    %3680 = vmatprep.subr.mxu0 0.0
    %3681 = vmatpush1.msra.mxu0 0.0
    %3682 = vmatprep.subr.mxu0 0.0
    %3683 = vmatpush1.msra.mxu0 0.0
    %3684 = vmatprep.subr.mxu0 0.0
    %3685 = vmatpush1.msra.mxu0 0.0
    %3686 = vmatprep.subr.mxu0 0.0
    %3687 = vmatpush1.msra.mxu0 0.0
    %3688 = vmatprep.subr.mxu0 0.0
    %3689 = vmatpush1.msra.mxu0 0.0
    %3690 = vmatprep.subr.mxu0 0.0
    %3691 = vmatpush1.msra.mxu0 0.0
    %3692 = vmatprep.subr.mxu0 0.0
    %3693 = vmatpush1.msra.mxu0 0.0
    %3694 = vmatprep.subr.mxu0 0.0
    %3695 = vmatpush1.msra.mxu0 0.0
    %3696 = vmatprep.subr.mxu0 0.0
    %3697 = vmatpush1.msra.mxu0 0.0
    %3698 = vmatprep.subr.mxu0 0.0
    %3699 = vmatpush1.msra.mxu0 0.0
    %3700 = vmatprep.subr.mxu0 0.0
    %3701 = vmatpush1.msra.mxu0 0.0
    %3702 = vmatprep.subr.mxu0 0.0
    %3703 = vmatpush1.msra.mxu0 0.0
    %3704 = vmatprep.subr.mxu0 0.0
    %3705 = vmatpush1.msra.mxu0 0.0
    %3706 = vmatprep.subr.mxu0 0.0
    %3707 = vmatpush1.msra.mxu0 0.0
    %3708 = vmatprep.subr.mxu0 0.0
    %3709 = vmatpush1.msra.mxu0 0.0
    %3710 = vmatprep.subr.mxu0 0.0
    %3711 = vmatpush1.msra.mxu0 0.0
    %3712 = vmatprep.subr.mxu0 0.0
    %3713 = vmatpush1.msra.mxu0 0.0
    %3714 = vmatprep.subr.mxu0 0.0
    %3715 = vmatpush1.msra.mxu0 0.0
    %3716 = vmatprep.subr.mxu0 0.0
    %3717 = vmatpush1.msra.mxu0 0.0
    %3718 = vmatprep.subr.mxu0 0.0
    %3719 = vmatpush1.msra.mxu0 0.0
    %3720 = vmatprep.subr.mxu0 0.0
    %3721 = vmatpush1.msra.mxu0 0.0
    %3722 = vmatprep.subr.mxu0 0.0
    %3723 = vmatpush1.msra.mxu0 0.0
    %3724 = vmatprep.subr.mxu0 0.0
    %3725 = vmatpush1.msra.mxu0 0.0
    %3726 = vmatprep.subr.mxu0 0.0
    %3727 = vmatpush1.msra.mxu0 0.0
    %3728 = vmatprep.subr.mxu0 0.0
    %3729 = vmatpush1.msra.mxu0 0.0
    %3730 = vmatprep.subr.mxu0 0.0
    %3731 = vmatpush1.msra.mxu0 0.0
    %3732 = vmatprep.mubr.f32.mxu0 0.0
    %3733 = vmatmul.mubr.f32.gmra.mrb[0].mxu0 %v3666
    %v3734 = vpop.f32.mrb[0].mxu0
    %v3735 = vadd.f32 0.0, %v3734
    %v3736 = vpop.f32.mrb[0].mxu0
    %3737 = vdwg.mxu0
    %v3739 = vsel %vm2084, %v3216, 0
    %3741 = vmatprep.subr.mxu0 0.0
    %3742 = vmatpush1.msra.mxu0 %v3370
    %3743 = vmatprep.subr.mxu0 0.0
    %3744 = vmatpush1.msra.mxu0 0.0
    %3745 = vmatprep.subr.mxu0 0.0
    %3746 = vmatpush1.msra.mxu0 0.0
    %3747 = vmatprep.subr.mxu0 0.0
    %3748 = vmatpush1.msra.mxu0 0.0
    %3749 = vmatprep.subr.mxu0 0.0
    %3750 = vmatpush1.msra.mxu0 0.0
    %3751 = vmatprep.subr.mxu0 0.0
    %3752 = vmatpush1.msra.mxu0 0.0
    %3753 = vmatprep.subr.mxu0 0.0
    %3754 = vmatpush1.msra.mxu0 0.0
    %3755 = vmatprep.subr.mxu0 0.0
    %3756 = vmatpush1.msra.mxu0 0.0
    %3757 = vmatprep.subr.mxu0 0.0
    %3758 = vmatpush1.msra.mxu0 0.0
    %3759 = vmatprep.subr.mxu0 0.0
    %3760 = vmatpush1.msra.mxu0 0.0
    %3761 = vmatprep.subr.mxu0 0.0
    %3762 = vmatpush1.msra.mxu0 0.0
    %3763 = vmatprep.subr.mxu0 0.0
    %3764 = vmatpush1.msra.mxu0 0.0
    %3765 = vmatprep.subr.mxu0 0.0
    %3766 = vmatpush1.msra.mxu0 0.0
    %3767 = vmatprep.subr.mxu0 0.0
    %3768 = vmatpush1.msra.mxu0 0.0
    %3769 = vmatprep.subr.mxu0 0.0
    %3770 = vmatpush1.msra.mxu0 0.0
    %3771 = vmatprep.subr.mxu0 0.0
    %3772 = vmatpush1.msra.mxu0 0.0
    %3773 = vmatprep.subr.mxu0 0.0
    %3774 = vmatpush1.msra.mxu0 0.0
    %3775 = vmatprep.subr.mxu0 0.0
    %3776 = vmatpush1.msra.mxu0 0.0
    %3777 = vmatprep.subr.mxu0 0.0
    %3778 = vmatpush1.msra.mxu0 0.0
    %3779 = vmatprep.subr.mxu0 0.0
    %3780 = vmatpush1.msra.mxu0 0.0
    %3781 = vmatprep.subr.mxu0 0.0
    %3782 = vmatpush1.msra.mxu0 0.0
    %3783 = vmatprep.subr.mxu0 0.0
    %3784 = vmatpush1.msra.mxu0 0.0
    %3785 = vmatprep.subr.mxu0 0.0
    %3786 = vmatpush1.msra.mxu0 0.0
    %3787 = vmatprep.subr.mxu0 0.0
    %3788 = vmatpush1.msra.mxu0 0.0
    %3789 = vmatprep.subr.mxu0 0.0
    %3790 = vmatpush1.msra.mxu0 0.0
    %3791 = vmatprep.subr.mxu0 0.0
    %3792 = vmatpush1.msra.mxu0 0.0
    %3793 = vmatprep.subr.mxu0 0.0
    %3794 = vmatpush1.msra.mxu0 0.0
    %3795 = vmatprep.subr.mxu0 0.0
    %3796 = vmatpush1.msra.mxu0 0.0
    %3797 = vmatprep.subr.mxu0 0.0
    %3798 = vmatpush1.msra.mxu0 0.0
    %3799 = vmatprep.subr.mxu0 0.0
    %3800 = vmatpush1.msra.mxu0 0.0
    %3801 = vmatprep.subr.mxu0 0.0
    %3802 = vmatpush1.msra.mxu0 0.0
    %3803 = vmatprep.subr.mxu0 0.0
    %3804 = vmatpush1.msra.mxu0 0.0
    %3805 = vmatprep.mubr.f32.mxu0 0.0
    %3806 = vmatmul.mubr.f32.gmra.mrb[0].mxu0 %v3739
    %v3807 = vpop.f32.mrb[0].mxu0
    %v3808 = vadd.f32 0.0, %v3807
    %v3809 = vpop.f32.mrb[0].mxu0
    %3810 = vdwg.mxu0
    %v3812 = vsel %vm2084, %v3289, 0
    %3814 = vmatprep.subr.mxu0 0.0
    %3815 = vmatpush1.msra.mxu0 %v3371
    %3816 = vmatprep.subr.mxu0 0.0
    %3817 = vmatpush1.msra.mxu0 0.0
    %3818 = vmatprep.subr.mxu0 0.0
    %3819 = vmatpush1.msra.mxu0 0.0
    %3820 = vmatprep.subr.mxu0 0.0
    %3821 = vmatpush1.msra.mxu0 0.0
    %3822 = vmatprep.subr.mxu0 0.0
    %3823 = vmatpush1.msra.mxu0 0.0
    %3824 = vmatprep.subr.mxu0 0.0
    %3825 = vmatpush1.msra.mxu0 0.0
    %3826 = vmatprep.subr.mxu0 0.0
    %3827 = vmatpush1.msra.mxu0 0.0
    %3828 = vmatprep.subr.mxu0 0.0
    %3829 = vmatpush1.msra.mxu0 0.0
    %3830 = vmatprep.subr.mxu0 0.0
    %3831 = vmatpush1.msra.mxu0 0.0
    %3832 = vmatprep.subr.mxu0 0.0
    %3833 = vmatpush1.msra.mxu0 0.0
    %3834 = vmatprep.subr.mxu0 0.0
    %3835 = vmatpush1.msra.mxu0 0.0
    %3836 = vmatprep.subr.mxu0 0.0
    %3837 = vmatpush1.msra.mxu0 0.0
    %3838 = vmatprep.subr.mxu0 0.0
    %3839 = vmatpush1.msra.mxu0 0.0
    %3840 = vmatprep.subr.mxu0 0.0
    %3841 = vmatpush1.msra.mxu0 0.0
    %3842 = vmatprep.subr.mxu0 0.0
    %3843 = vmatpush1.msra.mxu0 0.0
    %3844 = vmatprep.subr.mxu0 0.0
    %3845 = vmatpush1.msra.mxu0 0.0
    %3846 = vmatprep.subr.mxu0 0.0
    %3847 = vmatpush1.msra.mxu0 0.0
    %3848 = vmatprep.subr.mxu0 0.0
    %3849 = vmatpush1.msra.mxu0 0.0
    %3850 = vmatprep.subr.mxu0 0.0
    %3851 = vmatpush1.msra.mxu0 0.0
    %3852 = vmatprep.subr.mxu0 0.0
    %3853 = vmatpush1.msra.mxu0 0.0
    %3854 = vmatprep.subr.mxu0 0.0
    %3855 = vmatpush1.msra.mxu0 0.0
    %3856 = vmatprep.subr.mxu0 0.0
    %3857 = vmatpush1.msra.mxu0 0.0
    %3858 = vmatprep.subr.mxu0 0.0
    %3859 = vmatpush1.msra.mxu0 0.0
    %3860 = vmatprep.subr.mxu0 0.0
    %3861 = vmatpush1.msra.mxu0 0.0
    %3862 = vmatprep.subr.mxu0 0.0
    %3863 = vmatpush1.msra.mxu0 0.0
    %3864 = vmatprep.subr.mxu0 0.0
    %3865 = vmatpush1.msra.mxu0 0.0
    %3866 = vmatprep.subr.mxu0 0.0
    %3867 = vmatpush1.msra.mxu0 0.0
    %3868 = vmatprep.subr.mxu0 0.0
    %3869 = vmatpush1.msra.mxu0 0.0
    %3870 = vmatprep.subr.mxu0 0.0
    %3871 = vmatpush1.msra.mxu0 0.0
    %3872 = vmatprep.subr.mxu0 0.0
    %3873 = vmatpush1.msra.mxu0 0.0
    %3874 = vmatprep.subr.mxu0 0.0
    %3875 = vmatpush1.msra.mxu0 0.0
    %3876 = vmatprep.subr.mxu0 0.0
    %3877 = vmatpush1.msra.mxu0 0.0
    %3878 = vmatprep.mubr.f32.mxu0 0.0
    %3879 = vmatmul.mubr.f32.gmra.mrb[0].mxu0 %v3812
    %v3880 = vpop.f32.mrb[0].mxu0
    %v3881 = vadd.f32 0.0, %v3880
    %v3882 = vpop.f32.mrb[0].mxu0
    %3883 = vdwg.mxu0
    %v3885 = vsel %vm2084, %v3362, 0
    %3887 = vmatprep.subr.mxu0 0.0
    %3888 = vmatpush1.msra.mxu0 %v3372
    %3889 = vmatprep.subr.mxu0 0.0
    %3890 = vmatpush1.msra.mxu0 0.0
    %3891 = vmatprep.subr.mxu0 0.0
    %3892 = vmatpush1.msra.mxu0 0.0
    %3893 = vmatprep.subr.mxu0 0.0
    %3894 = vmatpush1.msra.mxu0 0.0
    %3895 = vmatprep.subr.mxu0 0.0
    %3896 = vmatpush1.msra.mxu0 0.0
    %3897 = vmatprep.subr.mxu0 0.0
    %3898 = vmatpush1.msra.mxu0 0.0
    %3899 = vmatprep.subr.mxu0 0.0
    %3900 = vmatpush1.msra.mxu0 0.0
    %3901 = vmatprep.subr.mxu0 0.0
    %3902 = vmatpush1.msra.mxu0 0.0
    %3903 = vmatprep.subr.mxu0 0.0
    %3904 = vmatpush1.msra.mxu0 0.0
    %3905 = vmatprep.subr.mxu0 0.0
    %3906 = vmatpush1.msra.mxu0 0.0
    %3907 = vmatprep.subr.mxu0 0.0
    %3908 = vmatpush1.msra.mxu0 0.0
    %3909 = vmatprep.subr.mxu0 0.0
    %3910 = vmatpush1.msra.mxu0 0.0
    %3911 = vmatprep.subr.mxu0 0.0
    %3912 = vmatpush1.msra.mxu0 0.0
    %3913 = vmatprep.subr.mxu0 0.0
    %3914 = vmatpush1.msra.mxu0 0.0
    %3915 = vmatprep.subr.mxu0 0.0
    %3916 = vmatpush1.msra.mxu0 0.0
    %3917 = vmatprep.subr.mxu0 0.0
    %3918 = vmatpush1.msra.mxu0 0.0
    %3919 = vmatprep.subr.mxu0 0.0
    %3920 = vmatpush1.msra.mxu0 0.0
    %3921 = vmatprep.subr.mxu0 0.0
    %3922 = vmatpush1.msra.mxu0 0.0
    %3923 = vmatprep.subr.mxu0 0.0
    %3924 = vmatpush1.msra.mxu0 0.0
    %3925 = vmatprep.subr.mxu0 0.0
    %3926 = vmatpush1.msra.mxu0 0.0
    %3927 = vmatprep.subr.mxu0 0.0
    %3928 = vmatpush1.msra.mxu0 0.0
    %3929 = vmatprep.subr.mxu0 0.0
    %3930 = vmatpush1.msra.mxu0 0.0
    %3931 = vmatprep.subr.mxu0 0.0
    %3932 = vmatpush1.msra.mxu0 0.0
    %3933 = vmatprep.subr.mxu0 0.0
    %3934 = vmatpush1.msra.mxu0 0.0
    %3935 = vmatprep.subr.mxu0 0.0
    %3936 = vmatpush1.msra.mxu0 0.0
    %3937 = vmatprep.subr.mxu0 0.0
    %3938 = vmatpush1.msra.mxu0 0.0
    %3939 = vmatprep.subr.mxu0 0.0
    %3940 = vmatpush1.msra.mxu0 0.0
    %3941 = vmatprep.subr.mxu0 0.0
    %3942 = vmatpush1.msra.mxu0 0.0
    %3943 = vmatprep.subr.mxu0 0.0
    %3944 = vmatpush1.msra.mxu0 0.0
    %3945 = vmatprep.subr.mxu0 0.0
    %3946 = vmatpush1.msra.mxu0 0.0
    %3947 = vmatprep.subr.mxu0 0.0
    %3948 = vmatpush1.msra.mxu0 0.0
    %3949 = vmatprep.subr.mxu0 0.0
    %3950 = vmatpush1.msra.mxu0 0.0
    %3951 = vmatprep.mubr.f32.mxu0 0.0
    %3952 = vmatmul.mubr.f32.gmra.mrb[0].mxu0 %v3885
    %v3953 = vpop.f32.mrb[0].mxu0
    %v3954 = vadd.f32 0.0, %v3953
    %v3955 = vpop.f32.mrb[0].mxu0
    %3956 = vdwg.mxu0
    %v3957 = vsel %vm173, %v3443, 0.0
    %v3958 = vsel %vm173, %v3516, 0.0
    %v3959 = vadd.f32 %v3957, %v3958
    %v3960 = vsel %vm173, %v3589, 0.0
    %v3961 = vadd.f32 %v3959, %v3960
    %v3962 = vsel %vm173, %v3662, 0.0
    %v3963 = vadd.f32 %v3961, %v3962
    %v3964 = vsel %vm173, %v3735, 0.0
    %v3965 = vsel %vm173, %v3808, 0.0
    %v3966 = vadd.f32 %v3964, %v3965
    %v3967 = vsel %vm173, %v3881, 0.0
    %v3968 = vadd.f32 %v3966, %v3967
    %v3969 = vsel %vm173, %v3954, 0.0
    %v3970 = vadd.f32 %v3968, %v3969
    %v3971 = vld [vmem:[%s9] sm:$0x1]
    %v3973 = vlaneseq
    %v3974 = vshrl.u32 %v3973, 7
    %v3975 = vsub.s32 0, %v3974
    %v3976 = vrot.slane %v3971, %v3975
    %v3978 = vadd.f32 %v3963, %v3976
    %v3979 = vadd.f32 %v3970, %v3976
    %v3980 = vadd.f32 %v75, %v3978
    %v3981 = vadd.f32 %v76, %v3979
    %v3982 = vld [vmem:[%s14] sm:$0x1]
    %v3983 = vld [vmem:[%s15] sm:$0x1]
    %v3984 = vsel %vm173, %v3980, 0.0
    %3985 = vadd.xlane.f32.xlu0 %v3984
    %v3986 = vpop.xlane.xlu0 %3985
    %v3987 = vsel %vm173, %v3981, 0.0
    %3988 = vadd.xlane.f32.xlu0 %v3987
    %v3989 = vpop.xlane.xlu0 %3988
    %v3990 = vrcp.pop 32.0
    %v3991 = vmul.f32 %v3986, %v3990
    %v3992 = vmul.f32 %v3989, %v3990
    %v3993 = vsub.f32 %v3980, %v3991
    %v3994 = vsub.f32 %v3981, %v3992
    %v3995 = vmul.f32 %v3993, %v3993
    %v3996 = vmul.f32 %v3994, %v3994
    %v3997 = vsel %vm173, %v3995, 0.0
    %3998 = vadd.xlane.f32.xlu0 %v3997
    %v3999 = vpop.xlane.xlu0 %3998
    %v4000 = vsel %vm173, %v3996, 0.0
    %4001 = vadd.xlane.f32.xlu0 %v4000
    %v4002 = vpop.xlane.xlu0 %4001
    %v4003 = vmul.f32 %v3999, %v3990
    %v4004 = vmul.f32 %v4002, %v3990
    %v4005 = vadd.f32 %v4003, 1e-05
    %v4006 = vadd.f32 %v4004, 1e-05
    %v4007 = vrsqrt.pop %v4005
    %v4008 = vrsqrt.pop %v4006
    %v4009 = vmul.f32 %v3993, %v4007
    %v4010 = vmul.f32 %v3994, %v4008
    %v4012 = vlaneseq
    %v4013 = vshrl.u32 %v4012, 7
    %v4014 = vsub.s32 0, %v4013
    %v4015 = vrot.slane %v3982, %v4014
    %v4017 = vmul.f32 %v4009, %v4015
    %v4018 = vmul.f32 %v4010, %v4015
    %v4020 = vlaneseq
    %v4021 = vshrl.u32 %v4020, 7
    %v4022 = vsub.s32 0, %v4021
    %v4023 = vrot.slane %v3983, %v4022
    %v4025 = vadd.f32 %v4017, %v4023
    %v4026 = vadd.f32 %v4018, %v4023
    %v4027 = vld [vmem:[%s10] sm:$0xff]
    %v4028 = vld [vmem:[%s10 + $0x8] sm:$0xff]
    %v4029 = vld [vmem:[%s10 + $0x10] sm:$0xff]
    %v4030 = vld [vmem:[%s10 + $0x18] sm:$0xff]
    %v4031 = vld [vmem:[%s11] sm:$0x1]
    %v4033 = vlaneseq
    %v4034 = vshrl.u32 %v4033, 7
    %v4035 = vsub.s32 0, %v4034
    %v4036 = vrot.slane %v4031, %v4035
    %v4039 = vsel %vm173, %v4025, 0
    %v4042 = vsel %vm173, %v4026, 0
    %4044 = vmatprep.subr.mxu0 0.0
    %4045 = vmatpush1.msra.mxu0 %v4027
    %4046 = vmatprep.subr.mxu0 0.0
    %4047 = vmatpush1.msra.mxu0 %v4028
    %4048 = vmatprep.subr.mxu0 0.0
    %4049 = vmatpush1.msra.mxu0 %v4029
    %4050 = vmatprep.subr.mxu0 0.0
    %4051 = vmatpush1.msra.mxu0 %v4030
    %4052 = vmatprep.subr.mxu0 0.0
    %4053 = vmatpush1.msra.mxu0 0.0
    %4054 = vmatprep.subr.mxu0 0.0
    %4055 = vmatpush1.msra.mxu0 0.0
    %4056 = vmatprep.subr.mxu0 0.0
    %4057 = vmatpush1.msra.mxu0 0.0
    %4058 = vmatprep.subr.mxu0 0.0
    %4059 = vmatpush1.msra.mxu0 0.0
    %4060 = vmatprep.subr.mxu0 0.0
    %4061 = vmatpush1.msra.mxu0 0.0
    %4062 = vmatprep.subr.mxu0 0.0
    %4063 = vmatpush1.msra.mxu0 0.0
    %4064 = vmatprep.subr.mxu0 0.0
    %4065 = vmatpush1.msra.mxu0 0.0
    %4066 = vmatprep.subr.mxu0 0.0
    %4067 = vmatpush1.msra.mxu0 0.0
    %4068 = vmatprep.subr.mxu0 0.0
    %4069 = vmatpush1.msra.mxu0 0.0
    %4070 = vmatprep.subr.mxu0 0.0
    %4071 = vmatpush1.msra.mxu0 0.0
    %4072 = vmatprep.subr.mxu0 0.0
    %4073 = vmatpush1.msra.mxu0 0.0
    %4074 = vmatprep.subr.mxu0 0.0
    %4075 = vmatpush1.msra.mxu0 0.0
    %4076 = vmatprep.subr.mxu0 0.0
    %4077 = vmatpush1.msra.mxu0 0.0
    %4078 = vmatprep.subr.mxu0 0.0
    %4079 = vmatpush1.msra.mxu0 0.0
    %4080 = vmatprep.subr.mxu0 0.0
    %4081 = vmatpush1.msra.mxu0 0.0
    %4082 = vmatprep.subr.mxu0 0.0
    %4083 = vmatpush1.msra.mxu0 0.0
    %4084 = vmatprep.subr.mxu0 0.0
    %4085 = vmatpush1.msra.mxu0 0.0
    %4086 = vmatprep.subr.mxu0 0.0
    %4087 = vmatpush1.msra.mxu0 0.0
    %4088 = vmatprep.subr.mxu0 0.0
    %4089 = vmatpush1.msra.mxu0 0.0
    %4090 = vmatprep.subr.mxu0 0.0
    %4091 = vmatpush1.msra.mxu0 0.0
    %4092 = vmatprep.subr.mxu0 0.0
    %4093 = vmatpush1.msra.mxu0 0.0
    %4094 = vmatprep.subr.mxu0 0.0
    %4095 = vmatpush1.msra.mxu0 0.0
    %4096 = vmatprep.subr.mxu0 0.0
    %4097 = vmatpush1.msra.mxu0 0.0
    %4098 = vmatprep.subr.mxu0 0.0
    %4099 = vmatpush1.msra.mxu0 0.0
    %4100 = vmatprep.subr.mxu0 0.0
    %4101 = vmatpush1.msra.mxu0 0.0
    %4102 = vmatprep.subr.mxu0 0.0
    %4103 = vmatpush1.msra.mxu0 0.0
    %4104 = vmatprep.subr.mxu0 0.0
    %4105 = vmatpush1.msra.mxu0 0.0
    %4106 = vmatprep.subr.mxu0 0.0
    %4107 = vmatpush1.msra.mxu0 0.0
    %4108 = vmatprep.mubr.f32.mxu0 0.0
    %4109 = vmatmul.mubr.f32.gmra.mrb[0].mxu0 %v4039
    %v4110 = vpop.f32.mrb[0].mxu0
    %v4111 = vadd.f32 %v4036, %v4110
    %v4112 = vpop.f32.mrb[0].mxu0
    %4113 = vmatprep.mubr.f32.mxu0 0.0
    %4114 = vmatmul.mubr.f32.gmra.mrb[0].mxu0 %v4042
    %v4115 = vpop.f32.mrb[0].mxu0
    %v4116 = vadd.f32 %v4036, %v4115
    %v4117 = vpop.f32.mrb[0].mxu0
    %4118 = vdwg.mxu0
    %v4119 = vmax.f32 %v4111, 0.0
    %v4120 = vmax.f32 %v4116, 0.0
    %v4121 = vld [vmem:[%s12] sm:$0xff]
    %v4122 = vld [vmem:[%s12 + $0x8] sm:$0xff]
    %v4123 = vld [vmem:[%s12 + $0x10] sm:$0xff]
    %v4124 = vld [vmem:[%s12 + $0x18] sm:$0xff]
    %v4125 = vld [vmem:[%s12 + $0x20] sm:$0xff]
    %v4126 = vld [vmem:[%s12 + $0x28] sm:$0xff]
    %v4127 = vld [vmem:[%s12 + $0x30] sm:$0xff]
    %v4128 = vld [vmem:[%s12 + $0x38] sm:$0xff]
    %v4129 = vld [vmem:[%s13] sm:$0x1]
    %v4131 = vlaneseq
    %v4132 = vshrl.u32 %v4131, 7
    %v4133 = vsub.s32 0, %v4132
    %v4134 = vrot.slane %v4129, %v4133
    %vm4136 = vcmask 523264
    %v4138 = vsel %vm4136, %v4119, 0
    %v4141 = vsel %vm4136, %v4120, 0
    %4143 = vmatprep.subr.mxu0 0.0
    %4144 = vmatpush1.msra.mxu0 %v4121
    %4145 = vmatprep.subr.mxu0 0.0
    %4146 = vmatpush1.msra.mxu0 %v4122
    %4147 = vmatprep.subr.mxu0 0.0
    %4148 = vmatpush1.msra.mxu0 %v4123
    %4149 = vmatprep.subr.mxu0 0.0
    %4150 = vmatpush1.msra.mxu0 %v4124
    %4151 = vmatprep.subr.mxu0 0.0
    %4152 = vmatpush1.msra.mxu0 %v4125
    %4153 = vmatprep.subr.mxu0 0.0
    %4154 = vmatpush1.msra.mxu0 %v4126
    %4155 = vmatprep.subr.mxu0 0.0
    %4156 = vmatpush1.msra.mxu0 %v4127
    %4157 = vmatprep.subr.mxu0 0.0
    %4158 = vmatpush1.msra.mxu0 %v4128
    %4159 = vmatprep.subr.mxu0 0.0
    %4160 = vmatpush1.msra.mxu0 0.0
    %4161 = vmatprep.subr.mxu0 0.0
    %4162 = vmatpush1.msra.mxu0 0.0
    %4163 = vmatprep.subr.mxu0 0.0
    %4164 = vmatpush1.msra.mxu0 0.0
    %4165 = vmatprep.subr.mxu0 0.0
    %4166 = vmatpush1.msra.mxu0 0.0
    %4167 = vmatprep.subr.mxu0 0.0
    %4168 = vmatpush1.msra.mxu0 0.0
    %4169 = vmatprep.subr.mxu0 0.0
    %4170 = vmatpush1.msra.mxu0 0.0
    %4171 = vmatprep.subr.mxu0 0.0
    %4172 = vmatpush1.msra.mxu0 0.0
    %4173 = vmatprep.subr.mxu0 0.0
    %4174 = vmatpush1.msra.mxu0 0.0
    %4175 = vmatprep.subr.mxu0 0.0
    %4176 = vmatpush1.msra.mxu0 0.0
    %4177 = vmatprep.subr.mxu0 0.0
    %4178 = vmatpush1.msra.mxu0 0.0
    %4179 = vmatprep.subr.mxu0 0.0
    %4180 = vmatpush1.msra.mxu0 0.0
    %4181 = vmatprep.subr.mxu0 0.0
    %4182 = vmatpush1.msra.mxu0 0.0
    %4183 = vmatprep.subr.mxu0 0.0
    %4184 = vmatpush1.msra.mxu0 0.0
    %4185 = vmatprep.subr.mxu0 0.0
    %4186 = vmatpush1.msra.mxu0 0.0
    %4187 = vmatprep.subr.mxu0 0.0
    %4188 = vmatpush1.msra.mxu0 0.0
    %4189 = vmatprep.subr.mxu0 0.0
    %4190 = vmatpush1.msra.mxu0 0.0
    %4191 = vmatprep.subr.mxu0 0.0
    %4192 = vmatpush1.msra.mxu0 0.0
    %4193 = vmatprep.subr.mxu0 0.0
    %4194 = vmatpush1.msra.mxu0 0.0
    %4195 = vmatprep.subr.mxu0 0.0
    %4196 = vmatpush1.msra.mxu0 0.0
    %4197 = vmatprep.subr.mxu0 0.0
    %4198 = vmatpush1.msra.mxu0 0.0
    %4199 = vmatprep.subr.mxu0 0.0
    %4200 = vmatpush1.msra.mxu0 0.0
    %4201 = vmatprep.subr.mxu0 0.0
    %4202 = vmatpush1.msra.mxu0 0.0
    %4203 = vmatprep.subr.mxu0 0.0
    %4204 = vmatpush1.msra.mxu0 0.0
    %4205 = vmatprep.subr.mxu0 0.0
    %4206 = vmatpush1.msra.mxu0 0.0
    %4207 = vmatprep.mubr.f32.mxu0 0.0
    %4208 = vmatmul.mubr.f32.gmra.mrb[0].mxu0 %v4138
    %v4209 = vpop.f32.mrb[0].mxu0
    %v4210 = vadd.f32 %v4134, %v4209
    %v4211 = vpop.f32.mrb[0].mxu0
    %4212 = vmatprep.mubr.f32.mxu0 0.0
    %4213 = vmatmul.mubr.f32.gmra.mrb[0].mxu0 %v4141
    %v4214 = vpop.f32.mrb[0].mxu0
    %v4215 = vadd.f32 %v4134, %v4214
    %v4216 = vpop.f32.mrb[0].mxu0
    %4217 = vdwg.mxu0
    %v4218 = vadd.f32 %v4025, %v4210
    %v4219 = vadd.f32 %v4026, %v4215
    %v4220 = vld [vmem:[%s16] sm:$0x1]
    %v4221 = vld [vmem:[%s17] sm:$0x1]
    %v4222 = vsel %vm173, %v4218, 0.0
    %4223 = vadd.xlane.f32.xlu0 %v4222
    %v4224 = vpop.xlane.xlu0 %4223
    %v4225 = vsel %vm173, %v4219, 0.0
    %4226 = vadd.xlane.f32.xlu0 %v4225
    %v4227 = vpop.xlane.xlu0 %4226
    %v4228 = vmul.f32 %v4224, %v3990
    %v4229 = vmul.f32 %v4227, %v3990
    %v4230 = vsub.f32 %v4218, %v4228
    %v4231 = vsub.f32 %v4219, %v4229
    %v4232 = vmul.f32 %v4230, %v4230
    %v4233 = vmul.f32 %v4231, %v4231
    %v4234 = vsel %vm173, %v4232, 0.0
    %4235 = vadd.xlane.f32.xlu0 %v4234
    %v4236 = vpop.xlane.xlu0 %4235
    %v4237 = vsel %vm173, %v4233, 0.0
    %4238 = vadd.xlane.f32.xlu0 %v4237
    %v4239 = vpop.xlane.xlu0 %4238
    %v4240 = vmul.f32 %v4236, %v3990
    %v4241 = vmul.f32 %v4239, %v3990
    %v4242 = vadd.f32 %v4240, 1e-05
    %v4243 = vadd.f32 %v4241, 1e-05
    %v4244 = vrsqrt.pop %v4242
    %v4245 = vrsqrt.pop %v4243
    %v4246 = vmul.f32 %v4230, %v4244
    %v4247 = vmul.f32 %v4231, %v4245
    %v4249 = vlaneseq
    %v4250 = vshrl.u32 %v4249, 7
    %v4251 = vsub.s32 0, %v4250
    %v4252 = vrot.slane %v4220, %v4251
    %v4254 = vmul.f32 %v4246, %v4252
    %v4255 = vmul.f32 %v4247, %v4252
    %v4257 = vlaneseq
    %v4258 = vshrl.u32 %v4257, 7
    %v4259 = vsub.s32 0, %v4258
    %v4260 = vrot.slane %v4221, %v4259
    %v4262 = vadd.f32 %v4254, %v4260
    %v4263 = vadd.f32 %v4255, %v4260
    %s4264 = scalar_lea.vmem %s2, 256
    %v4265 = vld [vmem:[%s4264] sm:$0xff]
    %v4266 = vld [vmem:[%s4264 + $0x8] sm:$0xff]
    %v4267 = vld [vmem:[%s4264 + $0x10] sm:$0xff]
    %v4268 = vld [vmem:[%s4264 + $0x18] sm:$0xff]
    %v4269 = vld [vmem:[%s4264 + $0x20] sm:$0xff]
    %v4270 = vld [vmem:[%s4264 + $0x28] sm:$0xff]
    %v4271 = vld [vmem:[%s4264 + $0x30] sm:$0xff]
    %v4272 = vld [vmem:[%s4264 + $0x38] sm:$0xff]
    %v4273 = vld [vmem:[%s4264 + $0x40] sm:$0xff]
    %v4274 = vld [vmem:[%s4264 + $0x48] sm:$0xff]
    %v4275 = vld [vmem:[%s4264 + $0x50] sm:$0xff]
    %v4276 = vld [vmem:[%s4264 + $0x58] sm:$0xff]
    %v4277 = vld [vmem:[%s4264 + $0x60] sm:$0xff]
    %v4278 = vld [vmem:[%s4264 + $0x68] sm:$0xff]
    %v4279 = vld [vmem:[%s4264 + $0x70] sm:$0xff]
    %v4280 = vld [vmem:[%s4264 + $0x78] sm:$0xff]
    %v4281 = vld [vmem:[%s4264 + $0x80] sm:$0xff]
    %v4282 = vld [vmem:[%s4264 + $0x88] sm:$0xff]
    %v4283 = vld [vmem:[%s4264 + $0x90] sm:$0xff]
    %v4284 = vld [vmem:[%s4264 + $0x98] sm:$0xff]
    %v4285 = vld [vmem:[%s4264 + $0xa0] sm:$0xff]
    %v4286 = vld [vmem:[%s4264 + $0xa8] sm:$0xff]
    %v4287 = vld [vmem:[%s4264 + $0xb0] sm:$0xff]
    %v4288 = vld [vmem:[%s4264 + $0xb8] sm:$0xff]
    %v4289 = vld [vmem:[%s4264 + $0xc0] sm:$0xff]
    %v4290 = vld [vmem:[%s4264 + $0xc8] sm:$0xff]
    %v4291 = vld [vmem:[%s4264 + $0xd0] sm:$0xff]
    %v4292 = vld [vmem:[%s4264 + $0xd8] sm:$0xff]
    %v4293 = vld [vmem:[%s4264 + $0xe0] sm:$0xff]
    %v4294 = vld [vmem:[%s4264 + $0xe8] sm:$0xff]
    %v4295 = vld [vmem:[%s4264 + $0xf0] sm:$0xff]
    %v4296 = vld [vmem:[%s4264 + $0xf8] sm:$0xff]
    %s4297 = scalar_lea.vmem %s3, 8
    %v4298 = vld [vmem:[%s4297] sm:$0x1]
    %v4299 = vld [vmem:[%s4297 + $0x1] sm:$0x1]
    %v4300 = vld [vmem:[%s4297 + $0x2] sm:$0x1]
    %v4301 = vld [vmem:[%s4297 + $0x3] sm:$0x1]
    %v4302 = vld [vmem:[%s4297 + $0x4] sm:$0x1]
    %v4303 = vld [vmem:[%s4297 + $0x5] sm:$0x1]
    %v4304 = vld [vmem:[%s4297 + $0x6] sm:$0x1]
    %v4305 = vld [vmem:[%s4297 + $0x7] sm:$0x1]
    %v4314 = vlaneseq
    %v4315 = vshrl.u32 %v4314, 7
    %v4316 = vsub.s32 0, %v4315
    %v4317 = vrot.slane %v4298, %v4316
    %v4318 = vlaneseq
    %v4319 = vshrl.u32 %v4318, 7
    %v4320 = vsub.s32 0, %v4319
    %v4321 = vrot.slane %v4299, %v4320
    %v4322 = vlaneseq
    %v4323 = vshrl.u32 %v4322, 7
    %v4324 = vsub.s32 0, %v4323
    %v4325 = vrot.slane %v4300, %v4324
    %v4326 = vlaneseq
    %v4327 = vshrl.u32 %v4326, 7
    %v4328 = vsub.s32 0, %v4327
    %v4329 = vrot.slane %v4301, %v4328
    %v4330 = vlaneseq
    %v4331 = vshrl.u32 %v4330, 7
    %v4332 = vsub.s32 0, %v4331
    %v4333 = vrot.slane %v4302, %v4332
    %v4334 = vlaneseq
    %v4335 = vshrl.u32 %v4334, 7
    %v4336 = vsub.s32 0, %v4335
    %v4337 = vrot.slane %v4303, %v4336
    %v4338 = vlaneseq
    %v4339 = vshrl.u32 %v4338, 7
    %v4340 = vsub.s32 0, %v4339
    %v4341 = vrot.slane %v4304, %v4340
    %v4342 = vlaneseq
    %v4343 = vshrl.u32 %v4342, 7
    %v4344 = vsub.s32 0, %v4343
    %v4345 = vrot.slane %v4305, %v4344
    %v4355 = vsel %vm173, %v4262, 0
    %4357 = vmatprep.subr.mxu0 0.0
    %4358 = vmatpush1.msra.mxu0 %v4265
    %4359 = vmatprep.subr.mxu0 0.0
    %4360 = vmatpush1.msra.mxu0 %v4266
    %4361 = vmatprep.subr.mxu0 0.0
    %4362 = vmatpush1.msra.mxu0 %v4267
    %4363 = vmatprep.subr.mxu0 0.0
    %4364 = vmatpush1.msra.mxu0 %v4268
    %4365 = vmatprep.subr.mxu0 0.0
    %4366 = vmatpush1.msra.mxu0 0.0
    %4367 = vmatprep.subr.mxu0 0.0
    %4368 = vmatpush1.msra.mxu0 0.0
    %4369 = vmatprep.subr.mxu0 0.0
    %4370 = vmatpush1.msra.mxu0 0.0
    %4371 = vmatprep.subr.mxu0 0.0
    %4372 = vmatpush1.msra.mxu0 0.0
    %4373 = vmatprep.subr.mxu0 0.0
    %4374 = vmatpush1.msra.mxu0 0.0
    %4375 = vmatprep.subr.mxu0 0.0
    %4376 = vmatpush1.msra.mxu0 0.0
    %4377 = vmatprep.subr.mxu0 0.0
    %4378 = vmatpush1.msra.mxu0 0.0
    %4379 = vmatprep.subr.mxu0 0.0
    %4380 = vmatpush1.msra.mxu0 0.0
    %4381 = vmatprep.subr.mxu0 0.0
    %4382 = vmatpush1.msra.mxu0 0.0
    %4383 = vmatprep.subr.mxu0 0.0
    %4384 = vmatpush1.msra.mxu0 0.0
    %4385 = vmatprep.subr.mxu0 0.0
    %4386 = vmatpush1.msra.mxu0 0.0
    %4387 = vmatprep.subr.mxu0 0.0
    %4388 = vmatpush1.msra.mxu0 0.0
    %4389 = vmatprep.subr.mxu0 0.0
    %4390 = vmatpush1.msra.mxu0 0.0
    %4391 = vmatprep.subr.mxu0 0.0
    %4392 = vmatpush1.msra.mxu0 0.0
    %4393 = vmatprep.subr.mxu0 0.0
    %4394 = vmatpush1.msra.mxu0 0.0
    %4395 = vmatprep.subr.mxu0 0.0
    %4396 = vmatpush1.msra.mxu0 0.0
    %4397 = vmatprep.subr.mxu0 0.0
    %4398 = vmatpush1.msra.mxu0 0.0
    %4399 = vmatprep.subr.mxu0 0.0
    %4400 = vmatpush1.msra.mxu0 0.0
    %4401 = vmatprep.subr.mxu0 0.0
    %4402 = vmatpush1.msra.mxu0 0.0
    %4403 = vmatprep.subr.mxu0 0.0
    %4404 = vmatpush1.msra.mxu0 0.0
    %4405 = vmatprep.subr.mxu0 0.0
    %4406 = vmatpush1.msra.mxu0 0.0
    %4407 = vmatprep.subr.mxu0 0.0
    %4408 = vmatpush1.msra.mxu0 0.0
    %4409 = vmatprep.subr.mxu0 0.0
    %4410 = vmatpush1.msra.mxu0 0.0
    %4411 = vmatprep.subr.mxu0 0.0
    %4412 = vmatpush1.msra.mxu0 0.0
    %4413 = vmatprep.subr.mxu0 0.0
    %4414 = vmatpush1.msra.mxu0 0.0
    %4415 = vmatprep.subr.mxu0 0.0
    %4416 = vmatpush1.msra.mxu0 0.0
    %4417 = vmatprep.subr.mxu0 0.0
    %4418 = vmatpush1.msra.mxu0 0.0
    %4419 = vmatprep.subr.mxu0 0.0
    %4420 = vmatpush1.msra.mxu0 0.0
    %4421 = vmatprep.mubr.f32.mxu0 0.0
    %4422 = vmatmul.mubr.f32.gmra.mrb[0].mxu0 %v4355
    %v4423 = vpop.f32.mrb[0].mxu0
    %v4424 = vadd.f32 %v4317, %v4423
    %v4425 = vpop.f32.mrb[0].mxu0
    %4426 = vdwg.mxu0
    %4427 = vmatprep.subr.mxu0 0.0
    %4428 = vmatpush1.msra.mxu0 %v4269
    %4429 = vmatprep.subr.mxu0 0.0
    %4430 = vmatpush1.msra.mxu0 %v4270
    %4431 = vmatprep.subr.mxu0 0.0
    %4432 = vmatpush1.msra.mxu0 %v4271
    %4433 = vmatprep.subr.mxu0 0.0
    %4434 = vmatpush1.msra.mxu0 %v4272
    %4435 = vmatprep.subr.mxu0 0.0
    %4436 = vmatpush1.msra.mxu0 0.0
    %4437 = vmatprep.subr.mxu0 0.0
    %4438 = vmatpush1.msra.mxu0 0.0
    %4439 = vmatprep.subr.mxu0 0.0
    %4440 = vmatpush1.msra.mxu0 0.0
    %4441 = vmatprep.subr.mxu0 0.0
    %4442 = vmatpush1.msra.mxu0 0.0
    %4443 = vmatprep.subr.mxu0 0.0
    %4444 = vmatpush1.msra.mxu0 0.0
    %4445 = vmatprep.subr.mxu0 0.0
    %4446 = vmatpush1.msra.mxu0 0.0
    %4447 = vmatprep.subr.mxu0 0.0
    %4448 = vmatpush1.msra.mxu0 0.0
    %4449 = vmatprep.subr.mxu0 0.0
    %4450 = vmatpush1.msra.mxu0 0.0
    %4451 = vmatprep.subr.mxu0 0.0
    %4452 = vmatpush1.msra.mxu0 0.0
    %4453 = vmatprep.subr.mxu0 0.0
    %4454 = vmatpush1.msra.mxu0 0.0
    %4455 = vmatprep.subr.mxu0 0.0
    %4456 = vmatpush1.msra.mxu0 0.0
    %4457 = vmatprep.subr.mxu0 0.0
    %4458 = vmatpush1.msra.mxu0 0.0
    %4459 = vmatprep.subr.mxu0 0.0
    %4460 = vmatpush1.msra.mxu0 0.0
    %4461 = vmatprep.subr.mxu0 0.0
    %4462 = vmatpush1.msra.mxu0 0.0
    %4463 = vmatprep.subr.mxu0 0.0
    %4464 = vmatpush1.msra.mxu0 0.0
    %4465 = vmatprep.subr.mxu0 0.0
    %4466 = vmatpush1.msra.mxu0 0.0
    %4467 = vmatprep.subr.mxu0 0.0
    %4468 = vmatpush1.msra.mxu0 0.0
    %4469 = vmatprep.subr.mxu0 0.0
    %4470 = vmatpush1.msra.mxu0 0.0
    %4471 = vmatprep.subr.mxu0 0.0
    %4472 = vmatpush1.msra.mxu0 0.0
    %4473 = vmatprep.subr.mxu0 0.0
    %4474 = vmatpush1.msra.mxu0 0.0
    %4475 = vmatprep.subr.mxu0 0.0
    %4476 = vmatpush1.msra.mxu0 0.0
    %4477 = vmatprep.subr.mxu0 0.0
    %4478 = vmatpush1.msra.mxu0 0.0
    %4479 = vmatprep.subr.mxu0 0.0
    %4480 = vmatpush1.msra.mxu0 0.0
    %4481 = vmatprep.subr.mxu0 0.0
    %4482 = vmatpush1.msra.mxu0 0.0
    %4483 = vmatprep.subr.mxu0 0.0
    %4484 = vmatpush1.msra.mxu0 0.0
    %4485 = vmatprep.subr.mxu0 0.0
    %4486 = vmatpush1.msra.mxu0 0.0
    %4487 = vmatprep.subr.mxu0 0.0
    %4488 = vmatpush1.msra.mxu0 0.0
    %4489 = vmatprep.subr.mxu0 0.0
    %4490 = vmatpush1.msra.mxu0 0.0
    %4491 = vmatprep.mubr.f32.mxu0 0.0
    %4492 = vmatmul.mubr.f32.gmra.mrb[0].mxu0 %v4355
    %v4493 = vpop.f32.mrb[0].mxu0
    %v4494 = vadd.f32 %v4321, %v4493
    %v4495 = vpop.f32.mrb[0].mxu0
    %4496 = vdwg.mxu0
    %4497 = vmatprep.subr.mxu0 0.0
    %4498 = vmatpush1.msra.mxu0 %v4273
    %4499 = vmatprep.subr.mxu0 0.0
    %4500 = vmatpush1.msra.mxu0 %v4274
    %4501 = vmatprep.subr.mxu0 0.0
    %4502 = vmatpush1.msra.mxu0 %v4275
    %4503 = vmatprep.subr.mxu0 0.0
    %4504 = vmatpush1.msra.mxu0 %v4276
    %4505 = vmatprep.subr.mxu0 0.0
    %4506 = vmatpush1.msra.mxu0 0.0
    %4507 = vmatprep.subr.mxu0 0.0
    %4508 = vmatpush1.msra.mxu0 0.0
    %4509 = vmatprep.subr.mxu0 0.0
    %4510 = vmatpush1.msra.mxu0 0.0
    %4511 = vmatprep.subr.mxu0 0.0
    %4512 = vmatpush1.msra.mxu0 0.0
    %4513 = vmatprep.subr.mxu0 0.0
    %4514 = vmatpush1.msra.mxu0 0.0
    %4515 = vmatprep.subr.mxu0 0.0
    %4516 = vmatpush1.msra.mxu0 0.0
    %4517 = vmatprep.subr.mxu0 0.0
    %4518 = vmatpush1.msra.mxu0 0.0
    %4519 = vmatprep.subr.mxu0 0.0
    %4520 = vmatpush1.msra.mxu0 0.0
    %4521 = vmatprep.subr.mxu0 0.0
    %4522 = vmatpush1.msra.mxu0 0.0
    %4523 = vmatprep.subr.mxu0 0.0
    %4524 = vmatpush1.msra.mxu0 0.0
    %4525 = vmatprep.subr.mxu0 0.0
    %4526 = vmatpush1.msra.mxu0 0.0
    %4527 = vmatprep.subr.mxu0 0.0
    %4528 = vmatpush1.msra.mxu0 0.0
    %4529 = vmatprep.subr.mxu0 0.0
    %4530 = vmatpush1.msra.mxu0 0.0
    %4531 = vmatprep.subr.mxu0 0.0
    %4532 = vmatpush1.msra.mxu0 0.0
    %4533 = vmatprep.subr.mxu0 0.0
    %4534 = vmatpush1.msra.mxu0 0.0
    %4535 = vmatprep.subr.mxu0 0.0
    %4536 = vmatpush1.msra.mxu0 0.0
    %4537 = vmatprep.subr.mxu0 0.0
    %4538 = vmatpush1.msra.mxu0 0.0
    %4539 = vmatprep.subr.mxu0 0.0
    %4540 = vmatpush1.msra.mxu0 0.0
    %4541 = vmatprep.subr.mxu0 0.0
    %4542 = vmatpush1.msra.mxu0 0.0
    %4543 = vmatprep.subr.mxu0 0.0
    %4544 = vmatpush1.msra.mxu0 0.0
    %4545 = vmatprep.subr.mxu0 0.0
    %4546 = vmatpush1.msra.mxu0 0.0
    %4547 = vmatprep.subr.mxu0 0.0
    %4548 = vmatpush1.msra.mxu0 0.0
    %4549 = vmatprep.subr.mxu0 0.0
    %4550 = vmatpush1.msra.mxu0 0.0
    %4551 = vmatprep.subr.mxu0 0.0
    %4552 = vmatpush1.msra.mxu0 0.0
    %4553 = vmatprep.subr.mxu0 0.0
    %4554 = vmatpush1.msra.mxu0 0.0
    %4555 = vmatprep.subr.mxu0 0.0
    %4556 = vmatpush1.msra.mxu0 0.0
    %4557 = vmatprep.subr.mxu0 0.0
    %4558 = vmatpush1.msra.mxu0 0.0
    %4559 = vmatprep.subr.mxu0 0.0
    %4560 = vmatpush1.msra.mxu0 0.0
    %4561 = vmatprep.mubr.f32.mxu0 0.0
    %4562 = vmatmul.mubr.f32.gmra.mrb[0].mxu0 %v4355
    %v4563 = vpop.f32.mrb[0].mxu0
    %v4564 = vadd.f32 %v4325, %v4563
    %v4565 = vpop.f32.mrb[0].mxu0
    %4566 = vdwg.mxu0
    %4567 = vmatprep.subr.mxu0 0.0
    %4568 = vmatpush1.msra.mxu0 %v4277
    %4569 = vmatprep.subr.mxu0 0.0
    %4570 = vmatpush1.msra.mxu0 %v4278
    %4571 = vmatprep.subr.mxu0 0.0
    %4572 = vmatpush1.msra.mxu0 %v4279
    %4573 = vmatprep.subr.mxu0 0.0
    %4574 = vmatpush1.msra.mxu0 %v4280
    %4575 = vmatprep.subr.mxu0 0.0
    %4576 = vmatpush1.msra.mxu0 0.0
    %4577 = vmatprep.subr.mxu0 0.0
    %4578 = vmatpush1.msra.mxu0 0.0
    %4579 = vmatprep.subr.mxu0 0.0
    %4580 = vmatpush1.msra.mxu0 0.0
    %4581 = vmatprep.subr.mxu0 0.0
    %4582 = vmatpush1.msra.mxu0 0.0
    %4583 = vmatprep.subr.mxu0 0.0
    %4584 = vmatpush1.msra.mxu0 0.0
    %4585 = vmatprep.subr.mxu0 0.0
    %4586 = vmatpush1.msra.mxu0 0.0
    %4587 = vmatprep.subr.mxu0 0.0
    %4588 = vmatpush1.msra.mxu0 0.0
    %4589 = vmatprep.subr.mxu0 0.0
    %4590 = vmatpush1.msra.mxu0 0.0
    %4591 = vmatprep.subr.mxu0 0.0
    %4592 = vmatpush1.msra.mxu0 0.0
    %4593 = vmatprep.subr.mxu0 0.0
    %4594 = vmatpush1.msra.mxu0 0.0
    %4595 = vmatprep.subr.mxu0 0.0
    %4596 = vmatpush1.msra.mxu0 0.0
    %4597 = vmatprep.subr.mxu0 0.0
    %4598 = vmatpush1.msra.mxu0 0.0
    %4599 = vmatprep.subr.mxu0 0.0
    %4600 = vmatpush1.msra.mxu0 0.0
    %4601 = vmatprep.subr.mxu0 0.0
    %4602 = vmatpush1.msra.mxu0 0.0
    %4603 = vmatprep.subr.mxu0 0.0
    %4604 = vmatpush1.msra.mxu0 0.0
    %4605 = vmatprep.subr.mxu0 0.0
    %4606 = vmatpush1.msra.mxu0 0.0
    %4607 = vmatprep.subr.mxu0 0.0
    %4608 = vmatpush1.msra.mxu0 0.0
    %4609 = vmatprep.subr.mxu0 0.0
    %4610 = vmatpush1.msra.mxu0 0.0
    %4611 = vmatprep.subr.mxu0 0.0
    %4612 = vmatpush1.msra.mxu0 0.0
    %4613 = vmatprep.subr.mxu0 0.0
    %4614 = vmatpush1.msra.mxu0 0.0
    %4615 = vmatprep.subr.mxu0 0.0
    %4616 = vmatpush1.msra.mxu0 0.0
    %4617 = vmatprep.subr.mxu0 0.0
    %4618 = vmatpush1.msra.mxu0 0.0
    %4619 = vmatprep.subr.mxu0 0.0
    %4620 = vmatpush1.msra.mxu0 0.0
    %4621 = vmatprep.subr.mxu0 0.0
    %4622 = vmatpush1.msra.mxu0 0.0
    %4623 = vmatprep.subr.mxu0 0.0
    %4624 = vmatpush1.msra.mxu0 0.0
    %4625 = vmatprep.subr.mxu0 0.0
    %4626 = vmatpush1.msra.mxu0 0.0
    %4627 = vmatprep.subr.mxu0 0.0
    %4628 = vmatpush1.msra.mxu0 0.0
    %4629 = vmatprep.subr.mxu0 0.0
    %4630 = vmatpush1.msra.mxu0 0.0
    %4631 = vmatprep.mubr.f32.mxu0 0.0
    %4632 = vmatmul.mubr.f32.gmra.mrb[0].mxu0 %v4355
    %v4633 = vpop.f32.mrb[0].mxu0
    %v4634 = vadd.f32 %v4329, %v4633
    %v4635 = vpop.f32.mrb[0].mxu0
    %4636 = vdwg.mxu0
    %v4638 = vsel %vm173, %v4263, 0
    %4640 = vmatprep.subr.mxu0 0.0
    %4641 = vmatpush1.msra.mxu0 %v4281
    %4642 = vmatprep.subr.mxu0 0.0
    %4643 = vmatpush1.msra.mxu0 %v4282
    %4644 = vmatprep.subr.mxu0 0.0
    %4645 = vmatpush1.msra.mxu0 %v4283
    %4646 = vmatprep.subr.mxu0 0.0
    %4647 = vmatpush1.msra.mxu0 %v4284
    %4648 = vmatprep.subr.mxu0 0.0
    %4649 = vmatpush1.msra.mxu0 0.0
    %4650 = vmatprep.subr.mxu0 0.0
    %4651 = vmatpush1.msra.mxu0 0.0
    %4652 = vmatprep.subr.mxu0 0.0
    %4653 = vmatpush1.msra.mxu0 0.0
    %4654 = vmatprep.subr.mxu0 0.0
    %4655 = vmatpush1.msra.mxu0 0.0
    %4656 = vmatprep.subr.mxu0 0.0
    %4657 = vmatpush1.msra.mxu0 0.0
    %4658 = vmatprep.subr.mxu0 0.0
    %4659 = vmatpush1.msra.mxu0 0.0
    %4660 = vmatprep.subr.mxu0 0.0
    %4661 = vmatpush1.msra.mxu0 0.0
    %4662 = vmatprep.subr.mxu0 0.0
    %4663 = vmatpush1.msra.mxu0 0.0
    %4664 = vmatprep.subr.mxu0 0.0
    %4665 = vmatpush1.msra.mxu0 0.0
    %4666 = vmatprep.subr.mxu0 0.0
    %4667 = vmatpush1.msra.mxu0 0.0
    %4668 = vmatprep.subr.mxu0 0.0
    %4669 = vmatpush1.msra.mxu0 0.0
    %4670 = vmatprep.subr.mxu0 0.0
    %4671 = vmatpush1.msra.mxu0 0.0
    %4672 = vmatprep.subr.mxu0 0.0
    %4673 = vmatpush1.msra.mxu0 0.0
    %4674 = vmatprep.subr.mxu0 0.0
    %4675 = vmatpush1.msra.mxu0 0.0
    %4676 = vmatprep.subr.mxu0 0.0
    %4677 = vmatpush1.msra.mxu0 0.0
    %4678 = vmatprep.subr.mxu0 0.0
    %4679 = vmatpush1.msra.mxu0 0.0
    %4680 = vmatprep.subr.mxu0 0.0
    %4681 = vmatpush1.msra.mxu0 0.0
    %4682 = vmatprep.subr.mxu0 0.0
    %4683 = vmatpush1.msra.mxu0 0.0
    %4684 = vmatprep.subr.mxu0 0.0
    %4685 = vmatpush1.msra.mxu0 0.0
    %4686 = vmatprep.subr.mxu0 0.0
    %4687 = vmatpush1.msra.mxu0 0.0
    %4688 = vmatprep.subr.mxu0 0.0
    %4689 = vmatpush1.msra.mxu0 0.0
    %4690 = vmatprep.subr.mxu0 0.0
    %4691 = vmatpush1.msra.mxu0 0.0
    %4692 = vmatprep.subr.mxu0 0.0
    %4693 = vmatpush1.msra.mxu0 0.0
    %4694 = vmatprep.subr.mxu0 0.0
    %4695 = vmatpush1.msra.mxu0 0.0
    %4696 = vmatprep.subr.mxu0 0.0
    %4697 = vmatpush1.msra.mxu0 0.0
    %4698 = vmatprep.subr.mxu0 0.0
    %4699 = vmatpush1.msra.mxu0 0.0
    %4700 = vmatprep.subr.mxu0 0.0
    %4701 = vmatpush1.msra.mxu0 0.0
    %4702 = vmatprep.subr.mxu0 0.0
    %4703 = vmatpush1.msra.mxu0 0.0
    %4704 = vmatprep.mubr.f32.mxu0 0.0
    %4705 = vmatmul.mubr.f32.gmra.mrb[0].mxu0 %v4638
    %v4706 = vpop.f32.mrb[0].mxu0
    %v4707 = vadd.f32 %v4333, %v4706
    %v4708 = vpop.f32.mrb[0].mxu0
    %4709 = vdwg.mxu0
    %4710 = vmatprep.subr.mxu0 0.0
    %4711 = vmatpush1.msra.mxu0 %v4285
    %4712 = vmatprep.subr.mxu0 0.0
    %4713 = vmatpush1.msra.mxu0 %v4286
    %4714 = vmatprep.subr.mxu0 0.0
    %4715 = vmatpush1.msra.mxu0 %v4287
    %4716 = vmatprep.subr.mxu0 0.0
    %4717 = vmatpush1.msra.mxu0 %v4288
    %4718 = vmatprep.subr.mxu0 0.0
    %4719 = vmatpush1.msra.mxu0 0.0
    %4720 = vmatprep.subr.mxu0 0.0
    %4721 = vmatpush1.msra.mxu0 0.0
    %4722 = vmatprep.subr.mxu0 0.0
    %4723 = vmatpush1.msra.mxu0 0.0
    %4724 = vmatprep.subr.mxu0 0.0
    %4725 = vmatpush1.msra.mxu0 0.0
    %4726 = vmatprep.subr.mxu0 0.0
    %4727 = vmatpush1.msra.mxu0 0.0
    %4728 = vmatprep.subr.mxu0 0.0
    %4729 = vmatpush1.msra.mxu0 0.0
    %4730 = vmatprep.subr.mxu0 0.0
    %4731 = vmatpush1.msra.mxu0 0.0
    %4732 = vmatprep.subr.mxu0 0.0
    %4733 = vmatpush1.msra.mxu0 0.0
    %4734 = vmatprep.subr.mxu0 0.0
    %4735 = vmatpush1.msra.mxu0 0.0
    %4736 = vmatprep.subr.mxu0 0.0
    %4737 = vmatpush1.msra.mxu0 0.0
    %4738 = vmatprep.subr.mxu0 0.0
    %4739 = vmatpush1.msra.mxu0 0.0
    %4740 = vmatprep.subr.mxu0 0.0
    %4741 = vmatpush1.msra.mxu0 0.0
    %4742 = vmatprep.subr.mxu0 0.0
    %4743 = vmatpush1.msra.mxu0 0.0
    %4744 = vmatprep.subr.mxu0 0.0
    %4745 = vmatpush1.msra.mxu0 0.0
    %4746 = vmatprep.subr.mxu0 0.0
    %4747 = vmatpush1.msra.mxu0 0.0
    %4748 = vmatprep.subr.mxu0 0.0
    %4749 = vmatpush1.msra.mxu0 0.0
    %4750 = vmatprep.subr.mxu0 0.0
    %4751 = vmatpush1.msra.mxu0 0.0
    %4752 = vmatprep.subr.mxu0 0.0
    %4753 = vmatpush1.msra.mxu0 0.0
    %4754 = vmatprep.subr.mxu0 0.0
    %4755 = vmatpush1.msra.mxu0 0.0
    %4756 = vmatprep.subr.mxu0 0.0
    %4757 = vmatpush1.msra.mxu0 0.0
    %4758 = vmatprep.subr.mxu0 0.0
    %4759 = vmatpush1.msra.mxu0 0.0
    %4760 = vmatprep.subr.mxu0 0.0
    %4761 = vmatpush1.msra.mxu0 0.0
    %4762 = vmatprep.subr.mxu0 0.0
    %4763 = vmatpush1.msra.mxu0 0.0
    %4764 = vmatprep.subr.mxu0 0.0
    %4765 = vmatpush1.msra.mxu0 0.0
    %4766 = vmatprep.subr.mxu0 0.0
    %4767 = vmatpush1.msra.mxu0 0.0
    %4768 = vmatprep.subr.mxu0 0.0
    %4769 = vmatpush1.msra.mxu0 0.0
    %4770 = vmatprep.subr.mxu0 0.0
    %4771 = vmatpush1.msra.mxu0 0.0
    %4772 = vmatprep.subr.mxu0 0.0
    %4773 = vmatpush1.msra.mxu0 0.0
    %4774 = vmatprep.mubr.f32.mxu0 0.0
    %4775 = vmatmul.mubr.f32.gmra.mrb[0].mxu0 %v4638
    %v4776 = vpop.f32.mrb[0].mxu0
    %v4777 = vadd.f32 %v4337, %v4776
    %v4778 = vpop.f32.mrb[0].mxu0
    %4779 = vdwg.mxu0
    %4780 = vmatprep.subr.mxu0 0.0
    %4781 = vmatpush1.msra.mxu0 %v4289
    %4782 = vmatprep.subr.mxu0 0.0
    %4783 = vmatpush1.msra.mxu0 %v4290
    %4784 = vmatprep.subr.mxu0 0.0
    %4785 = vmatpush1.msra.mxu0 %v4291
    %4786 = vmatprep.subr.mxu0 0.0
    %4787 = vmatpush1.msra.mxu0 %v4292
    %4788 = vmatprep.subr.mxu0 0.0
    %4789 = vmatpush1.msra.mxu0 0.0
    %4790 = vmatprep.subr.mxu0 0.0
    %4791 = vmatpush1.msra.mxu0 0.0
    %4792 = vmatprep.subr.mxu0 0.0
    %4793 = vmatpush1.msra.mxu0 0.0
    %4794 = vmatprep.subr.mxu0 0.0
    %4795 = vmatpush1.msra.mxu0 0.0
    %4796 = vmatprep.subr.mxu0 0.0
    %4797 = vmatpush1.msra.mxu0 0.0
    %4798 = vmatprep.subr.mxu0 0.0
    %4799 = vmatpush1.msra.mxu0 0.0
    %4800 = vmatprep.subr.mxu0 0.0
    %4801 = vmatpush1.msra.mxu0 0.0
    %4802 = vmatprep.subr.mxu0 0.0
    %4803 = vmatpush1.msra.mxu0 0.0
    %4804 = vmatprep.subr.mxu0 0.0
    %4805 = vmatpush1.msra.mxu0 0.0
    %4806 = vmatprep.subr.mxu0 0.0
    %4807 = vmatpush1.msra.mxu0 0.0
    %4808 = vmatprep.subr.mxu0 0.0
    %4809 = vmatpush1.msra.mxu0 0.0
    %4810 = vmatprep.subr.mxu0 0.0
    %4811 = vmatpush1.msra.mxu0 0.0
    %4812 = vmatprep.subr.mxu0 0.0
    %4813 = vmatpush1.msra.mxu0 0.0
    %4814 = vmatprep.subr.mxu0 0.0
    %4815 = vmatpush1.msra.mxu0 0.0
    %4816 = vmatprep.subr.mxu0 0.0
    %4817 = vmatpush1.msra.mxu0 0.0
    %4818 = vmatprep.subr.mxu0 0.0
    %4819 = vmatpush1.msra.mxu0 0.0
    %4820 = vmatprep.subr.mxu0 0.0
    %4821 = vmatpush1.msra.mxu0 0.0
    %4822 = vmatprep.subr.mxu0 0.0
    %4823 = vmatpush1.msra.mxu0 0.0
    %4824 = vmatprep.subr.mxu0 0.0
    %4825 = vmatpush1.msra.mxu0 0.0
    %4826 = vmatprep.subr.mxu0 0.0
    %4827 = vmatpush1.msra.mxu0 0.0
    %4828 = vmatprep.subr.mxu0 0.0
    %4829 = vmatpush1.msra.mxu0 0.0
    %4830 = vmatprep.subr.mxu0 0.0
    %4831 = vmatpush1.msra.mxu0 0.0
    %4832 = vmatprep.subr.mxu0 0.0
    %4833 = vmatpush1.msra.mxu0 0.0
    %4834 = vmatprep.subr.mxu0 0.0
    %4835 = vmatpush1.msra.mxu0 0.0
    %4836 = vmatprep.subr.mxu0 0.0
    %4837 = vmatpush1.msra.mxu0 0.0
    %4838 = vmatprep.subr.mxu0 0.0
    %4839 = vmatpush1.msra.mxu0 0.0
    %4840 = vmatprep.subr.mxu0 0.0
    %4841 = vmatpush1.msra.mxu0 0.0
    %4842 = vmatprep.subr.mxu0 0.0
    %4843 = vmatpush1.msra.mxu0 0.0
    %4844 = vmatprep.mubr.f32.mxu0 0.0
    %4845 = vmatmul.mubr.f32.gmra.mrb[0].mxu0 %v4638
    %v4846 = vpop.f32.mrb[0].mxu0
    %v4847 = vadd.f32 %v4341, %v4846
    %v4848 = vpop.f32.mrb[0].mxu0
    %4849 = vdwg.mxu0
    %4850 = vmatprep.subr.mxu0 0.0
    %4851 = vmatpush1.msra.mxu0 %v4293
    %4852 = vmatprep.subr.mxu0 0.0
    %4853 = vmatpush1.msra.mxu0 %v4294
    %4854 = vmatprep.subr.mxu0 0.0
    %4855 = vmatpush1.msra.mxu0 %v4295
    %4856 = vmatprep.subr.mxu0 0.0
    %4857 = vmatpush1.msra.mxu0 %v4296
    %4858 = vmatprep.subr.mxu0 0.0
    %4859 = vmatpush1.msra.mxu0 0.0
    %4860 = vmatprep.subr.mxu0 0.0
    %4861 = vmatpush1.msra.mxu0 0.0
    %4862 = vmatprep.subr.mxu0 0.0
    %4863 = vmatpush1.msra.mxu0 0.0
    %4864 = vmatprep.subr.mxu0 0.0
    %4865 = vmatpush1.msra.mxu0 0.0
    %4866 = vmatprep.subr.mxu0 0.0
    %4867 = vmatpush1.msra.mxu0 0.0
    %4868 = vmatprep.subr.mxu0 0.0
    %4869 = vmatpush1.msra.mxu0 0.0
    %4870 = vmatprep.subr.mxu0 0.0
    %4871 = vmatpush1.msra.mxu0 0.0
    %4872 = vmatprep.subr.mxu0 0.0
    %4873 = vmatpush1.msra.mxu0 0.0
    %4874 = vmatprep.subr.mxu0 0.0
    %4875 = vmatpush1.msra.mxu0 0.0
    %4876 = vmatprep.subr.mxu0 0.0
    %4877 = vmatpush1.msra.mxu0 0.0
    %4878 = vmatprep.subr.mxu0 0.0
    %4879 = vmatpush1.msra.mxu0 0.0
    %4880 = vmatprep.subr.mxu0 0.0
    %4881 = vmatpush1.msra.mxu0 0.0
    %4882 = vmatprep.subr.mxu0 0.0
    %4883 = vmatpush1.msra.mxu0 0.0
    %4884 = vmatprep.subr.mxu0 0.0
    %4885 = vmatpush1.msra.mxu0 0.0
    %4886 = vmatprep.subr.mxu0 0.0
    %4887 = vmatpush1.msra.mxu0 0.0
    %4888 = vmatprep.subr.mxu0 0.0
    %4889 = vmatpush1.msra.mxu0 0.0
    %4890 = vmatprep.subr.mxu0 0.0
    %4891 = vmatpush1.msra.mxu0 0.0
    %4892 = vmatprep.subr.mxu0 0.0
    %4893 = vmatpush1.msra.mxu0 0.0
    %4894 = vmatprep.subr.mxu0 0.0
    %4895 = vmatpush1.msra.mxu0 0.0
    %4896 = vmatprep.subr.mxu0 0.0
    %4897 = vmatpush1.msra.mxu0 0.0
    %4898 = vmatprep.subr.mxu0 0.0
    %4899 = vmatpush1.msra.mxu0 0.0
    %4900 = vmatprep.subr.mxu0 0.0
    %4901 = vmatpush1.msra.mxu0 0.0
    %4902 = vmatprep.subr.mxu0 0.0
    %4903 = vmatpush1.msra.mxu0 0.0
    %4904 = vmatprep.subr.mxu0 0.0
    %4905 = vmatpush1.msra.mxu0 0.0
    %4906 = vmatprep.subr.mxu0 0.0
    %4907 = vmatpush1.msra.mxu0 0.0
    %4908 = vmatprep.subr.mxu0 0.0
    %4909 = vmatpush1.msra.mxu0 0.0
    %4910 = vmatprep.subr.mxu0 0.0
    %4911 = vmatpush1.msra.mxu0 0.0
    %4912 = vmatprep.subr.mxu0 0.0
    %4913 = vmatpush1.msra.mxu0 0.0
    %4914 = vmatprep.mubr.f32.mxu0 0.0
    %4915 = vmatmul.mubr.f32.gmra.mrb[0].mxu0 %v4638
    %v4916 = vpop.f32.mrb[0].mxu0
    %v4917 = vadd.f32 %v4345, %v4916
    %v4918 = vpop.f32.mrb[0].mxu0
    %4919 = vdwg.mxu0
    %s4920 = scalar_lea.vmem %s4, 256
    %v4921 = vld [vmem:[%s4920] sm:$0xff]
    %v4922 = vld [vmem:[%s4920 + $0x8] sm:$0xff]
    %v4923 = vld [vmem:[%s4920 + $0x10] sm:$0xff]
    %v4924 = vld [vmem:[%s4920 + $0x18] sm:$0xff]
    %v4925 = vld [vmem:[%s4920 + $0x20] sm:$0xff]
    %v4926 = vld [vmem:[%s4920 + $0x28] sm:$0xff]
    %v4927 = vld [vmem:[%s4920 + $0x30] sm:$0xff]
    %v4928 = vld [vmem:[%s4920 + $0x38] sm:$0xff]
    %v4929 = vld [vmem:[%s4920 + $0x40] sm:$0xff]
    %v4930 = vld [vmem:[%s4920 + $0x48] sm:$0xff]
    %v4931 = vld [vmem:[%s4920 + $0x50] sm:$0xff]
    %v4932 = vld [vmem:[%s4920 + $0x58] sm:$0xff]
    %v4933 = vld [vmem:[%s4920 + $0x60] sm:$0xff]
    %v4934 = vld [vmem:[%s4920 + $0x68] sm:$0xff]
    %v4935 = vld [vmem:[%s4920 + $0x70] sm:$0xff]
    %v4936 = vld [vmem:[%s4920 + $0x78] sm:$0xff]
    %v4937 = vld [vmem:[%s4920 + $0x80] sm:$0xff]
    %v4938 = vld [vmem:[%s4920 + $0x88] sm:$0xff]
    %v4939 = vld [vmem:[%s4920 + $0x90] sm:$0xff]
    %v4940 = vld [vmem:[%s4920 + $0x98] sm:$0xff]
    %v4941 = vld [vmem:[%s4920 + $0xa0] sm:$0xff]
    %v4942 = vld [vmem:[%s4920 + $0xa8] sm:$0xff]
    %v4943 = vld [vmem:[%s4920 + $0xb0] sm:$0xff]
    %v4944 = vld [vmem:[%s4920 + $0xb8] sm:$0xff]
    %v4945 = vld [vmem:[%s4920 + $0xc0] sm:$0xff]
    %v4946 = vld [vmem:[%s4920 + $0xc8] sm:$0xff]
    %v4947 = vld [vmem:[%s4920 + $0xd0] sm:$0xff]
    %v4948 = vld [vmem:[%s4920 + $0xd8] sm:$0xff]
    %v4949 = vld [vmem:[%s4920 + $0xe0] sm:$0xff]
    %v4950 = vld [vmem:[%s4920 + $0xe8] sm:$0xff]
    %v4951 = vld [vmem:[%s4920 + $0xf0] sm:$0xff]
    %v4952 = vld [vmem:[%s4920 + $0xf8] sm:$0xff]
    %s4953 = scalar_lea.vmem %s5, 8
    %v4954 = vld [vmem:[%s4953] sm:$0x1]
    %v4955 = vld [vmem:[%s4953 + $0x1] sm:$0x1]
    %v4956 = vld [vmem:[%s4953 + $0x2] sm:$0x1]
    %v4957 = vld [vmem:[%s4953 + $0x3] sm:$0x1]
    %v4958 = vld [vmem:[%s4953 + $0x4] sm:$0x1]
    %v4959 = vld [vmem:[%s4953 + $0x5] sm:$0x1]
    %v4960 = vld [vmem:[%s4953 + $0x6] sm:$0x1]
    %v4961 = vld [vmem:[%s4953 + $0x7] sm:$0x1]
    %v4970 = vlaneseq
    %v4971 = vshrl.u32 %v4970, 7
    %v4972 = vsub.s32 0, %v4971
    %v4973 = vrot.slane %v4954, %v4972
    %v4974 = vlaneseq
    %v4975 = vshrl.u32 %v4974, 7
    %v4976 = vsub.s32 0, %v4975
    %v4977 = vrot.slane %v4955, %v4976
    %v4978 = vlaneseq
    %v4979 = vshrl.u32 %v4978, 7
    %v4980 = vsub.s32 0, %v4979
    %v4981 = vrot.slane %v4956, %v4980
    %v4982 = vlaneseq
    %v4983 = vshrl.u32 %v4982, 7
    %v4984 = vsub.s32 0, %v4983
    %v4985 = vrot.slane %v4957, %v4984
    %v4986 = vlaneseq
    %v4987 = vshrl.u32 %v4986, 7
    %v4988 = vsub.s32 0, %v4987
    %v4989 = vrot.slane %v4958, %v4988
    %v4990 = vlaneseq
    %v4991 = vshrl.u32 %v4990, 7
    %v4992 = vsub.s32 0, %v4991
    %v4993 = vrot.slane %v4959, %v4992
    %v4994 = vlaneseq
    %v4995 = vshrl.u32 %v4994, 7
    %v4996 = vsub.s32 0, %v4995
    %v4997 = vrot.slane %v4960, %v4996
    %v4998 = vlaneseq
    %v4999 = vshrl.u32 %v4998, 7
    %v5000 = vsub.s32 0, %v4999
    %v5001 = vrot.slane %v4961, %v5000
    %5010 = vmatprep.subr.mxu0 0.0
    %5011 = vmatpush1.msra.mxu0 %v4921
    %5012 = vmatprep.subr.mxu0 0.0
    %5013 = vmatpush1.msra.mxu0 %v4922
    %5014 = vmatprep.subr.mxu0 0.0
    %5015 = vmatpush1.msra.mxu0 %v4923
    %5016 = vmatprep.subr.mxu0 0.0
    %5017 = vmatpush1.msra.mxu0 %v4924
    %5018 = vmatprep.subr.mxu0 0.0
    %5019 = vmatpush1.msra.mxu0 0.0
    %5020 = vmatprep.subr.mxu0 0.0
    %5021 = vmatpush1.msra.mxu0 0.0
    %5022 = vmatprep.subr.mxu0 0.0
    %5023 = vmatpush1.msra.mxu0 0.0
    %5024 = vmatprep.subr.mxu0 0.0
    %5025 = vmatpush1.msra.mxu0 0.0
    %5026 = vmatprep.subr.mxu0 0.0
    %5027 = vmatpush1.msra.mxu0 0.0
    %5028 = vmatprep.subr.mxu0 0.0
    %5029 = vmatpush1.msra.mxu0 0.0
    %5030 = vmatprep.subr.mxu0 0.0
    %5031 = vmatpush1.msra.mxu0 0.0
    %5032 = vmatprep.subr.mxu0 0.0
    %5033 = vmatpush1.msra.mxu0 0.0
    %5034 = vmatprep.subr.mxu0 0.0
    %5035 = vmatpush1.msra.mxu0 0.0
    %5036 = vmatprep.subr.mxu0 0.0
    %5037 = vmatpush1.msra.mxu0 0.0
    %5038 = vmatprep.subr.mxu0 0.0
    %5039 = vmatpush1.msra.mxu0 0.0
    %5040 = vmatprep.subr.mxu0 0.0
    %5041 = vmatpush1.msra.mxu0 0.0
    %5042 = vmatprep.subr.mxu0 0.0
    %5043 = vmatpush1.msra.mxu0 0.0
    %5044 = vmatprep.subr.mxu0 0.0
    %5045 = vmatpush1.msra.mxu0 0.0
    %5046 = vmatprep.subr.mxu0 0.0
    %5047 = vmatpush1.msra.mxu0 0.0
    %5048 = vmatprep.subr.mxu0 0.0
    %5049 = vmatpush1.msra.mxu0 0.0
    %5050 = vmatprep.subr.mxu0 0.0
    %5051 = vmatpush1.msra.mxu0 0.0
    %5052 = vmatprep.subr.mxu0 0.0
    %5053 = vmatpush1.msra.mxu0 0.0
    %5054 = vmatprep.subr.mxu0 0.0
    %5055 = vmatpush1.msra.mxu0 0.0
    %5056 = vmatprep.subr.mxu0 0.0
    %5057 = vmatpush1.msra.mxu0 0.0
    %5058 = vmatprep.subr.mxu0 0.0
    %5059 = vmatpush1.msra.mxu0 0.0
    %5060 = vmatprep.subr.mxu0 0.0
    %5061 = vmatpush1.msra.mxu0 0.0
    %5062 = vmatprep.subr.mxu0 0.0
    %5063 = vmatpush1.msra.mxu0 0.0
    %5064 = vmatprep.subr.mxu0 0.0
    %5065 = vmatpush1.msra.mxu0 0.0
    %5066 = vmatprep.subr.mxu0 0.0
    %5067 = vmatpush1.msra.mxu0 0.0
    %5068 = vmatprep.subr.mxu0 0.0
    %5069 = vmatpush1.msra.mxu0 0.0
    %5070 = vmatprep.subr.mxu0 0.0
    %5071 = vmatpush1.msra.mxu0 0.0
    %5072 = vmatprep.subr.mxu0 0.0
    %5073 = vmatpush1.msra.mxu0 0.0
    %5074 = vmatprep.mubr.f32.mxu0 0.0
    %5075 = vmatmul.mubr.f32.gmra.mrb[0].mxu0 %v4355
    %v5076 = vpop.f32.mrb[0].mxu0
    %v5077 = vadd.f32 %v4973, %v5076
    %v5078 = vpop.f32.mrb[0].mxu0
    %5079 = vdwg.mxu0
    %5080 = vmatprep.subr.mxu0 0.0
    %5081 = vmatpush1.msra.mxu0 %v4925
    %5082 = vmatprep.subr.mxu0 0.0
    %5083 = vmatpush1.msra.mxu0 %v4926
    %5084 = vmatprep.subr.mxu0 0.0
    %5085 = vmatpush1.msra.mxu0 %v4927
    %5086 = vmatprep.subr.mxu0 0.0
    %5087 = vmatpush1.msra.mxu0 %v4928
    %5088 = vmatprep.subr.mxu0 0.0
    %5089 = vmatpush1.msra.mxu0 0.0
    %5090 = vmatprep.subr.mxu0 0.0
    %5091 = vmatpush1.msra.mxu0 0.0
    %5092 = vmatprep.subr.mxu0 0.0
    %5093 = vmatpush1.msra.mxu0 0.0
    %5094 = vmatprep.subr.mxu0 0.0
    %5095 = vmatpush1.msra.mxu0 0.0
    %5096 = vmatprep.subr.mxu0 0.0
    %5097 = vmatpush1.msra.mxu0 0.0
    %5098 = vmatprep.subr.mxu0 0.0
    %5099 = vmatpush1.msra.mxu0 0.0
    %5100 = vmatprep.subr.mxu0 0.0
    %5101 = vmatpush1.msra.mxu0 0.0
    %5102 = vmatprep.subr.mxu0 0.0
    %5103 = vmatpush1.msra.mxu0 0.0
    %5104 = vmatprep.subr.mxu0 0.0
    %5105 = vmatpush1.msra.mxu0 0.0
    %5106 = vmatprep.subr.mxu0 0.0
    %5107 = vmatpush1.msra.mxu0 0.0
    %5108 = vmatprep.subr.mxu0 0.0
    %5109 = vmatpush1.msra.mxu0 0.0
    %5110 = vmatprep.subr.mxu0 0.0
    %5111 = vmatpush1.msra.mxu0 0.0
    %5112 = vmatprep.subr.mxu0 0.0
    %5113 = vmatpush1.msra.mxu0 0.0
    %5114 = vmatprep.subr.mxu0 0.0
    %5115 = vmatpush1.msra.mxu0 0.0
    %5116 = vmatprep.subr.mxu0 0.0
    %5117 = vmatpush1.msra.mxu0 0.0
    %5118 = vmatprep.subr.mxu0 0.0
    %5119 = vmatpush1.msra.mxu0 0.0
    %5120 = vmatprep.subr.mxu0 0.0
    %5121 = vmatpush1.msra.mxu0 0.0
    %5122 = vmatprep.subr.mxu0 0.0
    %5123 = vmatpush1.msra.mxu0 0.0
    %5124 = vmatprep.subr.mxu0 0.0
    %5125 = vmatpush1.msra.mxu0 0.0
    %5126 = vmatprep.subr.mxu0 0.0
    %5127 = vmatpush1.msra.mxu0 0.0
    %5128 = vmatprep.subr.mxu0 0.0
    %5129 = vmatpush1.msra.mxu0 0.0
    %5130 = vmatprep.subr.mxu0 0.0
    %5131 = vmatpush1.msra.mxu0 0.0
    %5132 = vmatprep.subr.mxu0 0.0
    %5133 = vmatpush1.msra.mxu0 0.0
    %5134 = vmatprep.subr.mxu0 0.0
    %5135 = vmatpush1.msra.mxu0 0.0
    %5136 = vmatprep.subr.mxu0 0.0
    %5137 = vmatpush1.msra.mxu0 0.0
    %5138 = vmatprep.subr.mxu0 0.0
    %5139 = vmatpush1.msra.mxu0 0.0
    %5140 = vmatprep.subr.mxu0 0.0
    %5141 = vmatpush1.msra.mxu0 0.0
    %5142 = vmatprep.subr.mxu0 0.0
    %5143 = vmatpush1.msra.mxu0 0.0
    %5144 = vmatprep.mubr.f32.mxu0 0.0
    %5145 = vmatmul.mubr.f32.gmra.mrb[0].mxu0 %v4355
    %v5146 = vpop.f32.mrb[0].mxu0
    %v5147 = vadd.f32 %v4977, %v5146
    %v5148 = vpop.f32.mrb[0].mxu0
    %5149 = vdwg.mxu0
    %5150 = vmatprep.subr.mxu0 0.0
    %5151 = vmatpush1.msra.mxu0 %v4929
    %5152 = vmatprep.subr.mxu0 0.0
    %5153 = vmatpush1.msra.mxu0 %v4930
    %5154 = vmatprep.subr.mxu0 0.0
    %5155 = vmatpush1.msra.mxu0 %v4931
    %5156 = vmatprep.subr.mxu0 0.0
    %5157 = vmatpush1.msra.mxu0 %v4932
    %5158 = vmatprep.subr.mxu0 0.0
    %5159 = vmatpush1.msra.mxu0 0.0
    %5160 = vmatprep.subr.mxu0 0.0
    %5161 = vmatpush1.msra.mxu0 0.0
    %5162 = vmatprep.subr.mxu0 0.0
    %5163 = vmatpush1.msra.mxu0 0.0
    %5164 = vmatprep.subr.mxu0 0.0
    %5165 = vmatpush1.msra.mxu0 0.0
    %5166 = vmatprep.subr.mxu0 0.0
    %5167 = vmatpush1.msra.mxu0 0.0
    %5168 = vmatprep.subr.mxu0 0.0
    %5169 = vmatpush1.msra.mxu0 0.0
    %5170 = vmatprep.subr.mxu0 0.0
    %5171 = vmatpush1.msra.mxu0 0.0
    %5172 = vmatprep.subr.mxu0 0.0
    %5173 = vmatpush1.msra.mxu0 0.0
    %5174 = vmatprep.subr.mxu0 0.0
    %5175 = vmatpush1.msra.mxu0 0.0
    %5176 = vmatprep.subr.mxu0 0.0
    %5177 = vmatpush1.msra.mxu0 0.0
    %5178 = vmatprep.subr.mxu0 0.0
    %5179 = vmatpush1.msra.mxu0 0.0
    %5180 = vmatprep.subr.mxu0 0.0
    %5181 = vmatpush1.msra.mxu0 0.0
    %5182 = vmatprep.subr.mxu0 0.0
    %5183 = vmatpush1.msra.mxu0 0.0
    %5184 = vmatprep.subr.mxu0 0.0
    %5185 = vmatpush1.msra.mxu0 0.0
    %5186 = vmatprep.subr.mxu0 0.0
    %5187 = vmatpush1.msra.mxu0 0.0
    %5188 = vmatprep.subr.mxu0 0.0
    %5189 = vmatpush1.msra.mxu0 0.0
    %5190 = vmatprep.subr.mxu0 0.0
    %5191 = vmatpush1.msra.mxu0 0.0
    %5192 = vmatprep.subr.mxu0 0.0
    %5193 = vmatpush1.msra.mxu0 0.0
    %5194 = vmatprep.subr.mxu0 0.0
    %5195 = vmatpush1.msra.mxu0 0.0
    %5196 = vmatprep.subr.mxu0 0.0
    %5197 = vmatpush1.msra.mxu0 0.0
    %5198 = vmatprep.subr.mxu0 0.0
    %5199 = vmatpush1.msra.mxu0 0.0
    %5200 = vmatprep.subr.mxu0 0.0
    %5201 = vmatpush1.msra.mxu0 0.0
    %5202 = vmatprep.subr.mxu0 0.0
    %5203 = vmatpush1.msra.mxu0 0.0
    %5204 = vmatprep.subr.mxu0 0.0
    %5205 = vmatpush1.msra.mxu0 0.0
    %5206 = vmatprep.subr.mxu0 0.0
    %5207 = vmatpush1.msra.mxu0 0.0
    %5208 = vmatprep.subr.mxu0 0.0
    %5209 = vmatpush1.msra.mxu0 0.0
    %5210 = vmatprep.subr.mxu0 0.0
    %5211 = vmatpush1.msra.mxu0 0.0
    %5212 = vmatprep.subr.mxu0 0.0
    %5213 = vmatpush1.msra.mxu0 0.0
    %5214 = vmatprep.mubr.f32.mxu0 0.0
    %5215 = vmatmul.mubr.f32.gmra.mrb[0].mxu0 %v4355
    %v5216 = vpop.f32.mrb[0].mxu0
    %v5217 = vadd.f32 %v4981, %v5216
    %v5218 = vpop.f32.mrb[0].mxu0
    %5219 = vdwg.mxu0
    %5220 = vmatprep.subr.mxu0 0.0
    %5221 = vmatpush1.msra.mxu0 %v4933
    %5222 = vmatprep.subr.mxu0 0.0
    %5223 = vmatpush1.msra.mxu0 %v4934
    %5224 = vmatprep.subr.mxu0 0.0
    %5225 = vmatpush1.msra.mxu0 %v4935
    %5226 = vmatprep.subr.mxu0 0.0
    %5227 = vmatpush1.msra.mxu0 %v4936
    %5228 = vmatprep.subr.mxu0 0.0
    %5229 = vmatpush1.msra.mxu0 0.0
    %5230 = vmatprep.subr.mxu0 0.0
    %5231 = vmatpush1.msra.mxu0 0.0
    %5232 = vmatprep.subr.mxu0 0.0
    %5233 = vmatpush1.msra.mxu0 0.0
    %5234 = vmatprep.subr.mxu0 0.0
    %5235 = vmatpush1.msra.mxu0 0.0
    %5236 = vmatprep.subr.mxu0 0.0
    %5237 = vmatpush1.msra.mxu0 0.0
    %5238 = vmatprep.subr.mxu0 0.0
    %5239 = vmatpush1.msra.mxu0 0.0
    %5240 = vmatprep.subr.mxu0 0.0
    %5241 = vmatpush1.msra.mxu0 0.0
    %5242 = vmatprep.subr.mxu0 0.0
    %5243 = vmatpush1.msra.mxu0 0.0
    %5244 = vmatprep.subr.mxu0 0.0
    %5245 = vmatpush1.msra.mxu0 0.0
    %5246 = vmatprep.subr.mxu0 0.0
    %5247 = vmatpush1.msra.mxu0 0.0
    %5248 = vmatprep.subr.mxu0 0.0
    %5249 = vmatpush1.msra.mxu0 0.0
    %5250 = vmatprep.subr.mxu0 0.0
    %5251 = vmatpush1.msra.mxu0 0.0
    %5252 = vmatprep.subr.mxu0 0.0
    %5253 = vmatpush1.msra.mxu0 0.0
    %5254 = vmatprep.subr.mxu0 0.0
    %5255 = vmatpush1.msra.mxu0 0.0
    %5256 = vmatprep.subr.mxu0 0.0
    %5257 = vmatpush1.msra.mxu0 0.0
    %5258 = vmatprep.subr.mxu0 0.0
    %5259 = vmatpush1.msra.mxu0 0.0
    %5260 = vmatprep.subr.mxu0 0.0
    %5261 = vmatpush1.msra.mxu0 0.0
    %5262 = vmatprep.subr.mxu0 0.0
    %5263 = vmatpush1.msra.mxu0 0.0
    %5264 = vmatprep.subr.mxu0 0.0
    %5265 = vmatpush1.msra.mxu0 0.0
    %5266 = vmatprep.subr.mxu0 0.0
    %5267 = vmatpush1.msra.mxu0 0.0
    %5268 = vmatprep.subr.mxu0 0.0
    %5269 = vmatpush1.msra.mxu0 0.0
    %5270 = vmatprep.subr.mxu0 0.0
    %5271 = vmatpush1.msra.mxu0 0.0
    %5272 = vmatprep.subr.mxu0 0.0
    %5273 = vmatpush1.msra.mxu0 0.0
    %5274 = vmatprep.subr.mxu0 0.0
    %5275 = vmatpush1.msra.mxu0 0.0
    %5276 = vmatprep.subr.mxu0 0.0
    %5277 = vmatpush1.msra.mxu0 0.0
    %5278 = vmatprep.subr.mxu0 0.0
    %5279 = vmatpush1.msra.mxu0 0.0
    %5280 = vmatprep.subr.mxu0 0.0
    %5281 = vmatpush1.msra.mxu0 0.0
    %5282 = vmatprep.subr.mxu0 0.0
    %5283 = vmatpush1.msra.mxu0 0.0
    %5284 = vmatprep.mubr.f32.mxu0 0.0
    %5285 = vmatmul.mubr.f32.gmra.mrb[0].mxu0 %v4355
    %v5286 = vpop.f32.mrb[0].mxu0
    %v5287 = vadd.f32 %v4985, %v5286
    %v5288 = vpop.f32.mrb[0].mxu0
    %5289 = vdwg.mxu0
    %5290 = vmatprep.subr.mxu0 0.0
    %5291 = vmatpush1.msra.mxu0 %v4937
    %5292 = vmatprep.subr.mxu0 0.0
    %5293 = vmatpush1.msra.mxu0 %v4938
    %5294 = vmatprep.subr.mxu0 0.0
    %5295 = vmatpush1.msra.mxu0 %v4939
    %5296 = vmatprep.subr.mxu0 0.0
    %5297 = vmatpush1.msra.mxu0 %v4940
    %5298 = vmatprep.subr.mxu0 0.0
    %5299 = vmatpush1.msra.mxu0 0.0
    %5300 = vmatprep.subr.mxu0 0.0
    %5301 = vmatpush1.msra.mxu0 0.0
    %5302 = vmatprep.subr.mxu0 0.0
    %5303 = vmatpush1.msra.mxu0 0.0
    %5304 = vmatprep.subr.mxu0 0.0
    %5305 = vmatpush1.msra.mxu0 0.0
    %5306 = vmatprep.subr.mxu0 0.0
    %5307 = vmatpush1.msra.mxu0 0.0
    %5308 = vmatprep.subr.mxu0 0.0
    %5309 = vmatpush1.msra.mxu0 0.0
    %5310 = vmatprep.subr.mxu0 0.0
    %5311 = vmatpush1.msra.mxu0 0.0
    %5312 = vmatprep.subr.mxu0 0.0
    %5313 = vmatpush1.msra.mxu0 0.0
    %5314 = vmatprep.subr.mxu0 0.0
    %5315 = vmatpush1.msra.mxu0 0.0
    %5316 = vmatprep.subr.mxu0 0.0
    %5317 = vmatpush1.msra.mxu0 0.0
    %5318 = vmatprep.subr.mxu0 0.0
    %5319 = vmatpush1.msra.mxu0 0.0
    %5320 = vmatprep.subr.mxu0 0.0
    %5321 = vmatpush1.msra.mxu0 0.0
    %5322 = vmatprep.subr.mxu0 0.0
    %5323 = vmatpush1.msra.mxu0 0.0
    %5324 = vmatprep.subr.mxu0 0.0
    %5325 = vmatpush1.msra.mxu0 0.0
    %5326 = vmatprep.subr.mxu0 0.0
    %5327 = vmatpush1.msra.mxu0 0.0
    %5328 = vmatprep.subr.mxu0 0.0
    %5329 = vmatpush1.msra.mxu0 0.0
    %5330 = vmatprep.subr.mxu0 0.0
    %5331 = vmatpush1.msra.mxu0 0.0
    %5332 = vmatprep.subr.mxu0 0.0
    %5333 = vmatpush1.msra.mxu0 0.0
    %5334 = vmatprep.subr.mxu0 0.0
    %5335 = vmatpush1.msra.mxu0 0.0
    %5336 = vmatprep.subr.mxu0 0.0
    %5337 = vmatpush1.msra.mxu0 0.0
    %5338 = vmatprep.subr.mxu0 0.0
    %5339 = vmatpush1.msra.mxu0 0.0
    %5340 = vmatprep.subr.mxu0 0.0
    %5341 = vmatpush1.msra.mxu0 0.0
    %5342 = vmatprep.subr.mxu0 0.0
    %5343 = vmatpush1.msra.mxu0 0.0
    %5344 = vmatprep.subr.mxu0 0.0
    %5345 = vmatpush1.msra.mxu0 0.0
    %5346 = vmatprep.subr.mxu0 0.0
    %5347 = vmatpush1.msra.mxu0 0.0
    %5348 = vmatprep.subr.mxu0 0.0
    %5349 = vmatpush1.msra.mxu0 0.0
    %5350 = vmatprep.subr.mxu0 0.0
    %5351 = vmatpush1.msra.mxu0 0.0
    %5352 = vmatprep.subr.mxu0 0.0
    %5353 = vmatpush1.msra.mxu0 0.0
    %5354 = vmatprep.mubr.f32.mxu0 0.0
    %5355 = vmatmul.mubr.f32.gmra.mrb[0].mxu0 %v4638
    %v5356 = vpop.f32.mrb[0].mxu0
    %v5357 = vadd.f32 %v4989, %v5356
    %v5358 = vpop.f32.mrb[0].mxu0
    %5359 = vdwg.mxu0
    %5360 = vmatprep.subr.mxu0 0.0
    %5361 = vmatpush1.msra.mxu0 %v4941
    %5362 = vmatprep.subr.mxu0 0.0
    %5363 = vmatpush1.msra.mxu0 %v4942
    %5364 = vmatprep.subr.mxu0 0.0
    %5365 = vmatpush1.msra.mxu0 %v4943
    %5366 = vmatprep.subr.mxu0 0.0
    %5367 = vmatpush1.msra.mxu0 %v4944
    %5368 = vmatprep.subr.mxu0 0.0
    %5369 = vmatpush1.msra.mxu0 0.0
    %5370 = vmatprep.subr.mxu0 0.0
    %5371 = vmatpush1.msra.mxu0 0.0
    %5372 = vmatprep.subr.mxu0 0.0
    %5373 = vmatpush1.msra.mxu0 0.0
    %5374 = vmatprep.subr.mxu0 0.0
    %5375 = vmatpush1.msra.mxu0 0.0
    %5376 = vmatprep.subr.mxu0 0.0
    %5377 = vmatpush1.msra.mxu0 0.0
    %5378 = vmatprep.subr.mxu0 0.0
    %5379 = vmatpush1.msra.mxu0 0.0
    %5380 = vmatprep.subr.mxu0 0.0
    %5381 = vmatpush1.msra.mxu0 0.0
    %5382 = vmatprep.subr.mxu0 0.0
    %5383 = vmatpush1.msra.mxu0 0.0
    %5384 = vmatprep.subr.mxu0 0.0
    %5385 = vmatpush1.msra.mxu0 0.0
    %5386 = vmatprep.subr.mxu0 0.0
    %5387 = vmatpush1.msra.mxu0 0.0
    %5388 = vmatprep.subr.mxu0 0.0
    %5389 = vmatpush1.msra.mxu0 0.0
    %5390 = vmatprep.subr.mxu0 0.0
    %5391 = vmatpush1.msra.mxu0 0.0
    %5392 = vmatprep.subr.mxu0 0.0
    %5393 = vmatpush1.msra.mxu0 0.0
    %5394 = vmatprep.subr.mxu0 0.0
    %5395 = vmatpush1.msra.mxu0 0.0
    %5396 = vmatprep.subr.mxu0 0.0
    %5397 = vmatpush1.msra.mxu0 0.0
    %5398 = vmatprep.subr.mxu0 0.0
    %5399 = vmatpush1.msra.mxu0 0.0
    %5400 = vmatprep.subr.mxu0 0.0
    %5401 = vmatpush1.msra.mxu0 0.0
    %5402 = vmatprep.subr.mxu0 0.0
    %5403 = vmatpush1.msra.mxu0 0.0
    %5404 = vmatprep.subr.mxu0 0.0
    %5405 = vmatpush1.msra.mxu0 0.0
    %5406 = vmatprep.subr.mxu0 0.0
    %5407 = vmatpush1.msra.mxu0 0.0
    %5408 = vmatprep.subr.mxu0 0.0
    %5409 = vmatpush1.msra.mxu0 0.0
    %5410 = vmatprep.subr.mxu0 0.0
    %5411 = vmatpush1.msra.mxu0 0.0
    %5412 = vmatprep.subr.mxu0 0.0
    %5413 = vmatpush1.msra.mxu0 0.0
    %5414 = vmatprep.subr.mxu0 0.0
    %5415 = vmatpush1.msra.mxu0 0.0
    %5416 = vmatprep.subr.mxu0 0.0
    %5417 = vmatpush1.msra.mxu0 0.0
    %5418 = vmatprep.subr.mxu0 0.0
    %5419 = vmatpush1.msra.mxu0 0.0
    %5420 = vmatprep.subr.mxu0 0.0
    %5421 = vmatpush1.msra.mxu0 0.0
    %5422 = vmatprep.subr.mxu0 0.0
    %5423 = vmatpush1.msra.mxu0 0.0
    %5424 = vmatprep.mubr.f32.mxu0 0.0
    %5425 = vmatmul.mubr.f32.gmra.mrb[0].mxu0 %v4638
    %v5426 = vpop.f32.mrb[0].mxu0
    %v5427 = vadd.f32 %v4993, %v5426
    %v5428 = vpop.f32.mrb[0].mxu0
    %5429 = vdwg.mxu0
    %5430 = vmatprep.subr.mxu0 0.0
    %5431 = vmatpush1.msra.mxu0 %v4945
    %5432 = vmatprep.subr.mxu0 0.0
    %5433 = vmatpush1.msra.mxu0 %v4946
    %5434 = vmatprep.subr.mxu0 0.0
    %5435 = vmatpush1.msra.mxu0 %v4947
    %5436 = vmatprep.subr.mxu0 0.0
    %5437 = vmatpush1.msra.mxu0 %v4948
    %5438 = vmatprep.subr.mxu0 0.0
    %5439 = vmatpush1.msra.mxu0 0.0
    %5440 = vmatprep.subr.mxu0 0.0
    %5441 = vmatpush1.msra.mxu0 0.0
    %5442 = vmatprep.subr.mxu0 0.0
    %5443 = vmatpush1.msra.mxu0 0.0
    %5444 = vmatprep.subr.mxu0 0.0
    %5445 = vmatpush1.msra.mxu0 0.0
    %5446 = vmatprep.subr.mxu0 0.0
    %5447 = vmatpush1.msra.mxu0 0.0
    %5448 = vmatprep.subr.mxu0 0.0
    %5449 = vmatpush1.msra.mxu0 0.0
    %5450 = vmatprep.subr.mxu0 0.0
    %5451 = vmatpush1.msra.mxu0 0.0
    %5452 = vmatprep.subr.mxu0 0.0
    %5453 = vmatpush1.msra.mxu0 0.0
    %5454 = vmatprep.subr.mxu0 0.0
    %5455 = vmatpush1.msra.mxu0 0.0
    %5456 = vmatprep.subr.mxu0 0.0
    %5457 = vmatpush1.msra.mxu0 0.0
    %5458 = vmatprep.subr.mxu0 0.0
    %5459 = vmatpush1.msra.mxu0 0.0
    %5460 = vmatprep.subr.mxu0 0.0
    %5461 = vmatpush1.msra.mxu0 0.0
    %5462 = vmatprep.subr.mxu0 0.0
    %5463 = vmatpush1.msra.mxu0 0.0
    %5464 = vmatprep.subr.mxu0 0.0
    %5465 = vmatpush1.msra.mxu0 0.0
    %5466 = vmatprep.subr.mxu0 0.0
    %5467 = vmatpush1.msra.mxu0 0.0
    %5468 = vmatprep.subr.mxu0 0.0
    %5469 = vmatpush1.msra.mxu0 0.0
    %5470 = vmatprep.subr.mxu0 0.0
    %5471 = vmatpush1.msra.mxu0 0.0
    %5472 = vmatprep.subr.mxu0 0.0
    %5473 = vmatpush1.msra.mxu0 0.0
    %5474 = vmatprep.subr.mxu0 0.0
    %5475 = vmatpush1.msra.mxu0 0.0
    %5476 = vmatprep.subr.mxu0 0.0
    %5477 = vmatpush1.msra.mxu0 0.0
    %5478 = vmatprep.subr.mxu0 0.0
    %5479 = vmatpush1.msra.mxu0 0.0
    %5480 = vmatprep.subr.mxu0 0.0
    %5481 = vmatpush1.msra.mxu0 0.0
    %5482 = vmatprep.subr.mxu0 0.0
    %5483 = vmatpush1.msra.mxu0 0.0
    %5484 = vmatprep.subr.mxu0 0.0
    %5485 = vmatpush1.msra.mxu0 0.0
    %5486 = vmatprep.subr.mxu0 0.0
    %5487 = vmatpush1.msra.mxu0 0.0
    %5488 = vmatprep.subr.mxu0 0.0
    %5489 = vmatpush1.msra.mxu0 0.0
    %5490 = vmatprep.subr.mxu0 0.0
    %5491 = vmatpush1.msra.mxu0 0.0
    %5492 = vmatprep.subr.mxu0 0.0
    %5493 = vmatpush1.msra.mxu0 0.0
    %5494 = vmatprep.mubr.f32.mxu0 0.0
    %5495 = vmatmul.mubr.f32.gmra.mrb[0].mxu0 %v4638
    %v5496 = vpop.f32.mrb[0].mxu0
    %v5497 = vadd.f32 %v4997, %v5496
    %v5498 = vpop.f32.mrb[0].mxu0
    %5499 = vdwg.mxu0
    %5500 = vmatprep.subr.mxu0 0.0
    %5501 = vmatpush1.msra.mxu0 %v4949
    %5502 = vmatprep.subr.mxu0 0.0
    %5503 = vmatpush1.msra.mxu0 %v4950
    %5504 = vmatprep.subr.mxu0 0.0
    %5505 = vmatpush1.msra.mxu0 %v4951
    %5506 = vmatprep.subr.mxu0 0.0
    %5507 = vmatpush1.msra.mxu0 %v4952
    %5508 = vmatprep.subr.mxu0 0.0
    %5509 = vmatpush1.msra.mxu0 0.0
    %5510 = vmatprep.subr.mxu0 0.0
    %5511 = vmatpush1.msra.mxu0 0.0
    %5512 = vmatprep.subr.mxu0 0.0
    %5513 = vmatpush1.msra.mxu0 0.0
    %5514 = vmatprep.subr.mxu0 0.0
    %5515 = vmatpush1.msra.mxu0 0.0
    %5516 = vmatprep.subr.mxu0 0.0
    %5517 = vmatpush1.msra.mxu0 0.0
    %5518 = vmatprep.subr.mxu0 0.0
    %5519 = vmatpush1.msra.mxu0 0.0
    %5520 = vmatprep.subr.mxu0 0.0
    %5521 = vmatpush1.msra.mxu0 0.0
    %5522 = vmatprep.subr.mxu0 0.0
    %5523 = vmatpush1.msra.mxu0 0.0
    %5524 = vmatprep.subr.mxu0 0.0
    %5525 = vmatpush1.msra.mxu0 0.0
    %5526 = vmatprep.subr.mxu0 0.0
    %5527 = vmatpush1.msra.mxu0 0.0
    %5528 = vmatprep.subr.mxu0 0.0
    %5529 = vmatpush1.msra.mxu0 0.0
    %5530 = vmatprep.subr.mxu0 0.0
    %5531 = vmatpush1.msra.mxu0 0.0
    %5532 = vmatprep.subr.mxu0 0.0
    %5533 = vmatpush1.msra.mxu0 0.0
    %5534 = vmatprep.subr.mxu0 0.0
    %5535 = vmatpush1.msra.mxu0 0.0
    %5536 = vmatprep.subr.mxu0 0.0
    %5537 = vmatpush1.msra.mxu0 0.0
    %5538 = vmatprep.subr.mxu0 0.0
    %5539 = vmatpush1.msra.mxu0 0.0
    %5540 = vmatprep.subr.mxu0 0.0
    %5541 = vmatpush1.msra.mxu0 0.0
    %5542 = vmatprep.subr.mxu0 0.0
    %5543 = vmatpush1.msra.mxu0 0.0
    %5544 = vmatprep.subr.mxu0 0.0
    %5545 = vmatpush1.msra.mxu0 0.0
    %5546 = vmatprep.subr.mxu0 0.0
    %5547 = vmatpush1.msra.mxu0 0.0
    %5548 = vmatprep.subr.mxu0 0.0
    %5549 = vmatpush1.msra.mxu0 0.0
    %5550 = vmatprep.subr.mxu0 0.0
    %5551 = vmatpush1.msra.mxu0 0.0
    %5552 = vmatprep.subr.mxu0 0.0
    %5553 = vmatpush1.msra.mxu0 0.0
    %5554 = vmatprep.subr.mxu0 0.0
    %5555 = vmatpush1.msra.mxu0 0.0
    %5556 = vmatprep.subr.mxu0 0.0
    %5557 = vmatpush1.msra.mxu0 0.0
    %5558 = vmatprep.subr.mxu0 0.0
    %5559 = vmatpush1.msra.mxu0 0.0
    %5560 = vmatprep.subr.mxu0 0.0
    %5561 = vmatpush1.msra.mxu0 0.0
    %5562 = vmatprep.subr.mxu0 0.0
    %5563 = vmatpush1.msra.mxu0 0.0
    %5564 = vmatprep.mubr.f32.mxu0 0.0
    %5565 = vmatmul.mubr.f32.gmra.mrb[0].mxu0 %v4638
    %v5566 = vpop.f32.mrb[0].mxu0
    %v5567 = vadd.f32 %v5001, %v5566
    %v5568 = vpop.f32.mrb[0].mxu0
    %5569 = vdwg.mxu0
    %s5570 = scalar_lea.vmem %s6, 256
    %v5571 = vld [vmem:[%s5570] sm:$0xff]
    %v5572 = vld [vmem:[%s5570 + $0x8] sm:$0xff]
    %v5573 = vld [vmem:[%s5570 + $0x10] sm:$0xff]
    %v5574 = vld [vmem:[%s5570 + $0x18] sm:$0xff]
    %v5575 = vld [vmem:[%s5570 + $0x20] sm:$0xff]
    %v5576 = vld [vmem:[%s5570 + $0x28] sm:$0xff]
    %v5577 = vld [vmem:[%s5570 + $0x30] sm:$0xff]
    %v5578 = vld [vmem:[%s5570 + $0x38] sm:$0xff]
    %v5579 = vld [vmem:[%s5570 + $0x40] sm:$0xff]
    %v5580 = vld [vmem:[%s5570 + $0x48] sm:$0xff]
    %v5581 = vld [vmem:[%s5570 + $0x50] sm:$0xff]
    %v5582 = vld [vmem:[%s5570 + $0x58] sm:$0xff]
    %v5583 = vld [vmem:[%s5570 + $0x60] sm:$0xff]
    %v5584 = vld [vmem:[%s5570 + $0x68] sm:$0xff]
    %v5585 = vld [vmem:[%s5570 + $0x70] sm:$0xff]
    %v5586 = vld [vmem:[%s5570 + $0x78] sm:$0xff]
    %v5587 = vld [vmem:[%s5570 + $0x80] sm:$0xff]
    %v5588 = vld [vmem:[%s5570 + $0x88] sm:$0xff]
    %v5589 = vld [vmem:[%s5570 + $0x90] sm:$0xff]
    %v5590 = vld [vmem:[%s5570 + $0x98] sm:$0xff]
    %v5591 = vld [vmem:[%s5570 + $0xa0] sm:$0xff]
    %v5592 = vld [vmem:[%s5570 + $0xa8] sm:$0xff]
    %v5593 = vld [vmem:[%s5570 + $0xb0] sm:$0xff]
    %v5594 = vld [vmem:[%s5570 + $0xb8] sm:$0xff]
    %v5595 = vld [vmem:[%s5570 + $0xc0] sm:$0xff]
    %v5596 = vld [vmem:[%s5570 + $0xc8] sm:$0xff]
    %v5597 = vld [vmem:[%s5570 + $0xd0] sm:$0xff]
    %v5598 = vld [vmem:[%s5570 + $0xd8] sm:$0xff]
    %v5599 = vld [vmem:[%s5570 + $0xe0] sm:$0xff]
    %v5600 = vld [vmem:[%s5570 + $0xe8] sm:$0xff]
    %v5601 = vld [vmem:[%s5570 + $0xf0] sm:$0xff]
    %v5602 = vld [vmem:[%s5570 + $0xf8] sm:$0xff]
    %s5603 = scalar_lea.vmem %s7, 8
    %v5604 = vld [vmem:[%s5603] sm:$0x1]
    %v5605 = vld [vmem:[%s5603 + $0x1] sm:$0x1]
    %v5606 = vld [vmem:[%s5603 + $0x2] sm:$0x1]
    %v5607 = vld [vmem:[%s5603 + $0x3] sm:$0x1]
    %v5608 = vld [vmem:[%s5603 + $0x4] sm:$0x1]
    %v5609 = vld [vmem:[%s5603 + $0x5] sm:$0x1]
    %v5610 = vld [vmem:[%s5603 + $0x6] sm:$0x1]
    %v5611 = vld [vmem:[%s5603 + $0x7] sm:$0x1]
    %v5620 = vlaneseq
    %v5621 = vshrl.u32 %v5620, 7
    %v5622 = vsub.s32 0, %v5621
    %v5623 = vrot.slane %v5604, %v5622
    %v5624 = vlaneseq
    %v5625 = vshrl.u32 %v5624, 7
    %v5626 = vsub.s32 0, %v5625
    %v5627 = vrot.slane %v5605, %v5626
    %v5628 = vlaneseq
    %v5629 = vshrl.u32 %v5628, 7
    %v5630 = vsub.s32 0, %v5629
    %v5631 = vrot.slane %v5606, %v5630
    %v5632 = vlaneseq
    %v5633 = vshrl.u32 %v5632, 7
    %v5634 = vsub.s32 0, %v5633
    %v5635 = vrot.slane %v5607, %v5634
    %v5636 = vlaneseq
    %v5637 = vshrl.u32 %v5636, 7
    %v5638 = vsub.s32 0, %v5637
    %v5639 = vrot.slane %v5608, %v5638
    %v5640 = vlaneseq
    %v5641 = vshrl.u32 %v5640, 7
    %v5642 = vsub.s32 0, %v5641
    %v5643 = vrot.slane %v5609, %v5642
    %v5644 = vlaneseq
    %v5645 = vshrl.u32 %v5644, 7
    %v5646 = vsub.s32 0, %v5645
    %v5647 = vrot.slane %v5610, %v5646
    %v5648 = vlaneseq
    %v5649 = vshrl.u32 %v5648, 7
    %v5650 = vsub.s32 0, %v5649
    %v5651 = vrot.slane %v5611, %v5650
    %5660 = vmatprep.subr.mxu0 0.0
    %5661 = vmatpush1.msra.mxu0 %v5571
    %5662 = vmatprep.subr.mxu0 0.0
    %5663 = vmatpush1.msra.mxu0 %v5572
    %5664 = vmatprep.subr.mxu0 0.0
    %5665 = vmatpush1.msra.mxu0 %v5573
    %5666 = vmatprep.subr.mxu0 0.0
    %5667 = vmatpush1.msra.mxu0 %v5574
    %5668 = vmatprep.subr.mxu0 0.0
    %5669 = vmatpush1.msra.mxu0 0.0
    %5670 = vmatprep.subr.mxu0 0.0
    %5671 = vmatpush1.msra.mxu0 0.0
    %5672 = vmatprep.subr.mxu0 0.0
    %5673 = vmatpush1.msra.mxu0 0.0
    %5674 = vmatprep.subr.mxu0 0.0
    %5675 = vmatpush1.msra.mxu0 0.0
    %5676 = vmatprep.subr.mxu0 0.0
    %5677 = vmatpush1.msra.mxu0 0.0
    %5678 = vmatprep.subr.mxu0 0.0
    %5679 = vmatpush1.msra.mxu0 0.0
    %5680 = vmatprep.subr.mxu0 0.0
    %5681 = vmatpush1.msra.mxu0 0.0
    %5682 = vmatprep.subr.mxu0 0.0
    %5683 = vmatpush1.msra.mxu0 0.0
    %5684 = vmatprep.subr.mxu0 0.0
    %5685 = vmatpush1.msra.mxu0 0.0
    %5686 = vmatprep.subr.mxu0 0.0
    %5687 = vmatpush1.msra.mxu0 0.0
    %5688 = vmatprep.subr.mxu0 0.0
    %5689 = vmatpush1.msra.mxu0 0.0
    %5690 = vmatprep.subr.mxu0 0.0
    %5691 = vmatpush1.msra.mxu0 0.0
    %5692 = vmatprep.subr.mxu0 0.0
    %5693 = vmatpush1.msra.mxu0 0.0
    %5694 = vmatprep.subr.mxu0 0.0
    %5695 = vmatpush1.msra.mxu0 0.0
    %5696 = vmatprep.subr.mxu0 0.0
    %5697 = vmatpush1.msra.mxu0 0.0
    %5698 = vmatprep.subr.mxu0 0.0
    %5699 = vmatpush1.msra.mxu0 0.0
    %5700 = vmatprep.subr.mxu0 0.0
    %5701 = vmatpush1.msra.mxu0 0.0
    %5702 = vmatprep.subr.mxu0 0.0
    %5703 = vmatpush1.msra.mxu0 0.0
    %5704 = vmatprep.subr.mxu0 0.0
    %5705 = vmatpush1.msra.mxu0 0.0
    %5706 = vmatprep.subr.mxu0 0.0
    %5707 = vmatpush1.msra.mxu0 0.0
    %5708 = vmatprep.subr.mxu0 0.0
    %5709 = vmatpush1.msra.mxu0 0.0
    %5710 = vmatprep.subr.mxu0 0.0
    %5711 = vmatpush1.msra.mxu0 0.0
    %5712 = vmatprep.subr.mxu0 0.0
    %5713 = vmatpush1.msra.mxu0 0.0
    %5714 = vmatprep.subr.mxu0 0.0
    %5715 = vmatpush1.msra.mxu0 0.0
    %5716 = vmatprep.subr.mxu0 0.0
    %5717 = vmatpush1.msra.mxu0 0.0
    %5718 = vmatprep.subr.mxu0 0.0
    %5719 = vmatpush1.msra.mxu0 0.0
    %5720 = vmatprep.subr.mxu0 0.0
    %5721 = vmatpush1.msra.mxu0 0.0
    %5722 = vmatprep.subr.mxu0 0.0
    %5723 = vmatpush1.msra.mxu0 0.0
    %5724 = vmatprep.mubr.f32.mxu0 0.0
    %5725 = vmatmul.mubr.f32.gmra.mrb[0].mxu0 %v4355
    %v5726 = vpop.f32.mrb[0].mxu0
    %v5727 = vadd.f32 %v5623, %v5726
    %v5728 = vpop.f32.mrb[0].mxu0
    %5729 = vdwg.mxu0
    %5730 = vmatprep.subr.mxu0 0.0
    %5731 = vmatpush1.msra.mxu0 %v5575
    %5732 = vmatprep.subr.mxu0 0.0
    %5733 = vmatpush1.msra.mxu0 %v5576
    %5734 = vmatprep.subr.mxu0 0.0
    %5735 = vmatpush1.msra.mxu0 %v5577
    %5736 = vmatprep.subr.mxu0 0.0
    %5737 = vmatpush1.msra.mxu0 %v5578
    %5738 = vmatprep.subr.mxu0 0.0
    %5739 = vmatpush1.msra.mxu0 0.0
    %5740 = vmatprep.subr.mxu0 0.0
    %5741 = vmatpush1.msra.mxu0 0.0
    %5742 = vmatprep.subr.mxu0 0.0
    %5743 = vmatpush1.msra.mxu0 0.0
    %5744 = vmatprep.subr.mxu0 0.0
    %5745 = vmatpush1.msra.mxu0 0.0
    %5746 = vmatprep.subr.mxu0 0.0
    %5747 = vmatpush1.msra.mxu0 0.0
    %5748 = vmatprep.subr.mxu0 0.0
    %5749 = vmatpush1.msra.mxu0 0.0
    %5750 = vmatprep.subr.mxu0 0.0
    %5751 = vmatpush1.msra.mxu0 0.0
    %5752 = vmatprep.subr.mxu0 0.0
    %5753 = vmatpush1.msra.mxu0 0.0
    %5754 = vmatprep.subr.mxu0 0.0
    %5755 = vmatpush1.msra.mxu0 0.0
    %5756 = vmatprep.subr.mxu0 0.0
    %5757 = vmatpush1.msra.mxu0 0.0
    %5758 = vmatprep.subr.mxu0 0.0
    %5759 = vmatpush1.msra.mxu0 0.0
    %5760 = vmatprep.subr.mxu0 0.0
    %5761 = vmatpush1.msra.mxu0 0.0
    %5762 = vmatprep.subr.mxu0 0.0
    %5763 = vmatpush1.msra.mxu0 0.0
    %5764 = vmatprep.subr.mxu0 0.0
    %5765 = vmatpush1.msra.mxu0 0.0
    %5766 = vmatprep.subr.mxu0 0.0
    %5767 = vmatpush1.msra.mxu0 0.0
    %5768 = vmatprep.subr.mxu0 0.0
    %5769 = vmatpush1.msra.mxu0 0.0
    %5770 = vmatprep.subr.mxu0 0.0
    %5771 = vmatpush1.msra.mxu0 0.0
    %5772 = vmatprep.subr.mxu0 0.0
    %5773 = vmatpush1.msra.mxu0 0.0
    %5774 = vmatprep.subr.mxu0 0.0
    %5775 = vmatpush1.msra.mxu0 0.0
    %5776 = vmatprep.subr.mxu0 0.0
    %5777 = vmatpush1.msra.mxu0 0.0
    %5778 = vmatprep.subr.mxu0 0.0
    %5779 = vmatpush1.msra.mxu0 0.0
    %5780 = vmatprep.subr.mxu0 0.0
    %5781 = vmatpush1.msra.mxu0 0.0
    %5782 = vmatprep.subr.mxu0 0.0
    %5783 = vmatpush1.msra.mxu0 0.0
    %5784 = vmatprep.subr.mxu0 0.0
    %5785 = vmatpush1.msra.mxu0 0.0
    %5786 = vmatprep.subr.mxu0 0.0
    %5787 = vmatpush1.msra.mxu0 0.0
    %5788 = vmatprep.subr.mxu0 0.0
    %5789 = vmatpush1.msra.mxu0 0.0
    %5790 = vmatprep.subr.mxu0 0.0
    %5791 = vmatpush1.msra.mxu0 0.0
    %5792 = vmatprep.subr.mxu0 0.0
    %5793 = vmatpush1.msra.mxu0 0.0
    %5794 = vmatprep.mubr.f32.mxu0 0.0
    %5795 = vmatmul.mubr.f32.gmra.mrb[0].mxu0 %v4355
    %v5796 = vpop.f32.mrb[0].mxu0
    %v5797 = vadd.f32 %v5627, %v5796
    %v5798 = vpop.f32.mrb[0].mxu0
    %5799 = vdwg.mxu0
    %5800 = vmatprep.subr.mxu0 0.0
    %5801 = vmatpush1.msra.mxu0 %v5579
    %5802 = vmatprep.subr.mxu0 0.0
    %5803 = vmatpush1.msra.mxu0 %v5580
    %5804 = vmatprep.subr.mxu0 0.0
    %5805 = vmatpush1.msra.mxu0 %v5581
    %5806 = vmatprep.subr.mxu0 0.0
    %5807 = vmatpush1.msra.mxu0 %v5582
    %5808 = vmatprep.subr.mxu0 0.0
    %5809 = vmatpush1.msra.mxu0 0.0
    %5810 = vmatprep.subr.mxu0 0.0
    %5811 = vmatpush1.msra.mxu0 0.0
    %5812 = vmatprep.subr.mxu0 0.0
    %5813 = vmatpush1.msra.mxu0 0.0
    %5814 = vmatprep.subr.mxu0 0.0
    %5815 = vmatpush1.msra.mxu0 0.0
    %5816 = vmatprep.subr.mxu0 0.0
    %5817 = vmatpush1.msra.mxu0 0.0
    %5818 = vmatprep.subr.mxu0 0.0
    %5819 = vmatpush1.msra.mxu0 0.0
    %5820 = vmatprep.subr.mxu0 0.0
    %5821 = vmatpush1.msra.mxu0 0.0
    %5822 = vmatprep.subr.mxu0 0.0
    %5823 = vmatpush1.msra.mxu0 0.0
    %5824 = vmatprep.subr.mxu0 0.0
    %5825 = vmatpush1.msra.mxu0 0.0
    %5826 = vmatprep.subr.mxu0 0.0
    %5827 = vmatpush1.msra.mxu0 0.0
    %5828 = vmatprep.subr.mxu0 0.0
    %5829 = vmatpush1.msra.mxu0 0.0
    %5830 = vmatprep.subr.mxu0 0.0
    %5831 = vmatpush1.msra.mxu0 0.0
    %5832 = vmatprep.subr.mxu0 0.0
    %5833 = vmatpush1.msra.mxu0 0.0
    %5834 = vmatprep.subr.mxu0 0.0
    %5835 = vmatpush1.msra.mxu0 0.0
    %5836 = vmatprep.subr.mxu0 0.0
    %5837 = vmatpush1.msra.mxu0 0.0
    %5838 = vmatprep.subr.mxu0 0.0
    %5839 = vmatpush1.msra.mxu0 0.0
    %5840 = vmatprep.subr.mxu0 0.0
    %5841 = vmatpush1.msra.mxu0 0.0
    %5842 = vmatprep.subr.mxu0 0.0
    %5843 = vmatpush1.msra.mxu0 0.0
    %5844 = vmatprep.subr.mxu0 0.0
    %5845 = vmatpush1.msra.mxu0 0.0
    %5846 = vmatprep.subr.mxu0 0.0
    %5847 = vmatpush1.msra.mxu0 0.0
    %5848 = vmatprep.subr.mxu0 0.0
    %5849 = vmatpush1.msra.mxu0 0.0
    %5850 = vmatprep.subr.mxu0 0.0
    %5851 = vmatpush1.msra.mxu0 0.0
    %5852 = vmatprep.subr.mxu0 0.0
    %5853 = vmatpush1.msra.mxu0 0.0
    %5854 = vmatprep.subr.mxu0 0.0
    %5855 = vmatpush1.msra.mxu0 0.0
    %5856 = vmatprep.subr.mxu0 0.0
    %5857 = vmatpush1.msra.mxu0 0.0
    %5858 = vmatprep.subr.mxu0 0.0
    %5859 = vmatpush1.msra.mxu0 0.0
    %5860 = vmatprep.subr.mxu0 0.0
    %5861 = vmatpush1.msra.mxu0 0.0
    %5862 = vmatprep.subr.mxu0 0.0
    %5863 = vmatpush1.msra.mxu0 0.0
    %5864 = vmatprep.mubr.f32.mxu0 0.0
    %5865 = vmatmul.mubr.f32.gmra.mrb[0].mxu0 %v4355
    %v5866 = vpop.f32.mrb[0].mxu0
    %v5867 = vadd.f32 %v5631, %v5866
    %v5868 = vpop.f32.mrb[0].mxu0
    %5869 = vdwg.mxu0
    %5870 = vmatprep.subr.mxu0 0.0
    %5871 = vmatpush1.msra.mxu0 %v5583
    %5872 = vmatprep.subr.mxu0 0.0
    %5873 = vmatpush1.msra.mxu0 %v5584
    %5874 = vmatprep.subr.mxu0 0.0
    %5875 = vmatpush1.msra.mxu0 %v5585
    %5876 = vmatprep.subr.mxu0 0.0
    %5877 = vmatpush1.msra.mxu0 %v5586
    %5878 = vmatprep.subr.mxu0 0.0
    %5879 = vmatpush1.msra.mxu0 0.0
    %5880 = vmatprep.subr.mxu0 0.0
    %5881 = vmatpush1.msra.mxu0 0.0
    %5882 = vmatprep.subr.mxu0 0.0
    %5883 = vmatpush1.msra.mxu0 0.0
    %5884 = vmatprep.subr.mxu0 0.0
    %5885 = vmatpush1.msra.mxu0 0.0
    %5886 = vmatprep.subr.mxu0 0.0
    %5887 = vmatpush1.msra.mxu0 0.0
    %5888 = vmatprep.subr.mxu0 0.0
    %5889 = vmatpush1.msra.mxu0 0.0
    %5890 = vmatprep.subr.mxu0 0.0
    %5891 = vmatpush1.msra.mxu0 0.0
    %5892 = vmatprep.subr.mxu0 0.0
    %5893 = vmatpush1.msra.mxu0 0.0
    %5894 = vmatprep.subr.mxu0 0.0
    %5895 = vmatpush1.msra.mxu0 0.0
    %5896 = vmatprep.subr.mxu0 0.0
    %5897 = vmatpush1.msra.mxu0 0.0
    %5898 = vmatprep.subr.mxu0 0.0
    %5899 = vmatpush1.msra.mxu0 0.0
    %5900 = vmatprep.subr.mxu0 0.0
    %5901 = vmatpush1.msra.mxu0 0.0
    %5902 = vmatprep.subr.mxu0 0.0
    %5903 = vmatpush1.msra.mxu0 0.0
    %5904 = vmatprep.subr.mxu0 0.0
    %5905 = vmatpush1.msra.mxu0 0.0
    %5906 = vmatprep.subr.mxu0 0.0
    %5907 = vmatpush1.msra.mxu0 0.0
    %5908 = vmatprep.subr.mxu0 0.0
    %5909 = vmatpush1.msra.mxu0 0.0
    %5910 = vmatprep.subr.mxu0 0.0
    %5911 = vmatpush1.msra.mxu0 0.0
    %5912 = vmatprep.subr.mxu0 0.0
    %5913 = vmatpush1.msra.mxu0 0.0
    %5914 = vmatprep.subr.mxu0 0.0
    %5915 = vmatpush1.msra.mxu0 0.0
    %5916 = vmatprep.subr.mxu0 0.0
    %5917 = vmatpush1.msra.mxu0 0.0
    %5918 = vmatprep.subr.mxu0 0.0
    %5919 = vmatpush1.msra.mxu0 0.0
    %5920 = vmatprep.subr.mxu0 0.0
    %5921 = vmatpush1.msra.mxu0 0.0
    %5922 = vmatprep.subr.mxu0 0.0
    %5923 = vmatpush1.msra.mxu0 0.0
    %5924 = vmatprep.subr.mxu0 0.0
    %5925 = vmatpush1.msra.mxu0 0.0
    %5926 = vmatprep.subr.mxu0 0.0
    %5927 = vmatpush1.msra.mxu0 0.0
    %5928 = vmatprep.subr.mxu0 0.0
    %5929 = vmatpush1.msra.mxu0 0.0
    %5930 = vmatprep.subr.mxu0 0.0
    %5931 = vmatpush1.msra.mxu0 0.0
    %5932 = vmatprep.subr.mxu0 0.0
    %5933 = vmatpush1.msra.mxu0 0.0
    %5934 = vmatprep.mubr.f32.mxu0 0.0
    %5935 = vmatmul.mubr.f32.gmra.mrb[0].mxu0 %v4355
    %v5936 = vpop.f32.mrb[0].mxu0
    %v5937 = vadd.f32 %v5635, %v5936
    %v5938 = vpop.f32.mrb[0].mxu0
    %5939 = vdwg.mxu0
    %5940 = vmatprep.subr.mxu0 0.0
    %5941 = vmatpush1.msra.mxu0 %v5587
    %5942 = vmatprep.subr.mxu0 0.0
    %5943 = vmatpush1.msra.mxu0 %v5588
    %5944 = vmatprep.subr.mxu0 0.0
    %5945 = vmatpush1.msra.mxu0 %v5589
    %5946 = vmatprep.subr.mxu0 0.0
    %5947 = vmatpush1.msra.mxu0 %v5590
    %5948 = vmatprep.subr.mxu0 0.0
    %5949 = vmatpush1.msra.mxu0 0.0
    %5950 = vmatprep.subr.mxu0 0.0
    %5951 = vmatpush1.msra.mxu0 0.0
    %5952 = vmatprep.subr.mxu0 0.0
    %5953 = vmatpush1.msra.mxu0 0.0
    %5954 = vmatprep.subr.mxu0 0.0
    %5955 = vmatpush1.msra.mxu0 0.0
    %5956 = vmatprep.subr.mxu0 0.0
    %5957 = vmatpush1.msra.mxu0 0.0
    %5958 = vmatprep.subr.mxu0 0.0
    %5959 = vmatpush1.msra.mxu0 0.0
    %5960 = vmatprep.subr.mxu0 0.0
    %5961 = vmatpush1.msra.mxu0 0.0
    %5962 = vmatprep.subr.mxu0 0.0
    %5963 = vmatpush1.msra.mxu0 0.0
    %5964 = vmatprep.subr.mxu0 0.0
    %5965 = vmatpush1.msra.mxu0 0.0
    %5966 = vmatprep.subr.mxu0 0.0
    %5967 = vmatpush1.msra.mxu0 0.0
    %5968 = vmatprep.subr.mxu0 0.0
    %5969 = vmatpush1.msra.mxu0 0.0
    %5970 = vmatprep.subr.mxu0 0.0
    %5971 = vmatpush1.msra.mxu0 0.0
    %5972 = vmatprep.subr.mxu0 0.0
    %5973 = vmatpush1.msra.mxu0 0.0
    %5974 = vmatprep.subr.mxu0 0.0
    %5975 = vmatpush1.msra.mxu0 0.0
    %5976 = vmatprep.subr.mxu0 0.0
    %5977 = vmatpush1.msra.mxu0 0.0
    %5978 = vmatprep.subr.mxu0 0.0
    %5979 = vmatpush1.msra.mxu0 0.0
    %5980 = vmatprep.subr.mxu0 0.0
    %5981 = vmatpush1.msra.mxu0 0.0
    %5982 = vmatprep.subr.mxu0 0.0
    %5983 = vmatpush1.msra.mxu0 0.0
    %5984 = vmatprep.subr.mxu0 0.0
    %5985 = vmatpush1.msra.mxu0 0.0
    %5986 = vmatprep.subr.mxu0 0.0
    %5987 = vmatpush1.msra.mxu0 0.0
    %5988 = vmatprep.subr.mxu0 0.0
    %5989 = vmatpush1.msra.mxu0 0.0
    %5990 = vmatprep.subr.mxu0 0.0
    %5991 = vmatpush1.msra.mxu0 0.0
    %5992 = vmatprep.subr.mxu0 0.0
    %5993 = vmatpush1.msra.mxu0 0.0
    %5994 = vmatprep.subr.mxu0 0.0
    %5995 = vmatpush1.msra.mxu0 0.0
    %5996 = vmatprep.subr.mxu0 0.0
    %5997 = vmatpush1.msra.mxu0 0.0
    %5998 = vmatprep.subr.mxu0 0.0
    %5999 = vmatpush1.msra.mxu0 0.0
    %6000 = vmatprep.subr.mxu0 0.0
    %6001 = vmatpush1.msra.mxu0 0.0
    %6002 = vmatprep.subr.mxu0 0.0
    %6003 = vmatpush1.msra.mxu0 0.0
    %6004 = vmatprep.mubr.f32.mxu0 0.0
    %6005 = vmatmul.mubr.f32.gmra.mrb[0].mxu0 %v4638
    %v6006 = vpop.f32.mrb[0].mxu0
    %v6007 = vadd.f32 %v5639, %v6006
    %v6008 = vpop.f32.mrb[0].mxu0
    %6009 = vdwg.mxu0
    %6010 = vmatprep.subr.mxu0 0.0
    %6011 = vmatpush1.msra.mxu0 %v5591
    %6012 = vmatprep.subr.mxu0 0.0
    %6013 = vmatpush1.msra.mxu0 %v5592
    %6014 = vmatprep.subr.mxu0 0.0
    %6015 = vmatpush1.msra.mxu0 %v5593
    %6016 = vmatprep.subr.mxu0 0.0
    %6017 = vmatpush1.msra.mxu0 %v5594
    %6018 = vmatprep.subr.mxu0 0.0
    %6019 = vmatpush1.msra.mxu0 0.0
    %6020 = vmatprep.subr.mxu0 0.0
    %6021 = vmatpush1.msra.mxu0 0.0
    %6022 = vmatprep.subr.mxu0 0.0
    %6023 = vmatpush1.msra.mxu0 0.0
    %6024 = vmatprep.subr.mxu0 0.0
    %6025 = vmatpush1.msra.mxu0 0.0
    %6026 = vmatprep.subr.mxu0 0.0
    %6027 = vmatpush1.msra.mxu0 0.0
    %6028 = vmatprep.subr.mxu0 0.0
    %6029 = vmatpush1.msra.mxu0 0.0
    %6030 = vmatprep.subr.mxu0 0.0
    %6031 = vmatpush1.msra.mxu0 0.0
    %6032 = vmatprep.subr.mxu0 0.0
    %6033 = vmatpush1.msra.mxu0 0.0
    %6034 = vmatprep.subr.mxu0 0.0
    %6035 = vmatpush1.msra.mxu0 0.0
    %6036 = vmatprep.subr.mxu0 0.0
    %6037 = vmatpush1.msra.mxu0 0.0
    %6038 = vmatprep.subr.mxu0 0.0
    %6039 = vmatpush1.msra.mxu0 0.0
    %6040 = vmatprep.subr.mxu0 0.0
    %6041 = vmatpush1.msra.mxu0 0.0
    %6042 = vmatprep.subr.mxu0 0.0
    %6043 = vmatpush1.msra.mxu0 0.0
    %6044 = vmatprep.subr.mxu0 0.0
    %6045 = vmatpush1.msra.mxu0 0.0
    %6046 = vmatprep.subr.mxu0 0.0
    %6047 = vmatpush1.msra.mxu0 0.0
    %6048 = vmatprep.subr.mxu0 0.0
    %6049 = vmatpush1.msra.mxu0 0.0
    %6050 = vmatprep.subr.mxu0 0.0
    %6051 = vmatpush1.msra.mxu0 0.0
    %6052 = vmatprep.subr.mxu0 0.0
    %6053 = vmatpush1.msra.mxu0 0.0
    %6054 = vmatprep.subr.mxu0 0.0
    %6055 = vmatpush1.msra.mxu0 0.0
    %6056 = vmatprep.subr.mxu0 0.0
    %6057 = vmatpush1.msra.mxu0 0.0
    %6058 = vmatprep.subr.mxu0 0.0
    %6059 = vmatpush1.msra.mxu0 0.0
    %6060 = vmatprep.subr.mxu0 0.0
    %6061 = vmatpush1.msra.mxu0 0.0
    %6062 = vmatprep.subr.mxu0 0.0
    %6063 = vmatpush1.msra.mxu0 0.0
    %6064 = vmatprep.subr.mxu0 0.0
    %6065 = vmatpush1.msra.mxu0 0.0
    %6066 = vmatprep.subr.mxu0 0.0
    %6067 = vmatpush1.msra.mxu0 0.0
    %6068 = vmatprep.subr.mxu0 0.0
    %6069 = vmatpush1.msra.mxu0 0.0
    %6070 = vmatprep.subr.mxu0 0.0
    %6071 = vmatpush1.msra.mxu0 0.0
    %6072 = vmatprep.subr.mxu0 0.0
    %6073 = vmatpush1.msra.mxu0 0.0
    %6074 = vmatprep.mubr.f32.mxu0 0.0
    %6075 = vmatmul.mubr.f32.gmra.mrb[0].mxu0 %v4638
    %v6076 = vpop.f32.mrb[0].mxu0
    %v6077 = vadd.f32 %v5643, %v6076
    %v6078 = vpop.f32.mrb[0].mxu0
    %6079 = vdwg.mxu0
    %6080 = vmatprep.subr.mxu0 0.0
    %6081 = vmatpush1.msra.mxu0 %v5595
    %6082 = vmatprep.subr.mxu0 0.0
    %6083 = vmatpush1.msra.mxu0 %v5596
    %6084 = vmatprep.subr.mxu0 0.0
    %6085 = vmatpush1.msra.mxu0 %v5597
    %6086 = vmatprep.subr.mxu0 0.0
    %6087 = vmatpush1.msra.mxu0 %v5598
    %6088 = vmatprep.subr.mxu0 0.0
    %6089 = vmatpush1.msra.mxu0 0.0
    %6090 = vmatprep.subr.mxu0 0.0
    %6091 = vmatpush1.msra.mxu0 0.0
    %6092 = vmatprep.subr.mxu0 0.0
    %6093 = vmatpush1.msra.mxu0 0.0
    %6094 = vmatprep.subr.mxu0 0.0
    %6095 = vmatpush1.msra.mxu0 0.0
    %6096 = vmatprep.subr.mxu0 0.0
    %6097 = vmatpush1.msra.mxu0 0.0
    %6098 = vmatprep.subr.mxu0 0.0
    %6099 = vmatpush1.msra.mxu0 0.0
    %6100 = vmatprep.subr.mxu0 0.0
    %6101 = vmatpush1.msra.mxu0 0.0
    %6102 = vmatprep.subr.mxu0 0.0
    %6103 = vmatpush1.msra.mxu0 0.0
    %6104 = vmatprep.subr.mxu0 0.0
    %6105 = vmatpush1.msra.mxu0 0.0
    %6106 = vmatprep.subr.mxu0 0.0
    %6107 = vmatpush1.msra.mxu0 0.0
    %6108 = vmatprep.subr.mxu0 0.0
    %6109 = vmatpush1.msra.mxu0 0.0
    %6110 = vmatprep.subr.mxu0 0.0
    %6111 = vmatpush1.msra.mxu0 0.0
    %6112 = vmatprep.subr.mxu0 0.0
    %6113 = vmatpush1.msra.mxu0 0.0
    %6114 = vmatprep.subr.mxu0 0.0
    %6115 = vmatpush1.msra.mxu0 0.0
    %6116 = vmatprep.subr.mxu0 0.0
    %6117 = vmatpush1.msra.mxu0 0.0
    %6118 = vmatprep.subr.mxu0 0.0
    %6119 = vmatpush1.msra.mxu0 0.0
    %6120 = vmatprep.subr.mxu0 0.0
    %6121 = vmatpush1.msra.mxu0 0.0
    %6122 = vmatprep.subr.mxu0 0.0
    %6123 = vmatpush1.msra.mxu0 0.0
    %6124 = vmatprep.subr.mxu0 0.0
    %6125 = vmatpush1.msra.mxu0 0.0
    %6126 = vmatprep.subr.mxu0 0.0
    %6127 = vmatpush1.msra.mxu0 0.0
    %6128 = vmatprep.subr.mxu0 0.0
    %6129 = vmatpush1.msra.mxu0 0.0
    %6130 = vmatprep.subr.mxu0 0.0
    %6131 = vmatpush1.msra.mxu0 0.0
    %6132 = vmatprep.subr.mxu0 0.0
    %6133 = vmatpush1.msra.mxu0 0.0
    %6134 = vmatprep.subr.mxu0 0.0
    %6135 = vmatpush1.msra.mxu0 0.0
    %6136 = vmatprep.subr.mxu0 0.0
    %6137 = vmatpush1.msra.mxu0 0.0
    %6138 = vmatprep.subr.mxu0 0.0
    %6139 = vmatpush1.msra.mxu0 0.0
    %6140 = vmatprep.subr.mxu0 0.0
    %6141 = vmatpush1.msra.mxu0 0.0
    %6142 = vmatprep.subr.mxu0 0.0
    %6143 = vmatpush1.msra.mxu0 0.0
    %6144 = vmatprep.mubr.f32.mxu0 0.0
    %6145 = vmatmul.mubr.f32.gmra.mrb[0].mxu0 %v4638
    %v6146 = vpop.f32.mrb[0].mxu0
    %v6147 = vadd.f32 %v5647, %v6146
    %v6148 = vpop.f32.mrb[0].mxu0
    %6149 = vdwg.mxu0
    %6150 = vmatprep.subr.mxu0 0.0
    %6151 = vmatpush1.msra.mxu0 %v5599
    %6152 = vmatprep.subr.mxu0 0.0
    %6153 = vmatpush1.msra.mxu0 %v5600
    %6154 = vmatprep.subr.mxu0 0.0
    %6155 = vmatpush1.msra.mxu0 %v5601
    %6156 = vmatprep.subr.mxu0 0.0
    %6157 = vmatpush1.msra.mxu0 %v5602
    %6158 = vmatprep.subr.mxu0 0.0
    %6159 = vmatpush1.msra.mxu0 0.0
    %6160 = vmatprep.subr.mxu0 0.0
    %6161 = vmatpush1.msra.mxu0 0.0
    %6162 = vmatprep.subr.mxu0 0.0
    %6163 = vmatpush1.msra.mxu0 0.0
    %6164 = vmatprep.subr.mxu0 0.0
    %6165 = vmatpush1.msra.mxu0 0.0
    %6166 = vmatprep.subr.mxu0 0.0
    %6167 = vmatpush1.msra.mxu0 0.0
    %6168 = vmatprep.subr.mxu0 0.0
    %6169 = vmatpush1.msra.mxu0 0.0
    %6170 = vmatprep.subr.mxu0 0.0
    %6171 = vmatpush1.msra.mxu0 0.0
    %6172 = vmatprep.subr.mxu0 0.0
    %6173 = vmatpush1.msra.mxu0 0.0
    %6174 = vmatprep.subr.mxu0 0.0
    %6175 = vmatpush1.msra.mxu0 0.0
    %6176 = vmatprep.subr.mxu0 0.0
    %6177 = vmatpush1.msra.mxu0 0.0
    %6178 = vmatprep.subr.mxu0 0.0
    %6179 = vmatpush1.msra.mxu0 0.0
    %6180 = vmatprep.subr.mxu0 0.0
    %6181 = vmatpush1.msra.mxu0 0.0
    %6182 = vmatprep.subr.mxu0 0.0
    %6183 = vmatpush1.msra.mxu0 0.0
    %6184 = vmatprep.subr.mxu0 0.0
    %6185 = vmatpush1.msra.mxu0 0.0
    %6186 = vmatprep.subr.mxu0 0.0
    %6187 = vmatpush1.msra.mxu0 0.0
    %6188 = vmatprep.subr.mxu0 0.0
    %6189 = vmatpush1.msra.mxu0 0.0
    %6190 = vmatprep.subr.mxu0 0.0
    %6191 = vmatpush1.msra.mxu0 0.0
    %6192 = vmatprep.subr.mxu0 0.0
    %6193 = vmatpush1.msra.mxu0 0.0
    %6194 = vmatprep.subr.mxu0 0.0
    %6195 = vmatpush1.msra.mxu0 0.0
    %6196 = vmatprep.subr.mxu0 0.0
    %6197 = vmatpush1.msra.mxu0 0.0
    %6198 = vmatprep.subr.mxu0 0.0
    %6199 = vmatpush1.msra.mxu0 0.0
    %6200 = vmatprep.subr.mxu0 0.0
    %6201 = vmatpush1.msra.mxu0 0.0
    %6202 = vmatprep.subr.mxu0 0.0
    %6203 = vmatpush1.msra.mxu0 0.0
    %6204 = vmatprep.subr.mxu0 0.0
    %6205 = vmatpush1.msra.mxu0 0.0
    %6206 = vmatprep.subr.mxu0 0.0
    %6207 = vmatpush1.msra.mxu0 0.0
    %6208 = vmatprep.subr.mxu0 0.0
    %6209 = vmatpush1.msra.mxu0 0.0
    %6210 = vmatprep.subr.mxu0 0.0
    %6211 = vmatpush1.msra.mxu0 0.0
    %6212 = vmatprep.subr.mxu0 0.0
    %6213 = vmatpush1.msra.mxu0 0.0
    %6214 = vmatprep.mubr.f32.mxu0 0.0
    %6215 = vmatmul.mubr.f32.gmra.mrb[0].mxu0 %v4638
    %v6216 = vpop.f32.mrb[0].mxu0
    %v6217 = vadd.f32 %v5651, %v6216
    %v6218 = vpop.f32.mrb[0].mxu0
    %6219 = vdwg.mxu0
    %v6221 = vsel %vm2084, %v4424, 0
    %v6224 = vsel %vm2084, %v5077, 0
    %6226 = vmatprep.subr.mxu0 0.0
    %6227 = vmatpush1.xpose.msra.mxu0 %v6224
    %6228 = vmatprep.subr.mxu0 0.0
    %6229 = vmatpush1.xpose.msra.mxu0 0.0
    %6230 = vmatprep.subr.mxu0 0.0
    %6231 = vmatpush1.xpose.msra.mxu0 0.0
    %6232 = vmatprep.subr.mxu0 0.0
    %6233 = vmatpush1.xpose.msra.mxu0 0.0
    %6234 = vmatprep.subr.mxu0 0.0
    %6235 = vmatpush1.xpose.msra.mxu0 0.0
    %6236 = vmatprep.subr.mxu0 0.0
    %6237 = vmatpush1.xpose.msra.mxu0 0.0
    %6238 = vmatprep.subr.mxu0 0.0
    %6239 = vmatpush1.xpose.msra.mxu0 0.0
    %6240 = vmatprep.subr.mxu0 0.0
    %6241 = vmatpush1.xpose.msra.mxu0 0.0
    %6242 = vmatprep.subr.mxu0 0.0
    %6243 = vmatpush1.xpose.msra.mxu0 0.0
    %6244 = vmatprep.subr.mxu0 0.0
    %6245 = vmatpush1.xpose.msra.mxu0 0.0
    %6246 = vmatprep.subr.mxu0 0.0
    %6247 = vmatpush1.xpose.msra.mxu0 0.0
    %6248 = vmatprep.subr.mxu0 0.0
    %6249 = vmatpush1.xpose.msra.mxu0 0.0
    %6250 = vmatprep.subr.mxu0 0.0
    %6251 = vmatpush1.xpose.msra.mxu0 0.0
    %6252 = vmatprep.subr.mxu0 0.0
    %6253 = vmatpush1.xpose.msra.mxu0 0.0
    %6254 = vmatprep.subr.mxu0 0.0
    %6255 = vmatpush1.xpose.msra.mxu0 0.0
    %6256 = vmatprep.subr.mxu0 0.0
    %6257 = vmatpush1.xpose.msra.mxu0 0.0
    %6258 = vmatprep.subr.mxu0 0.0
    %6259 = vmatpush1.xpose.msra.mxu0 0.0
    %6260 = vmatprep.subr.mxu0 0.0
    %6261 = vmatpush1.xpose.msra.mxu0 0.0
    %6262 = vmatprep.subr.mxu0 0.0
    %6263 = vmatpush1.xpose.msra.mxu0 0.0
    %6264 = vmatprep.subr.mxu0 0.0
    %6265 = vmatpush1.xpose.msra.mxu0 0.0
    %6266 = vmatprep.subr.mxu0 0.0
    %6267 = vmatpush1.xpose.msra.mxu0 0.0
    %6268 = vmatprep.subr.mxu0 0.0
    %6269 = vmatpush1.xpose.msra.mxu0 0.0
    %6270 = vmatprep.subr.mxu0 0.0
    %6271 = vmatpush1.xpose.msra.mxu0 0.0
    %6272 = vmatprep.subr.mxu0 0.0
    %6273 = vmatpush1.xpose.msra.mxu0 0.0
    %6274 = vmatprep.subr.mxu0 0.0
    %6275 = vmatpush1.xpose.msra.mxu0 0.0
    %6276 = vmatprep.subr.mxu0 0.0
    %6277 = vmatpush1.xpose.msra.mxu0 0.0
    %6278 = vmatprep.subr.mxu0 0.0
    %6279 = vmatpush1.xpose.msra.mxu0 0.0
    %6280 = vmatprep.subr.mxu0 0.0
    %6281 = vmatpush1.xpose.msra.mxu0 0.0
    %6282 = vmatprep.subr.mxu0 0.0
    %6283 = vmatpush1.xpose.msra.mxu0 0.0
    %6284 = vmatprep.subr.mxu0 0.0
    %6285 = vmatpush1.xpose.msra.mxu0 0.0
    %6286 = vmatprep.subr.mxu0 0.0
    %6287 = vmatpush1.xpose.msra.mxu0 0.0
    %6288 = vmatprep.subr.mxu0 0.0
    %6289 = vmatpush1.xpose.msra.mxu0 0.0
    %6290 = vmatprep.mubr.f32.mxu0 0.0
    %6291 = vmatmul.mubr.f32.gmra.mrb[0].mxu0 %v6221
    %v6292 = vpop.f32.mrb[0].mxu0
    %v6293 = vadd.f32 %v2047, %v6292
    %v6294 = vpop.f32.mrb[0].mxu0
    %6295 = vdwg.mxu0
    %v6297 = vsel %vm2084, %v4494, 0
    %v6300 = vsel %vm2084, %v5147, 0
    %6302 = vmatprep.subr.mxu0 0.0
    %6303 = vmatpush1.xpose.msra.mxu0 %v6300
    %6304 = vmatprep.subr.mxu0 0.0
    %6305 = vmatpush1.xpose.msra.mxu0 0.0
    %6306 = vmatprep.subr.mxu0 0.0
    %6307 = vmatpush1.xpose.msra.mxu0 0.0
    %6308 = vmatprep.subr.mxu0 0.0
    %6309 = vmatpush1.xpose.msra.mxu0 0.0
    %6310 = vmatprep.subr.mxu0 0.0
    %6311 = vmatpush1.xpose.msra.mxu0 0.0
    %6312 = vmatprep.subr.mxu0 0.0
    %6313 = vmatpush1.xpose.msra.mxu0 0.0
    %6314 = vmatprep.subr.mxu0 0.0
    %6315 = vmatpush1.xpose.msra.mxu0 0.0
    %6316 = vmatprep.subr.mxu0 0.0
    %6317 = vmatpush1.xpose.msra.mxu0 0.0
    %6318 = vmatprep.subr.mxu0 0.0
    %6319 = vmatpush1.xpose.msra.mxu0 0.0
    %6320 = vmatprep.subr.mxu0 0.0
    %6321 = vmatpush1.xpose.msra.mxu0 0.0
    %6322 = vmatprep.subr.mxu0 0.0
    %6323 = vmatpush1.xpose.msra.mxu0 0.0
    %6324 = vmatprep.subr.mxu0 0.0
    %6325 = vmatpush1.xpose.msra.mxu0 0.0
    %6326 = vmatprep.subr.mxu0 0.0
    %6327 = vmatpush1.xpose.msra.mxu0 0.0
    %6328 = vmatprep.subr.mxu0 0.0
    %6329 = vmatpush1.xpose.msra.mxu0 0.0
    %6330 = vmatprep.subr.mxu0 0.0
    %6331 = vmatpush1.xpose.msra.mxu0 0.0
    %6332 = vmatprep.subr.mxu0 0.0
    %6333 = vmatpush1.xpose.msra.mxu0 0.0
    %6334 = vmatprep.subr.mxu0 0.0
    %6335 = vmatpush1.xpose.msra.mxu0 0.0
    %6336 = vmatprep.subr.mxu0 0.0
    %6337 = vmatpush1.xpose.msra.mxu0 0.0
    %6338 = vmatprep.subr.mxu0 0.0
    %6339 = vmatpush1.xpose.msra.mxu0 0.0
    %6340 = vmatprep.subr.mxu0 0.0
    %6341 = vmatpush1.xpose.msra.mxu0 0.0
    %6342 = vmatprep.subr.mxu0 0.0
    %6343 = vmatpush1.xpose.msra.mxu0 0.0
    %6344 = vmatprep.subr.mxu0 0.0
    %6345 = vmatpush1.xpose.msra.mxu0 0.0
    %6346 = vmatprep.subr.mxu0 0.0
    %6347 = vmatpush1.xpose.msra.mxu0 0.0
    %6348 = vmatprep.subr.mxu0 0.0
    %6349 = vmatpush1.xpose.msra.mxu0 0.0
    %6350 = vmatprep.subr.mxu0 0.0
    %6351 = vmatpush1.xpose.msra.mxu0 0.0
    %6352 = vmatprep.subr.mxu0 0.0
    %6353 = vmatpush1.xpose.msra.mxu0 0.0
    %6354 = vmatprep.subr.mxu0 0.0
    %6355 = vmatpush1.xpose.msra.mxu0 0.0
    %6356 = vmatprep.subr.mxu0 0.0
    %6357 = vmatpush1.xpose.msra.mxu0 0.0
    %6358 = vmatprep.subr.mxu0 0.0
    %6359 = vmatpush1.xpose.msra.mxu0 0.0
    %6360 = vmatprep.subr.mxu0 0.0
    %6361 = vmatpush1.xpose.msra.mxu0 0.0
    %6362 = vmatprep.subr.mxu0 0.0
    %6363 = vmatpush1.xpose.msra.mxu0 0.0
    %6364 = vmatprep.subr.mxu0 0.0
    %6365 = vmatpush1.xpose.msra.mxu0 0.0
    %6366 = vmatprep.mubr.f32.mxu0 0.0
    %6367 = vmatmul.mubr.f32.gmra.mrb[0].mxu0 %v6297
    %v6368 = vpop.f32.mrb[0].mxu0
    %v6369 = vadd.f32 %v2051, %v6368
    %v6370 = vpop.f32.mrb[0].mxu0
    %6371 = vdwg.mxu0
    %v6373 = vsel %vm2084, %v4564, 0
    %v6376 = vsel %vm2084, %v5217, 0
    %6378 = vmatprep.subr.mxu0 0.0
    %6379 = vmatpush1.xpose.msra.mxu0 %v6376
    %6380 = vmatprep.subr.mxu0 0.0
    %6381 = vmatpush1.xpose.msra.mxu0 0.0
    %6382 = vmatprep.subr.mxu0 0.0
    %6383 = vmatpush1.xpose.msra.mxu0 0.0
    %6384 = vmatprep.subr.mxu0 0.0
    %6385 = vmatpush1.xpose.msra.mxu0 0.0
    %6386 = vmatprep.subr.mxu0 0.0
    %6387 = vmatpush1.xpose.msra.mxu0 0.0
    %6388 = vmatprep.subr.mxu0 0.0
    %6389 = vmatpush1.xpose.msra.mxu0 0.0
    %6390 = vmatprep.subr.mxu0 0.0
    %6391 = vmatpush1.xpose.msra.mxu0 0.0
    %6392 = vmatprep.subr.mxu0 0.0
    %6393 = vmatpush1.xpose.msra.mxu0 0.0
    %6394 = vmatprep.subr.mxu0 0.0
    %6395 = vmatpush1.xpose.msra.mxu0 0.0
    %6396 = vmatprep.subr.mxu0 0.0
    %6397 = vmatpush1.xpose.msra.mxu0 0.0
    %6398 = vmatprep.subr.mxu0 0.0
    %6399 = vmatpush1.xpose.msra.mxu0 0.0
    %6400 = vmatprep.subr.mxu0 0.0
    %6401 = vmatpush1.xpose.msra.mxu0 0.0
    %6402 = vmatprep.subr.mxu0 0.0
    %6403 = vmatpush1.xpose.msra.mxu0 0.0
    %6404 = vmatprep.subr.mxu0 0.0
    %6405 = vmatpush1.xpose.msra.mxu0 0.0
    %6406 = vmatprep.subr.mxu0 0.0
    %6407 = vmatpush1.xpose.msra.mxu0 0.0
    %6408 = vmatprep.subr.mxu0 0.0
    %6409 = vmatpush1.xpose.msra.mxu0 0.0
    %6410 = vmatprep.subr.mxu0 0.0
    %6411 = vmatpush1.xpose.msra.mxu0 0.0
    %6412 = vmatprep.subr.mxu0 0.0
    %6413 = vmatpush1.xpose.msra.mxu0 0.0
    %6414 = vmatprep.subr.mxu0 0.0
    %6415 = vmatpush1.xpose.msra.mxu0 0.0
    %6416 = vmatprep.subr.mxu0 0.0
    %6417 = vmatpush1.xpose.msra.mxu0 0.0
    %6418 = vmatprep.subr.mxu0 0.0
    %6419 = vmatpush1.xpose.msra.mxu0 0.0
    %6420 = vmatprep.subr.mxu0 0.0
    %6421 = vmatpush1.xpose.msra.mxu0 0.0
    %6422 = vmatprep.subr.mxu0 0.0
    %6423 = vmatpush1.xpose.msra.mxu0 0.0
    %6424 = vmatprep.subr.mxu0 0.0
    %6425 = vmatpush1.xpose.msra.mxu0 0.0
    %6426 = vmatprep.subr.mxu0 0.0
    %6427 = vmatpush1.xpose.msra.mxu0 0.0
    %6428 = vmatprep.subr.mxu0 0.0
    %6429 = vmatpush1.xpose.msra.mxu0 0.0
    %6430 = vmatprep.subr.mxu0 0.0
    %6431 = vmatpush1.xpose.msra.mxu0 0.0
    %6432 = vmatprep.subr.mxu0 0.0
    %6433 = vmatpush1.xpose.msra.mxu0 0.0
    %6434 = vmatprep.subr.mxu0 0.0
    %6435 = vmatpush1.xpose.msra.mxu0 0.0
    %6436 = vmatprep.subr.mxu0 0.0
    %6437 = vmatpush1.xpose.msra.mxu0 0.0
    %6438 = vmatprep.subr.mxu0 0.0
    %6439 = vmatpush1.xpose.msra.mxu0 0.0
    %6440 = vmatprep.subr.mxu0 0.0
    %6441 = vmatpush1.xpose.msra.mxu0 0.0
    %6442 = vmatprep.mubr.f32.mxu0 0.0
    %6443 = vmatmul.mubr.f32.gmra.mrb[0].mxu0 %v6373
    %v6444 = vpop.f32.mrb[0].mxu0
    %v6445 = vadd.f32 %v2055, %v6444
    %v6446 = vpop.f32.mrb[0].mxu0
    %6447 = vdwg.mxu0
    %v6449 = vsel %vm2084, %v4634, 0
    %v6452 = vsel %vm2084, %v5287, 0
    %6454 = vmatprep.subr.mxu0 0.0
    %6455 = vmatpush1.xpose.msra.mxu0 %v6452
    %6456 = vmatprep.subr.mxu0 0.0
    %6457 = vmatpush1.xpose.msra.mxu0 0.0
    %6458 = vmatprep.subr.mxu0 0.0
    %6459 = vmatpush1.xpose.msra.mxu0 0.0
    %6460 = vmatprep.subr.mxu0 0.0
    %6461 = vmatpush1.xpose.msra.mxu0 0.0
    %6462 = vmatprep.subr.mxu0 0.0
    %6463 = vmatpush1.xpose.msra.mxu0 0.0
    %6464 = vmatprep.subr.mxu0 0.0
    %6465 = vmatpush1.xpose.msra.mxu0 0.0
    %6466 = vmatprep.subr.mxu0 0.0
    %6467 = vmatpush1.xpose.msra.mxu0 0.0
    %6468 = vmatprep.subr.mxu0 0.0
    %6469 = vmatpush1.xpose.msra.mxu0 0.0
    %6470 = vmatprep.subr.mxu0 0.0
    %6471 = vmatpush1.xpose.msra.mxu0 0.0
    %6472 = vmatprep.subr.mxu0 0.0
    %6473 = vmatpush1.xpose.msra.mxu0 0.0
    %6474 = vmatprep.subr.mxu0 0.0
    %6475 = vmatpush1.xpose.msra.mxu0 0.0
    %6476 = vmatprep.subr.mxu0 0.0
    %6477 = vmatpush1.xpose.msra.mxu0 0.0
    %6478 = vmatprep.subr.mxu0 0.0
    %6479 = vmatpush1.xpose.msra.mxu0 0.0
    %6480 = vmatprep.subr.mxu0 0.0
    %6481 = vmatpush1.xpose.msra.mxu0 0.0
    %6482 = vmatprep.subr.mxu0 0.0
    %6483 = vmatpush1.xpose.msra.mxu0 0.0
    %6484 = vmatprep.subr.mxu0 0.0
    %6485 = vmatpush1.xpose.msra.mxu0 0.0
    %6486 = vmatprep.subr.mxu0 0.0
    %6487 = vmatpush1.xpose.msra.mxu0 0.0
    %6488 = vmatprep.subr.mxu0 0.0
    %6489 = vmatpush1.xpose.msra.mxu0 0.0
    %6490 = vmatprep.subr.mxu0 0.0
    %6491 = vmatpush1.xpose.msra.mxu0 0.0
    %6492 = vmatprep.subr.mxu0 0.0
    %6493 = vmatpush1.xpose.msra.mxu0 0.0
    %6494 = vmatprep.subr.mxu0 0.0
    %6495 = vmatpush1.xpose.msra.mxu0 0.0
    %6496 = vmatprep.subr.mxu0 0.0
    %6497 = vmatpush1.xpose.msra.mxu0 0.0
    %6498 = vmatprep.subr.mxu0 0.0
    %6499 = vmatpush1.xpose.msra.mxu0 0.0
    %6500 = vmatprep.subr.mxu0 0.0
    %6501 = vmatpush1.xpose.msra.mxu0 0.0
    %6502 = vmatprep.subr.mxu0 0.0
    %6503 = vmatpush1.xpose.msra.mxu0 0.0
    %6504 = vmatprep.subr.mxu0 0.0
    %6505 = vmatpush1.xpose.msra.mxu0 0.0
    %6506 = vmatprep.subr.mxu0 0.0
    %6507 = vmatpush1.xpose.msra.mxu0 0.0
    %6508 = vmatprep.subr.mxu0 0.0
    %6509 = vmatpush1.xpose.msra.mxu0 0.0
    %6510 = vmatprep.subr.mxu0 0.0
    %6511 = vmatpush1.xpose.msra.mxu0 0.0
    %6512 = vmatprep.subr.mxu0 0.0
    %6513 = vmatpush1.xpose.msra.mxu0 0.0
    %6514 = vmatprep.subr.mxu0 0.0
    %6515 = vmatpush1.xpose.msra.mxu0 0.0
    %6516 = vmatprep.subr.mxu0 0.0
    %6517 = vmatpush1.xpose.msra.mxu0 0.0
    %6518 = vmatprep.mubr.f32.mxu0 0.0
    %6519 = vmatmul.mubr.f32.gmra.mrb[0].mxu0 %v6449
    %v6520 = vpop.f32.mrb[0].mxu0
    %v6521 = vadd.f32 %v2059, %v6520
    %v6522 = vpop.f32.mrb[0].mxu0
    %6523 = vdwg.mxu0
    %v6525 = vsel %vm2084, %v4707, 0
    %v6528 = vsel %vm2084, %v5357, 0
    %6530 = vmatprep.subr.mxu0 0.0
    %6531 = vmatpush1.xpose.msra.mxu0 %v6528
    %6532 = vmatprep.subr.mxu0 0.0
    %6533 = vmatpush1.xpose.msra.mxu0 0.0
    %6534 = vmatprep.subr.mxu0 0.0
    %6535 = vmatpush1.xpose.msra.mxu0 0.0
    %6536 = vmatprep.subr.mxu0 0.0
    %6537 = vmatpush1.xpose.msra.mxu0 0.0
    %6538 = vmatprep.subr.mxu0 0.0
    %6539 = vmatpush1.xpose.msra.mxu0 0.0
    %6540 = vmatprep.subr.mxu0 0.0
    %6541 = vmatpush1.xpose.msra.mxu0 0.0
    %6542 = vmatprep.subr.mxu0 0.0
    %6543 = vmatpush1.xpose.msra.mxu0 0.0
    %6544 = vmatprep.subr.mxu0 0.0
    %6545 = vmatpush1.xpose.msra.mxu0 0.0
    %6546 = vmatprep.subr.mxu0 0.0
    %6547 = vmatpush1.xpose.msra.mxu0 0.0
    %6548 = vmatprep.subr.mxu0 0.0
    %6549 = vmatpush1.xpose.msra.mxu0 0.0
    %6550 = vmatprep.subr.mxu0 0.0
    %6551 = vmatpush1.xpose.msra.mxu0 0.0
    %6552 = vmatprep.subr.mxu0 0.0
    %6553 = vmatpush1.xpose.msra.mxu0 0.0
    %6554 = vmatprep.subr.mxu0 0.0
    %6555 = vmatpush1.xpose.msra.mxu0 0.0
    %6556 = vmatprep.subr.mxu0 0.0
    %6557 = vmatpush1.xpose.msra.mxu0 0.0
    %6558 = vmatprep.subr.mxu0 0.0
    %6559 = vmatpush1.xpose.msra.mxu0 0.0
    %6560 = vmatprep.subr.mxu0 0.0
    %6561 = vmatpush1.xpose.msra.mxu0 0.0
    %6562 = vmatprep.subr.mxu0 0.0
    %6563 = vmatpush1.xpose.msra.mxu0 0.0
    %6564 = vmatprep.subr.mxu0 0.0
    %6565 = vmatpush1.xpose.msra.mxu0 0.0
    %6566 = vmatprep.subr.mxu0 0.0
    %6567 = vmatpush1.xpose.msra.mxu0 0.0
    %6568 = vmatprep.subr.mxu0 0.0
    %6569 = vmatpush1.xpose.msra.mxu0 0.0
    %6570 = vmatprep.subr.mxu0 0.0
    %6571 = vmatpush1.xpose.msra.mxu0 0.0
    %6572 = vmatprep.subr.mxu0 0.0
    %6573 = vmatpush1.xpose.msra.mxu0 0.0
    %6574 = vmatprep.subr.mxu0 0.0
    %6575 = vmatpush1.xpose.msra.mxu0 0.0
    %6576 = vmatprep.subr.mxu0 0.0
    %6577 = vmatpush1.xpose.msra.mxu0 0.0
    %6578 = vmatprep.subr.mxu0 0.0
    %6579 = vmatpush1.xpose.msra.mxu0 0.0
    %6580 = vmatprep.subr.mxu0 0.0
    %6581 = vmatpush1.xpose.msra.mxu0 0.0
    %6582 = vmatprep.subr.mxu0 0.0
    %6583 = vmatpush1.xpose.msra.mxu0 0.0
    %6584 = vmatprep.subr.mxu0 0.0
    %6585 = vmatpush1.xpose.msra.mxu0 0.0
    %6586 = vmatprep.subr.mxu0 0.0
    %6587 = vmatpush1.xpose.msra.mxu0 0.0
    %6588 = vmatprep.subr.mxu0 0.0
    %6589 = vmatpush1.xpose.msra.mxu0 0.0
    %6590 = vmatprep.subr.mxu0 0.0
    %6591 = vmatpush1.xpose.msra.mxu0 0.0
    %6592 = vmatprep.subr.mxu0 0.0
    %6593 = vmatpush1.xpose.msra.mxu0 0.0
    %6594 = vmatprep.mubr.f32.mxu0 0.0
    %6595 = vmatmul.mubr.f32.gmra.mrb[0].mxu0 %v6525
    %v6596 = vpop.f32.mrb[0].mxu0
    %v6597 = vadd.f32 %v2063, %v6596
    %v6598 = vpop.f32.mrb[0].mxu0
    %6599 = vdwg.mxu0
    %v6601 = vsel %vm2084, %v4777, 0
    %v6604 = vsel %vm2084, %v5427, 0
    %6606 = vmatprep.subr.mxu0 0.0
    %6607 = vmatpush1.xpose.msra.mxu0 %v6604
    %6608 = vmatprep.subr.mxu0 0.0
    %6609 = vmatpush1.xpose.msra.mxu0 0.0
    %6610 = vmatprep.subr.mxu0 0.0
    %6611 = vmatpush1.xpose.msra.mxu0 0.0
    %6612 = vmatprep.subr.mxu0 0.0
    %6613 = vmatpush1.xpose.msra.mxu0 0.0
    %6614 = vmatprep.subr.mxu0 0.0
    %6615 = vmatpush1.xpose.msra.mxu0 0.0
    %6616 = vmatprep.subr.mxu0 0.0
    %6617 = vmatpush1.xpose.msra.mxu0 0.0
    %6618 = vmatprep.subr.mxu0 0.0
    %6619 = vmatpush1.xpose.msra.mxu0 0.0
    %6620 = vmatprep.subr.mxu0 0.0
    %6621 = vmatpush1.xpose.msra.mxu0 0.0
    %6622 = vmatprep.subr.mxu0 0.0
    %6623 = vmatpush1.xpose.msra.mxu0 0.0
    %6624 = vmatprep.subr.mxu0 0.0
    %6625 = vmatpush1.xpose.msra.mxu0 0.0
    %6626 = vmatprep.subr.mxu0 0.0
    %6627 = vmatpush1.xpose.msra.mxu0 0.0
    %6628 = vmatprep.subr.mxu0 0.0
    %6629 = vmatpush1.xpose.msra.mxu0 0.0
    %6630 = vmatprep.subr.mxu0 0.0
    %6631 = vmatpush1.xpose.msra.mxu0 0.0
    %6632 = vmatprep.subr.mxu0 0.0
    %6633 = vmatpush1.xpose.msra.mxu0 0.0
    %6634 = vmatprep.subr.mxu0 0.0
    %6635 = vmatpush1.xpose.msra.mxu0 0.0
    %6636 = vmatprep.subr.mxu0 0.0
    %6637 = vmatpush1.xpose.msra.mxu0 0.0
    %6638 = vmatprep.subr.mxu0 0.0
    %6639 = vmatpush1.xpose.msra.mxu0 0.0
    %6640 = vmatprep.subr.mxu0 0.0
    %6641 = vmatpush1.xpose.msra.mxu0 0.0
    %6642 = vmatprep.subr.mxu0 0.0
    %6643 = vmatpush1.xpose.msra.mxu0 0.0
    %6644 = vmatprep.subr.mxu0 0.0
    %6645 = vmatpush1.xpose.msra.mxu0 0.0
    %6646 = vmatprep.subr.mxu0 0.0
    %6647 = vmatpush1.xpose.msra.mxu0 0.0
    %6648 = vmatprep.subr.mxu0 0.0
    %6649 = vmatpush1.xpose.msra.mxu0 0.0
    %6650 = vmatprep.subr.mxu0 0.0
    %6651 = vmatpush1.xpose.msra.mxu0 0.0
    %6652 = vmatprep.subr.mxu0 0.0
    %6653 = vmatpush1.xpose.msra.mxu0 0.0
    %6654 = vmatprep.subr.mxu0 0.0
    %6655 = vmatpush1.xpose.msra.mxu0 0.0
    %6656 = vmatprep.subr.mxu0 0.0
    %6657 = vmatpush1.xpose.msra.mxu0 0.0
    %6658 = vmatprep.subr.mxu0 0.0
    %6659 = vmatpush1.xpose.msra.mxu0 0.0
    %6660 = vmatprep.subr.mxu0 0.0
    %6661 = vmatpush1.xpose.msra.mxu0 0.0
    %6662 = vmatprep.subr.mxu0 0.0
    %6663 = vmatpush1.xpose.msra.mxu0 0.0
    %6664 = vmatprep.subr.mxu0 0.0
    %6665 = vmatpush1.xpose.msra.mxu0 0.0
    %6666 = vmatprep.subr.mxu0 0.0
    %6667 = vmatpush1.xpose.msra.mxu0 0.0
    %6668 = vmatprep.subr.mxu0 0.0
    %6669 = vmatpush1.xpose.msra.mxu0 0.0
    %6670 = vmatprep.mubr.f32.mxu0 0.0
    %6671 = vmatmul.mubr.f32.gmra.mrb[0].mxu0 %v6601
    %v6672 = vpop.f32.mrb[0].mxu0
    %v6673 = vadd.f32 %v2067, %v6672
    %v6674 = vpop.f32.mrb[0].mxu0
    %6675 = vdwg.mxu0
    %v6677 = vsel %vm2084, %v4847, 0
    %v6680 = vsel %vm2084, %v5497, 0
    %6682 = vmatprep.subr.mxu0 0.0
    %6683 = vmatpush1.xpose.msra.mxu0 %v6680
    %6684 = vmatprep.subr.mxu0 0.0
    %6685 = vmatpush1.xpose.msra.mxu0 0.0
    %6686 = vmatprep.subr.mxu0 0.0
    %6687 = vmatpush1.xpose.msra.mxu0 0.0
    %6688 = vmatprep.subr.mxu0 0.0
    %6689 = vmatpush1.xpose.msra.mxu0 0.0
    %6690 = vmatprep.subr.mxu0 0.0
    %6691 = vmatpush1.xpose.msra.mxu0 0.0
    %6692 = vmatprep.subr.mxu0 0.0
    %6693 = vmatpush1.xpose.msra.mxu0 0.0
    %6694 = vmatprep.subr.mxu0 0.0
    %6695 = vmatpush1.xpose.msra.mxu0 0.0
    %6696 = vmatprep.subr.mxu0 0.0
    %6697 = vmatpush1.xpose.msra.mxu0 0.0
    %6698 = vmatprep.subr.mxu0 0.0
    %6699 = vmatpush1.xpose.msra.mxu0 0.0
    %6700 = vmatprep.subr.mxu0 0.0
    %6701 = vmatpush1.xpose.msra.mxu0 0.0
    %6702 = vmatprep.subr.mxu0 0.0
    %6703 = vmatpush1.xpose.msra.mxu0 0.0
    %6704 = vmatprep.subr.mxu0 0.0
    %6705 = vmatpush1.xpose.msra.mxu0 0.0
    %6706 = vmatprep.subr.mxu0 0.0
    %6707 = vmatpush1.xpose.msra.mxu0 0.0
    %6708 = vmatprep.subr.mxu0 0.0
    %6709 = vmatpush1.xpose.msra.mxu0 0.0
    %6710 = vmatprep.subr.mxu0 0.0
    %6711 = vmatpush1.xpose.msra.mxu0 0.0
    %6712 = vmatprep.subr.mxu0 0.0
    %6713 = vmatpush1.xpose.msra.mxu0 0.0
    %6714 = vmatprep.subr.mxu0 0.0
    %6715 = vmatpush1.xpose.msra.mxu0 0.0
    %6716 = vmatprep.subr.mxu0 0.0
    %6717 = vmatpush1.xpose.msra.mxu0 0.0
    %6718 = vmatprep.subr.mxu0 0.0
    %6719 = vmatpush1.xpose.msra.mxu0 0.0
    %6720 = vmatprep.subr.mxu0 0.0
    %6721 = vmatpush1.xpose.msra.mxu0 0.0
    %6722 = vmatprep.subr.mxu0 0.0
    %6723 = vmatpush1.xpose.msra.mxu0 0.0
    %6724 = vmatprep.subr.mxu0 0.0
    %6725 = vmatpush1.xpose.msra.mxu0 0.0
    %6726 = vmatprep.subr.mxu0 0.0
    %6727 = vmatpush1.xpose.msra.mxu0 0.0
    %6728 = vmatprep.subr.mxu0 0.0
    %6729 = vmatpush1.xpose.msra.mxu0 0.0
    %6730 = vmatprep.subr.mxu0 0.0
    %6731 = vmatpush1.xpose.msra.mxu0 0.0
    %6732 = vmatprep.subr.mxu0 0.0
    %6733 = vmatpush1.xpose.msra.mxu0 0.0
    %6734 = vmatprep.subr.mxu0 0.0
    %6735 = vmatpush1.xpose.msra.mxu0 0.0
    %6736 = vmatprep.subr.mxu0 0.0
    %6737 = vmatpush1.xpose.msra.mxu0 0.0
    %6738 = vmatprep.subr.mxu0 0.0
    %6739 = vmatpush1.xpose.msra.mxu0 0.0
    %6740 = vmatprep.subr.mxu0 0.0
    %6741 = vmatpush1.xpose.msra.mxu0 0.0
    %6742 = vmatprep.subr.mxu0 0.0
    %6743 = vmatpush1.xpose.msra.mxu0 0.0
    %6744 = vmatprep.subr.mxu0 0.0
    %6745 = vmatpush1.xpose.msra.mxu0 0.0
    %6746 = vmatprep.mubr.f32.mxu0 0.0
    %6747 = vmatmul.mubr.f32.gmra.mrb[0].mxu0 %v6677
    %v6748 = vpop.f32.mrb[0].mxu0
    %v6749 = vadd.f32 %v2071, %v6748
    %v6750 = vpop.f32.mrb[0].mxu0
    %6751 = vdwg.mxu0
    %v6753 = vsel %vm2084, %v4917, 0
    %v6756 = vsel %vm2084, %v5567, 0
    %6758 = vmatprep.subr.mxu0 0.0
    %6759 = vmatpush1.xpose.msra.mxu0 %v6756
    %6760 = vmatprep.subr.mxu0 0.0
    %6761 = vmatpush1.xpose.msra.mxu0 0.0
    %6762 = vmatprep.subr.mxu0 0.0
    %6763 = vmatpush1.xpose.msra.mxu0 0.0
    %6764 = vmatprep.subr.mxu0 0.0
    %6765 = vmatpush1.xpose.msra.mxu0 0.0
    %6766 = vmatprep.subr.mxu0 0.0
    %6767 = vmatpush1.xpose.msra.mxu0 0.0
    %6768 = vmatprep.subr.mxu0 0.0
    %6769 = vmatpush1.xpose.msra.mxu0 0.0
    %6770 = vmatprep.subr.mxu0 0.0
    %6771 = vmatpush1.xpose.msra.mxu0 0.0
    %6772 = vmatprep.subr.mxu0 0.0
    %6773 = vmatpush1.xpose.msra.mxu0 0.0
    %6774 = vmatprep.subr.mxu0 0.0
    %6775 = vmatpush1.xpose.msra.mxu0 0.0
    %6776 = vmatprep.subr.mxu0 0.0
    %6777 = vmatpush1.xpose.msra.mxu0 0.0
    %6778 = vmatprep.subr.mxu0 0.0
    %6779 = vmatpush1.xpose.msra.mxu0 0.0
    %6780 = vmatprep.subr.mxu0 0.0
    %6781 = vmatpush1.xpose.msra.mxu0 0.0
    %6782 = vmatprep.subr.mxu0 0.0
    %6783 = vmatpush1.xpose.msra.mxu0 0.0
    %6784 = vmatprep.subr.mxu0 0.0
    %6785 = vmatpush1.xpose.msra.mxu0 0.0
    %6786 = vmatprep.subr.mxu0 0.0
    %6787 = vmatpush1.xpose.msra.mxu0 0.0
    %6788 = vmatprep.subr.mxu0 0.0
    %6789 = vmatpush1.xpose.msra.mxu0 0.0
    %6790 = vmatprep.subr.mxu0 0.0
    %6791 = vmatpush1.xpose.msra.mxu0 0.0
    %6792 = vmatprep.subr.mxu0 0.0
    %6793 = vmatpush1.xpose.msra.mxu0 0.0
    %6794 = vmatprep.subr.mxu0 0.0
    %6795 = vmatpush1.xpose.msra.mxu0 0.0
    %6796 = vmatprep.subr.mxu0 0.0
    %6797 = vmatpush1.xpose.msra.mxu0 0.0
    %6798 = vmatprep.subr.mxu0 0.0
    %6799 = vmatpush1.xpose.msra.mxu0 0.0
    %6800 = vmatprep.subr.mxu0 0.0
    %6801 = vmatpush1.xpose.msra.mxu0 0.0
    %6802 = vmatprep.subr.mxu0 0.0
    %6803 = vmatpush1.xpose.msra.mxu0 0.0
    %6804 = vmatprep.subr.mxu0 0.0
    %6805 = vmatpush1.xpose.msra.mxu0 0.0
    %6806 = vmatprep.subr.mxu0 0.0
    %6807 = vmatpush1.xpose.msra.mxu0 0.0
    %6808 = vmatprep.subr.mxu0 0.0
    %6809 = vmatpush1.xpose.msra.mxu0 0.0
    %6810 = vmatprep.subr.mxu0 0.0
    %6811 = vmatpush1.xpose.msra.mxu0 0.0
    %6812 = vmatprep.subr.mxu0 0.0
    %6813 = vmatpush1.xpose.msra.mxu0 0.0
    %6814 = vmatprep.subr.mxu0 0.0
    %6815 = vmatpush1.xpose.msra.mxu0 0.0
    %6816 = vmatprep.subr.mxu0 0.0
    %6817 = vmatpush1.xpose.msra.mxu0 0.0
    %6818 = vmatprep.subr.mxu0 0.0
    %6819 = vmatpush1.xpose.msra.mxu0 0.0
    %6820 = vmatprep.subr.mxu0 0.0
    %6821 = vmatpush1.xpose.msra.mxu0 0.0
    %6822 = vmatprep.mubr.f32.mxu0 0.0
    %6823 = vmatmul.mubr.f32.gmra.mrb[0].mxu0 %v6753
    %v6824 = vpop.f32.mrb[0].mxu0
    %v6825 = vadd.f32 %v2075, %v6824
    %v6826 = vpop.f32.mrb[0].mxu0
    %6827 = vdwg.mxu0
    %v6828 = vsel %vm2084, %v6293, -inf
    %6829 = vmax.xlane.f32.xlu0 %v6828
    %v6830 = vpop.xlane.xlu0 %6829
    %v6831 = vsel %vm2084, %v6369, -inf
    %6832 = vmax.xlane.f32.xlu0 %v6831
    %v6833 = vpop.xlane.xlu0 %6832
    %v6834 = vsel %vm2084, %v6445, -inf
    %6835 = vmax.xlane.f32.xlu0 %v6834
    %v6836 = vpop.xlane.xlu0 %6835
    %v6837 = vsel %vm2084, %v6521, -inf
    %6838 = vmax.xlane.f32.xlu0 %v6837
    %v6839 = vpop.xlane.xlu0 %6838
    %v6840 = vsel %vm2084, %v6597, -inf
    %6841 = vmax.xlane.f32.xlu0 %v6840
    %v6842 = vpop.xlane.xlu0 %6841
    %v6843 = vsel %vm2084, %v6673, -inf
    %6844 = vmax.xlane.f32.xlu0 %v6843
    %v6845 = vpop.xlane.xlu0 %6844
    %v6846 = vsel %vm2084, %v6749, -inf
    %6847 = vmax.xlane.f32.xlu0 %v6846
    %v6848 = vpop.xlane.xlu0 %6847
    %v6849 = vsel %vm2084, %v6825, -inf
    %6850 = vmax.xlane.f32.xlu0 %v6849
    %v6851 = vpop.xlane.xlu0 %6850
    %v6852 = vsub.f32 %v6293, %v6830
    %v6853 = vsub.f32 %v6369, %v6833
    %v6854 = vsub.f32 %v6445, %v6836
    %v6855 = vsub.f32 %v6521, %v6839
    %v6856 = vsub.f32 %v6597, %v6842
    %v6857 = vsub.f32 %v6673, %v6845
    %v6858 = vsub.f32 %v6749, %v6848
    %v6859 = vsub.f32 %v6825, %v6851
    %v6860 = vmul.f32 %v6852, 1.442695
    %v6861 = vpow.pop %v6860
    %v6862 = vmul.f32 %v6853, 1.442695
    %v6863 = vpow.pop %v6862
    %v6864 = vmul.f32 %v6854, 1.442695
    %v6865 = vpow.pop %v6864
    %v6866 = vmul.f32 %v6855, 1.442695
    %v6867 = vpow.pop %v6866
    %v6868 = vmul.f32 %v6856, 1.442695
    %v6869 = vpow.pop %v6868
    %v6870 = vmul.f32 %v6857, 1.442695
    %v6871 = vpow.pop %v6870
    %v6872 = vmul.f32 %v6858, 1.442695
    %v6873 = vpow.pop %v6872
    %v6874 = vmul.f32 %v6859, 1.442695
    %v6875 = vpow.pop %v6874
    %v6876 = vsel %vm2084, %v6861, 0.0
    %6877 = vadd.xlane.f32.xlu0 %v6876
    %v6878 = vpop.xlane.xlu0 %6877
    %v6879 = vsel %vm2084, %v6863, 0.0
    %6880 = vadd.xlane.f32.xlu0 %v6879
    %v6881 = vpop.xlane.xlu0 %6880
    %v6882 = vsel %vm2084, %v6865, 0.0
    %6883 = vadd.xlane.f32.xlu0 %v6882
    %v6884 = vpop.xlane.xlu0 %6883
    %v6885 = vsel %vm2084, %v6867, 0.0
    %6886 = vadd.xlane.f32.xlu0 %v6885
    %v6887 = vpop.xlane.xlu0 %6886
    %v6888 = vsel %vm2084, %v6869, 0.0
    %6889 = vadd.xlane.f32.xlu0 %v6888
    %v6890 = vpop.xlane.xlu0 %6889
    %v6891 = vsel %vm2084, %v6871, 0.0
    %6892 = vadd.xlane.f32.xlu0 %v6891
    %v6893 = vpop.xlane.xlu0 %6892
    %v6894 = vsel %vm2084, %v6873, 0.0
    %6895 = vadd.xlane.f32.xlu0 %v6894
    %v6896 = vpop.xlane.xlu0 %6895
    %v6897 = vsel %vm2084, %v6875, 0.0
    %6898 = vadd.xlane.f32.xlu0 %v6897
    %v6899 = vpop.xlane.xlu0 %6898
    %v6900 = vrcp.pop %v6878
    %v6901 = vrcp.pop %v6881
    %v6902 = vrcp.pop %v6884
    %v6903 = vrcp.pop %v6887
    %v6904 = vrcp.pop %v6890
    %v6905 = vrcp.pop %v6893
    %v6906 = vrcp.pop %v6896
    %v6907 = vrcp.pop %v6899
    %v6908 = vmul.f32 %v6861, %v6900
    %v6909 = vmul.f32 %v6863, %v6901
    %v6910 = vmul.f32 %v6865, %v6902
    %v6911 = vmul.f32 %v6867, %v6903
    %v6912 = vmul.f32 %v6869, %v6904
    %v6913 = vmul.f32 %v6871, %v6905
    %v6914 = vmul.f32 %v6873, %v6906
    %v6915 = vmul.f32 %v6875, %v6907
    %v6917 = vsel %vm2084, %v6908, 0
    %6919 = vmatprep.subr.mxu0 0.0
    %6920 = vmatpush1.msra.mxu0 %v5727
    %6921 = vmatprep.subr.mxu0 0.0
    %6922 = vmatpush1.msra.mxu0 0.0
    %6923 = vmatprep.subr.mxu0 0.0
    %6924 = vmatpush1.msra.mxu0 0.0
    %6925 = vmatprep.subr.mxu0 0.0
    %6926 = vmatpush1.msra.mxu0 0.0
    %6927 = vmatprep.subr.mxu0 0.0
    %6928 = vmatpush1.msra.mxu0 0.0
    %6929 = vmatprep.subr.mxu0 0.0
    %6930 = vmatpush1.msra.mxu0 0.0
    %6931 = vmatprep.subr.mxu0 0.0
    %6932 = vmatpush1.msra.mxu0 0.0
    %6933 = vmatprep.subr.mxu0 0.0
    %6934 = vmatpush1.msra.mxu0 0.0
    %6935 = vmatprep.subr.mxu0 0.0
    %6936 = vmatpush1.msra.mxu0 0.0
    %6937 = vmatprep.subr.mxu0 0.0
    %6938 = vmatpush1.msra.mxu0 0.0
    %6939 = vmatprep.subr.mxu0 0.0
    %6940 = vmatpush1.msra.mxu0 0.0
    %6941 = vmatprep.subr.mxu0 0.0
    %6942 = vmatpush1.msra.mxu0 0.0
    %6943 = vmatprep.subr.mxu0 0.0
    %6944 = vmatpush1.msra.mxu0 0.0
    %6945 = vmatprep.subr.mxu0 0.0
    %6946 = vmatpush1.msra.mxu0 0.0
    %6947 = vmatprep.subr.mxu0 0.0
    %6948 = vmatpush1.msra.mxu0 0.0
    %6949 = vmatprep.subr.mxu0 0.0
    %6950 = vmatpush1.msra.mxu0 0.0
    %6951 = vmatprep.subr.mxu0 0.0
    %6952 = vmatpush1.msra.mxu0 0.0
    %6953 = vmatprep.subr.mxu0 0.0
    %6954 = vmatpush1.msra.mxu0 0.0
    %6955 = vmatprep.subr.mxu0 0.0
    %6956 = vmatpush1.msra.mxu0 0.0
    %6957 = vmatprep.subr.mxu0 0.0
    %6958 = vmatpush1.msra.mxu0 0.0
    %6959 = vmatprep.subr.mxu0 0.0
    %6960 = vmatpush1.msra.mxu0 0.0
    %6961 = vmatprep.subr.mxu0 0.0
    %6962 = vmatpush1.msra.mxu0 0.0
    %6963 = vmatprep.subr.mxu0 0.0
    %6964 = vmatpush1.msra.mxu0 0.0
    %6965 = vmatprep.subr.mxu0 0.0
    %6966 = vmatpush1.msra.mxu0 0.0
    %6967 = vmatprep.subr.mxu0 0.0
    %6968 = vmatpush1.msra.mxu0 0.0
    %6969 = vmatprep.subr.mxu0 0.0
    %6970 = vmatpush1.msra.mxu0 0.0
    %6971 = vmatprep.subr.mxu0 0.0
    %6972 = vmatpush1.msra.mxu0 0.0
    %6973 = vmatprep.subr.mxu0 0.0
    %6974 = vmatpush1.msra.mxu0 0.0
    %6975 = vmatprep.subr.mxu0 0.0
    %6976 = vmatpush1.msra.mxu0 0.0
    %6977 = vmatprep.subr.mxu0 0.0
    %6978 = vmatpush1.msra.mxu0 0.0
    %6979 = vmatprep.subr.mxu0 0.0
    %6980 = vmatpush1.msra.mxu0 0.0
    %6981 = vmatprep.subr.mxu0 0.0
    %6982 = vmatpush1.msra.mxu0 0.0
    %6983 = vmatprep.mubr.f32.mxu0 0.0
    %6984 = vmatmul.mubr.f32.gmra.mrb[0].mxu0 %v6917
    %v6985 = vpop.f32.mrb[0].mxu0
    %v6986 = vadd.f32 0.0, %v6985
    %v6987 = vpop.f32.mrb[0].mxu0
    %6988 = vdwg.mxu0
    %v6990 = vsel %vm2084, %v6909, 0
    %6992 = vmatprep.subr.mxu0 0.0
    %6993 = vmatpush1.msra.mxu0 %v5797
    %6994 = vmatprep.subr.mxu0 0.0
    %6995 = vmatpush1.msra.mxu0 0.0
    %6996 = vmatprep.subr.mxu0 0.0
    %6997 = vmatpush1.msra.mxu0 0.0
    %6998 = vmatprep.subr.mxu0 0.0
    %6999 = vmatpush1.msra.mxu0 0.0
    %7000 = vmatprep.subr.mxu0 0.0
    %7001 = vmatpush1.msra.mxu0 0.0
    %7002 = vmatprep.subr.mxu0 0.0
    %7003 = vmatpush1.msra.mxu0 0.0
    %7004 = vmatprep.subr.mxu0 0.0
    %7005 = vmatpush1.msra.mxu0 0.0
    %7006 = vmatprep.subr.mxu0 0.0
    %7007 = vmatpush1.msra.mxu0 0.0
    %7008 = vmatprep.subr.mxu0 0.0
    %7009 = vmatpush1.msra.mxu0 0.0
    %7010 = vmatprep.subr.mxu0 0.0
    %7011 = vmatpush1.msra.mxu0 0.0
    %7012 = vmatprep.subr.mxu0 0.0
    %7013 = vmatpush1.msra.mxu0 0.0
    %7014 = vmatprep.subr.mxu0 0.0
    %7015 = vmatpush1.msra.mxu0 0.0
    %7016 = vmatprep.subr.mxu0 0.0
    %7017 = vmatpush1.msra.mxu0 0.0
    %7018 = vmatprep.subr.mxu0 0.0
    %7019 = vmatpush1.msra.mxu0 0.0
    %7020 = vmatprep.subr.mxu0 0.0
    %7021 = vmatpush1.msra.mxu0 0.0
    %7022 = vmatprep.subr.mxu0 0.0
    %7023 = vmatpush1.msra.mxu0 0.0
    %7024 = vmatprep.subr.mxu0 0.0
    %7025 = vmatpush1.msra.mxu0 0.0
    %7026 = vmatprep.subr.mxu0 0.0
    %7027 = vmatpush1.msra.mxu0 0.0
    %7028 = vmatprep.subr.mxu0 0.0
    %7029 = vmatpush1.msra.mxu0 0.0
    %7030 = vmatprep.subr.mxu0 0.0
    %7031 = vmatpush1.msra.mxu0 0.0
    %7032 = vmatprep.subr.mxu0 0.0
    %7033 = vmatpush1.msra.mxu0 0.0
    %7034 = vmatprep.subr.mxu0 0.0
    %7035 = vmatpush1.msra.mxu0 0.0
    %7036 = vmatprep.subr.mxu0 0.0
    %7037 = vmatpush1.msra.mxu0 0.0
    %7038 = vmatprep.subr.mxu0 0.0
    %7039 = vmatpush1.msra.mxu0 0.0
    %7040 = vmatprep.subr.mxu0 0.0
    %7041 = vmatpush1.msra.mxu0 0.0
    %7042 = vmatprep.subr.mxu0 0.0
    %7043 = vmatpush1.msra.mxu0 0.0
    %7044 = vmatprep.subr.mxu0 0.0
    %7045 = vmatpush1.msra.mxu0 0.0
    %7046 = vmatprep.subr.mxu0 0.0
    %7047 = vmatpush1.msra.mxu0 0.0
    %7048 = vmatprep.subr.mxu0 0.0
    %7049 = vmatpush1.msra.mxu0 0.0
    %7050 = vmatprep.subr.mxu0 0.0
    %7051 = vmatpush1.msra.mxu0 0.0
    %7052 = vmatprep.subr.mxu0 0.0
    %7053 = vmatpush1.msra.mxu0 0.0
    %7054 = vmatprep.subr.mxu0 0.0
    %7055 = vmatpush1.msra.mxu0 0.0
    %7056 = vmatprep.mubr.f32.mxu0 0.0
    %7057 = vmatmul.mubr.f32.gmra.mrb[0].mxu0 %v6990
    %v7058 = vpop.f32.mrb[0].mxu0
    %v7059 = vadd.f32 0.0, %v7058
    %v7060 = vpop.f32.mrb[0].mxu0
    %7061 = vdwg.mxu0
    %v7063 = vsel %vm2084, %v6910, 0
    %7065 = vmatprep.subr.mxu0 0.0
    %7066 = vmatpush1.msra.mxu0 %v5867
    %7067 = vmatprep.subr.mxu0 0.0
    %7068 = vmatpush1.msra.mxu0 0.0
    %7069 = vmatprep.subr.mxu0 0.0
    %7070 = vmatpush1.msra.mxu0 0.0
    %7071 = vmatprep.subr.mxu0 0.0
    %7072 = vmatpush1.msra.mxu0 0.0
    %7073 = vmatprep.subr.mxu0 0.0
    %7074 = vmatpush1.msra.mxu0 0.0
    %7075 = vmatprep.subr.mxu0 0.0
    %7076 = vmatpush1.msra.mxu0 0.0
    %7077 = vmatprep.subr.mxu0 0.0
    %7078 = vmatpush1.msra.mxu0 0.0
    %7079 = vmatprep.subr.mxu0 0.0
    %7080 = vmatpush1.msra.mxu0 0.0
    %7081 = vmatprep.subr.mxu0 0.0
    %7082 = vmatpush1.msra.mxu0 0.0
    %7083 = vmatprep.subr.mxu0 0.0
    %7084 = vmatpush1.msra.mxu0 0.0
    %7085 = vmatprep.subr.mxu0 0.0
    %7086 = vmatpush1.msra.mxu0 0.0
    %7087 = vmatprep.subr.mxu0 0.0
    %7088 = vmatpush1.msra.mxu0 0.0
    %7089 = vmatprep.subr.mxu0 0.0
    %7090 = vmatpush1.msra.mxu0 0.0
    %7091 = vmatprep.subr.mxu0 0.0
    %7092 = vmatpush1.msra.mxu0 0.0
    %7093 = vmatprep.subr.mxu0 0.0
    %7094 = vmatpush1.msra.mxu0 0.0
    %7095 = vmatprep.subr.mxu0 0.0
    %7096 = vmatpush1.msra.mxu0 0.0
    %7097 = vmatprep.subr.mxu0 0.0
    %7098 = vmatpush1.msra.mxu0 0.0
    %7099 = vmatprep.subr.mxu0 0.0
    %7100 = vmatpush1.msra.mxu0 0.0
    %7101 = vmatprep.subr.mxu0 0.0
    %7102 = vmatpush1.msra.mxu0 0.0
    %7103 = vmatprep.subr.mxu0 0.0
    %7104 = vmatpush1.msra.mxu0 0.0
    %7105 = vmatprep.subr.mxu0 0.0
    %7106 = vmatpush1.msra.mxu0 0.0
    %7107 = vmatprep.subr.mxu0 0.0
    %7108 = vmatpush1.msra.mxu0 0.0
    %7109 = vmatprep.subr.mxu0 0.0
    %7110 = vmatpush1.msra.mxu0 0.0
    %7111 = vmatprep.subr.mxu0 0.0
    %7112 = vmatpush1.msra.mxu0 0.0
    %7113 = vmatprep.subr.mxu0 0.0
    %7114 = vmatpush1.msra.mxu0 0.0
    %7115 = vmatprep.subr.mxu0 0.0
    %7116 = vmatpush1.msra.mxu0 0.0
    %7117 = vmatprep.subr.mxu0 0.0
    %7118 = vmatpush1.msra.mxu0 0.0
    %7119 = vmatprep.subr.mxu0 0.0
    %7120 = vmatpush1.msra.mxu0 0.0
    %7121 = vmatprep.subr.mxu0 0.0
    %7122 = vmatpush1.msra.mxu0 0.0
    %7123 = vmatprep.subr.mxu0 0.0
    %7124 = vmatpush1.msra.mxu0 0.0
    %7125 = vmatprep.subr.mxu0 0.0
    %7126 = vmatpush1.msra.mxu0 0.0
    %7127 = vmatprep.subr.mxu0 0.0
    %7128 = vmatpush1.msra.mxu0 0.0
    %7129 = vmatprep.mubr.f32.mxu0 0.0
    %7130 = vmatmul.mubr.f32.gmra.mrb[0].mxu0 %v7063
    %v7131 = vpop.f32.mrb[0].mxu0
    %v7132 = vadd.f32 0.0, %v7131
    %v7133 = vpop.f32.mrb[0].mxu0
    %7134 = vdwg.mxu0
    %v7136 = vsel %vm2084, %v6911, 0
    %7138 = vmatprep.subr.mxu0 0.0
    %7139 = vmatpush1.msra.mxu0 %v5937
    %7140 = vmatprep.subr.mxu0 0.0
    %7141 = vmatpush1.msra.mxu0 0.0
    %7142 = vmatprep.subr.mxu0 0.0
    %7143 = vmatpush1.msra.mxu0 0.0
    %7144 = vmatprep.subr.mxu0 0.0
    %7145 = vmatpush1.msra.mxu0 0.0
    %7146 = vmatprep.subr.mxu0 0.0
    %7147 = vmatpush1.msra.mxu0 0.0
    %7148 = vmatprep.subr.mxu0 0.0
    %7149 = vmatpush1.msra.mxu0 0.0
    %7150 = vmatprep.subr.mxu0 0.0
    %7151 = vmatpush1.msra.mxu0 0.0
    %7152 = vmatprep.subr.mxu0 0.0
    %7153 = vmatpush1.msra.mxu0 0.0
    %7154 = vmatprep.subr.mxu0 0.0
    %7155 = vmatpush1.msra.mxu0 0.0
    %7156 = vmatprep.subr.mxu0 0.0
    %7157 = vmatpush1.msra.mxu0 0.0
    %7158 = vmatprep.subr.mxu0 0.0
    %7159 = vmatpush1.msra.mxu0 0.0
    %7160 = vmatprep.subr.mxu0 0.0
    %7161 = vmatpush1.msra.mxu0 0.0
    %7162 = vmatprep.subr.mxu0 0.0
    %7163 = vmatpush1.msra.mxu0 0.0
    %7164 = vmatprep.subr.mxu0 0.0
    %7165 = vmatpush1.msra.mxu0 0.0
    %7166 = vmatprep.subr.mxu0 0.0
    %7167 = vmatpush1.msra.mxu0 0.0
    %7168 = vmatprep.subr.mxu0 0.0
    %7169 = vmatpush1.msra.mxu0 0.0
    %7170 = vmatprep.subr.mxu0 0.0
    %7171 = vmatpush1.msra.mxu0 0.0
    %7172 = vmatprep.subr.mxu0 0.0
    %7173 = vmatpush1.msra.mxu0 0.0
    %7174 = vmatprep.subr.mxu0 0.0
    %7175 = vmatpush1.msra.mxu0 0.0
    %7176 = vmatprep.subr.mxu0 0.0
    %7177 = vmatpush1.msra.mxu0 0.0
    %7178 = vmatprep.subr.mxu0 0.0
    %7179 = vmatpush1.msra.mxu0 0.0
    %7180 = vmatprep.subr.mxu0 0.0
    %7181 = vmatpush1.msra.mxu0 0.0
    %7182 = vmatprep.subr.mxu0 0.0
    %7183 = vmatpush1.msra.mxu0 0.0
    %7184 = vmatprep.subr.mxu0 0.0
    %7185 = vmatpush1.msra.mxu0 0.0
    %7186 = vmatprep.subr.mxu0 0.0
    %7187 = vmatpush1.msra.mxu0 0.0
    %7188 = vmatprep.subr.mxu0 0.0
    %7189 = vmatpush1.msra.mxu0 0.0
    %7190 = vmatprep.subr.mxu0 0.0
    %7191 = vmatpush1.msra.mxu0 0.0
    %7192 = vmatprep.subr.mxu0 0.0
    %7193 = vmatpush1.msra.mxu0 0.0
    %7194 = vmatprep.subr.mxu0 0.0
    %7195 = vmatpush1.msra.mxu0 0.0
    %7196 = vmatprep.subr.mxu0 0.0
    %7197 = vmatpush1.msra.mxu0 0.0
    %7198 = vmatprep.subr.mxu0 0.0
    %7199 = vmatpush1.msra.mxu0 0.0
    %7200 = vmatprep.subr.mxu0 0.0
    %7201 = vmatpush1.msra.mxu0 0.0
    %7202 = vmatprep.mubr.f32.mxu0 0.0
    %7203 = vmatmul.mubr.f32.gmra.mrb[0].mxu0 %v7136
    %v7204 = vpop.f32.mrb[0].mxu0
    %v7205 = vadd.f32 0.0, %v7204
    %v7206 = vpop.f32.mrb[0].mxu0
    %7207 = vdwg.mxu0
    %v7209 = vsel %vm2084, %v6912, 0
    %7211 = vmatprep.subr.mxu0 0.0
    %7212 = vmatpush1.msra.mxu0 %v6007
    %7213 = vmatprep.subr.mxu0 0.0
    %7214 = vmatpush1.msra.mxu0 0.0
    %7215 = vmatprep.subr.mxu0 0.0
    %7216 = vmatpush1.msra.mxu0 0.0
    %7217 = vmatprep.subr.mxu0 0.0
    %7218 = vmatpush1.msra.mxu0 0.0
    %7219 = vmatprep.subr.mxu0 0.0
    %7220 = vmatpush1.msra.mxu0 0.0
    %7221 = vmatprep.subr.mxu0 0.0
    %7222 = vmatpush1.msra.mxu0 0.0
    %7223 = vmatprep.subr.mxu0 0.0
    %7224 = vmatpush1.msra.mxu0 0.0
    %7225 = vmatprep.subr.mxu0 0.0
    %7226 = vmatpush1.msra.mxu0 0.0
    %7227 = vmatprep.subr.mxu0 0.0
    %7228 = vmatpush1.msra.mxu0 0.0
    %7229 = vmatprep.subr.mxu0 0.0
    %7230 = vmatpush1.msra.mxu0 0.0
    %7231 = vmatprep.subr.mxu0 0.0
    %7232 = vmatpush1.msra.mxu0 0.0
    %7233 = vmatprep.subr.mxu0 0.0
    %7234 = vmatpush1.msra.mxu0 0.0
    %7235 = vmatprep.subr.mxu0 0.0
    %7236 = vmatpush1.msra.mxu0 0.0
    %7237 = vmatprep.subr.mxu0 0.0
    %7238 = vmatpush1.msra.mxu0 0.0
    %7239 = vmatprep.subr.mxu0 0.0
    %7240 = vmatpush1.msra.mxu0 0.0
    %7241 = vmatprep.subr.mxu0 0.0
    %7242 = vmatpush1.msra.mxu0 0.0
    %7243 = vmatprep.subr.mxu0 0.0
    %7244 = vmatpush1.msra.mxu0 0.0
    %7245 = vmatprep.subr.mxu0 0.0
    %7246 = vmatpush1.msra.mxu0 0.0
    %7247 = vmatprep.subr.mxu0 0.0
    %7248 = vmatpush1.msra.mxu0 0.0
    %7249 = vmatprep.subr.mxu0 0.0
    %7250 = vmatpush1.msra.mxu0 0.0
    %7251 = vmatprep.subr.mxu0 0.0
    %7252 = vmatpush1.msra.mxu0 0.0
    %7253 = vmatprep.subr.mxu0 0.0
    %7254 = vmatpush1.msra.mxu0 0.0
    %7255 = vmatprep.subr.mxu0 0.0
    %7256 = vmatpush1.msra.mxu0 0.0
    %7257 = vmatprep.subr.mxu0 0.0
    %7258 = vmatpush1.msra.mxu0 0.0
    %7259 = vmatprep.subr.mxu0 0.0
    %7260 = vmatpush1.msra.mxu0 0.0
    %7261 = vmatprep.subr.mxu0 0.0
    %7262 = vmatpush1.msra.mxu0 0.0
    %7263 = vmatprep.subr.mxu0 0.0
    %7264 = vmatpush1.msra.mxu0 0.0
    %7265 = vmatprep.subr.mxu0 0.0
    %7266 = vmatpush1.msra.mxu0 0.0
    %7267 = vmatprep.subr.mxu0 0.0
    %7268 = vmatpush1.msra.mxu0 0.0
    %7269 = vmatprep.subr.mxu0 0.0
    %7270 = vmatpush1.msra.mxu0 0.0
    %7271 = vmatprep.subr.mxu0 0.0
    %7272 = vmatpush1.msra.mxu0 0.0
    %7273 = vmatprep.subr.mxu0 0.0
    %7274 = vmatpush1.msra.mxu0 0.0
    %7275 = vmatprep.mubr.f32.mxu0 0.0
    %7276 = vmatmul.mubr.f32.gmra.mrb[0].mxu0 %v7209
    %v7277 = vpop.f32.mrb[0].mxu0
    %v7278 = vadd.f32 0.0, %v7277
    %v7279 = vpop.f32.mrb[0].mxu0
    %7280 = vdwg.mxu0
    %v7282 = vsel %vm2084, %v6913, 0
    %7284 = vmatprep.subr.mxu0 0.0
    %7285 = vmatpush1.msra.mxu0 %v6077
    %7286 = vmatprep.subr.mxu0 0.0
    %7287 = vmatpush1.msra.mxu0 0.0
    %7288 = vmatprep.subr.mxu0 0.0
    %7289 = vmatpush1.msra.mxu0 0.0
    %7290 = vmatprep.subr.mxu0 0.0
    %7291 = vmatpush1.msra.mxu0 0.0
    %7292 = vmatprep.subr.mxu0 0.0
    %7293 = vmatpush1.msra.mxu0 0.0
    %7294 = vmatprep.subr.mxu0 0.0
    %7295 = vmatpush1.msra.mxu0 0.0
    %7296 = vmatprep.subr.mxu0 0.0
    %7297 = vmatpush1.msra.mxu0 0.0
    %7298 = vmatprep.subr.mxu0 0.0
    %7299 = vmatpush1.msra.mxu0 0.0
    %7300 = vmatprep.subr.mxu0 0.0
    %7301 = vmatpush1.msra.mxu0 0.0
    %7302 = vmatprep.subr.mxu0 0.0
    %7303 = vmatpush1.msra.mxu0 0.0
    %7304 = vmatprep.subr.mxu0 0.0
    %7305 = vmatpush1.msra.mxu0 0.0
    %7306 = vmatprep.subr.mxu0 0.0
    %7307 = vmatpush1.msra.mxu0 0.0
    %7308 = vmatprep.subr.mxu0 0.0
    %7309 = vmatpush1.msra.mxu0 0.0
    %7310 = vmatprep.subr.mxu0 0.0
    %7311 = vmatpush1.msra.mxu0 0.0
    %7312 = vmatprep.subr.mxu0 0.0
    %7313 = vmatpush1.msra.mxu0 0.0
    %7314 = vmatprep.subr.mxu0 0.0
    %7315 = vmatpush1.msra.mxu0 0.0
    %7316 = vmatprep.subr.mxu0 0.0
    %7317 = vmatpush1.msra.mxu0 0.0
    %7318 = vmatprep.subr.mxu0 0.0
    %7319 = vmatpush1.msra.mxu0 0.0
    %7320 = vmatprep.subr.mxu0 0.0
    %7321 = vmatpush1.msra.mxu0 0.0
    %7322 = vmatprep.subr.mxu0 0.0
    %7323 = vmatpush1.msra.mxu0 0.0
    %7324 = vmatprep.subr.mxu0 0.0
    %7325 = vmatpush1.msra.mxu0 0.0
    %7326 = vmatprep.subr.mxu0 0.0
    %7327 = vmatpush1.msra.mxu0 0.0
    %7328 = vmatprep.subr.mxu0 0.0
    %7329 = vmatpush1.msra.mxu0 0.0
    %7330 = vmatprep.subr.mxu0 0.0
    %7331 = vmatpush1.msra.mxu0 0.0
    %7332 = vmatprep.subr.mxu0 0.0
    %7333 = vmatpush1.msra.mxu0 0.0
    %7334 = vmatprep.subr.mxu0 0.0
    %7335 = vmatpush1.msra.mxu0 0.0
    %7336 = vmatprep.subr.mxu0 0.0
    %7337 = vmatpush1.msra.mxu0 0.0
    %7338 = vmatprep.subr.mxu0 0.0
    %7339 = vmatpush1.msra.mxu0 0.0
    %7340 = vmatprep.subr.mxu0 0.0
    %7341 = vmatpush1.msra.mxu0 0.0
    %7342 = vmatprep.subr.mxu0 0.0
    %7343 = vmatpush1.msra.mxu0 0.0
    %7344 = vmatprep.subr.mxu0 0.0
    %7345 = vmatpush1.msra.mxu0 0.0
    %7346 = vmatprep.subr.mxu0 0.0
    %7347 = vmatpush1.msra.mxu0 0.0
    %7348 = vmatprep.mubr.f32.mxu0 0.0
    %7349 = vmatmul.mubr.f32.gmra.mrb[0].mxu0 %v7282
    %v7350 = vpop.f32.mrb[0].mxu0
    %v7351 = vadd.f32 0.0, %v7350
    %v7352 = vpop.f32.mrb[0].mxu0
    %7353 = vdwg.mxu0
    %v7355 = vsel %vm2084, %v6914, 0
    %7357 = vmatprep.subr.mxu0 0.0
    %7358 = vmatpush1.msra.mxu0 %v6147
    %7359 = vmatprep.subr.mxu0 0.0
    %7360 = vmatpush1.msra.mxu0 0.0
    %7361 = vmatprep.subr.mxu0 0.0
    %7362 = vmatpush1.msra.mxu0 0.0
    %7363 = vmatprep.subr.mxu0 0.0
    %7364 = vmatpush1.msra.mxu0 0.0
    %7365 = vmatprep.subr.mxu0 0.0
    %7366 = vmatpush1.msra.mxu0 0.0
    %7367 = vmatprep.subr.mxu0 0.0
    %7368 = vmatpush1.msra.mxu0 0.0
    %7369 = vmatprep.subr.mxu0 0.0
    %7370 = vmatpush1.msra.mxu0 0.0
    %7371 = vmatprep.subr.mxu0 0.0
    %7372 = vmatpush1.msra.mxu0 0.0
    %7373 = vmatprep.subr.mxu0 0.0
    %7374 = vmatpush1.msra.mxu0 0.0
    %7375 = vmatprep.subr.mxu0 0.0
    %7376 = vmatpush1.msra.mxu0 0.0
    %7377 = vmatprep.subr.mxu0 0.0
    %7378 = vmatpush1.msra.mxu0 0.0
    %7379 = vmatprep.subr.mxu0 0.0
    %7380 = vmatpush1.msra.mxu0 0.0
    %7381 = vmatprep.subr.mxu0 0.0
    %7382 = vmatpush1.msra.mxu0 0.0
    %7383 = vmatprep.subr.mxu0 0.0
    %7384 = vmatpush1.msra.mxu0 0.0
    %7385 = vmatprep.subr.mxu0 0.0
    %7386 = vmatpush1.msra.mxu0 0.0
    %7387 = vmatprep.subr.mxu0 0.0
    %7388 = vmatpush1.msra.mxu0 0.0
    %7389 = vmatprep.subr.mxu0 0.0
    %7390 = vmatpush1.msra.mxu0 0.0
    %7391 = vmatprep.subr.mxu0 0.0
    %7392 = vmatpush1.msra.mxu0 0.0
    %7393 = vmatprep.subr.mxu0 0.0
    %7394 = vmatpush1.msra.mxu0 0.0
    %7395 = vmatprep.subr.mxu0 0.0
    %7396 = vmatpush1.msra.mxu0 0.0
    %7397 = vmatprep.subr.mxu0 0.0
    %7398 = vmatpush1.msra.mxu0 0.0
    %7399 = vmatprep.subr.mxu0 0.0
    %7400 = vmatpush1.msra.mxu0 0.0
    %7401 = vmatprep.subr.mxu0 0.0
    %7402 = vmatpush1.msra.mxu0 0.0
    %7403 = vmatprep.subr.mxu0 0.0
    %7404 = vmatpush1.msra.mxu0 0.0
    %7405 = vmatprep.subr.mxu0 0.0
    %7406 = vmatpush1.msra.mxu0 0.0
    %7407 = vmatprep.subr.mxu0 0.0
    %7408 = vmatpush1.msra.mxu0 0.0
    %7409 = vmatprep.subr.mxu0 0.0
    %7410 = vmatpush1.msra.mxu0 0.0
    %7411 = vmatprep.subr.mxu0 0.0
    %7412 = vmatpush1.msra.mxu0 0.0
    %7413 = vmatprep.subr.mxu0 0.0
    %7414 = vmatpush1.msra.mxu0 0.0
    %7415 = vmatprep.subr.mxu0 0.0
    %7416 = vmatpush1.msra.mxu0 0.0
    %7417 = vmatprep.subr.mxu0 0.0
    %7418 = vmatpush1.msra.mxu0 0.0
    %7419 = vmatprep.subr.mxu0 0.0
    %7420 = vmatpush1.msra.mxu0 0.0
    %7421 = vmatprep.mubr.f32.mxu0 0.0
    %7422 = vmatmul.mubr.f32.gmra.mrb[0].mxu0 %v7355
    %v7423 = vpop.f32.mrb[0].mxu0
    %v7424 = vadd.f32 0.0, %v7423
    %v7425 = vpop.f32.mrb[0].mxu0
    %7426 = vdwg.mxu0
    %v7428 = vsel %vm2084, %v6915, 0
    %7430 = vmatprep.subr.mxu0 0.0
    %7431 = vmatpush1.msra.mxu0 %v6217
    %7432 = vmatprep.subr.mxu0 0.0
    %7433 = vmatpush1.msra.mxu0 0.0
    %7434 = vmatprep.subr.mxu0 0.0
    %7435 = vmatpush1.msra.mxu0 0.0
    %7436 = vmatprep.subr.mxu0 0.0
    %7437 = vmatpush1.msra.mxu0 0.0
    %7438 = vmatprep.subr.mxu0 0.0
    %7439 = vmatpush1.msra.mxu0 0.0
    %7440 = vmatprep.subr.mxu0 0.0
    %7441 = vmatpush1.msra.mxu0 0.0
    %7442 = vmatprep.subr.mxu0 0.0
    %7443 = vmatpush1.msra.mxu0 0.0
    %7444 = vmatprep.subr.mxu0 0.0
    %7445 = vmatpush1.msra.mxu0 0.0
    %7446 = vmatprep.subr.mxu0 0.0
    %7447 = vmatpush1.msra.mxu0 0.0
    %7448 = vmatprep.subr.mxu0 0.0
    %7449 = vmatpush1.msra.mxu0 0.0
    %7450 = vmatprep.subr.mxu0 0.0
    %7451 = vmatpush1.msra.mxu0 0.0
    %7452 = vmatprep.subr.mxu0 0.0
    %7453 = vmatpush1.msra.mxu0 0.0
    %7454 = vmatprep.subr.mxu0 0.0
    %7455 = vmatpush1.msra.mxu0 0.0
    %7456 = vmatprep.subr.mxu0 0.0
    %7457 = vmatpush1.msra.mxu0 0.0
    %7458 = vmatprep.subr.mxu0 0.0
    %7459 = vmatpush1.msra.mxu0 0.0
    %7460 = vmatprep.subr.mxu0 0.0
    %7461 = vmatpush1.msra.mxu0 0.0
    %7462 = vmatprep.subr.mxu0 0.0
    %7463 = vmatpush1.msra.mxu0 0.0
    %7464 = vmatprep.subr.mxu0 0.0
    %7465 = vmatpush1.msra.mxu0 0.0
    %7466 = vmatprep.subr.mxu0 0.0
    %7467 = vmatpush1.msra.mxu0 0.0
    %7468 = vmatprep.subr.mxu0 0.0
    %7469 = vmatpush1.msra.mxu0 0.0
    %7470 = vmatprep.subr.mxu0 0.0
    %7471 = vmatpush1.msra.mxu0 0.0
    %7472 = vmatprep.subr.mxu0 0.0
    %7473 = vmatpush1.msra.mxu0 0.0
    %7474 = vmatprep.subr.mxu0 0.0
    %7475 = vmatpush1.msra.mxu0 0.0
    %7476 = vmatprep.subr.mxu0 0.0
    %7477 = vmatpush1.msra.mxu0 0.0
    %7478 = vmatprep.subr.mxu0 0.0
    %7479 = vmatpush1.msra.mxu0 0.0
    %7480 = vmatprep.subr.mxu0 0.0
    %7481 = vmatpush1.msra.mxu0 0.0
    %7482 = vmatprep.subr.mxu0 0.0
    %7483 = vmatpush1.msra.mxu0 0.0
    %7484 = vmatprep.subr.mxu0 0.0
    %7485 = vmatpush1.msra.mxu0 0.0
    %7486 = vmatprep.subr.mxu0 0.0
    %7487 = vmatpush1.msra.mxu0 0.0
    %7488 = vmatprep.subr.mxu0 0.0
    %7489 = vmatpush1.msra.mxu0 0.0
    %7490 = vmatprep.subr.mxu0 0.0
    %7491 = vmatpush1.msra.mxu0 0.0
    %7492 = vmatprep.subr.mxu0 0.0
    %7493 = vmatpush1.msra.mxu0 0.0
    %7494 = vmatprep.mubr.f32.mxu0 0.0
    %7495 = vmatmul.mubr.f32.gmra.mrb[0].mxu0 %v7428
    %v7496 = vpop.f32.mrb[0].mxu0
    %v7497 = vadd.f32 0.0, %v7496
    %v7498 = vpop.f32.mrb[0].mxu0
    %7499 = vdwg.mxu0
    %s7500 = scalar_lea.vmem %s8, 64
    %v7501 = vld [vmem:[%s7500] sm:$0xff]
    %v7502 = vld [vmem:[%s7500 + $0x8] sm:$0xff]
    %v7503 = vld [vmem:[%s7500 + $0x10] sm:$0xff]
    %v7504 = vld [vmem:[%s7500 + $0x18] sm:$0xff]
    %v7505 = vld [vmem:[%s7500 + $0x20] sm:$0xff]
    %v7506 = vld [vmem:[%s7500 + $0x28] sm:$0xff]
    %v7507 = vld [vmem:[%s7500 + $0x30] sm:$0xff]
    %v7508 = vld [vmem:[%s7500 + $0x38] sm:$0xff]
    %v7510 = vsel %vm2084, %v6986, 0
    %7512 = vmatprep.subr.mxu0 0.0
    %7513 = vmatpush1.msra.mxu0 %v7501
    %7514 = vmatprep.subr.mxu0 0.0
    %7515 = vmatpush1.msra.mxu0 0.0
    %7516 = vmatprep.subr.mxu0 0.0
    %7517 = vmatpush1.msra.mxu0 0.0
    %7518 = vmatprep.subr.mxu0 0.0
    %7519 = vmatpush1.msra.mxu0 0.0
    %7520 = vmatprep.subr.mxu0 0.0
    %7521 = vmatpush1.msra.mxu0 0.0
    %7522 = vmatprep.subr.mxu0 0.0
    %7523 = vmatpush1.msra.mxu0 0.0
    %7524 = vmatprep.subr.mxu0 0.0
    %7525 = vmatpush1.msra.mxu0 0.0
    %7526 = vmatprep.subr.mxu0 0.0
    %7527 = vmatpush1.msra.mxu0 0.0
    %7528 = vmatprep.subr.mxu0 0.0
    %7529 = vmatpush1.msra.mxu0 0.0
    %7530 = vmatprep.subr.mxu0 0.0
    %7531 = vmatpush1.msra.mxu0 0.0
    %7532 = vmatprep.subr.mxu0 0.0
    %7533 = vmatpush1.msra.mxu0 0.0
    %7534 = vmatprep.subr.mxu0 0.0
    %7535 = vmatpush1.msra.mxu0 0.0
    %7536 = vmatprep.subr.mxu0 0.0
    %7537 = vmatpush1.msra.mxu0 0.0
    %7538 = vmatprep.subr.mxu0 0.0
    %7539 = vmatpush1.msra.mxu0 0.0
    %7540 = vmatprep.subr.mxu0 0.0
    %7541 = vmatpush1.msra.mxu0 0.0
    %7542 = vmatprep.subr.mxu0 0.0
    %7543 = vmatpush1.msra.mxu0 0.0
    %7544 = vmatprep.subr.mxu0 0.0
    %7545 = vmatpush1.msra.mxu0 0.0
    %7546 = vmatprep.subr.mxu0 0.0
    %7547 = vmatpush1.msra.mxu0 0.0
    %7548 = vmatprep.subr.mxu0 0.0
    %7549 = vmatpush1.msra.mxu0 0.0
    %7550 = vmatprep.subr.mxu0 0.0
    %7551 = vmatpush1.msra.mxu0 0.0
    %7552 = vmatprep.subr.mxu0 0.0
    %7553 = vmatpush1.msra.mxu0 0.0
    %7554 = vmatprep.subr.mxu0 0.0
    %7555 = vmatpush1.msra.mxu0 0.0
    %7556 = vmatprep.subr.mxu0 0.0
    %7557 = vmatpush1.msra.mxu0 0.0
    %7558 = vmatprep.subr.mxu0 0.0
    %7559 = vmatpush1.msra.mxu0 0.0
    %7560 = vmatprep.subr.mxu0 0.0
    %7561 = vmatpush1.msra.mxu0 0.0
    %7562 = vmatprep.subr.mxu0 0.0
    %7563 = vmatpush1.msra.mxu0 0.0
    %7564 = vmatprep.subr.mxu0 0.0
    %7565 = vmatpush1.msra.mxu0 0.0
    %7566 = vmatprep.subr.mxu0 0.0
    %7567 = vmatpush1.msra.mxu0 0.0
    %7568 = vmatprep.subr.mxu0 0.0
    %7569 = vmatpush1.msra.mxu0 0.0
    %7570 = vmatprep.subr.mxu0 0.0
    %7571 = vmatpush1.msra.mxu0 0.0
    %7572 = vmatprep.subr.mxu0 0.0
    %7573 = vmatpush1.msra.mxu0 0.0
    %7574 = vmatprep.subr.mxu0 0.0
    %7575 = vmatpush1.msra.mxu0 0.0
    %7576 = vmatprep.mubr.f32.mxu0 0.0
    %7577 = vmatmul.mubr.f32.gmra.mrb[0].mxu0 %v7510
    %v7578 = vpop.f32.mrb[0].mxu0
    %v7579 = vadd.f32 0.0, %v7578
    %v7580 = vpop.f32.mrb[0].mxu0
    %7581 = vdwg.mxu0
    %v7583 = vsel %vm2084, %v7059, 0
    %7585 = vmatprep.subr.mxu0 0.0
    %7586 = vmatpush1.msra.mxu0 %v7502
    %7587 = vmatprep.subr.mxu0 0.0
    %7588 = vmatpush1.msra.mxu0 0.0
    %7589 = vmatprep.subr.mxu0 0.0
    %7590 = vmatpush1.msra.mxu0 0.0
    %7591 = vmatprep.subr.mxu0 0.0
    %7592 = vmatpush1.msra.mxu0 0.0
    %7593 = vmatprep.subr.mxu0 0.0
    %7594 = vmatpush1.msra.mxu0 0.0
    %7595 = vmatprep.subr.mxu0 0.0
    %7596 = vmatpush1.msra.mxu0 0.0
    %7597 = vmatprep.subr.mxu0 0.0
    %7598 = vmatpush1.msra.mxu0 0.0
    %7599 = vmatprep.subr.mxu0 0.0
    %7600 = vmatpush1.msra.mxu0 0.0
    %7601 = vmatprep.subr.mxu0 0.0
    %7602 = vmatpush1.msra.mxu0 0.0
    %7603 = vmatprep.subr.mxu0 0.0
    %7604 = vmatpush1.msra.mxu0 0.0
    %7605 = vmatprep.subr.mxu0 0.0
    %7606 = vmatpush1.msra.mxu0 0.0
    %7607 = vmatprep.subr.mxu0 0.0
    %7608 = vmatpush1.msra.mxu0 0.0
    %7609 = vmatprep.subr.mxu0 0.0
    %7610 = vmatpush1.msra.mxu0 0.0
    %7611 = vmatprep.subr.mxu0 0.0
    %7612 = vmatpush1.msra.mxu0 0.0
    %7613 = vmatprep.subr.mxu0 0.0
    %7614 = vmatpush1.msra.mxu0 0.0
    %7615 = vmatprep.subr.mxu0 0.0
    %7616 = vmatpush1.msra.mxu0 0.0
    %7617 = vmatprep.subr.mxu0 0.0
    %7618 = vmatpush1.msra.mxu0 0.0
    %7619 = vmatprep.subr.mxu0 0.0
    %7620 = vmatpush1.msra.mxu0 0.0
    %7621 = vmatprep.subr.mxu0 0.0
    %7622 = vmatpush1.msra.mxu0 0.0
    %7623 = vmatprep.subr.mxu0 0.0
    %7624 = vmatpush1.msra.mxu0 0.0
    %7625 = vmatprep.subr.mxu0 0.0
    %7626 = vmatpush1.msra.mxu0 0.0
    %7627 = vmatprep.subr.mxu0 0.0
    %7628 = vmatpush1.msra.mxu0 0.0
    %7629 = vmatprep.subr.mxu0 0.0
    %7630 = vmatpush1.msra.mxu0 0.0
    %7631 = vmatprep.subr.mxu0 0.0
    %7632 = vmatpush1.msra.mxu0 0.0
    %7633 = vmatprep.subr.mxu0 0.0
    %7634 = vmatpush1.msra.mxu0 0.0
    %7635 = vmatprep.subr.mxu0 0.0
    %7636 = vmatpush1.msra.mxu0 0.0
    %7637 = vmatprep.subr.mxu0 0.0
    %7638 = vmatpush1.msra.mxu0 0.0
    %7639 = vmatprep.subr.mxu0 0.0
    %7640 = vmatpush1.msra.mxu0 0.0
    %7641 = vmatprep.subr.mxu0 0.0
    %7642 = vmatpush1.msra.mxu0 0.0
    %7643 = vmatprep.subr.mxu0 0.0
    %7644 = vmatpush1.msra.mxu0 0.0
    %7645 = vmatprep.subr.mxu0 0.0
    %7646 = vmatpush1.msra.mxu0 0.0
    %7647 = vmatprep.subr.mxu0 0.0
    %7648 = vmatpush1.msra.mxu0 0.0
    %7649 = vmatprep.mubr.f32.mxu0 0.0
    %7650 = vmatmul.mubr.f32.gmra.mrb[0].mxu0 %v7583
    %v7651 = vpop.f32.mrb[0].mxu0
    %v7652 = vadd.f32 0.0, %v7651
    %v7653 = vpop.f32.mrb[0].mxu0
    %7654 = vdwg.mxu0
    %v7656 = vsel %vm2084, %v7132, 0
    %7658 = vmatprep.subr.mxu0 0.0
    %7659 = vmatpush1.msra.mxu0 %v7503
    %7660 = vmatprep.subr.mxu0 0.0
    %7661 = vmatpush1.msra.mxu0 0.0
    %7662 = vmatprep.subr.mxu0 0.0
    %7663 = vmatpush1.msra.mxu0 0.0
    %7664 = vmatprep.subr.mxu0 0.0
    %7665 = vmatpush1.msra.mxu0 0.0
    %7666 = vmatprep.subr.mxu0 0.0
    %7667 = vmatpush1.msra.mxu0 0.0
    %7668 = vmatprep.subr.mxu0 0.0
    %7669 = vmatpush1.msra.mxu0 0.0
    %7670 = vmatprep.subr.mxu0 0.0
    %7671 = vmatpush1.msra.mxu0 0.0
    %7672 = vmatprep.subr.mxu0 0.0
    %7673 = vmatpush1.msra.mxu0 0.0
    %7674 = vmatprep.subr.mxu0 0.0
    %7675 = vmatpush1.msra.mxu0 0.0
    %7676 = vmatprep.subr.mxu0 0.0
    %7677 = vmatpush1.msra.mxu0 0.0
    %7678 = vmatprep.subr.mxu0 0.0
    %7679 = vmatpush1.msra.mxu0 0.0
    %7680 = vmatprep.subr.mxu0 0.0
    %7681 = vmatpush1.msra.mxu0 0.0
    %7682 = vmatprep.subr.mxu0 0.0
    %7683 = vmatpush1.msra.mxu0 0.0
    %7684 = vmatprep.subr.mxu0 0.0
    %7685 = vmatpush1.msra.mxu0 0.0
    %7686 = vmatprep.subr.mxu0 0.0
    %7687 = vmatpush1.msra.mxu0 0.0
    %7688 = vmatprep.subr.mxu0 0.0
    %7689 = vmatpush1.msra.mxu0 0.0
    %7690 = vmatprep.subr.mxu0 0.0
    %7691 = vmatpush1.msra.mxu0 0.0
    %7692 = vmatprep.subr.mxu0 0.0
    %7693 = vmatpush1.msra.mxu0 0.0
    %7694 = vmatprep.subr.mxu0 0.0
    %7695 = vmatpush1.msra.mxu0 0.0
    %7696 = vmatprep.subr.mxu0 0.0
    %7697 = vmatpush1.msra.mxu0 0.0
    %7698 = vmatprep.subr.mxu0 0.0
    %7699 = vmatpush1.msra.mxu0 0.0
    %7700 = vmatprep.subr.mxu0 0.0
    %7701 = vmatpush1.msra.mxu0 0.0
    %7702 = vmatprep.subr.mxu0 0.0
    %7703 = vmatpush1.msra.mxu0 0.0
    %7704 = vmatprep.subr.mxu0 0.0
    %7705 = vmatpush1.msra.mxu0 0.0
    %7706 = vmatprep.subr.mxu0 0.0
    %7707 = vmatpush1.msra.mxu0 0.0
    %7708 = vmatprep.subr.mxu0 0.0
    %7709 = vmatpush1.msra.mxu0 0.0
    %7710 = vmatprep.subr.mxu0 0.0
    %7711 = vmatpush1.msra.mxu0 0.0
    %7712 = vmatprep.subr.mxu0 0.0
    %7713 = vmatpush1.msra.mxu0 0.0
    %7714 = vmatprep.subr.mxu0 0.0
    %7715 = vmatpush1.msra.mxu0 0.0
    %7716 = vmatprep.subr.mxu0 0.0
    %7717 = vmatpush1.msra.mxu0 0.0
    %7718 = vmatprep.subr.mxu0 0.0
    %7719 = vmatpush1.msra.mxu0 0.0
    %7720 = vmatprep.subr.mxu0 0.0
    %7721 = vmatpush1.msra.mxu0 0.0
    %7722 = vmatprep.mubr.f32.mxu0 0.0
    %7723 = vmatmul.mubr.f32.gmra.mrb[0].mxu0 %v7656
    %v7724 = vpop.f32.mrb[0].mxu0
    %v7725 = vadd.f32 0.0, %v7724
    %v7726 = vpop.f32.mrb[0].mxu0
    %7727 = vdwg.mxu0
    %v7729 = vsel %vm2084, %v7205, 0
    %7731 = vmatprep.subr.mxu0 0.0
    %7732 = vmatpush1.msra.mxu0 %v7504
    %7733 = vmatprep.subr.mxu0 0.0
    %7734 = vmatpush1.msra.mxu0 0.0
    %7735 = vmatprep.subr.mxu0 0.0
    %7736 = vmatpush1.msra.mxu0 0.0
    %7737 = vmatprep.subr.mxu0 0.0
    %7738 = vmatpush1.msra.mxu0 0.0
    %7739 = vmatprep.subr.mxu0 0.0
    %7740 = vmatpush1.msra.mxu0 0.0
    %7741 = vmatprep.subr.mxu0 0.0
    %7742 = vmatpush1.msra.mxu0 0.0
    %7743 = vmatprep.subr.mxu0 0.0
    %7744 = vmatpush1.msra.mxu0 0.0
    %7745 = vmatprep.subr.mxu0 0.0
    %7746 = vmatpush1.msra.mxu0 0.0
    %7747 = vmatprep.subr.mxu0 0.0
    %7748 = vmatpush1.msra.mxu0 0.0
    %7749 = vmatprep.subr.mxu0 0.0
    %7750 = vmatpush1.msra.mxu0 0.0
    %7751 = vmatprep.subr.mxu0 0.0
    %7752 = vmatpush1.msra.mxu0 0.0
    %7753 = vmatprep.subr.mxu0 0.0
    %7754 = vmatpush1.msra.mxu0 0.0
    %7755 = vmatprep.subr.mxu0 0.0
    %7756 = vmatpush1.msra.mxu0 0.0
    %7757 = vmatprep.subr.mxu0 0.0
    %7758 = vmatpush1.msra.mxu0 0.0
    %7759 = vmatprep.subr.mxu0 0.0
    %7760 = vmatpush1.msra.mxu0 0.0
    %7761 = vmatprep.subr.mxu0 0.0
    %7762 = vmatpush1.msra.mxu0 0.0
    %7763 = vmatprep.subr.mxu0 0.0
    %7764 = vmatpush1.msra.mxu0 0.0
    %7765 = vmatprep.subr.mxu0 0.0
    %7766 = vmatpush1.msra.mxu0 0.0
    %7767 = vmatprep.subr.mxu0 0.0
    %7768 = vmatpush1.msra.mxu0 0.0
    %7769 = vmatprep.subr.mxu0 0.0
    %7770 = vmatpush1.msra.mxu0 0.0
    %7771 = vmatprep.subr.mxu0 0.0
    %7772 = vmatpush1.msra.mxu0 0.0
    %7773 = vmatprep.subr.mxu0 0.0
    %7774 = vmatpush1.msra.mxu0 0.0
    %7775 = vmatprep.subr.mxu0 0.0
    %7776 = vmatpush1.msra.mxu0 0.0
    %7777 = vmatprep.subr.mxu0 0.0
    %7778 = vmatpush1.msra.mxu0 0.0
    %7779 = vmatprep.subr.mxu0 0.0
    %7780 = vmatpush1.msra.mxu0 0.0
    %7781 = vmatprep.subr.mxu0 0.0
    %7782 = vmatpush1.msra.mxu0 0.0
    %7783 = vmatprep.subr.mxu0 0.0
    %7784 = vmatpush1.msra.mxu0 0.0
    %7785 = vmatprep.subr.mxu0 0.0
    %7786 = vmatpush1.msra.mxu0 0.0
    %7787 = vmatprep.subr.mxu0 0.0
    %7788 = vmatpush1.msra.mxu0 0.0
    %7789 = vmatprep.subr.mxu0 0.0
    %7790 = vmatpush1.msra.mxu0 0.0
    %7791 = vmatprep.subr.mxu0 0.0
    %7792 = vmatpush1.msra.mxu0 0.0
    %7793 = vmatprep.subr.mxu0 0.0
    %7794 = vmatpush1.msra.mxu0 0.0
    %7795 = vmatprep.mubr.f32.mxu0 0.0
    %7796 = vmatmul.mubr.f32.gmra.mrb[0].mxu0 %v7729
    %v7797 = vpop.f32.mrb[0].mxu0
    %v7798 = vadd.f32 0.0, %v7797
    %v7799 = vpop.f32.mrb[0].mxu0
    %7800 = vdwg.mxu0
    %v7802 = vsel %vm2084, %v7278, 0
    %7804 = vmatprep.subr.mxu0 0.0
    %7805 = vmatpush1.msra.mxu0 %v7505
    %7806 = vmatprep.subr.mxu0 0.0
    %7807 = vmatpush1.msra.mxu0 0.0
    %7808 = vmatprep.subr.mxu0 0.0
    %7809 = vmatpush1.msra.mxu0 0.0
    %7810 = vmatprep.subr.mxu0 0.0
    %7811 = vmatpush1.msra.mxu0 0.0
    %7812 = vmatprep.subr.mxu0 0.0
    %7813 = vmatpush1.msra.mxu0 0.0
    %7814 = vmatprep.subr.mxu0 0.0
    %7815 = vmatpush1.msra.mxu0 0.0
    %7816 = vmatprep.subr.mxu0 0.0
    %7817 = vmatpush1.msra.mxu0 0.0
    %7818 = vmatprep.subr.mxu0 0.0
    %7819 = vmatpush1.msra.mxu0 0.0
    %7820 = vmatprep.subr.mxu0 0.0
    %7821 = vmatpush1.msra.mxu0 0.0
    %7822 = vmatprep.subr.mxu0 0.0
    %7823 = vmatpush1.msra.mxu0 0.0
    %7824 = vmatprep.subr.mxu0 0.0
    %7825 = vmatpush1.msra.mxu0 0.0
    %7826 = vmatprep.subr.mxu0 0.0
    %7827 = vmatpush1.msra.mxu0 0.0
    %7828 = vmatprep.subr.mxu0 0.0
    %7829 = vmatpush1.msra.mxu0 0.0
    %7830 = vmatprep.subr.mxu0 0.0
    %7831 = vmatpush1.msra.mxu0 0.0
    %7832 = vmatprep.subr.mxu0 0.0
    %7833 = vmatpush1.msra.mxu0 0.0
    %7834 = vmatprep.subr.mxu0 0.0
    %7835 = vmatpush1.msra.mxu0 0.0
    %7836 = vmatprep.subr.mxu0 0.0
    %7837 = vmatpush1.msra.mxu0 0.0
    %7838 = vmatprep.subr.mxu0 0.0
    %7839 = vmatpush1.msra.mxu0 0.0
    %7840 = vmatprep.subr.mxu0 0.0
    %7841 = vmatpush1.msra.mxu0 0.0
    %7842 = vmatprep.subr.mxu0 0.0
    %7843 = vmatpush1.msra.mxu0 0.0
    %7844 = vmatprep.subr.mxu0 0.0
    %7845 = vmatpush1.msra.mxu0 0.0
    %7846 = vmatprep.subr.mxu0 0.0
    %7847 = vmatpush1.msra.mxu0 0.0
    %7848 = vmatprep.subr.mxu0 0.0
    %7849 = vmatpush1.msra.mxu0 0.0
    %7850 = vmatprep.subr.mxu0 0.0
    %7851 = vmatpush1.msra.mxu0 0.0
    %7852 = vmatprep.subr.mxu0 0.0
    %7853 = vmatpush1.msra.mxu0 0.0
    %7854 = vmatprep.subr.mxu0 0.0
    %7855 = vmatpush1.msra.mxu0 0.0
    %7856 = vmatprep.subr.mxu0 0.0
    %7857 = vmatpush1.msra.mxu0 0.0
    %7858 = vmatprep.subr.mxu0 0.0
    %7859 = vmatpush1.msra.mxu0 0.0
    %7860 = vmatprep.subr.mxu0 0.0
    %7861 = vmatpush1.msra.mxu0 0.0
    %7862 = vmatprep.subr.mxu0 0.0
    %7863 = vmatpush1.msra.mxu0 0.0
    %7864 = vmatprep.subr.mxu0 0.0
    %7865 = vmatpush1.msra.mxu0 0.0
    %7866 = vmatprep.subr.mxu0 0.0
    %7867 = vmatpush1.msra.mxu0 0.0
    %7868 = vmatprep.mubr.f32.mxu0 0.0
    %7869 = vmatmul.mubr.f32.gmra.mrb[0].mxu0 %v7802
    %v7870 = vpop.f32.mrb[0].mxu0
    %v7871 = vadd.f32 0.0, %v7870
    %v7872 = vpop.f32.mrb[0].mxu0
    %7873 = vdwg.mxu0
    %v7875 = vsel %vm2084, %v7351, 0
    %7877 = vmatprep.subr.mxu0 0.0
    %7878 = vmatpush1.msra.mxu0 %v7506
    %7879 = vmatprep.subr.mxu0 0.0
    %7880 = vmatpush1.msra.mxu0 0.0
    %7881 = vmatprep.subr.mxu0 0.0
    %7882 = vmatpush1.msra.mxu0 0.0
    %7883 = vmatprep.subr.mxu0 0.0
    %7884 = vmatpush1.msra.mxu0 0.0
    %7885 = vmatprep.subr.mxu0 0.0
    %7886 = vmatpush1.msra.mxu0 0.0
    %7887 = vmatprep.subr.mxu0 0.0
    %7888 = vmatpush1.msra.mxu0 0.0
    %7889 = vmatprep.subr.mxu0 0.0
    %7890 = vmatpush1.msra.mxu0 0.0
    %7891 = vmatprep.subr.mxu0 0.0
    %7892 = vmatpush1.msra.mxu0 0.0
    %7893 = vmatprep.subr.mxu0 0.0
    %7894 = vmatpush1.msra.mxu0 0.0
    %7895 = vmatprep.subr.mxu0 0.0
    %7896 = vmatpush1.msra.mxu0 0.0
    %7897 = vmatprep.subr.mxu0 0.0
    %7898 = vmatpush1.msra.mxu0 0.0
    %7899 = vmatprep.subr.mxu0 0.0
    %7900 = vmatpush1.msra.mxu0 0.0
    %7901 = vmatprep.subr.mxu0 0.0
    %7902 = vmatpush1.msra.mxu0 0.0
    %7903 = vmatprep.subr.mxu0 0.0
    %7904 = vmatpush1.msra.mxu0 0.0
    %7905 = vmatprep.subr.mxu0 0.0
    %7906 = vmatpush1.msra.mxu0 0.0
    %7907 = vmatprep.subr.mxu0 0.0
    %7908 = vmatpush1.msra.mxu0 0.0
    %7909 = vmatprep.subr.mxu0 0.0
    %7910 = vmatpush1.msra.mxu0 0.0
    %7911 = vmatprep.subr.mxu0 0.0
    %7912 = vmatpush1.msra.mxu0 0.0
    %7913 = vmatprep.subr.mxu0 0.0
    %7914 = vmatpush1.msra.mxu0 0.0
    %7915 = vmatprep.subr.mxu0 0.0
    %7916 = vmatpush1.msra.mxu0 0.0
    %7917 = vmatprep.subr.mxu0 0.0
    %7918 = vmatpush1.msra.mxu0 0.0
    %7919 = vmatprep.subr.mxu0 0.0
    %7920 = vmatpush1.msra.mxu0 0.0
    %7921 = vmatprep.subr.mxu0 0.0
    %7922 = vmatpush1.msra.mxu0 0.0
    %7923 = vmatprep.subr.mxu0 0.0
    %7924 = vmatpush1.msra.mxu0 0.0
    %7925 = vmatprep.subr.mxu0 0.0
    %7926 = vmatpush1.msra.mxu0 0.0
    %7927 = vmatprep.subr.mxu0 0.0
    %7928 = vmatpush1.msra.mxu0 0.0
    %7929 = vmatprep.subr.mxu0 0.0
    %7930 = vmatpush1.msra.mxu0 0.0
    %7931 = vmatprep.subr.mxu0 0.0
    %7932 = vmatpush1.msra.mxu0 0.0
    %7933 = vmatprep.subr.mxu0 0.0
    %7934 = vmatpush1.msra.mxu0 0.0
    %7935 = vmatprep.subr.mxu0 0.0
    %7936 = vmatpush1.msra.mxu0 0.0
    %7937 = vmatprep.subr.mxu0 0.0
    %7938 = vmatpush1.msra.mxu0 0.0
    %7939 = vmatprep.subr.mxu0 0.0
    %7940 = vmatpush1.msra.mxu0 0.0
    %7941 = vmatprep.mubr.f32.mxu0 0.0
    %7942 = vmatmul.mubr.f32.gmra.mrb[0].mxu0 %v7875
    %v7943 = vpop.f32.mrb[0].mxu0
    %v7944 = vadd.f32 0.0, %v7943
    %v7945 = vpop.f32.mrb[0].mxu0
    %7946 = vdwg.mxu0
    %v7948 = vsel %vm2084, %v7424, 0
    %7950 = vmatprep.subr.mxu0 0.0
    %7951 = vmatpush1.msra.mxu0 %v7507
    %7952 = vmatprep.subr.mxu0 0.0
    %7953 = vmatpush1.msra.mxu0 0.0
    %7954 = vmatprep.subr.mxu0 0.0
    %7955 = vmatpush1.msra.mxu0 0.0
    %7956 = vmatprep.subr.mxu0 0.0
    %7957 = vmatpush1.msra.mxu0 0.0
    %7958 = vmatprep.subr.mxu0 0.0
    %7959 = vmatpush1.msra.mxu0 0.0
    %7960 = vmatprep.subr.mxu0 0.0
    %7961 = vmatpush1.msra.mxu0 0.0
    %7962 = vmatprep.subr.mxu0 0.0
    %7963 = vmatpush1.msra.mxu0 0.0
    %7964 = vmatprep.subr.mxu0 0.0
    %7965 = vmatpush1.msra.mxu0 0.0
    %7966 = vmatprep.subr.mxu0 0.0
    %7967 = vmatpush1.msra.mxu0 0.0
    %7968 = vmatprep.subr.mxu0 0.0
    %7969 = vmatpush1.msra.mxu0 0.0
    %7970 = vmatprep.subr.mxu0 0.0
    %7971 = vmatpush1.msra.mxu0 0.0
    %7972 = vmatprep.subr.mxu0 0.0
    %7973 = vmatpush1.msra.mxu0 0.0
    %7974 = vmatprep.subr.mxu0 0.0
    %7975 = vmatpush1.msra.mxu0 0.0
    %7976 = vmatprep.subr.mxu0 0.0
    %7977 = vmatpush1.msra.mxu0 0.0
    %7978 = vmatprep.subr.mxu0 0.0
    %7979 = vmatpush1.msra.mxu0 0.0
    %7980 = vmatprep.subr.mxu0 0.0
    %7981 = vmatpush1.msra.mxu0 0.0
    %7982 = vmatprep.subr.mxu0 0.0
    %7983 = vmatpush1.msra.mxu0 0.0
    %7984 = vmatprep.subr.mxu0 0.0
    %7985 = vmatpush1.msra.mxu0 0.0
    %7986 = vmatprep.subr.mxu0 0.0
    %7987 = vmatpush1.msra.mxu0 0.0
    %7988 = vmatprep.subr.mxu0 0.0
    %7989 = vmatpush1.msra.mxu0 0.0
    %7990 = vmatprep.subr.mxu0 0.0
    %7991 = vmatpush1.msra.mxu0 0.0
    %7992 = vmatprep.subr.mxu0 0.0
    %7993 = vmatpush1.msra.mxu0 0.0
    %7994 = vmatprep.subr.mxu0 0.0
    %7995 = vmatpush1.msra.mxu0 0.0
    %7996 = vmatprep.subr.mxu0 0.0
    %7997 = vmatpush1.msra.mxu0 0.0
    %7998 = vmatprep.subr.mxu0 0.0
    %7999 = vmatpush1.msra.mxu0 0.0
    %8000 = vmatprep.subr.mxu0 0.0
    %8001 = vmatpush1.msra.mxu0 0.0
    %8002 = vmatprep.subr.mxu0 0.0
    %8003 = vmatpush1.msra.mxu0 0.0
    %8004 = vmatprep.subr.mxu0 0.0
    %8005 = vmatpush1.msra.mxu0 0.0
    %8006 = vmatprep.subr.mxu0 0.0
    %8007 = vmatpush1.msra.mxu0 0.0
    %8008 = vmatprep.subr.mxu0 0.0
    %8009 = vmatpush1.msra.mxu0 0.0
    %8010 = vmatprep.subr.mxu0 0.0
    %8011 = vmatpush1.msra.mxu0 0.0
    %8012 = vmatprep.subr.mxu0 0.0
    %8013 = vmatpush1.msra.mxu0 0.0
    %8014 = vmatprep.mubr.f32.mxu0 0.0
    %8015 = vmatmul.mubr.f32.gmra.mrb[0].mxu0 %v7948
    %v8016 = vpop.f32.mrb[0].mxu0
    %v8017 = vadd.f32 0.0, %v8016
    %v8018 = vpop.f32.mrb[0].mxu0
    %8019 = vdwg.mxu0
    %v8021 = vsel %vm2084, %v7497, 0
    %8023 = vmatprep.subr.mxu0 0.0
    %8024 = vmatpush1.msra.mxu0 %v7508
    %8025 = vmatprep.subr.mxu0 0.0
    %8026 = vmatpush1.msra.mxu0 0.0
    %8027 = vmatprep.subr.mxu0 0.0
    %8028 = vmatpush1.msra.mxu0 0.0
    %8029 = vmatprep.subr.mxu0 0.0
    %8030 = vmatpush1.msra.mxu0 0.0
    %8031 = vmatprep.subr.mxu0 0.0
    %8032 = vmatpush1.msra.mxu0 0.0
    %8033 = vmatprep.subr.mxu0 0.0
    %8034 = vmatpush1.msra.mxu0 0.0
    %8035 = vmatprep.subr.mxu0 0.0
    %8036 = vmatpush1.msra.mxu0 0.0
    %8037 = vmatprep.subr.mxu0 0.0
    %8038 = vmatpush1.msra.mxu0 0.0
    %8039 = vmatprep.subr.mxu0 0.0
    %8040 = vmatpush1.msra.mxu0 0.0
    %8041 = vmatprep.subr.mxu0 0.0
    %8042 = vmatpush1.msra.mxu0 0.0
    %8043 = vmatprep.subr.mxu0 0.0
    %8044 = vmatpush1.msra.mxu0 0.0
    %8045 = vmatprep.subr.mxu0 0.0
    %8046 = vmatpush1.msra.mxu0 0.0
    %8047 = vmatprep.subr.mxu0 0.0
    %8048 = vmatpush1.msra.mxu0 0.0
    %8049 = vmatprep.subr.mxu0 0.0
    %8050 = vmatpush1.msra.mxu0 0.0
    %8051 = vmatprep.subr.mxu0 0.0
    %8052 = vmatpush1.msra.mxu0 0.0
    %8053 = vmatprep.subr.mxu0 0.0
    %8054 = vmatpush1.msra.mxu0 0.0
    %8055 = vmatprep.subr.mxu0 0.0
    %8056 = vmatpush1.msra.mxu0 0.0
    %8057 = vmatprep.subr.mxu0 0.0
    %8058 = vmatpush1.msra.mxu0 0.0
    %8059 = vmatprep.subr.mxu0 0.0
    %8060 = vmatpush1.msra.mxu0 0.0
    %8061 = vmatprep.subr.mxu0 0.0
    %8062 = vmatpush1.msra.mxu0 0.0
    %8063 = vmatprep.subr.mxu0 0.0
    %8064 = vmatpush1.msra.mxu0 0.0
    %8065 = vmatprep.subr.mxu0 0.0
    %8066 = vmatpush1.msra.mxu0 0.0
    %8067 = vmatprep.subr.mxu0 0.0
    %8068 = vmatpush1.msra.mxu0 0.0
    %8069 = vmatprep.subr.mxu0 0.0
    %8070 = vmatpush1.msra.mxu0 0.0
    %8071 = vmatprep.subr.mxu0 0.0
    %8072 = vmatpush1.msra.mxu0 0.0
    %8073 = vmatprep.subr.mxu0 0.0
    %8074 = vmatpush1.msra.mxu0 0.0
    %8075 = vmatprep.subr.mxu0 0.0
    %8076 = vmatpush1.msra.mxu0 0.0
    %8077 = vmatprep.subr.mxu0 0.0
    %8078 = vmatpush1.msra.mxu0 0.0
    %8079 = vmatprep.subr.mxu0 0.0
    %8080 = vmatpush1.msra.mxu0 0.0
    %8081 = vmatprep.subr.mxu0 0.0
    %8082 = vmatpush1.msra.mxu0 0.0
    %8083 = vmatprep.subr.mxu0 0.0
    %8084 = vmatpush1.msra.mxu0 0.0
    %8085 = vmatprep.subr.mxu0 0.0
    %8086 = vmatpush1.msra.mxu0 0.0
    %8087 = vmatprep.mubr.f32.mxu0 0.0
    %8088 = vmatmul.mubr.f32.gmra.mrb[0].mxu0 %v8021
    %v8089 = vpop.f32.mrb[0].mxu0
    %v8090 = vadd.f32 0.0, %v8089
    %v8091 = vpop.f32.mrb[0].mxu0
    %8092 = vdwg.mxu0
    %v8093 = vsel %vm173, %v7579, 0.0
    %v8094 = vsel %vm173, %v7652, 0.0
    %v8095 = vadd.f32 %v8093, %v8094
    %v8096 = vsel %vm173, %v7725, 0.0
    %v8097 = vadd.f32 %v8095, %v8096
    %v8098 = vsel %vm173, %v7798, 0.0
    %v8099 = vadd.f32 %v8097, %v8098
    %v8100 = vsel %vm173, %v7871, 0.0
    %v8101 = vsel %vm173, %v7944, 0.0
    %v8102 = vadd.f32 %v8100, %v8101
    %v8103 = vsel %vm173, %v8017, 0.0
    %v8104 = vadd.f32 %v8102, %v8103
    %v8105 = vsel %vm173, %v8090, 0.0
    %v8106 = vadd.f32 %v8104, %v8105
    %s8107 = scalar_lea.vmem %s9, 1
    %v8108 = vld [vmem:[%s8107] sm:$0x1]
    %v8110 = vlaneseq
    %v8111 = vshrl.u32 %v8110, 7
    %v8112 = vsub.s32 0, %v8111
    %v8113 = vrot.slane %v8108, %v8112
    %v8115 = vadd.f32 %v8099, %v8113
    %v8116 = vadd.f32 %v8106, %v8113
    %v8117 = vadd.f32 %v4262, %v8115
    %v8118 = vadd.f32 %v4263, %v8116
    %s8119 = scalar_lea.vmem %s14, 1
    %v8120 = vld [vmem:[%s8119] sm:$0x1]
    %s8121 = scalar_lea.vmem %s15, 1
    %v8122 = vld [vmem:[%s8121] sm:$0x1]
    %v8123 = vsel %vm173, %v8117, 0.0
    %8124 = vadd.xlane.f32.xlu0 %v8123
    %v8125 = vpop.xlane.xlu0 %8124
    %v8126 = vsel %vm173, %v8118, 0.0
    %8127 = vadd.xlane.f32.xlu0 %v8126
    %v8128 = vpop.xlane.xlu0 %8127
    %v8129 = vmul.f32 %v8125, %v3990
    %v8130 = vmul.f32 %v8128, %v3990
    %v8131 = vsub.f32 %v8117, %v8129
    %v8132 = vsub.f32 %v8118, %v8130
    %v8133 = vmul.f32 %v8131, %v8131
    %v8134 = vmul.f32 %v8132, %v8132
    %v8135 = vsel %vm173, %v8133, 0.0
    %8136 = vadd.xlane.f32.xlu0 %v8135
    %v8137 = vpop.xlane.xlu0 %8136
    %v8138 = vsel %vm173, %v8134, 0.0
    %8139 = vadd.xlane.f32.xlu0 %v8138
    %v8140 = vpop.xlane.xlu0 %8139
    %v8141 = vmul.f32 %v8137, %v3990
    %v8142 = vmul.f32 %v8140, %v3990
    %v8143 = vadd.f32 %v8141, 1e-05
    %v8144 = vadd.f32 %v8142, 1e-05
    %v8145 = vrsqrt.pop %v8143
    %v8146 = vrsqrt.pop %v8144
    %v8147 = vmul.f32 %v8131, %v8145
    %v8148 = vmul.f32 %v8132, %v8146
    %v8150 = vlaneseq
    %v8151 = vshrl.u32 %v8150, 7
    %v8152 = vsub.s32 0, %v8151
    %v8153 = vrot.slane %v8120, %v8152
    %v8155 = vmul.f32 %v8147, %v8153
    %v8156 = vmul.f32 %v8148, %v8153
    %v8158 = vlaneseq
    %v8159 = vshrl.u32 %v8158, 7
    %v8160 = vsub.s32 0, %v8159
    %v8161 = vrot.slane %v8122, %v8160
    %v8163 = vadd.f32 %v8155, %v8161
    %v8164 = vadd.f32 %v8156, %v8161
    %s8165 = scalar_lea.vmem %s10, 32
    %v8166 = vld [vmem:[%s8165] sm:$0xff]
    %v8167 = vld [vmem:[%s8165 + $0x8] sm:$0xff]
    %v8168 = vld [vmem:[%s8165 + $0x10] sm:$0xff]
    %v8169 = vld [vmem:[%s8165 + $0x18] sm:$0xff]
    %s8170 = scalar_lea.vmem %s11, 1
    %v8171 = vld [vmem:[%s8170] sm:$0x1]
    %v8173 = vlaneseq
    %v8174 = vshrl.u32 %v8173, 7
    %v8175 = vsub.s32 0, %v8174
    %v8176 = vrot.slane %v8171, %v8175
    %v8179 = vsel %vm173, %v8163, 0
    %v8182 = vsel %vm173, %v8164, 0
    %8184 = vmatprep.subr.mxu0 0.0
    %8185 = vmatpush1.msra.mxu0 %v8166
    %8186 = vmatprep.subr.mxu0 0.0
    %8187 = vmatpush1.msra.mxu0 %v8167
    %8188 = vmatprep.subr.mxu0 0.0
    %8189 = vmatpush1.msra.mxu0 %v8168
    %8190 = vmatprep.subr.mxu0 0.0
    %8191 = vmatpush1.msra.mxu0 %v8169
    %8192 = vmatprep.subr.mxu0 0.0
    %8193 = vmatpush1.msra.mxu0 0.0
    %8194 = vmatprep.subr.mxu0 0.0
    %8195 = vmatpush1.msra.mxu0 0.0
    %8196 = vmatprep.subr.mxu0 0.0
    %8197 = vmatpush1.msra.mxu0 0.0
    %8198 = vmatprep.subr.mxu0 0.0
    %8199 = vmatpush1.msra.mxu0 0.0
    %8200 = vmatprep.subr.mxu0 0.0
    %8201 = vmatpush1.msra.mxu0 0.0
    %8202 = vmatprep.subr.mxu0 0.0
    %8203 = vmatpush1.msra.mxu0 0.0
    %8204 = vmatprep.subr.mxu0 0.0
    %8205 = vmatpush1.msra.mxu0 0.0
    %8206 = vmatprep.subr.mxu0 0.0
    %8207 = vmatpush1.msra.mxu0 0.0
    %8208 = vmatprep.subr.mxu0 0.0
    %8209 = vmatpush1.msra.mxu0 0.0
    %8210 = vmatprep.subr.mxu0 0.0
    %8211 = vmatpush1.msra.mxu0 0.0
    %8212 = vmatprep.subr.mxu0 0.0
    %8213 = vmatpush1.msra.mxu0 0.0
    %8214 = vmatprep.subr.mxu0 0.0
    %8215 = vmatpush1.msra.mxu0 0.0
    %8216 = vmatprep.subr.mxu0 0.0
    %8217 = vmatpush1.msra.mxu0 0.0
    %8218 = vmatprep.subr.mxu0 0.0
    %8219 = vmatpush1.msra.mxu0 0.0
    %8220 = vmatprep.subr.mxu0 0.0
    %8221 = vmatpush1.msra.mxu0 0.0
    %8222 = vmatprep.subr.mxu0 0.0
    %8223 = vmatpush1.msra.mxu0 0.0
    %8224 = vmatprep.subr.mxu0 0.0
    %8225 = vmatpush1.msra.mxu0 0.0
    %8226 = vmatprep.subr.mxu0 0.0
    %8227 = vmatpush1.msra.mxu0 0.0
    %8228 = vmatprep.subr.mxu0 0.0
    %8229 = vmatpush1.msra.mxu0 0.0
    %8230 = vmatprep.subr.mxu0 0.0
    %8231 = vmatpush1.msra.mxu0 0.0
    %8232 = vmatprep.subr.mxu0 0.0
    %8233 = vmatpush1.msra.mxu0 0.0
    %8234 = vmatprep.subr.mxu0 0.0
    %8235 = vmatpush1.msra.mxu0 0.0
    %8236 = vmatprep.subr.mxu0 0.0
    %8237 = vmatpush1.msra.mxu0 0.0
    %8238 = vmatprep.subr.mxu0 0.0
    %8239 = vmatpush1.msra.mxu0 0.0
    %8240 = vmatprep.subr.mxu0 0.0
    %8241 = vmatpush1.msra.mxu0 0.0
    %8242 = vmatprep.subr.mxu0 0.0
    %8243 = vmatpush1.msra.mxu0 0.0
    %8244 = vmatprep.subr.mxu0 0.0
    %8245 = vmatpush1.msra.mxu0 0.0
    %8246 = vmatprep.subr.mxu0 0.0
    %8247 = vmatpush1.msra.mxu0 0.0
    %8248 = vmatprep.mubr.f32.mxu0 0.0
    %8249 = vmatmul.mubr.f32.gmra.mrb[0].mxu0 %v8179
    %v8250 = vpop.f32.mrb[0].mxu0
    %v8251 = vadd.f32 %v8176, %v8250
    %v8252 = vpop.f32.mrb[0].mxu0
    %8253 = vmatprep.mubr.f32.mxu0 0.0
    %8254 = vmatmul.mubr.f32.gmra.mrb[0].mxu0 %v8182
    %v8255 = vpop.f32.mrb[0].mxu0
    %v8256 = vadd.f32 %v8176, %v8255
    %v8257 = vpop.f32.mrb[0].mxu0
    %8258 = vdwg.mxu0
    %v8259 = vmax.f32 %v8251, 0.0
    %v8260 = vmax.f32 %v8256, 0.0
    %s8261 = scalar_lea.vmem %s12, 64
    %v8262 = vld [vmem:[%s8261] sm:$0xff]
    %v8263 = vld [vmem:[%s8261 + $0x8] sm:$0xff]
    %v8264 = vld [vmem:[%s8261 + $0x10] sm:$0xff]
    %v8265 = vld [vmem:[%s8261 + $0x18] sm:$0xff]
    %v8266 = vld [vmem:[%s8261 + $0x20] sm:$0xff]
    %v8267 = vld [vmem:[%s8261 + $0x28] sm:$0xff]
    %v8268 = vld [vmem:[%s8261 + $0x30] sm:$0xff]
    %v8269 = vld [vmem:[%s8261 + $0x38] sm:$0xff]
    %s8270 = scalar_lea.vmem %s13, 1
    %v8271 = vld [vmem:[%s8270] sm:$0x1]
    %v8273 = vlaneseq
    %v8274 = vshrl.u32 %v8273, 7
    %v8275 = vsub.s32 0, %v8274
    %v8276 = vrot.slane %v8271, %v8275
    %v8279 = vsel %vm4136, %v8259, 0
    %v8282 = vsel %vm4136, %v8260, 0
    %8284 = vmatprep.subr.mxu0 0.0
    %8285 = vmatpush1.msra.mxu0 %v8262
    %8286 = vmatprep.subr.mxu0 0.0
    %8287 = vmatpush1.msra.mxu0 %v8263
    %8288 = vmatprep.subr.mxu0 0.0
    %8289 = vmatpush1.msra.mxu0 %v8264
    %8290 = vmatprep.subr.mxu0 0.0
    %8291 = vmatpush1.msra.mxu0 %v8265
    %8292 = vmatprep.subr.mxu0 0.0
    %8293 = vmatpush1.msra.mxu0 %v8266
    %8294 = vmatprep.subr.mxu0 0.0
    %8295 = vmatpush1.msra.mxu0 %v8267
    %8296 = vmatprep.subr.mxu0 0.0
    %8297 = vmatpush1.msra.mxu0 %v8268
    %8298 = vmatprep.subr.mxu0 0.0
    %8299 = vmatpush1.msra.mxu0 %v8269
    %8300 = vmatprep.subr.mxu0 0.0
    %8301 = vmatpush1.msra.mxu0 0.0
    %8302 = vmatprep.subr.mxu0 0.0
    %8303 = vmatpush1.msra.mxu0 0.0
    %8304 = vmatprep.subr.mxu0 0.0
    %8305 = vmatpush1.msra.mxu0 0.0
    %8306 = vmatprep.subr.mxu0 0.0
    %8307 = vmatpush1.msra.mxu0 0.0
    %8308 = vmatprep.subr.mxu0 0.0
    %8309 = vmatpush1.msra.mxu0 0.0
    %8310 = vmatprep.subr.mxu0 0.0
    %8311 = vmatpush1.msra.mxu0 0.0
    %8312 = vmatprep.subr.mxu0 0.0
    %8313 = vmatpush1.msra.mxu0 0.0
    %8314 = vmatprep.subr.mxu0 0.0
    %8315 = vmatpush1.msra.mxu0 0.0
    %8316 = vmatprep.subr.mxu0 0.0
    %8317 = vmatpush1.msra.mxu0 0.0
    %8318 = vmatprep.subr.mxu0 0.0
    %8319 = vmatpush1.msra.mxu0 0.0
    %8320 = vmatprep.subr.mxu0 0.0
    %8321 = vmatpush1.msra.mxu0 0.0
    %8322 = vmatprep.subr.mxu0 0.0
    %8323 = vmatpush1.msra.mxu0 0.0
    %8324 = vmatprep.subr.mxu0 0.0
    %8325 = vmatpush1.msra.mxu0 0.0
    %8326 = vmatprep.subr.mxu0 0.0
    %8327 = vmatpush1.msra.mxu0 0.0
    %8328 = vmatprep.subr.mxu0 0.0
    %8329 = vmatpush1.msra.mxu0 0.0
    %8330 = vmatprep.subr.mxu0 0.0
    %8331 = vmatpush1.msra.mxu0 0.0
    %8332 = vmatprep.subr.mxu0 0.0
    %8333 = vmatpush1.msra.mxu0 0.0
    %8334 = vmatprep.subr.mxu0 0.0
    %8335 = vmatpush1.msra.mxu0 0.0
    %8336 = vmatprep.subr.mxu0 0.0
    %8337 = vmatpush1.msra.mxu0 0.0
    %8338 = vmatprep.subr.mxu0 0.0
    %8339 = vmatpush1.msra.mxu0 0.0
    %8340 = vmatprep.subr.mxu0 0.0
    %8341 = vmatpush1.msra.mxu0 0.0
    %8342 = vmatprep.subr.mxu0 0.0
    %8343 = vmatpush1.msra.mxu0 0.0
    %8344 = vmatprep.subr.mxu0 0.0
    %8345 = vmatpush1.msra.mxu0 0.0
    %8346 = vmatprep.subr.mxu0 0.0
    %8347 = vmatpush1.msra.mxu0 0.0
    %8348 = vmatprep.mubr.f32.mxu0 0.0
    %8349 = vmatmul.mubr.f32.gmra.mrb[0].mxu0 %v8279
    %v8350 = vpop.f32.mrb[0].mxu0
    %v8351 = vadd.f32 %v8276, %v8350
    %v8352 = vpop.f32.mrb[0].mxu0
    %8353 = vmatprep.mubr.f32.mxu0 0.0
    %8354 = vmatmul.mubr.f32.gmra.mrb[0].mxu0 %v8282
    %v8355 = vpop.f32.mrb[0].mxu0
    %v8356 = vadd.f32 %v8276, %v8355
    %v8357 = vpop.f32.mrb[0].mxu0
    %8358 = vdwg.mxu0
    %v8359 = vadd.f32 %v8163, %v8351
    %v8360 = vadd.f32 %v8164, %v8356
    %s8361 = scalar_lea.vmem %s16, 1
    %v8362 = vld [vmem:[%s8361] sm:$0x1]
    %s8363 = scalar_lea.vmem %s17, 1
    %v8364 = vld [vmem:[%s8363] sm:$0x1]
    %v8365 = vsel %vm173, %v8359, 0.0
    %8366 = vadd.xlane.f32.xlu0 %v8365
    %v8367 = vpop.xlane.xlu0 %8366
    %v8368 = vsel %vm173, %v8360, 0.0
    %8369 = vadd.xlane.f32.xlu0 %v8368
    %v8370 = vpop.xlane.xlu0 %8369
    %v8371 = vmul.f32 %v8367, %v3990
    %v8372 = vmul.f32 %v8370, %v3990
    %v8373 = vsub.f32 %v8359, %v8371
    %v8374 = vsub.f32 %v8360, %v8372
    %v8375 = vmul.f32 %v8373, %v8373
    %v8376 = vmul.f32 %v8374, %v8374
    %v8377 = vsel %vm173, %v8375, 0.0
    %8378 = vadd.xlane.f32.xlu0 %v8377
    %v8379 = vpop.xlane.xlu0 %8378
    %v8380 = vsel %vm173, %v8376, 0.0
    %8381 = vadd.xlane.f32.xlu0 %v8380
    %v8382 = vpop.xlane.xlu0 %8381
    %v8383 = vmul.f32 %v8379, %v3990
    %v8384 = vmul.f32 %v8382, %v3990
    %v8385 = vadd.f32 %v8383, 1e-05
    %v8386 = vadd.f32 %v8384, 1e-05
    %v8387 = vrsqrt.pop %v8385
    %v8388 = vrsqrt.pop %v8386
    %v8389 = vmul.f32 %v8373, %v8387
    %v8390 = vmul.f32 %v8374, %v8388
    %v8392 = vlaneseq
    %v8393 = vshrl.u32 %v8392, 7
    %v8394 = vsub.s32 0, %v8393
    %v8395 = vrot.slane %v8362, %v8394
    %v8397 = vmul.f32 %v8389, %v8395
    %v8398 = vmul.f32 %v8390, %v8395
    %v8400 = vlaneseq
    %v8401 = vshrl.u32 %v8400, 7
    %v8402 = vsub.s32 0, %v8401
    %v8403 = vrot.slane %v8364, %v8402
    %v8405 = vadd.f32 %v8397, %v8403
    %v8406 = vadd.f32 %v8398, %v8403
    %v8407 = vld [vmem:[%s18] sm:$0x1]
    %v8408 = vld [vmem:[%s19] sm:$0x1]
    %v8409 = vsel %vm173, %v8405, 0.0
    %8410 = vadd.xlane.f32.xlu0 %v8409
    %v8411 = vpop.xlane.xlu0 %8410
    %v8412 = vsel %vm173, %v8406, 0.0
    %8413 = vadd.xlane.f32.xlu0 %v8412
    %v8414 = vpop.xlane.xlu0 %8413
    %v8415 = vmul.f32 %v8411, %v3990
    %v8416 = vmul.f32 %v8414, %v3990
    %v8417 = vsub.f32 %v8405, %v8415
    %v8418 = vsub.f32 %v8406, %v8416
    %v8419 = vmul.f32 %v8417, %v8417
    %v8420 = vmul.f32 %v8418, %v8418
    %v8421 = vsel %vm173, %v8419, 0.0
    %8422 = vadd.xlane.f32.xlu0 %v8421
    %v8423 = vpop.xlane.xlu0 %8422
    %v8424 = vsel %vm173, %v8420, 0.0
    %8425 = vadd.xlane.f32.xlu0 %v8424
    %v8426 = vpop.xlane.xlu0 %8425
    %v8427 = vmul.f32 %v8423, %v3990
    %v8428 = vmul.f32 %v8426, %v3990
    %v8429 = vadd.f32 %v8427, 1e-05
    %v8430 = vadd.f32 %v8428, 1e-05
    %v8431 = vrsqrt.pop %v8429
    %v8432 = vrsqrt.pop %v8430
    %v8433 = vmul.f32 %v8417, %v8431
    %v8434 = vmul.f32 %v8418, %v8432
    %v8436 = vlaneseq
    %v8437 = vshrl.u32 %v8436, 7
    %v8438 = vsub.s32 0, %v8437
    %v8439 = vrot.slane %v8407, %v8438
    %v8441 = vmul.f32 %v8433, %v8439
    %v8442 = vmul.f32 %v8434, %v8439
    %v8444 = vlaneseq
    %v8445 = vshrl.u32 %v8444, 7
    %v8446 = vsub.s32 0, %v8445
    %v8447 = vrot.slane %v8408, %v8446
    %v8449 = vadd.f32 %v8441, %v8447
    %v8450 = vadd.f32 %v8442, %v8447
    %8451 = vst.msk [vmem:[#allocation2] sm:$0xff] %vm173, %v8449
    %8452 = vst.msk [vmem:[#allocation2 + $0x8] sm:$0xff] %vm173, %v8450
    %v8453 = vld [vmem:[%s20] sm:$0xff]
    %v8454 = vld [vmem:[%s20 + $0x8] sm:$0xff]
    %v8455 = vld [vmem:[%s20 + $0x10] sm:$0xff]
    %v8456 = vld [vmem:[%s20 + $0x18] sm:$0xff]
    %v8457 = vld [vmem:[%s21] sm:$0x1]
    %v8459 = vlaneseq
    %v8460 = vshrl.u32 %v8459, 7
    %v8461 = vsub.s32 0, %v8460
    %v8462 = vrot.slane %v8457, %v8461
    %v8466 = vrot.slane %v8450, 7
    %vm8467 = vcmask 1041409
    %v8468 = vsel %vm8467, %v8466, %v8449
    %v8469 = vsel %vm173, %v8468, 0
    %8471 = vmatprep.subr.mxu0 0.0
    %8472 = vmatpush1.msra.mxu0 %v8453
    %8473 = vmatprep.subr.mxu0 0.0
    %8474 = vmatpush1.msra.mxu0 %v8454
    %8475 = vmatprep.subr.mxu0 0.0
    %8476 = vmatpush1.msra.mxu0 %v8455
    %8477 = vmatprep.subr.mxu0 0.0
    %8478 = vmatpush1.msra.mxu0 %v8456
    %8479 = vmatprep.subr.mxu0 0.0
    %8480 = vmatpush1.msra.mxu0 0.0
    %8481 = vmatprep.subr.mxu0 0.0
    %8482 = vmatpush1.msra.mxu0 0.0
    %8483 = vmatprep.subr.mxu0 0.0
    %8484 = vmatpush1.msra.mxu0 0.0
    %8485 = vmatprep.subr.mxu0 0.0
    %8486 = vmatpush1.msra.mxu0 0.0
    %8487 = vmatprep.subr.mxu0 0.0
    %8488 = vmatpush1.msra.mxu0 0.0
    %8489 = vmatprep.subr.mxu0 0.0
    %8490 = vmatpush1.msra.mxu0 0.0
    %8491 = vmatprep.subr.mxu0 0.0
    %8492 = vmatpush1.msra.mxu0 0.0
    %8493 = vmatprep.subr.mxu0 0.0
    %8494 = vmatpush1.msra.mxu0 0.0
    %8495 = vmatprep.subr.mxu0 0.0
    %8496 = vmatpush1.msra.mxu0 0.0
    %8497 = vmatprep.subr.mxu0 0.0
    %8498 = vmatpush1.msra.mxu0 0.0
    %8499 = vmatprep.subr.mxu0 0.0
    %8500 = vmatpush1.msra.mxu0 0.0
    %8501 = vmatprep.subr.mxu0 0.0
    %8502 = vmatpush1.msra.mxu0 0.0
    %8503 = vmatprep.subr.mxu0 0.0
    %8504 = vmatpush1.msra.mxu0 0.0
    %8505 = vmatprep.subr.mxu0 0.0
    %8506 = vmatpush1.msra.mxu0 0.0
    %8507 = vmatprep.subr.mxu0 0.0
    %8508 = vmatpush1.msra.mxu0 0.0
    %8509 = vmatprep.subr.mxu0 0.0
    %8510 = vmatpush1.msra.mxu0 0.0
    %8511 = vmatprep.subr.mxu0 0.0
    %8512 = vmatpush1.msra.mxu0 0.0
    %8513 = vmatprep.subr.mxu0 0.0
    %8514 = vmatpush1.msra.mxu0 0.0
    %8515 = vmatprep.subr.mxu0 0.0
    %8516 = vmatpush1.msra.mxu0 0.0
    %8517 = vmatprep.subr.mxu0 0.0
    %8518 = vmatpush1.msra.mxu0 0.0
    %8519 = vmatprep.subr.mxu0 0.0
    %8520 = vmatpush1.msra.mxu0 0.0
    %8521 = vmatprep.subr.mxu0 0.0
    %8522 = vmatpush1.msra.mxu0 0.0
    %8523 = vmatprep.subr.mxu0 0.0
    %8524 = vmatpush1.msra.mxu0 0.0
    %8525 = vmatprep.subr.mxu0 0.0
    %8526 = vmatpush1.msra.mxu0 0.0
    %8527 = vmatprep.subr.mxu0 0.0
    %8528 = vmatpush1.msra.mxu0 0.0
    %8529 = vmatprep.subr.mxu0 0.0
    %8530 = vmatpush1.msra.mxu0 0.0
    %8531 = vmatprep.subr.mxu0 0.0
    %8532 = vmatpush1.msra.mxu0 0.0
    %8533 = vmatprep.subr.mxu0 0.0
    %8534 = vmatpush1.msra.mxu0 0.0
    %8535 = vmatprep.mubr.f32.mxu0 0.0
    %8536 = vmatmul.mubr.f32.gmra.mrb[0].mxu0 %v8469
    %v8537 = vpop.f32.mrb[0].mxu0
    %v8538 = vadd.f32 %v8462, %v8537
    %v8539 = vpop.f32.mrb[0].mxu0
    %8540 = vdwg.mxu0
    %8541 = vst [vmem:[#allocation4] sm:$0x3] %v8538
    // Predicated region
    $region90: #{modality_encoder_forward.1} parent=1 // pred_check
      _
    $region91: #{modality_encoder_forward.1} parent=1 // pred_check_branch
      %8543 = sbr.rel (0) target = $region93
    $region92: #{modality_encoder_forward.1} parent=1 // pred_region
      %s8545 = ssub.s32 256, 256
      %8546 = vsyncadd [#allocation3], %s8545
      %s8547 = sshll.u32 [#allocation2], 4
      %s8548 = int_to_ptr.vmem [resolvable:$true] %s8547
      %8553 = dma.vmem_to_hbm [thread:$0]  %s8548, 256, %s22, [#allocation3], 128, 128, 8
    $region93: #{modality_encoder_forward.1} parent=1 // pred_fallthru
      _
    // Predicated region
    $region94: #{modality_encoder_forward.1} parent=1 // pred_check
      _
    $region95: #{modality_encoder_forward.1} parent=1 // pred_check_branch
      %8555 = sbr.rel (0) target = $region97
    $region96: #{modality_encoder_forward.1} parent=1 // pred_region
      %s8557 = ssub.s32 32, 32
      %8558 = vsyncadd [#allocation5], %s8557
      %s8560 = sshll.u32 [#allocation4], 4
      %s8561 = int_to_ptr.vmem [resolvable:$true] %s8560
      %8563 = dma.vmem_to_hbm [thread:$0]  %s8561, 32, %s23, [#allocation5]
    $region97: #{modality_encoder_forward.1} parent=1 // pred_fallthru
      _
    // Predicated region
    $region98: #{modality_encoder_forward.1} parent=1 // pred_check
      _
    $region99: #{modality_encoder_forward.1} parent=1 // pred_check_branch
      %8565 = sbr.rel (0) target = $region101
    $region100: #{modality_encoder_forward.1} parent=1 // pred_region
      %8566 = dma.done [#allocation3], 256
    $region101: #{modality_encoder_forward.1} parent=1 // pred_fallthru
      _
    // Predicated region
    $region102: #{modality_encoder_forward.1} parent=1 // pred_check
      _
    $region103: #{modality_encoder_forward.1} parent=1 // pred_check_branch
      %8568 = sbr.rel (0) target = $region105
    $region104: #{modality_encoder_forward.1} parent=1 // pred_region
      %8569 = dma.done [#allocation5], 32
    $region105: #{modality_encoder_forward.1} parent=1 // pred_fallthru
      _
    %8570 = vsyncpa [#allocation3], 1
    %8571 = vsyncpa [#allocation5], 1

</llo_original>
